<compile_context>
chip_gen: v7x
topology: tpu7x:2x2x1
jax: 0.10.0
libtpu: 0.0.40
codegen_flags: <defaults>
</compile_context>

<pallas_src>
import functools

import jax
import jax.numpy as jnp
from jax.experimental import pallas as pl
from jax.experimental.pallas import tpu as pltpu


def _zero_border(ref):
    """Zero the 1-pixel spatial border of a (B, H+2, W+2, C) pad scratch.

    Only the 4 thin strips are written (few KB); the interior is fully
    overwritten every grid step by the [:, 1:H+1, 1:W+1, :] stores below.
    NEVER widen that interior slice, or stale data from a previous grid step
    leaks into the 'same' padding.
    """
    b, hp, wp, c = ref.shape
    zrow = jnp.zeros((b, 1, wp, c), ref.dtype)
    zcol = jnp.zeros((b, hp, 1, c), ref.dtype)
    ref[:, 0:1, :, :] = zrow
    ref[:, hp - 1:hp, :, :] = zrow
    ref[:, :, 0:1, :] = zcol
    ref[:, :, wp - 1:wp, :] = zcol


def _conv3x3_im2col(pad_ref, patches_ref, w_ref, b_ref, *, B, H, W, Cin, C):
    """3x3 'same' conv + bias + ReLU as ONE im2col matmul on the MXU.

    pad_ref:     (B, H+2, W+2, Cin)  padded activation (bf16 for layers 2/3)
    patches_ref: (B*H*W, 9*C)        bf16 im2col scratch (first 9*Cin cols used)
    w_ref:       (9*Cin, C)          bf16 weights, rows ordered (dy, dx, cin)
    b_ref:       (1, C)              f32 bias
    returns      (B*H*W, C)          f32 post-ReLU activation (value)
    """
    for dy in range(3):
        for dx in range(3):
            t = dy * 3 + dx
            tap = pad_ref[:, dy:dy + H, dx:dx + W, :]             # (B, H, W, Cin)
            # Tap is stored already in bf16 (no-op cast when pad_ref is bf16).
            patches_ref[:, t * Cin:(t + 1) * Cin] = (
                tap.reshape(B * H * W, Cin).astype(patches_ref.dtype))
    acc = jnp.dot(patches_ref[:, :9 * Cin], w_ref[...],           # MXU, K = 9*Cin
                  preferred_element_type=jnp.float32)
    acc = acc + b_ref[...]                                        # f32 bias (VPU)
    return jnp.maximum(acc, 0.0)                                  # f32 ReLU


def _encoder_fused_kernel(x_ref, w1_ref, b1_ref, w2_ref, b2_ref, w3_ref, b3_ref,
                          o_ref, xpad_ref, apad_ref, patches_ref,
                          *, B, H, W, Cin, C):
    """All three conv+ReLU layers for B images; activations never leave VMEM."""
    # Refresh the zero borders (megacore-safe replacement for zero-once).
    _zero_border(xpad_ref)
    _zero_border(apad_ref)

    # ---- layer 1: Cin -> C --------------------------------------------------
    xpad_ref[:, 1:H + 1, 1:W + 1, :] = x_ref[...].astype(xpad_ref.dtype)
    if Cin == 1:
        # VPU special case (Cin=1): 9 broadcast FMAs in f32, no im2col / MXU.
        acc = jnp.zeros((B, H, W, C), jnp.float32)
        for dy in range(3):
            for dx in range(3):
                t = dy * 3 + dx
                tap = xpad_ref[:, dy:dy + H, dx:dx + W, :]        # (B, H, W, 1)
                acc = acc + tap * w1_ref[t:t + 1, :].reshape(1, 1, 1, C)
        a = jnp.maximum(acc + b1_ref[...].reshape(1, 1, 1, C), 0.0)
    else:
        a = _conv3x3_im2col(xpad_ref, patches_ref, w1_ref, b1_ref,
                            B=B, H=H, W=W, Cin=Cin, C=C).reshape(B, H, W, C)

    # ---- layer 2: C -> C ----------------------------------------------------
    apad_ref[:, 1:H + 1, 1:W + 1, :] = a.astype(apad_ref.dtype)   # bf16 interior
    a = _conv3x3_im2col(apad_ref, patches_ref, w2_ref, b2_ref,
                        B=B, H=H, W=W, Cin=C, C=C)

    # ---- layer 3: C -> C ----------------------------------------------------
    apad_ref[:, 1:H + 1, 1:W + 1, :] = a.reshape(B, H, W, C).astype(apad_ref.dtype)
    a = _conv3x3_im2col(apad_ref, patches_ref, w3_ref, b3_ref,
                        B=B, H=H, W=W, Cin=C, C=C)

    o_ref[...] = a.reshape(B, H, W, C).astype(o_ref.dtype)


def _pick_batch_block(n, cap=8):
    """Largest divisor of n that is <= cap while keeping >= 2 grid steps
    whenever n >= 2 (so v7x's two TensorCores both get work)."""
    best = 1
    for cand in range(1, min(cap, n) + 1):
        if n % cand == 0 and (n // cand >= 2 or n == 1):
            best = cand
    return best


def torch_conv_weight_to_hwio(w_oihw):
    """Convert a PyTorch Conv2d weight (O, I, kH, kW) to the HWIO layout
    (kH, kW, I, O) this kernel expects."""
    return jnp.transpose(w_oihw, (2, 3, 1, 0))


def encoder_forward(x_nchw, params):
    """Forward pass of ENCODER. Input/output are NCHW like the PyTorch module."""
    x = jnp.transpose(x_nchw, (0, 2, 3, 1))               # NCHW -> NHWC (lane = C)
    N, H, W, Cin = x.shape
    (w1, b1), (w2, b2), (w3, b3) = params
    C = b1.shape[0]

    B = _pick_batch_block(N)
    assert N % B == 0

    # VMEM-scaling guard: im2col scratch is B*H*W*9*C bf16 elements.
    # TODO(synk): tile the im2col+matmul over H*W row blocks (spatial grid axis)
    # for large images; v7x only has 64 MiB physical VMEM (32 MiB scoped).
    assert B * H * W * 9 * C * 2 < 8 * 1024 * 1024, (
        "im2col scratch too large for one block; tile over H*W")

    # HWIO (3,3,Cin,C) -> (9*Cin, C), rows ordered (dy, dx, cin).
    if Cin == 1:
        w1m = w1.reshape(9, C).astype(jnp.float32)         # f32 for the VPU path
    else:
        w1m = w1.reshape(9 * Cin, C).astype(jnp.bfloat16)  # bf16 for the MXU
    w2m = w2.reshape(9 * C, C).astype(jnp.bfloat16)
    w3m = w3.reshape(9 * C, C).astype(jnp.bfloat16)
    b1m, b2m, b3m = (b.reshape(1, C).astype(jnp.float32) for b in (b1, b2, b3))

    kernel = functools.partial(_encoder_fused_kernel, B=B, H=H, W=W, Cin=Cin, C=C)

    def wspec(shape):                                       # weights: same block every step
        return pl.BlockSpec(shape, lambda n: (0, 0))

    out = pl.pallas_call(
        kernel,
        out_shape=jax.ShapeDtypeStruct((N, H, W, C), jnp.float32),
        grid_spec=pltpu.PrefetchScalarGridSpec(
            num_scalar_prefetch=0,
            grid=(N // B,),                                 # B images per grid step
            in_specs=[
                pl.BlockSpec((B, H, W, Cin), lambda n: (n, 0, 0, 0)),
                wspec(tuple(w1m.shape)), wspec((1, C)),     # layer 1
                wspec((9 * C, C)), wspec((1, C)),           # layer 2
                wspec((9 * C, C)), wspec((1, C)),           # layer 3
            ],
            out_specs=pl.BlockSpec((B, H, W, C), lambda n: (n, 0, 0, 0)),
            scratch_shapes=[
                pltpu.VMEM((B, H + 2, W + 2, Cin), jnp.float32),   # padded L1 input (f32)
                pltpu.VMEM((B, H + 2, W + 2, C), jnp.bfloat16),    # padded activation (bf16)
                pltpu.VMEM((B * H * W, 9 * C), jnp.bfloat16),      # bf16 im2col scratch
            ],
        ),
        compiler_params=pltpu.CompilerParams(
            # Parallel batch axis: v7x's 2 TensorCores split the grid steps
            # (grid length is kept >= 2 by _pick_batch_block); a no-op on
            # single-core v5e/v6e.
            dimension_semantics=("parallel",)),
    )(x, w1m, b1m, w2m, b2m, w3m, b3m)

    return jnp.transpose(out, (0, 3, 1, 2))                 # NHWC -> NCHW


def init_encoder_params(key, rgb=False):
    """Deterministic params matching ENCODER.__init__ shapes (rgb=False: 1->32->32->32)."""
    cin0 = 3 if rgb else 1
    chans = [(cin0, 32), (32, 32), (32, 32)]
    params = []
    for i, (ci, co) in enumerate(chans):
        kw, kb = jax.random.split(jax.random.fold_in(key, i))
        fan_in = ci * 3 * 3
        bound = 1.0 / jnp.sqrt(fan_in)
        # Stored as (3, 3, Cin, Cout) (HWIO) for the NHWC kernel.
        w = jax.random.uniform(kw, (3, 3, ci, co), jnp.float32, -bound, bound)
        b = jax.random.uniform(kb, (co,), jnp.float32, -bound, bound)
        params.append((w, b))
    return params


def _reference_forward(x_nchw, params):
    """Pure-JAX reference (lax.conv) mirroring the kernel's precision recipe:
    layer 1 (Cin=1) in f32, layers 2/3 with bf16 operands and f32 accumulation;
    bias + ReLU in f32."""
    x = x_nchw
    for i, (w, b) in enumerate(params):
        cin = w.shape[2]
        w_oihw = jnp.transpose(w, (3, 2, 0, 1))
        if i == 0 and cin == 1:
            lhs, rhs, prec = x, w_oihw, jax.lax.Precision.HIGHEST
        else:
            lhs, rhs, prec = (x.astype(jnp.bfloat16), w_oihw.astype(jnp.bfloat16),
                              jax.lax.Precision.DEFAULT)
        y = jax.lax.conv_general_dilated(
            lhs, rhs, window_strides=(1, 1), padding="SAME",
            dimension_numbers=("NCHW", "OIHW", "NCHW"),
            precision=prec, preferred_element_type=jnp.float32)
        x = jnp.maximum(y + b[None, :, None, None], 0.0)
    return x


if __name__ == "__main__":
    key = jax.random.PRNGKey(0)
    k_param, k_x = jax.random.split(key)

    params = init_encoder_params(k_param, rgb=False)        # 1 -> 32 -> 32 -> 32

    # Small NCHW input consistent with the module (rgb=False -> 1 input channel).
    x = jax.random.normal(k_x, (2, 1, 16, 16), jnp.float32)

    out = jax.block_until_ready(encoder_forward(x, params))
    assert out.shape == (2, 32, 16, 16), out.shape

    ref = jax.block_until_ready(_reference_forward(x, params))
    max_err = float(jnp.max(jnp.abs(out - ref)))
    assert jnp.allclose(out, ref, atol=7e-3, rtol=7e-3), f"max abs err {max_err}"

    print("KERNEL_OK")
</pallas_src>

<mosaic_0001>
module attributes {stable_mosaic.version = 11 : i64} {
  func.func @_encoder_fused_kernel(%arg0: i32, %arg1: memref<1x16x16x1xf32, #tpu.memory_space<vmem>>, %arg2: memref<9x32xf32, #tpu.memory_space<vmem>>, %arg3: memref<1x32xf32, #tpu.memory_space<vmem>>, %arg4: memref<288x32xbf16, #tpu.memory_space<vmem>>, %arg5: memref<1x32xf32, #tpu.memory_space<vmem>>, %arg6: memref<288x32xbf16, #tpu.memory_space<vmem>>, %arg7: memref<1x32xf32, #tpu.memory_space<vmem>>, %arg8: memref<1x16x16x32xf32, #tpu.memory_space<vmem>>, %arg9: memref<1x18x18x1xf32, #tpu.memory_space<vmem>>, %arg10: memref<1x18x18x32xbf16, #tpu.memory_space<vmem>>, %arg11: memref<256x288xbf16, #tpu.memory_space<vmem>>) attributes {dimension_semantics = [#tpu.dimension_semantics<parallel>], iteration_bounds = array<i64: 2>, scalar_prefetch = 0 : i64, scratch_operands = 3 : i64, tpu.core_type = #tpu.core_type<tc>, window_params = [{transform_indices = @transform_0, window_bounds = array<i64: 1, 16, 16, 1>}, {pipeline_mode = #tpu.pipeline_mode<synchronous>, transform_indices = @transform_1, window_bounds = array<i64: 9, 32>}, {pipeline_mode = #tpu.pipeline_mode<synchronous>, transform_indices = @transform_2, window_bounds = array<i64: 1, 32>}, {pipeline_mode = #tpu.pipeline_mode<synchronous>, transform_indices = @transform_3, window_bounds = array<i64: 288, 32>}, {pipeline_mode = #tpu.pipeline_mode<synchronous>, transform_indices = @transform_4, window_bounds = array<i64: 1, 32>}, {pipeline_mode = #tpu.pipeline_mode<synchronous>, transform_indices = @transform_5, window_bounds = array<i64: 288, 32>}, {pipeline_mode = #tpu.pipeline_mode<synchronous>, transform_indices = @transform_6, window_bounds = array<i64: 1, 32>}, {transform_indices = @transform_7, window_bounds = array<i64: 1, 16, 16, 32>}]} {
    %cst = arith.constant 0.000000e+00 : f32
    %0 = vector.broadcast %cst : f32 to vector<1x1x18x1xf32>
    %cst_0 = arith.constant 0.000000e+00 : f32
    %1 = vector.broadcast %cst_0 : f32 to vector<1x18x1x1xf32>
    %c0 = arith.constant 0 : index
    %c0_1 = arith.constant 0 : index
    %c0_2 = arith.constant 0 : index
    %c0_3 = arith.constant 0 : index
    %2 = vector.load %arg9[%c0, %c0_1, %c0_2, %c0_3] : memref<1x18x18x1xf32, #tpu.memory_space<vmem>>, vector<1x1x18x1xf32>
    tpu.vector_store %arg9[%c0, %c0_1, %c0_2, %c0_3], %0 {strides = array<i32>} : memref<1x18x18x1xf32, #tpu.memory_space<vmem>>, vector<1x1x18x1xf32>,
    %c0_4 = arith.constant 0 : index
    %c17 = arith.constant 17 : index
    %c0_5 = arith.constant 0 : index
    %c0_6 = arith.constant 0 : index
    %3 = vector.load %arg9[%c0_4, %c17, %c0_5, %c0_6] : memref<1x18x18x1xf32, #tpu.memory_space<vmem>>, vector<1x1x18x1xf32>
    tpu.vector_store %arg9[%c0_4, %c17, %c0_5, %c0_6], %0 {strides = array<i32>} : memref<1x18x18x1xf32, #tpu.memory_space<vmem>>, vector<1x1x18x1xf32>,
    %c0_7 = arith.constant 0 : index
    %c0_8 = arith.constant 0 : index
    %c0_9 = arith.constant 0 : index
    %c0_10 = arith.constant 0 : index
    %4 = vector.load %arg9[%c0_7, %c0_8, %c0_9, %c0_10] : memref<1x18x18x1xf32, #tpu.memory_space<vmem>>, vector<1x18x1x1xf32>
    tpu.vector_store %arg9[%c0_7, %c0_8, %c0_9, %c0_10], %1 {strides = array<i32>} : memref<1x18x18x1xf32, #tpu.memory_space<vmem>>, vector<1x18x1x1xf32>,
    %c0_11 = arith.constant 0 : index
    %c0_12 = arith.constant 0 : index
    %c17_13 = arith.constant 17 : index
    %c0_14 = arith.constant 0 : index
    %5 = vector.load %arg9[%c0_11, %c0_12, %c17_13, %c0_14] : memref<1x18x18x1xf32, #tpu.memory_space<vmem>>, vector<1x18x1x1xf32>
    tpu.vector_store %arg9[%c0_11, %c0_12, %c17_13, %c0_14], %1 {strides = array<i32>} : memref<1x18x18x1xf32, #tpu.memory_space<vmem>>, vector<1x18x1x1xf32>,
    %cst_15 = arith.constant 0.000000e+00 : bf16
    %6 = vector.broadcast %cst_15 : bf16 to vector<1x1x18x32xbf16>
    %cst_16 = arith.constant 0.000000e+00 : bf16
    %7 = vector.broadcast %cst_16 : bf16 to vector<1x18x1x32xbf16>
    %c0_17 = arith.constant 0 : index
    %c0_18 = arith.constant 0 : index
    %c0_19 = arith.constant 0 : index
    %c0_20 = arith.constant 0 : index
    %8 = vector.load %arg10[%c0_17, %c0_18, %c0_19, %c0_20] : memref<1x18x18x32xbf16, #tpu.memory_space<vmem>>, vector<1x1x18x32xbf16>
    tpu.vector_store %arg10[%c0_17, %c0_18, %c0_19, %c0_20], %6 {strides = array<i32>} : memref<1x18x18x32xbf16, #tpu.memory_space<vmem>>, vector<1x1x18x32xbf16>,
    %c0_21 = arith.constant 0 : index
    %c17_22 = arith.constant 17 : index
    %c0_23 = arith.constant 0 : index
    %c0_24 = arith.constant 0 : index
    %9 = vector.load %arg10[%c0_21, %c17_22, %c0_23, %c0_24] : memref<1x18x18x32xbf16, #tpu.memory_space<vmem>>, vector<1x1x18x32xbf16>
    tpu.vector_store %arg10[%c0_21, %c17_22, %c0_23, %c0_24], %6 {strides = array<i32>} : memref<1x18x18x32xbf16, #tpu.memory_space<vmem>>, vector<1x1x18x32xbf16>,
    %c0_25 = arith.constant 0 : index
    %c0_26 = arith.constant 0 : index
    %c0_27 = arith.constant 0 : index
    %c0_28 = arith.constant 0 : index
    %10 = vector.load %arg10[%c0_25, %c0_26, %c0_27, %c0_28] : memref<1x18x18x32xbf16, #tpu.memory_space<vmem>>, vector<1x18x1x32xbf16>
    tpu.vector_store %arg10[%c0_25, %c0_26, %c0_27, %c0_28], %7 {strides = array<i32>} : memref<1x18x18x32xbf16, #tpu.memory_space<vmem>>, vector<1x18x1x32xbf16>,
    %c0_29 = arith.constant 0 : index
    %c0_30 = arith.constant 0 : index
    %c17_31 = arith.constant 17 : index
    %c0_32 = arith.constant 0 : index
    %11 = vector.load %arg10[%c0_29, %c0_30, %c17_31, %c0_32] : memref<1x18x18x32xbf16, #tpu.memory_space<vmem>>, vector<1x18x1x32xbf16>
    tpu.vector_store %arg10[%c0_29, %c0_30, %c17_31, %c0_32], %7 {strides = array<i32>} : memref<1x18x18x32xbf16, #tpu.memory_space<vmem>>, vector<1x18x1x32xbf16>,
    %c0_33 = arith.constant 0 : index
    %c0_34 = arith.constant 0 : index
    %c0_35 = arith.constant 0 : index
    %c0_36 = arith.constant 0 : index
    %12 = vector.load %arg1[%c0_33, %c0_34, %c0_35, %c0_36] : memref<1x16x16x1xf32, #tpu.memory_space<vmem>>, vector<1x16x16x1xf32>
    %c0_37 = arith.constant 0 : index
    %c1 = arith.constant 1 : index
    %c1_38 = arith.constant 1 : index
    %c0_39 = arith.constant 0 : index
    %13 = vector.load %arg9[%c0_37, %c1, %c1_38, %c0_39] : memref<1x18x18x1xf32, #tpu.memory_space<vmem>>, vector<1x16x16x1xf32>
    tpu.vector_store %arg9[%c0_37, %c1, %c1_38, %c0_39], %12 {strides = array<i32>} : memref<1x18x18x1xf32, #tpu.memory_space<vmem>>, vector<1x16x16x1xf32>,
    %cst_40 = arith.constant 0.000000e+00 : f32
    %14 = vector.broadcast %cst_40 : f32 to vector<1x16x16x32xf32>
    %c0_41 = arith.constant 0 : index
    %c0_42 = arith.constant 0 : index
    %c0_43 = arith.constant 0 : index
    %c0_44 = arith.constant 0 : index
    %15 = vector.load %arg9[%c0_41, %c0_42, %c0_43, %c0_44] : memref<1x18x18x1xf32, #tpu.memory_space<vmem>>, vector<1x16x16x1xf32>
    %c0_45 = arith.constant 0 : index
    %c0_46 = arith.constant 0 : index
    %16 = vector.load %arg2[%c0_45, %c0_46] : memref<9x32xf32, #tpu.memory_space<vmem>>, vector<1x32xf32>
    %17 = vector.shape_cast %16 : vector<1x32xf32> to vector<1x1x1x32xf32>
    %18 = vector.broadcast %15 : vector<1x16x16x1xf32> to vector<1x16x16x32xf32>
    %19 = vector.broadcast %17 : vector<1x1x1x32xf32> to vector<1x16x16x32xf32>
    %20 = arith.mulf %18, %19 : vector<1x16x16x32xf32>
    %21 = arith.addf %14, %20 : vector<1x16x16x32xf32>
    %c0_47 = arith.constant 0 : index
    %c0_48 = arith.constant 0 : index
    %c1_49 = arith.constant 1 : index
    %c0_50 = arith.constant 0 : index
    %22 = vector.load %arg9[%c0_47, %c0_48, %c1_49, %c0_50] : memref<1x18x18x1xf32, #tpu.memory_space<vmem>>, vector<1x16x16x1xf32>
    %c1_51 = arith.constant 1 : index
    %c0_52 = arith.constant 0 : index
    %23 = vector.load %arg2[%c1_51, %c0_52] : memref<9x32xf32, #tpu.memory_space<vmem>>, vector<1x32xf32>
    %24 = vector.shape_cast %23 : vector<1x32xf32> to vector<1x1x1x32xf32>
    %25 = vector.broadcast %22 : vector<1x16x16x1xf32> to vector<1x16x16x32xf32>
    %26 = vector.broadcast %24 : vector<1x1x1x32xf32> to vector<1x16x16x32xf32>
    %27 = arith.mulf %25, %26 : vector<1x16x16x32xf32>
    %28 = arith.addf %21, %27 : vector<1x16x16x32xf32>
    %c0_53 = arith.constant 0 : index
    %c0_54 = arith.constant 0 : index
    %c2 = arith.constant 2 : index
    %c0_55 = arith.constant 0 : index
    %29 = vector.load %arg9[%c0_53, %c0_54, %c2, %c0_55] : memref<1x18x18x1xf32, #tpu.memory_space<vmem>>, vector<1x16x16x1xf32>
    %c2_56 = arith.constant 2 : index
    %c0_57 = arith.constant 0 : index
    %30 = vector.load %arg2[%c2_56, %c0_57] : memref<9x32xf32, #tpu.memory_space<vmem>>, vector<1x32xf32>
    %31 = vector.shape_cast %30 : vector<1x32xf32> to vector<1x1x1x32xf32>
    %32 = vector.broadcast %29 : vector<1x16x16x1xf32> to vector<1x16x16x32xf32>
    %33 = vector.broadcast %31 : vector<1x1x1x32xf32> to vector<1x16x16x32xf32>
    %34 = arith.mulf %32, %33 : vector<1x16x16x32xf32>
    %35 = arith.addf %28, %34 : vector<1x16x16x32xf32>
    %c0_58 = arith.constant 0 : index
    %c1_59 = arith.constant 1 : index
    %c0_60 = arith.constant 0 : index
    %c0_61 = arith.constant 0 : index
    %36 = vector.load %arg9[%c0_58, %c1_59, %c0_60, %c0_61] : memref<1x18x18x1xf32, #tpu.memory_space<vmem>>, vector<1x16x16x1xf32>
    %c3 = arith.constant 3 : index
    %c0_62 = arith.constant 0 : index
    %37 = vector.load %arg2[%c3, %c0_62] : memref<9x32xf32, #tpu.memory_space<vmem>>, vector<1x32xf32>
    %38 = vector.shape_cast %37 : vector<1x32xf32> to vector<1x1x1x32xf32>
    %39 = vector.broadcast %36 : vector<1x16x16x1xf32> to vector<1x16x16x32xf32>
    %40 = vector.broadcast %38 : vector<1x1x1x32xf32> to vector<1x16x16x32xf32>
    %41 = arith.mulf %39, %40 : vector<1x16x16x32xf32>
    %42 = arith.addf %35, %41 : vector<1x16x16x32xf32>
    %c0_63 = arith.constant 0 : index
    %c1_64 = arith.constant 1 : index
    %c1_65 = arith.constant 1 : index
    %c0_66 = arith.constant 0 : index
    %43 = vector.load %arg9[%c0_63, %c1_64, %c1_65, %c0_66] : memref<1x18x18x1xf32, #tpu.memory_space<vmem>>, vector<1x16x16x1xf32>
    %c4 = arith.constant 4 : index
    %c0_67 = arith.constant 0 : index
    %44 = vector.load %arg2[%c4, %c0_67] : memref<9x32xf32, #tpu.memory_space<vmem>>, vector<1x32xf32>
    %45 = vector.shape_cast %44 : vector<1x32xf32> to vector<1x1x1x32xf32>
    %46 = vector.broadcast %43 : vector<1x16x16x1xf32> to vector<1x16x16x32xf32>
    %47 = vector.broadcast %45 : vector<1x1x1x32xf32> to vector<1x16x16x32xf32>
    %48 = arith.mulf %46, %47 : vector<1x16x16x32xf32>
    %49 = arith.addf %42, %48 : vector<1x16x16x32xf32>
    %c0_68 = arith.constant 0 : index
    %c1_69 = arith.constant 1 : index
    %c2_70 = arith.constant 2 : index
    %c0_71 = arith.constant 0 : index
    %50 = vector.load %arg9[%c0_68, %c1_69, %c2_70, %c0_71] : memref<1x18x18x1xf32, #tpu.memory_space<vmem>>, vector<1x16x16x1xf32>
    %c5 = arith.constant 5 : index
    %c0_72 = arith.constant 0 : index
    %51 = vector.load %arg2[%c5, %c0_72] : memref<9x32xf32, #tpu.memory_space<vmem>>, vector<1x32xf32>
    %52 = vector.shape_cast %51 : vector<1x32xf32> to vector<1x1x1x32xf32>
    %53 = vector.broadcast %50 : vector<1x16x16x1xf32> to vector<1x16x16x32xf32>
    %54 = vector.broadcast %52 : vector<1x1x1x32xf32> to vector<1x16x16x32xf32>
    %55 = arith.mulf %53, %54 : vector<1x16x16x32xf32>
    %56 = arith.addf %49, %55 : vector<1x16x16x32xf32>
    %c0_73 = arith.constant 0 : index
    %c2_74 = arith.constant 2 : index
    %c0_75 = arith.constant 0 : index
    %c0_76 = arith.constant 0 : index
    %57 = vector.load %arg9[%c0_73, %c2_74, %c0_75, %c0_76] : memref<1x18x18x1xf32, #tpu.memory_space<vmem>>, vector<1x16x16x1xf32>
    %c6 = arith.constant 6 : index
    %c0_77 = arith.constant 0 : index
    %58 = vector.load %arg2[%c6, %c0_77] : memref<9x32xf32, #tpu.memory_space<vmem>>, vector<1x32xf32>
    %59 = vector.shape_cast %58 : vector<1x32xf32> to vector<1x1x1x32xf32>
    %60 = vector.broadcast %57 : vector<1x16x16x1xf32> to vector<1x16x16x32xf32>
    %61 = vector.broadcast %59 : vector<1x1x1x32xf32> to vector<1x16x16x32xf32>
    %62 = arith.mulf %60, %61 : vector<1x16x16x32xf32>
    %63 = arith.addf %56, %62 : vector<1x16x16x32xf32>
    %c0_78 = arith.constant 0 : index
    %c2_79 = arith.constant 2 : index
    %c1_80 = arith.constant 1 : index
    %c0_81 = arith.constant 0 : index
    %64 = vector.load %arg9[%c0_78, %c2_79, %c1_80, %c0_81] : memref<1x18x18x1xf32, #tpu.memory_space<vmem>>, vector<1x16x16x1xf32>
    %c7 = arith.constant 7 : index
    %c0_82 = arith.constant 0 : index
    %65 = vector.load %arg2[%c7, %c0_82] : memref<9x32xf32, #tpu.memory_space<vmem>>, vector<1x32xf32>
    %66 = vector.shape_cast %65 : vector<1x32xf32> to vector<1x1x1x32xf32>
    %67 = vector.broadcast %64 : vector<1x16x16x1xf32> to vector<1x16x16x32xf32>
    %68 = vector.broadcast %66 : vector<1x1x1x32xf32> to vector<1x16x16x32xf32>
    %69 = arith.mulf %67, %68 : vector<1x16x16x32xf32>
    %70 = arith.addf %63, %69 : vector<1x16x16x32xf32>
    %c0_83 = arith.constant 0 : index
    %c2_84 = arith.constant 2 : index
    %c2_85 = arith.constant 2 : index
    %c0_86 = arith.constant 0 : index
    %71 = vector.load %arg9[%c0_83, %c2_84, %c2_85, %c0_86] : memref<1x18x18x1xf32, #tpu.memory_space<vmem>>, vector<1x16x16x1xf32>
    %c8 = arith.constant 8 : index
    %c0_87 = arith.constant 0 : index
    %72 = vector.load %arg2[%c8, %c0_87] : memref<9x32xf32, #tpu.memory_space<vmem>>, vector<1x32xf32>
    %73 = vector.shape_cast %72 : vector<1x32xf32> to vector<1x1x1x32xf32>
    %74 = vector.broadcast %71 : vector<1x16x16x1xf32> to vector<1x16x16x32xf32>
    %75 = vector.broadcast %73 : vector<1x1x1x32xf32> to vector<1x16x16x32xf32>
    %76 = arith.mulf %74, %75 : vector<1x16x16x32xf32>
    %77 = arith.addf %70, %76 : vector<1x16x16x32xf32>
    %c0_88 = arith.constant 0 : index
    %c0_89 = arith.constant 0 : index
    %78 = vector.load %arg3[%c0_88, %c0_89] : memref<1x32xf32, #tpu.memory_space<vmem>>, vector<1x32xf32>
    %79 = vector.shape_cast %78 : vector<1x32xf32> to vector<1x1x1x32xf32>
    %80 = vector.broadcast %79 : vector<1x1x1x32xf32> to vector<1x16x16x32xf32>
    %81 = arith.addf %77, %80 : vector<1x16x16x32xf32>
    %cst_90 = arith.constant 0.000000e+00 : f32
    %82 = vector.broadcast %cst_90 : f32 to vector<1x16x16x32xf32>
    %83 = arith.maximumf %81, %82 : vector<1x16x16x32xf32>
    %84 = arith.truncf %83 : vector<1x16x16x32xf32> to vector<1x16x16x32xbf16>
    %c0_91 = arith.constant 0 : index
    %c1_92 = arith.constant 1 : index
    %c1_93 = arith.constant 1 : index
    %c0_94 = arith.constant 0 : index
    %85 = vector.load %arg10[%c0_91, %c1_92, %c1_93, %c0_94] : memref<1x18x18x32xbf16, #tpu.memory_space<vmem>>, vector<1x16x16x32xbf16>
    tpu.vector_store %arg10[%c0_91, %c1_92, %c1_93, %c0_94], %84 {strides = array<i32>} : memref<1x18x18x32xbf16, #tpu.memory_space<vmem>>, vector<1x16x16x32xbf16>,
    %c0_95 = arith.constant 0 : index
    %c0_96 = arith.constant 0 : index
    %c0_97 = arith.constant 0 : index
    %c0_98 = arith.constant 0 : index
    %86 = vector.load %arg10[%c0_95, %c0_96, %c0_97, %c0_98] : memref<1x18x18x32xbf16, #tpu.memory_space<vmem>>, vector<1x16x16x32xbf16>
    %87 = vector.shape_cast %86 : vector<1x16x16x32xbf16> to vector<256x32xbf16>
    %c0_99 = arith.constant 0 : index
    %c0_100 = arith.constant 0 : index
    %88 = vector.load %arg11[%c0_99, %c0_100] : memref<256x288xbf16, #tpu.memory_space<vmem>>, vector<256x32xbf16>
    tpu.vector_store %arg11[%c0_99, %c0_100], %87 {strides = array<i32>} : memref<256x288xbf16, #tpu.memory_space<vmem>>, vector<256x32xbf16>,
    %c0_101 = arith.constant 0 : index
    %c0_102 = arith.constant 0 : index
    %c1_103 = arith.constant 1 : index
    %c0_104 = arith.constant 0 : index
    %89 = vector.load %arg10[%c0_101, %c0_102, %c1_103, %c0_104] : memref<1x18x18x32xbf16, #tpu.memory_space<vmem>>, vector<1x16x16x32xbf16>
    %90 = vector.shape_cast %89 : vector<1x16x16x32xbf16> to vector<256x32xbf16>
    %c0_105 = arith.constant 0 : index
    %c32 = arith.constant 32 : index
    %91 = vector.load %arg11[%c0_105, %c32] : memref<256x288xbf16, #tpu.memory_space<vmem>>, vector<256x32xbf16>
    tpu.vector_store %arg11[%c0_105, %c32], %90 {strides = array<i32>} : memref<256x288xbf16, #tpu.memory_space<vmem>>, vector<256x32xbf16>,
    %c0_106 = arith.constant 0 : index
    %c0_107 = arith.constant 0 : index
    %c2_108 = arith.constant 2 : index
    %c0_109 = arith.constant 0 : index
    %92 = vector.load %arg10[%c0_106, %c0_107, %c2_108, %c0_109] : memref<1x18x18x32xbf16, #tpu.memory_space<vmem>>, vector<1x16x16x32xbf16>
    %93 = vector.shape_cast %92 : vector<1x16x16x32xbf16> to vector<256x32xbf16>
    %c0_110 = arith.constant 0 : index
    %c64 = arith.constant 64 : index
    %94 = vector.load %arg11[%c0_110, %c64] : memref<256x288xbf16, #tpu.memory_space<vmem>>, vector<256x32xbf16>
    tpu.vector_store %arg11[%c0_110, %c64], %93 {strides = array<i32>} : memref<256x288xbf16, #tpu.memory_space<vmem>>, vector<256x32xbf16>,
    %c0_111 = arith.constant 0 : index
    %c1_112 = arith.constant 1 : index
    %c0_113 = arith.constant 0 : index
    %c0_114 = arith.constant 0 : index
    %95 = vector.load %arg10[%c0_111, %c1_112, %c0_113, %c0_114] : memref<1x18x18x32xbf16, #tpu.memory_space<vmem>>, vector<1x16x16x32xbf16>
    %96 = vector.shape_cast %95 : vector<1x16x16x32xbf16> to vector<256x32xbf16>
    %c0_115 = arith.constant 0 : index
    %c96 = arith.constant 96 : index
    %97 = vector.load %arg11[%c0_115, %c96] : memref<256x288xbf16, #tpu.memory_space<vmem>>, vector<256x32xbf16>
    tpu.vector_store %arg11[%c0_115, %c96], %96 {strides = array<i32>} : memref<256x288xbf16, #tpu.memory_space<vmem>>, vector<256x32xbf16>,
    %c0_116 = arith.constant 0 : index
    %c1_117 = arith.constant 1 : index
    %c1_118 = arith.constant 1 : index
    %c0_119 = arith.constant 0 : index
    %98 = vector.load %arg10[%c0_116, %c1_117, %c1_118, %c0_119] : memref<1x18x18x32xbf16, #tpu.memory_space<vmem>>, vector<1x16x16x32xbf16>
    %99 = vector.shape_cast %98 : vector<1x16x16x32xbf16> to vector<256x32xbf16>
    %c0_120 = arith.constant 0 : index
    %c128 = arith.constant 128 : index
    %100 = vector.load %arg11[%c0_120, %c128] : memref<256x288xbf16, #tpu.memory_space<vmem>>, vector<256x32xbf16>
    tpu.vector_store %arg11[%c0_120, %c128], %99 {strides = array<i32>} : memref<256x288xbf16, #tpu.memory_space<vmem>>, vector<256x32xbf16>,
    %c0_121 = arith.constant 0 : index
    %c1_122 = arith.constant 1 : index
    %c2_123 = arith.constant 2 : index
    %c0_124 = arith.constant 0 : index
    %101 = vector.load %arg10[%c0_121, %c1_122, %c2_123, %c0_124] : memref<1x18x18x32xbf16, #tpu.memory_space<vmem>>, vector<1x16x16x32xbf16>
    %102 = vector.shape_cast %101 : vector<1x16x16x32xbf16> to vector<256x32xbf16>
    %c0_125 = arith.constant 0 : index
    %c160 = arith.constant 160 : index
    %103 = vector.load %arg11[%c0_125, %c160] : memref<256x288xbf16, #tpu.memory_space<vmem>>, vector<256x32xbf16>
    tpu.vector_store %arg11[%c0_125, %c160], %102 {strides = array<i32>} : memref<256x288xbf16, #tpu.memory_space<vmem>>, vector<256x32xbf16>,
    %c0_126 = arith.constant 0 : index
    %c2_127 = arith.constant 2 : index
    %c0_128 = arith.constant 0 : index
    %c0_129 = arith.constant 0 : index
    %104 = vector.load %arg10[%c0_126, %c2_127, %c0_128, %c0_129] : memref<1x18x18x32xbf16, #tpu.memory_space<vmem>>, vector<1x16x16x32xbf16>
    %105 = vector.shape_cast %104 : vector<1x16x16x32xbf16> to vector<256x32xbf16>
    %c0_130 = arith.constant 0 : index
    %c192 = arith.constant 192 : index
    %106 = vector.load %arg11[%c0_130, %c192] : memref<256x288xbf16, #tpu.memory_space<vmem>>, vector<256x32xbf16>
    tpu.vector_store %arg11[%c0_130, %c192], %105 {strides = array<i32>} : memref<256x288xbf16, #tpu.memory_space<vmem>>, vector<256x32xbf16>,
    %c0_131 = arith.constant 0 : index
    %c2_132 = arith.constant 2 : index
    %c1_133 = arith.constant 1 : index
    %c0_134 = arith.constant 0 : index
    %107 = vector.load %arg10[%c0_131, %c2_132, %c1_133, %c0_134] : memref<1x18x18x32xbf16, #tpu.memory_space<vmem>>, vector<1x16x16x32xbf16>
    %108 = vector.shape_cast %107 : vector<1x16x16x32xbf16> to vector<256x32xbf16>
    %c0_135 = arith.constant 0 : index
    %c224 = arith.constant 224 : index
    %109 = vector.load %arg11[%c0_135, %c224] : memref<256x288xbf16, #tpu.memory_space<vmem>>, vector<256x32xbf16>
    tpu.vector_store %arg11[%c0_135, %c224], %108 {strides = array<i32>} : memref<256x288xbf16, #tpu.memory_space<vmem>>, vector<256x32xbf16>,
    %c0_136 = arith.constant 0 : index
    %c2_137 = arith.constant 2 : index
    %c2_138 = arith.constant 2 : index
    %c0_139 = arith.constant 0 : index
    %110 = vector.load %arg10[%c0_136, %c2_137, %c2_138, %c0_139] : memref<1x18x18x32xbf16, #tpu.memory_space<vmem>>, vector<1x16x16x32xbf16>
    %111 = vector.shape_cast %110 : vector<1x16x16x32xbf16> to vector<256x32xbf16>
    %c0_140 = arith.constant 0 : index
    %c256 = arith.constant 256 : index
    %112 = vector.load %arg11[%c0_140, %c256] : memref<256x288xbf16, #tpu.memory_space<vmem>>, vector<256x32xbf16>
    tpu.vector_store %arg11[%c0_140, %c256], %111 {strides = array<i32>} : memref<256x288xbf16, #tpu.memory_space<vmem>>, vector<256x32xbf16>,
    %c0_141 = arith.constant 0 : index
    %c0_142 = arith.constant 0 : index
    %113 = vector.load %arg11[%c0_141, %c0_142] : memref<256x288xbf16, #tpu.memory_space<vmem>>, vector<256x288xbf16>
    %c0_143 = arith.constant 0 : index
    %c0_144 = arith.constant 0 : index
    %114 = vector.load %arg4[%c0_143, %c0_144] : memref<288x32xbf16, #tpu.memory_space<vmem>>, vector<288x32xbf16>
    %cst_145 = arith.constant dense<0.000000e+00> : vector<256x32xf32>
    %115 = tpu.matmul %113, %114, %cst_145 {dimension_numbers = #tpu.dot_dimension_numbers<[1], [0], [0], [1], [0, 0, 1, 1], [], []>} : vector<256x288xbf16>, vector<288x32xbf16>, vector<256x32xf32> -> vector<256x32xf32>
    %c0_146 = arith.constant 0 : index
    %c0_147 = arith.constant 0 : index
    %116 = vector.load %arg5[%c0_146, %c0_147] : memref<1x32xf32, #tpu.memory_space<vmem>>, vector<1x32xf32>
    %117 = vector.broadcast %116 : vector<1x32xf32> to vector<256x32xf32>
    %118 = arith.addf %115, %117 : vector<256x32xf32>
    %cst_148 = arith.constant 0.000000e+00 : f32
    %119 = vector.broadcast %cst_148 : f32 to vector<256x32xf32>
    %120 = arith.maximumf %118, %119 : vector<256x32xf32>
    %121 = vector.shape_cast %120 : vector<256x32xf32> to vector<1x16x16x32xf32>
    %122 = arith.truncf %121 : vector<1x16x16x32xf32> to vector<1x16x16x32xbf16>
    %c0_149 = arith.constant 0 : index
    %c1_150 = arith.constant 1 : index
    %c1_151 = arith.constant 1 : index
    %c0_152 = arith.constant 0 : index
    %123 = vector.load %arg10[%c0_149, %c1_150, %c1_151, %c0_152] : memref<1x18x18x32xbf16, #tpu.memory_space<vmem>>, vector<1x16x16x32xbf16>
    tpu.vector_store %arg10[%c0_149, %c1_150, %c1_151, %c0_152], %122 {strides = array<i32>} : memref<1x18x18x32xbf16, #tpu.memory_space<vmem>>, vector<1x16x16x32xbf16>,
    %c0_153 = arith.constant 0 : index
    %c0_154 = arith.constant 0 : index
    %c0_155 = arith.constant 0 : index
    %c0_156 = arith.constant 0 : index
    %124 = vector.load %arg10[%c0_153, %c0_154, %c0_155, %c0_156] : memref<1x18x18x32xbf16, #tpu.memory_space<vmem>>, vector<1x16x16x32xbf16>
    %125 = vector.shape_cast %124 : vector<1x16x16x32xbf16> to vector<256x32xbf16>
    %c0_157 = arith.constant 0 : index
    %c0_158 = arith.constant 0 : index
    %126 = vector.load %arg11[%c0_157, %c0_158] : memref<256x288xbf16, #tpu.memory_space<vmem>>, vector<256x32xbf16>
    tpu.vector_store %arg11[%c0_157, %c0_158], %125 {strides = array<i32>} : memref<256x288xbf16, #tpu.memory_space<vmem>>, vector<256x32xbf16>,
    %c0_159 = arith.constant 0 : index
    %c0_160 = arith.constant 0 : index
    %c1_161 = arith.constant 1 : index
    %c0_162 = arith.constant 0 : index
    %127 = vector.load %arg10[%c0_159, %c0_160, %c1_161, %c0_162] : memref<1x18x18x32xbf16, #tpu.memory_space<vmem>>, vector<1x16x16x32xbf16>
    %128 = vector.shape_cast %127 : vector<1x16x16x32xbf16> to vector<256x32xbf16>
    %c0_163 = arith.constant 0 : index
    %c32_164 = arith.constant 32 : index
    %129 = vector.load %arg11[%c0_163, %c32_164] : memref<256x288xbf16, #tpu.memory_space<vmem>>, vector<256x32xbf16>
    tpu.vector_store %arg11[%c0_163, %c32_164], %128 {strides = array<i32>} : memref<256x288xbf16, #tpu.memory_space<vmem>>, vector<256x32xbf16>,
    %c0_165 = arith.constant 0 : index
    %c0_166 = arith.constant 0 : index
    %c2_167 = arith.constant 2 : index
    %c0_168 = arith.constant 0 : index
    %130 = vector.load %arg10[%c0_165, %c0_166, %c2_167, %c0_168] : memref<1x18x18x32xbf16, #tpu.memory_space<vmem>>, vector<1x16x16x32xbf16>
    %131 = vector.shape_cast %130 : vector<1x16x16x32xbf16> to vector<256x32xbf16>
    %c0_169 = arith.constant 0 : index
    %c64_170 = arith.constant 64 : index
    %132 = vector.load %arg11[%c0_169, %c64_170] : memref<256x288xbf16, #tpu.memory_space<vmem>>, vector<256x32xbf16>
    tpu.vector_store %arg11[%c0_169, %c64_170], %131 {strides = array<i32>} : memref<256x288xbf16, #tpu.memory_space<vmem>>, vector<256x32xbf16>,
    %c0_171 = arith.constant 0 : index
    %c1_172 = arith.constant 1 : index
    %c0_173 = arith.constant 0 : index
    %c0_174 = arith.constant 0 : index
    %133 = vector.load %arg10[%c0_171, %c1_172, %c0_173, %c0_174] : memref<1x18x18x32xbf16, #tpu.memory_space<vmem>>, vector<1x16x16x32xbf16>
    %134 = vector.shape_cast %133 : vector<1x16x16x32xbf16> to vector<256x32xbf16>
    %c0_175 = arith.constant 0 : index
    %c96_176 = arith.constant 96 : index
    %135 = vector.load %arg11[%c0_175, %c96_176] : memref<256x288xbf16, #tpu.memory_space<vmem>>, vector<256x32xbf16>
    tpu.vector_store %arg11[%c0_175, %c96_176], %134 {strides = array<i32>} : memref<256x288xbf16, #tpu.memory_space<vmem>>, vector<256x32xbf16>,
    %c0_177 = arith.constant 0 : index
    %c1_178 = arith.constant 1 : index
    %c1_179 = arith.constant 1 : index
    %c0_180 = arith.constant 0 : index
    %136 = vector.load %arg10[%c0_177, %c1_178, %c1_179, %c0_180] : memref<1x18x18x32xbf16, #tpu.memory_space<vmem>>, vector<1x16x16x32xbf16>
    %137 = vector.shape_cast %136 : vector<1x16x16x32xbf16> to vector<256x32xbf16>
    %c0_181 = arith.constant 0 : index
    %c128_182 = arith.constant 128 : index
    %138 = vector.load %arg11[%c0_181, %c128_182] : memref<256x288xbf16, #tpu.memory_space<vmem>>, vector<256x32xbf16>
    tpu.vector_store %arg11[%c0_181, %c128_182], %137 {strides = array<i32>} : memref<256x288xbf16, #tpu.memory_space<vmem>>, vector<256x32xbf16>,
    %c0_183 = arith.constant 0 : index
    %c1_184 = arith.constant 1 : index
    %c2_185 = arith.constant 2 : index
    %c0_186 = arith.constant 0 : index
    %139 = vector.load %arg10[%c0_183, %c1_184, %c2_185, %c0_186] : memref<1x18x18x32xbf16, #tpu.memory_space<vmem>>, vector<1x16x16x32xbf16>
    %140 = vector.shape_cast %139 : vector<1x16x16x32xbf16> to vector<256x32xbf16>
    %c0_187 = arith.constant 0 : index
    %c160_188 = arith.constant 160 : index
    %141 = vector.load %arg11[%c0_187, %c160_188] : memref<256x288xbf16, #tpu.memory_space<vmem>>, vector<256x32xbf16>
    tpu.vector_store %arg11[%c0_187, %c160_188], %140 {strides = array<i32>} : memref<256x288xbf16, #tpu.memory_space<vmem>>, vector<256x32xbf16>,
    %c0_189 = arith.constant 0 : index
    %c2_190 = arith.constant 2 : index
    %c0_191 = arith.constant 0 : index
    %c0_192 = arith.constant 0 : index
    %142 = vector.load %arg10[%c0_189, %c2_190, %c0_191, %c0_192] : memref<1x18x18x32xbf16, #tpu.memory_space<vmem>>, vector<1x16x16x32xbf16>
    %143 = vector.shape_cast %142 : vector<1x16x16x32xbf16> to vector<256x32xbf16>
    %c0_193 = arith.constant 0 : index
    %c192_194 = arith.constant 192 : index
    %144 = vector.load %arg11[%c0_193, %c192_194] : memref<256x288xbf16, #tpu.memory_space<vmem>>, vector<256x32xbf16>
    tpu.vector_store %arg11[%c0_193, %c192_194], %143 {strides = array<i32>} : memref<256x288xbf16, #tpu.memory_space<vmem>>, vector<256x32xbf16>,
    %c0_195 = arith.constant 0 : index
    %c2_196 = arith.constant 2 : index
    %c1_197 = arith.constant 1 : index
    %c0_198 = arith.constant 0 : index
    %145 = vector.load %arg10[%c0_195, %c2_196, %c1_197, %c0_198] : memref<1x18x18x32xbf16, #tpu.memory_space<vmem>>, vector<1x16x16x32xbf16>
    %146 = vector.shape_cast %145 : vector<1x16x16x32xbf16> to vector<256x32xbf16>
    %c0_199 = arith.constant 0 : index
    %c224_200 = arith.constant 224 : index
    %147 = vector.load %arg11[%c0_199, %c224_200] : memref<256x288xbf16, #tpu.memory_space<vmem>>, vector<256x32xbf16>
    tpu.vector_store %arg11[%c0_199, %c224_200], %146 {strides = array<i32>} : memref<256x288xbf16, #tpu.memory_space<vmem>>, vector<256x32xbf16>,
    %c0_201 = arith.constant 0 : index
    %c2_202 = arith.constant 2 : index
    %c2_203 = arith.constant 2 : index
    %c0_204 = arith.constant 0 : index
    %148 = vector.load %arg10[%c0_201, %c2_202, %c2_203, %c0_204] : memref<1x18x18x32xbf16, #tpu.memory_space<vmem>>, vector<1x16x16x32xbf16>
    %149 = vector.shape_cast %148 : vector<1x16x16x32xbf16> to vector<256x32xbf16>
    %c0_205 = arith.constant 0 : index
    %c256_206 = arith.constant 256 : index
    %150 = vector.load %arg11[%c0_205, %c256_206] : memref<256x288xbf16, #tpu.memory_space<vmem>>, vector<256x32xbf16>
    tpu.vector_store %arg11[%c0_205, %c256_206], %149 {strides = array<i32>} : memref<256x288xbf16, #tpu.memory_space<vmem>>, vector<256x32xbf16>,
    %c0_207 = arith.constant 0 : index
    %c0_208 = arith.constant 0 : index
    %151 = vector.load %arg11[%c0_207, %c0_208] : memref<256x288xbf16, #tpu.memory_space<vmem>>, vector<256x288xbf16>
    %c0_209 = arith.constant 0 : index
    %c0_210 = arith.constant 0 : index
    %152 = vector.load %arg6[%c0_209, %c0_210] : memref<288x32xbf16, #tpu.memory_space<vmem>>, vector<288x32xbf16>
    %cst_211 = arith.constant dense<0.000000e+00> : vector<256x32xf32>
    %153 = tpu.matmul %151, %152, %cst_211 {dimension_numbers = #tpu.dot_dimension_numbers<[1], [0], [0], [1], [0, 0, 1, 1], [], []>} : vector<256x288xbf16>, vector<288x32xbf16>, vector<256x32xf32> -> vector<256x32xf32>
    %c0_212 = arith.constant 0 : index
    %c0_213 = arith.constant 0 : index
    %154 = vector.load %arg7[%c0_212, %c0_213] : memref<1x32xf32, #tpu.memory_space<vmem>>, vector<1x32xf32>
    %155 = vector.broadcast %154 : vector<1x32xf32> to vector<256x32xf32>
    %156 = arith.addf %153, %155 : vector<256x32xf32>
    %cst_214 = arith.constant 0.000000e+00 : f32
    %157 = vector.broadcast %cst_214 : f32 to vector<256x32xf32>
    %158 = arith.maximumf %156, %157 : vector<256x32xf32>
    %159 = vector.shape_cast %158 : vector<256x32xf32> to vector<1x16x16x32xf32>
    %c0_215 = arith.constant 0 : index
    %c0_216 = arith.constant 0 : index
    %c0_217 = arith.constant 0 : index
    %c0_218 = arith.constant 0 : index
    %160 = vector.load %arg8[%c0_215, %c0_216, %c0_217, %c0_218] : memref<1x16x16x32xf32, #tpu.memory_space<vmem>>, vector<1x16x16x32xf32>
    tpu.vector_store %arg8[%c0_215, %c0_216, %c0_217, %c0_218], %159 {strides = array<i32>} : memref<1x16x16x32xf32, #tpu.memory_space<vmem>>, vector<1x16x16x32xf32>,
    return
  }
  func.func @transform_0(%arg0: i32) -> (i32, i32, i32, i32) {
    %c0_i32 = arith.constant 0 : i32
    %c0_i32_0 = arith.constant 0 : i32
    %c0_i32_1 = arith.constant 0 : i32
    %c0_i32_2 = arith.constant 0 : i32
    return %arg0, %c0_i32, %c0_i32_0, %c0_i32_1 : i32, i32, i32, i32
  }
  func.func @transform_1(%arg0: i32) -> (i32, i32) {
    %c0_i32 = arith.constant 0 : i32
    %c0_i32_0 = arith.constant 0 : i32
    %c0_i32_1 = arith.constant 0 : i32
    return %c0_i32, %c0_i32_0 : i32, i32
  }
  func.func @transform_2(%arg0: i32) -> (i32, i32) {
    %c0_i32 = arith.constant 0 : i32
    %c0_i32_0 = arith.constant 0 : i32
    %c0_i32_1 = arith.constant 0 : i32
    return %c0_i32, %c0_i32_0 : i32, i32
  }
  func.func @transform_3(%arg0: i32) -> (i32, i32) {
    %c0_i32 = arith.constant 0 : i32
    %c0_i32_0 = arith.constant 0 : i32
    %c0_i32_1 = arith.constant 0 : i32
    return %c0_i32, %c0_i32_0 : i32, i32
  }
  func.func @transform_4(%arg0: i32) -> (i32, i32) {
    %c0_i32 = arith.constant 0 : i32
    %c0_i32_0 = arith.constant 0 : i32
    %c0_i32_1 = arith.constant 0 : i32
    return %c0_i32, %c0_i32_0 : i32, i32
  }
  func.func @transform_5(%arg0: i32) -> (i32, i32) {
    %c0_i32 = arith.constant 0 : i32
    %c0_i32_0 = arith.constant 0 : i32
    %c0_i32_1 = arith.constant 0 : i32
    return %c0_i32, %c0_i32_0 : i32, i32
  }
  func.func @transform_6(%arg0: i32) -> (i32, i32) {
    %c0_i32 = arith.constant 0 : i32
    %c0_i32_0 = arith.constant 0 : i32
    %c0_i32_1 = arith.constant 0 : i32
    return %c0_i32, %c0_i32_0 : i32, i32
  }
  func.func @transform_7(%arg0: i32) -> (i32, i32, i32, i32) {
    %c0_i32 = arith.constant 0 : i32
    %c0_i32_0 = arith.constant 0 : i32
    %c0_i32_1 = arith.constant 0 : i32
    %c0_i32_2 = arith.constant 0 : i32
    return %arg0, %c0_i32, %c0_i32_0, %c0_i32_1 : i32, i32, i32, i32
  }
}

</mosaic_0001>

<llo_original>
// kernel: tpu_custom_call.1
$region0: #{tpu_custom_call.1}
  #allocation0 [shape = 'u32[]', space=smem, size = 0x4, offset = 0x4, fixed_abs, tag = 'smem constant byte address 0x4 - core index']
  #allocation1 [shape = 'u32[144,128]{1,0:T(1,128)}', space=vmem, size = 0x12000, scoped, tag = 'internal scratch']
  #allocation2 [shape = 'f32[1,18,18,1]{3,2,1,0:T(8,128)}', space=vmem, size = 0x36000, scoped, tag = 'scratch operand']
  #allocation3 [shape = 'bf16[1,18,18,32]{3,2,1,0:T(8,128)(2,1)}', space=vmem, size = 0x1b000, scoped, tag = 'scratch operand']
  #allocation4 [shape = 'bf16[256,288]{1,0:T(16,128)(2,1)}', space=vmem, size = 0x30000, scoped, tag = 'scratch operand']
  %s0 = inlined_call_operand.vmem [shape: f32[2,16,16,1], index: 0, kind: input, shape index: {}]
  %s1 = inlined_call_operand.vmem [shape: f32[9,32], index: 1, kind: input, shape index: {}]
  %s2 = inlined_call_operand.vmem [shape: f32[1,32], index: 2, kind: input, shape index: {}]
  %s3 = inlined_call_operand.vmem [shape: bf16[288,32], index: 3, kind: input, shape index: {}]
  %s4 = inlined_call_operand.vmem [shape: f32[1,32], index: 4, kind: input, shape index: {}]
  %s5 = inlined_call_operand.vmem [shape: bf16[288,32], index: 5, kind: input, shape index: {}]
  %s6 = inlined_call_operand.vmem [shape: f32[1,32], index: 6, kind: input, shape index: {}]
  %s7 = inlined_call_operand.hbm [shape: f32[2,16,16,32], index: 7, kind: output, shape index: {}]
  %s8 = sld [smem:[#allocation0]]
  $region61: #{tpu_custom_call.1} parent=0
    _
  %s10 = ssub.s32 1, %s8
  %s11 = scalar_select 0, %s10, %s8
  $region1: #{tpu_custom_call.1} parent=0
    #allocation5 [shape = 'u8[262144]{0}', space=vmem, size = 0x40000, scoped, tag = 'output window, operand 0']
    #allocation6 [shape = 's32[2]{0}', space=sflag, size = 0x8, scoped, tag = 'scoped memory for tpu_custom_call.1']
    %12 = vsyncpa [#allocation6], 0
    %s13 = scalar_lea.sflag [#allocation6], 1
    %14 = vsyncpa %s13, 0
    loop: start=0, step=1, limit=4
    $region2: #{tpu_custom_call.1} parent=1 // loop_pre_header
      _
    $region3: #{tpu_custom_call.1} parent=1 // loop_header
      %s16 = sphi 0, %s20
      %p17 = scmp.ge.s32.totalorder %s16, 4
      %s26 = sphi 0, %s28
      %s29 = sphi 0, %s26
      %s30 = sphi 0, %s29
      %s46 = sphi 0, %s30
      %s50 = sphi 0, %s50
      %s52 = sphi 0, %s50
      %s53 = sphi 0, %s52
      %s67 = sphi 0, %s53
      %s71 = sphi 0, %s71
      %s73 = sphi 0, %s71
      %s74 = sphi 0, %s73
      %s88 = sphi 0, %s74
      %s92 = sphi 0, %s92
      %s94 = sphi 0, %s92
      %s95 = sphi 0, %s94
      %s109 = sphi 0, %s95
      %s113 = sphi 0, %s113
      %s115 = sphi 0, %s113
      %s116 = sphi 0, %s115
      %s130 = sphi 0, %s116
      %s134 = sphi 0, %s134
      %s136 = sphi 0, %s134
      %s137 = sphi 0, %s136
      %s151 = sphi 0, %s137
      %s155 = sphi 0, %s155
      %s157 = sphi 0, %s155
      %s158 = sphi 0, %s157
      %s172 = sphi 0, %s158
      %s178 = sphi 0, %s180
      %s181 = sphi 0, %s178
      %s182 = sphi 0, %s181
      %s198 = sphi 0, %s182
    $region4: #{tpu_custom_call.1} parent=1 // loop_header_branch
      %19 = sbr.rel (%p17) target = $region8
    $region5: #{tpu_custom_call.1} parent=1 // loop_body
      %s21 = ssub.s32 %s16, 1
      %s22 = ssub.s32 %s16, 2
      %s23 = sadd.s32 %s16, 1
      %s24 = ssub.s32 %s16, %s23
      %p25 = scmp.eq.s32.totalorder %s24, 0
      %s27 = sadd.s32 %s26, 1
      %s28 = scalar_select %p25, %s26, %s27
      %p31 = pneg %p25
      %p32 = scmp.eq.s32.totalorder %s16, 1
      %p33 = por %p31, %p32
      %p34 = scmp.ne.s32.totalorder %s26, %s29
      %p35 = scmp.eq.s32.totalorder %s16, 0
      %p36 = por %p34, %p35
      %p37 = scmp.ne.s32.totalorder %s26, %s29
      %p38 = scmp.eq.s32.totalorder %s21, 1
      %p39 = por %p37, %p38
      %p40 = scmp.ne.s32.totalorder %s29, %s30
      %p41 = scmp.eq.s32.totalorder %s21, 0
      %p42 = por %p40, %p41
      %p43 = scmp.ne.s32.totalorder %s29, %s30
      %p44 = scmp.eq.s32.totalorder %s22, 1
      %p45 = por %p43, %p44
      %p47 = scmp.ne.s32.totalorder %s30, %s46
      %p48 = scmp.eq.s32.totalorder %s22, 0
      %p49 = por %p47, %p48
      %s51 = sadd.s32 %s50, 1
      %p54 = scmp.eq.s32.totalorder %s16, 1
      %p55 = scmp.ne.s32.totalorder %s50, %s52
      %p56 = scmp.eq.s32.totalorder %s16, 0
      %p57 = por %p55, %p56
      %p58 = scmp.ne.s32.totalorder %s50, %s52
      %p59 = scmp.eq.s32.totalorder %s21, 1
      %p60 = por %p58, %p59
      %p61 = scmp.ne.s32.totalorder %s52, %s53
      %p62 = scmp.eq.s32.totalorder %s21, 0
      %p63 = por %p61, %p62
      %p64 = scmp.ne.s32.totalorder %s52, %s53
      %p65 = scmp.eq.s32.totalorder %s22, 1
      %p66 = por %p64, %p65
      %p68 = scmp.ne.s32.totalorder %s53, %s67
      %p69 = scmp.eq.s32.totalorder %s22, 0
      %p70 = por %p68, %p69
      %s72 = sadd.s32 %s71, 1
      %p75 = scmp.eq.s32.totalorder %s16, 1
      %p76 = scmp.ne.s32.totalorder %s71, %s73
      %p77 = scmp.eq.s32.totalorder %s16, 0
      %p78 = por %p76, %p77
      %p79 = scmp.ne.s32.totalorder %s71, %s73
      %p80 = scmp.eq.s32.totalorder %s21, 1
      %p81 = por %p79, %p80
      %p82 = scmp.ne.s32.totalorder %s73, %s74
      %p83 = scmp.eq.s32.totalorder %s21, 0
      %p84 = por %p82, %p83
      %p85 = scmp.ne.s32.totalorder %s73, %s74
      %p86 = scmp.eq.s32.totalorder %s22, 1
      %p87 = por %p85, %p86
      %p89 = scmp.ne.s32.totalorder %s74, %s88
      %p90 = scmp.eq.s32.totalorder %s22, 0
      %p91 = por %p89, %p90
      %s93 = sadd.s32 %s92, 1
      %p96 = scmp.eq.s32.totalorder %s16, 1
      %p97 = scmp.ne.s32.totalorder %s92, %s94
      %p98 = scmp.eq.s32.totalorder %s16, 0
      %p99 = por %p97, %p98
      %p100 = scmp.ne.s32.totalorder %s92, %s94
      %p101 = scmp.eq.s32.totalorder %s21, 1
      %p102 = por %p100, %p101
      %p103 = scmp.ne.s32.totalorder %s94, %s95
      %p104 = scmp.eq.s32.totalorder %s21, 0
      %p105 = por %p103, %p104
      %p106 = scmp.ne.s32.totalorder %s94, %s95
      %p107 = scmp.eq.s32.totalorder %s22, 1
      %p108 = por %p106, %p107
      %p110 = scmp.ne.s32.totalorder %s95, %s109
      %p111 = scmp.eq.s32.totalorder %s22, 0
      %p112 = por %p110, %p111
      %s114 = sadd.s32 %s113, 1
      %p117 = scmp.eq.s32.totalorder %s16, 1
      %p118 = scmp.ne.s32.totalorder %s113, %s115
      %p119 = scmp.eq.s32.totalorder %s16, 0
      %p120 = por %p118, %p119
      %p121 = scmp.ne.s32.totalorder %s113, %s115
      %p122 = scmp.eq.s32.totalorder %s21, 1
      %p123 = por %p121, %p122
      %p124 = scmp.ne.s32.totalorder %s115, %s116
      %p125 = scmp.eq.s32.totalorder %s21, 0
      %p126 = por %p124, %p125
      %p127 = scmp.ne.s32.totalorder %s115, %s116
      %p128 = scmp.eq.s32.totalorder %s22, 1
      %p129 = por %p127, %p128
      %p131 = scmp.ne.s32.totalorder %s116, %s130
      %p132 = scmp.eq.s32.totalorder %s22, 0
      %p133 = por %p131, %p132
      %s135 = sadd.s32 %s134, 1
      %p138 = scmp.eq.s32.totalorder %s16, 1
      %p139 = scmp.ne.s32.totalorder %s134, %s136
      %p140 = scmp.eq.s32.totalorder %s16, 0
      %p141 = por %p139, %p140
      %p142 = scmp.ne.s32.totalorder %s134, %s136
      %p143 = scmp.eq.s32.totalorder %s21, 1
      %p144 = por %p142, %p143
      %p145 = scmp.ne.s32.totalorder %s136, %s137
      %p146 = scmp.eq.s32.totalorder %s21, 0
      %p147 = por %p145, %p146
      %p148 = scmp.ne.s32.totalorder %s136, %s137
      %p149 = scmp.eq.s32.totalorder %s22, 1
      %p150 = por %p148, %p149
      %p152 = scmp.ne.s32.totalorder %s137, %s151
      %p153 = scmp.eq.s32.totalorder %s22, 0
      %p154 = por %p152, %p153
      %s156 = sadd.s32 %s155, 1
      %p159 = scmp.eq.s32.totalorder %s16, 1
      %p160 = scmp.ne.s32.totalorder %s155, %s157
      %p161 = scmp.eq.s32.totalorder %s16, 0
      %p162 = por %p160, %p161
      %p163 = scmp.ne.s32.totalorder %s155, %s157
      %p164 = scmp.eq.s32.totalorder %s21, 1
      %p165 = por %p163, %p164
      %p166 = scmp.ne.s32.totalorder %s157, %s158
      %p167 = scmp.eq.s32.totalorder %s21, 0
      %p168 = por %p166, %p167
      %p169 = scmp.ne.s32.totalorder %s157, %s158
      %p170 = scmp.eq.s32.totalorder %s22, 1
      %p171 = por %p169, %p170
      %p173 = scmp.ne.s32.totalorder %s158, %s172
      %p174 = scmp.eq.s32.totalorder %s22, 0
      %p175 = por %p173, %p174
      %s176 = ssub.s32 %s16, %s23
      %p177 = scmp.eq.s32.totalorder %s176, 0
      %s179 = sadd.s32 %s178, 1
      %s180 = scalar_select %p177, %s178, %s179
      %p183 = pneg %p177
      %p184 = scmp.eq.s32.totalorder %s16, 1
      %p185 = por %p183, %p184
      %p186 = scmp.ne.s32.totalorder %s178, %s181
      %p187 = scmp.eq.s32.totalorder %s16, 0
      %p188 = por %p186, %p187
      %p189 = scmp.ne.s32.totalorder %s178, %s181
      %p190 = scmp.eq.s32.totalorder %s21, 1
      %p191 = por %p189, %p190
      %p192 = scmp.ne.s32.totalorder %s181, %s182
      %p193 = scmp.eq.s32.totalorder %s21, 0
      %p194 = por %p192, %p193
      %p195 = scmp.ne.s32.totalorder %s181, %s182
      %p196 = scmp.eq.s32.totalorder %s22, 1
      %p197 = por %p195, %p196
      %p199 = scmp.ne.s32.totalorder %s182, %s198
      %p200 = scmp.eq.s32.totalorder %s22, 0
      %p201 = por %p199, %p200
      %p202 = scmp.le.s32.totalorder 1, %s16
      %p203 = scmp.lt.s32.totalorder %s16, 3
      %p204 = pnand %p202, %p203
      %p205 = pneg %p204
      // Predicated region
      $region9: #{tpu_custom_call.1} parent=5 // pred_check
        _
      $region10: #{tpu_custom_call.1} parent=5 // pred_check_branch
        %207 = sbr.rel (%p204) target = $region12
      $region11: #{tpu_custom_call.1} parent=5 // pred_region
        %s208 = ssub.s32 %s16, 1
        // Predicated region
        $region13: #{tpu_custom_call.1} parent=11 // pred_check
          %p209 = pneg %p63
        $region14: #{tpu_custom_call.1} parent=11 // pred_check_branch
          %211 = sbr.rel (%p209) target = $region16
        $region15: #{tpu_custom_call.1} parent=11 // pred_region
          _
        $region16: #{tpu_custom_call.1} parent=11 // pred_fallthru
          _
        // Predicated region
        $region17: #{tpu_custom_call.1} parent=11 // pred_check
          %p212 = pneg %p84
        $region18: #{tpu_custom_call.1} parent=11 // pred_check_branch
          %214 = sbr.rel (%p212) target = $region20
        $region19: #{tpu_custom_call.1} parent=11 // pred_region
          _
        $region20: #{tpu_custom_call.1} parent=11 // pred_fallthru
          _
        // Predicated region
        $region21: #{tpu_custom_call.1} parent=11 // pred_check
          %p215 = pneg %p105
        $region22: #{tpu_custom_call.1} parent=11 // pred_check_branch
          %217 = sbr.rel (%p215) target = $region24
        $region23: #{tpu_custom_call.1} parent=11 // pred_region
          _
        $region24: #{tpu_custom_call.1} parent=11 // pred_fallthru
          _
        // Predicated region
        $region25: #{tpu_custom_call.1} parent=11 // pred_check
          %p218 = pneg %p126
        $region26: #{tpu_custom_call.1} parent=11 // pred_check_branch
          %220 = sbr.rel (%p218) target = $region28
        $region27: #{tpu_custom_call.1} parent=11 // pred_region
          _
        $region28: #{tpu_custom_call.1} parent=11 // pred_fallthru
          _
        // Predicated region
        $region29: #{tpu_custom_call.1} parent=11 // pred_check
          %p221 = pneg %p147
        $region30: #{tpu_custom_call.1} parent=11 // pred_check_branch
          %223 = sbr.rel (%p221) target = $region32
        $region31: #{tpu_custom_call.1} parent=11 // pred_region
          _
        $region32: #{tpu_custom_call.1} parent=11 // pred_fallthru
          _
        // Predicated region
        $region33: #{tpu_custom_call.1} parent=11 // pred_check
          %p224 = pneg %p168
        $region34: #{tpu_custom_call.1} parent=11 // pred_check_branch
          %226 = sbr.rel (%p224) target = $region36
        $region35: #{tpu_custom_call.1} parent=11 // pred_region
          _
        $region36: #{tpu_custom_call.1} parent=11 // pred_fallthru
          _
      $region12: #{tpu_custom_call.1} parent=5 // pred_fallthru
        _
      %p227 = scmp.lt.s32.totalorder %s16, 2
      // Predicated region
      $region37: #{tpu_custom_call.1} parent=5 // pred_check
        %p228 = pneg %p227
      $region38: #{tpu_custom_call.1} parent=5 // pred_check_branch
        %230 = sbr.rel (%p228) target = $region40
      $region39: #{tpu_custom_call.1} parent=5 // pred_region
        // Predicated region
        $region41: #{tpu_custom_call.1} parent=39 // pred_check
          %p231 = pneg %p36
        $region42: #{tpu_custom_call.1} parent=39 // pred_check_branch
          %233 = sbr.rel (%p231) target = $region44
        $region43: #{tpu_custom_call.1} parent=39 // pred_region
          %p234 = scmp.lt.s32.totalorder %s16, 1
          %s235 = scalar_select %p234, %s16, 1
          %s236 = smul.addr %s235, 32
          %s237 = smul.addr %s236, 8
          %s238 = scalar_lea.vmem %s0, %s237
        $region44: #{tpu_custom_call.1} parent=39 // pred_fallthru
          _
      $region40: #{tpu_custom_call.1} parent=5 // pred_fallthru
        _
      %p239 = scmp.le.s32.totalorder 1, %s16
      %p240 = scmp.lt.s32.totalorder %s16, 3
      %p241 = pnand %p239, %p240
      %p242 = pneg %p241
      // Predicated region
      $region45: #{tpu_custom_call.1} parent=5 // pred_check
        _
      $region46: #{tpu_custom_call.1} parent=5 // pred_check_branch
        %244 = sbr.rel (%p241) target = $region48
      $region47: #{tpu_custom_call.1} parent=5 // pred_region
        %s245 = ssub.s32 %s16, 1
        %p246 = scmp.lt.s32.totalorder %s21, 1
        %s247 = scalar_select %p246, %s21, 1
        %s248 = smul.addr %s247, 32
        %s249 = smul.addr %s248, 8
        %s250 = scalar_lea.vmem %s0, %s249
        %p251 = pneg %p42
        %p252 = pneg %p39
        %p253 = pneg %p63
        %p254 = pneg %p60
        %p255 = pneg %p84
        %p256 = pneg %p81
        %p257 = pneg %p105
        %p258 = pneg %p102
        %p259 = pneg %p126
        %p260 = pneg %p123
        %p261 = pneg %p147
        %p262 = pneg %p144
        %p263 = pneg %p168
        %p264 = pneg %p165
        %p265 = pneg %p194
        %p266 = pneg %p191
        %s267 = sand.u32 %s181, 1
        %s268 = scalar_lea.sflag [#allocation6], %s267
        %s269 = sand.u32 %s181, 1
        %s270 = smul.addr %s269, 256
        %s271 = scalar_lea.vmem [#allocation5], %s270
        %p272 = scmp.lt.s32.totalorder %s21, 1
        %s273 = scalar_select %p272, %s21, 1
        %s274 = smul.addr %s273, 32
        %s275 = smul.addr %s274, 8
        %s276 = scalar_lea.vmem %s0, %s275
        %vm278 = vcmask 7168
        %279 = vst.msk [vmem:[#allocation2] sm:$0xff] %vm278, 0.0
        %280 = vst.msk [vmem:[#allocation2 + $0x8] sm:$0xff] %vm278, 0.0
        %vm281 = vcmask 1024
        %282 = vst.msk [vmem:[#allocation2 + $0x10] sm:$0x3] %vm281, 0.0
        %s283 = scalar_lea.vmem [#allocation2], 408
        %284 = vst.msk [vmem:[%s283] sm:$0xff] %vm278, 0.0
        %285 = vst.msk [vmem:[%s283 + $0x8] sm:$0xff] %vm278, 0.0
        %286 = vst.msk [vmem:[%s283 + $0x10] sm:$0x3] %vm281, 0.0
        %vm287 = vcmask 0
        %288 = vst.msk [vmem:[#allocation2] sm:$0x1] %vm287, 0.0
        %289 = vst.msk [vmem:[#allocation2 + $0x18] sm:$0x1] %vm287, 0.0
        %290 = vst.msk [vmem:[#allocation2 + $0x30] sm:$0x1] %vm287, 0.0
        %291 = vst.msk [vmem:[#allocation2 + $0x48] sm:$0x1] %vm287, 0.0
        %292 = vst.msk [vmem:[#allocation2 + $0x60] sm:$0x1] %vm287, 0.0
        %293 = vst.msk [vmem:[#allocation2 + $0x78] sm:$0x1] %vm287, 0.0
        %294 = vst.msk [vmem:[#allocation2 + $0x90] sm:$0x1] %vm287, 0.0
        %295 = vst.msk [vmem:[#allocation2 + $0xa8] sm:$0x1] %vm287, 0.0
        %296 = vst.msk [vmem:[#allocation2 + $0xc0] sm:$0x1] %vm287, 0.0
        %297 = vst.msk [vmem:[#allocation2 + $0xd8] sm:$0x1] %vm287, 0.0
        %298 = vst.msk [vmem:[#allocation2 + $0xf0] sm:$0x1] %vm287, 0.0
        %299 = vst.msk [vmem:[#allocation2 + $0x108] sm:$0x1] %vm287, 0.0
        %300 = vst.msk [vmem:[#allocation2 + $0x120] sm:$0x1] %vm287, 0.0
        %301 = vst.msk [vmem:[#allocation2 + $0x138] sm:$0x1] %vm287, 0.0
        %302 = vst.msk [vmem:[#allocation2 + $0x150] sm:$0x1] %vm287, 0.0
        %303 = vst.msk [vmem:[#allocation2 + $0x168] sm:$0x1] %vm287, 0.0
        %304 = vst.msk [vmem:[#allocation2 + $0x180] sm:$0x1] %vm287, 0.0
        %305 = vst.msk [vmem:[#allocation2 + $0x198] sm:$0x1] %vm287, 0.0
        %306 = vst.msk [vmem:[#allocation2 + $0x11] sm:$0x1] %vm287, 0.0
        %307 = vst.msk [vmem:[#allocation2 + $0x29] sm:$0x1] %vm287, 0.0
        %308 = vst.msk [vmem:[#allocation2 + $0x41] sm:$0x1] %vm287, 0.0
        %309 = vst.msk [vmem:[#allocation2 + $0x59] sm:$0x1] %vm287, 0.0
        %310 = vst.msk [vmem:[#allocation2 + $0x71] sm:$0x1] %vm287, 0.0
        %311 = vst.msk [vmem:[#allocation2 + $0x89] sm:$0x1] %vm287, 0.0
        %312 = vst.msk [vmem:[#allocation2 + $0xa1] sm:$0x1] %vm287, 0.0
        %313 = vst.msk [vmem:[#allocation2 + $0xb9] sm:$0x1] %vm287, 0.0
        %314 = vst.msk [vmem:[#allocation2 + $0xd1] sm:$0x1] %vm287, 0.0
        %315 = vst.msk [vmem:[#allocation2 + $0xe9] sm:$0x1] %vm287, 0.0
        %316 = vst.msk [vmem:[#allocation2 + $0x101] sm:$0x1] %vm287, 0.0
        %317 = vst.msk [vmem:[#allocation2 + $0x119] sm:$0x1] %vm287, 0.0
        %318 = vst.msk [vmem:[#allocation2 + $0x131] sm:$0x1] %vm287, 0.0
        %319 = vst.msk [vmem:[#allocation2 + $0x149] sm:$0x1] %vm287, 0.0
        %320 = vst.msk [vmem:[#allocation2 + $0x161] sm:$0x1] %vm287, 0.0
        %321 = vst.msk [vmem:[#allocation2 + $0x179] sm:$0x1] %vm287, 0.0
        %322 = vst.msk [vmem:[#allocation2 + $0x191] sm:$0x1] %vm287, 0.0
        %323 = vst.msk [vmem:[#allocation2 + $0x1a9] sm:$0x1] %vm287, 0.0
        %vm324 = vcmask 257024
        %325 = vst.msk [vmem:[#allocation3] sm:$0xf] %vm324, 0
        %326 = vst.msk [vmem:[#allocation3 + $0x4] sm:$0xf] %vm324, 0
        %vm327 = vcmask 253952
        %328 = vst.msk [vmem:[#allocation3 + $0x8] sm:$0x1] %vm327, 0
        %s329 = scalar_lea.vmem [#allocation3], 204
        %330 = vst.msk [vmem:[%s329] sm:$0xf] %vm324, 0
        %331 = vst.msk [vmem:[%s329 + $0x4] sm:$0xf] %vm324, 0
        %332 = vst.msk [vmem:[%s329 + $0x8] sm:$0x1] %vm327, 0
        %vm333 = vcmask 253952
        %vm334 = vsmask.f32 256
        %vm335 = vmand %vm333, %vm334
        %v336 = vld [vmem:[#allocation3] sm:$0x1]
        %v337 = vsel %vm335, 0, %v336
        %338 = vst [vmem:[#allocation3] sm:$0x1] %v337
        %v339 = vld [vmem:[#allocation3 + $0xc] sm:$0x1]
        %v340 = vsel %vm335, 0, %v339
        %341 = vst [vmem:[#allocation3 + $0xc] sm:$0x1] %v340
        %v342 = vld [vmem:[#allocation3 + $0x18] sm:$0x1]
        %v343 = vsel %vm335, 0, %v342
        %344 = vst [vmem:[#allocation3 + $0x18] sm:$0x1] %v343
        %v345 = vld [vmem:[#allocation3 + $0x24] sm:$0x1]
        %v346 = vsel %vm335, 0, %v345
        %347 = vst [vmem:[#allocation3 + $0x24] sm:$0x1] %v346
        %v348 = vld [vmem:[#allocation3 + $0x30] sm:$0x1]
        %v349 = vsel %vm335, 0, %v348
        %350 = vst [vmem:[#allocation3 + $0x30] sm:$0x1] %v349
        %v351 = vld [vmem:[#allocation3 + $0x3c] sm:$0x1]
        %v352 = vsel %vm335, 0, %v351
        %353 = vst [vmem:[#allocation3 + $0x3c] sm:$0x1] %v352
        %v354 = vld [vmem:[#allocation3 + $0x48] sm:$0x1]
        %v355 = vsel %vm335, 0, %v354
        %356 = vst [vmem:[#allocation3 + $0x48] sm:$0x1] %v355
        %v357 = vld [vmem:[#allocation3 + $0x54] sm:$0x1]
        %v358 = vsel %vm335, 0, %v357
        %359 = vst [vmem:[#allocation3 + $0x54] sm:$0x1] %v358
        %v360 = vld [vmem:[#allocation3 + $0x60] sm:$0x1]
        %v361 = vsel %vm335, 0, %v360
        %362 = vst [vmem:[#allocation3 + $0x60] sm:$0x1] %v361
        %v363 = vld [vmem:[#allocation3 + $0x6c] sm:$0x1]
        %v364 = vsel %vm335, 0, %v363
        %365 = vst [vmem:[#allocation3 + $0x6c] sm:$0x1] %v364
        %v366 = vld [vmem:[#allocation3 + $0x78] sm:$0x1]
        %v367 = vsel %vm335, 0, %v366
        %368 = vst [vmem:[#allocation3 + $0x78] sm:$0x1] %v367
        %v369 = vld [vmem:[#allocation3 + $0x84] sm:$0x1]
        %v370 = vsel %vm335, 0, %v369
        %371 = vst [vmem:[#allocation3 + $0x84] sm:$0x1] %v370
        %v372 = vld [vmem:[#allocation3 + $0x90] sm:$0x1]
        %v373 = vsel %vm335, 0, %v372
        %374 = vst [vmem:[#allocation3 + $0x90] sm:$0x1] %v373
        %v375 = vld [vmem:[#allocation3 + $0x9c] sm:$0x1]
        %v376 = vsel %vm335, 0, %v375
        %377 = vst [vmem:[#allocation3 + $0x9c] sm:$0x1] %v376
        %v378 = vld [vmem:[#allocation3 + $0xa8] sm:$0x1]
        %v379 = vsel %vm335, 0, %v378
        %380 = vst [vmem:[#allocation3 + $0xa8] sm:$0x1] %v379
        %v381 = vld [vmem:[#allocation3 + $0xb4] sm:$0x1]
        %v382 = vsel %vm335, 0, %v381
        %383 = vst [vmem:[#allocation3 + $0xb4] sm:$0x1] %v382
        %v384 = vld [vmem:[#allocation3 + $0xc0] sm:$0x1]
        %v385 = vsel %vm335, 0, %v384
        %386 = vst [vmem:[#allocation3 + $0xc0] sm:$0x1] %v385
        %v387 = vld [vmem:[#allocation3 + $0xcc] sm:$0x1]
        %v388 = vsel %vm335, 0, %v387
        %389 = vst [vmem:[#allocation3 + $0xcc] sm:$0x1] %v388
        %vm390 = vsmask.f32 7938
        %vm391 = vmand %vm333, %vm390
        %v392 = vld [vmem:[#allocation3 + $0x8] sm:$0x1]
        %v393 = vsel %vm391, 0, %v392
        %394 = vst [vmem:[#allocation3 + $0x8] sm:$0x1] %v393
        %v395 = vld [vmem:[#allocation3 + $0x14] sm:$0x1]
        %v396 = vsel %vm391, 0, %v395
        %397 = vst [vmem:[#allocation3 + $0x14] sm:$0x1] %v396
        %v398 = vld [vmem:[#allocation3 + $0x20] sm:$0x1]
        %v399 = vsel %vm391, 0, %v398
        %400 = vst [vmem:[#allocation3 + $0x20] sm:$0x1] %v399
        %v401 = vld [vmem:[#allocation3 + $0x2c] sm:$0x1]
        %v402 = vsel %vm391, 0, %v401
        %403 = vst [vmem:[#allocation3 + $0x2c] sm:$0x1] %v402
        %v404 = vld [vmem:[#allocation3 + $0x38] sm:$0x1]
        %v405 = vsel %vm391, 0, %v404
        %406 = vst [vmem:[#allocation3 + $0x38] sm:$0x1] %v405
        %v407 = vld [vmem:[#allocation3 + $0x44] sm:$0x1]
        %v408 = vsel %vm391, 0, %v407
        %409 = vst [vmem:[#allocation3 + $0x44] sm:$0x1] %v408
        %v410 = vld [vmem:[#allocation3 + $0x50] sm:$0x1]
        %v411 = vsel %vm391, 0, %v410
        %412 = vst [vmem:[#allocation3 + $0x50] sm:$0x1] %v411
        %v413 = vld [vmem:[#allocation3 + $0x5c] sm:$0x1]
        %v414 = vsel %vm391, 0, %v413
        %415 = vst [vmem:[#allocation3 + $0x5c] sm:$0x1] %v414
        %v416 = vld [vmem:[#allocation3 + $0x68] sm:$0x1]
        %v417 = vsel %vm391, 0, %v416
        %418 = vst [vmem:[#allocation3 + $0x68] sm:$0x1] %v417
        %v419 = vld [vmem:[#allocation3 + $0x74] sm:$0x1]
        %v420 = vsel %vm391, 0, %v419
        %421 = vst [vmem:[#allocation3 + $0x74] sm:$0x1] %v420
        %v422 = vld [vmem:[#allocation3 + $0x80] sm:$0x1]
        %v423 = vsel %vm391, 0, %v422
        %424 = vst [vmem:[#allocation3 + $0x80] sm:$0x1] %v423
        %v425 = vld [vmem:[#allocation3 + $0x8c] sm:$0x1]
        %v426 = vsel %vm391, 0, %v425
        %427 = vst [vmem:[#allocation3 + $0x8c] sm:$0x1] %v426
        %v428 = vld [vmem:[#allocation3 + $0x98] sm:$0x1]
        %v429 = vsel %vm391, 0, %v428
        %430 = vst [vmem:[#allocation3 + $0x98] sm:$0x1] %v429
        %v431 = vld [vmem:[#allocation3 + $0xa4] sm:$0x1]
        %v432 = vsel %vm391, 0, %v431
        %433 = vst [vmem:[#allocation3 + $0xa4] sm:$0x1] %v432
        %v434 = vld [vmem:[#allocation3 + $0xb0] sm:$0x1]
        %v435 = vsel %vm391, 0, %v434
        %436 = vst [vmem:[#allocation3 + $0xb0] sm:$0x1] %v435
        %v437 = vld [vmem:[#allocation3 + $0xbc] sm:$0x1]
        %v438 = vsel %vm391, 0, %v437
        %439 = vst [vmem:[#allocation3 + $0xbc] sm:$0x1] %v438
        %v440 = vld [vmem:[#allocation3 + $0xc8] sm:$0x1]
        %v441 = vsel %vm391, 0, %v440
        %442 = vst [vmem:[#allocation3 + $0xc8] sm:$0x1] %v441
        %v443 = vld [vmem:[#allocation3 + $0xd4] sm:$0x1]
        %v444 = vsel %vm391, 0, %v443
        %445 = vst [vmem:[#allocation3 + $0xd4] sm:$0x1] %v444
        %v446 = vld [vmem:[%s276] sm:$0xff]
        %v447 = vld [vmem:[%s276 + $0x8] sm:$0xff]
        %v448 = vld [vmem:[%s276 + $0x10] sm:$0xff]
        %v449 = vld [vmem:[%s276 + $0x18] sm:$0xff]
        %v450 = vld [vmem:[%s276 + $0x20] sm:$0xff]
        %v451 = vld [vmem:[%s276 + $0x28] sm:$0xff]
        %v452 = vld [vmem:[%s276 + $0x30] sm:$0xff]
        %v453 = vld [vmem:[%s276 + $0x38] sm:$0xff]
        %v454 = vld [vmem:[%s276 + $0x40] sm:$0xff]
        %v455 = vld [vmem:[%s276 + $0x48] sm:$0xff]
        %v456 = vld [vmem:[%s276 + $0x50] sm:$0xff]
        %v457 = vld [vmem:[%s276 + $0x58] sm:$0xff]
        %v458 = vld [vmem:[%s276 + $0x60] sm:$0xff]
        %v459 = vld [vmem:[%s276 + $0x68] sm:$0xff]
        %v460 = vld [vmem:[%s276 + $0x70] sm:$0xff]
        %v461 = vld [vmem:[%s276 + $0x78] sm:$0xff]
        %v462 = vld [vmem:[%s276 + $0x80] sm:$0xff]
        %v463 = vld [vmem:[%s276 + $0x88] sm:$0xff]
        %v464 = vld [vmem:[%s276 + $0x90] sm:$0xff]
        %v465 = vld [vmem:[%s276 + $0x98] sm:$0xff]
        %v466 = vld [vmem:[%s276 + $0xa0] sm:$0xff]
        %v467 = vld [vmem:[%s276 + $0xa8] sm:$0xff]
        %v468 = vld [vmem:[%s276 + $0xb0] sm:$0xff]
        %v469 = vld [vmem:[%s276 + $0xb8] sm:$0xff]
        %v470 = vld [vmem:[%s276 + $0xc0] sm:$0xff]
        %v471 = vld [vmem:[%s276 + $0xc8] sm:$0xff]
        %v472 = vld [vmem:[%s276 + $0xd0] sm:$0xff]
        %v473 = vld [vmem:[%s276 + $0xd8] sm:$0xff]
        %v474 = vld [vmem:[%s276 + $0xe0] sm:$0xff]
        %v475 = vld [vmem:[%s276 + $0xe8] sm:$0xff]
        %v476 = vld [vmem:[%s276 + $0xf0] sm:$0xff]
        %v477 = vld [vmem:[%s276 + $0xf8] sm:$0xff]
        %s478 = scalar_lea.vmem [#allocation2], 24
        %479 = vst.msk [vmem:[%s478 + $0x1] sm:$0xff] %vm278, %v446
        %480 = vst.msk [vmem:[%s478 + $0x9] sm:$0xff] %vm278, %v447
        %481 = vst.msk [vmem:[%s478 + $0x19] sm:$0xff] %vm278, %v448
        %482 = vst.msk [vmem:[%s478 + $0x21] sm:$0xff] %vm278, %v449
        %483 = vst.msk [vmem:[%s478 + $0x31] sm:$0xff] %vm278, %v450
        %484 = vst.msk [vmem:[%s478 + $0x39] sm:$0xff] %vm278, %v451
        %485 = vst.msk [vmem:[%s478 + $0x49] sm:$0xff] %vm278, %v452
        %486 = vst.msk [vmem:[%s478 + $0x51] sm:$0xff] %vm278, %v453
        %487 = vst.msk [vmem:[%s478 + $0x61] sm:$0xff] %vm278, %v454
        %488 = vst.msk [vmem:[%s478 + $0x69] sm:$0xff] %vm278, %v455
        %489 = vst.msk [vmem:[%s478 + $0x79] sm:$0xff] %vm278, %v456
        %490 = vst.msk [vmem:[%s478 + $0x81] sm:$0xff] %vm278, %v457
        %491 = vst.msk [vmem:[%s478 + $0x91] sm:$0xff] %vm278, %v458
        %492 = vst.msk [vmem:[%s478 + $0x99] sm:$0xff] %vm278, %v459
        %493 = vst.msk [vmem:[%s478 + $0xa9] sm:$0xff] %vm278, %v460
        %494 = vst.msk [vmem:[%s478 + $0xb1] sm:$0xff] %vm278, %v461
        %495 = vst.msk [vmem:[%s478 + $0xc1] sm:$0xff] %vm278, %v462
        %496 = vst.msk [vmem:[%s478 + $0xc9] sm:$0xff] %vm278, %v463
        %497 = vst.msk [vmem:[%s478 + $0xd9] sm:$0xff] %vm278, %v464
        %498 = vst.msk [vmem:[%s478 + $0xe1] sm:$0xff] %vm278, %v465
        %499 = vst.msk [vmem:[%s478 + $0xf1] sm:$0xff] %vm278, %v466
        %500 = vst.msk [vmem:[%s478 + $0xf9] sm:$0xff] %vm278, %v467
        %501 = vst.msk [vmem:[%s478 + $0x109] sm:$0xff] %vm278, %v468
        %502 = vst.msk [vmem:[%s478 + $0x111] sm:$0xff] %vm278, %v469
        %503 = vst.msk [vmem:[%s478 + $0x121] sm:$0xff] %vm278, %v470
        %504 = vst.msk [vmem:[%s478 + $0x129] sm:$0xff] %vm278, %v471
        %505 = vst.msk [vmem:[%s478 + $0x139] sm:$0xff] %vm278, %v472
        %506 = vst.msk [vmem:[%s478 + $0x141] sm:$0xff] %vm278, %v473
        %507 = vst.msk [vmem:[%s478 + $0x151] sm:$0xff] %vm278, %v474
        %508 = vst.msk [vmem:[%s478 + $0x159] sm:$0xff] %vm278, %v475
        %509 = vst.msk [vmem:[%s478 + $0x169] sm:$0xff] %vm278, %v476
        %510 = vst.msk [vmem:[%s478 + $0x171] sm:$0xff] %vm278, %v477
        %v511 = vld [vmem:[#allocation2] sm:$0xff]
        %v512 = vld [vmem:[#allocation2 + $0x8] sm:$0xff]
        %v513 = vld [vmem:[#allocation2 + $0x18] sm:$0xff]
        %v514 = vld [vmem:[#allocation2 + $0x20] sm:$0xff]
        %v515 = vld [vmem:[#allocation2 + $0x30] sm:$0xff]
        %v516 = vld [vmem:[#allocation2 + $0x38] sm:$0xff]
        %v517 = vld [vmem:[#allocation2 + $0x48] sm:$0xff]
        %v518 = vld [vmem:[#allocation2 + $0x50] sm:$0xff]
        %v519 = vld [vmem:[#allocation2 + $0x60] sm:$0xff]
        %v520 = vld [vmem:[#allocation2 + $0x68] sm:$0xff]
        %v521 = vld [vmem:[#allocation2 + $0x78] sm:$0xff]
        %v522 = vld [vmem:[#allocation2 + $0x80] sm:$0xff]
        %v523 = vld [vmem:[#allocation2 + $0x90] sm:$0xff]
        %v524 = vld [vmem:[#allocation2 + $0x98] sm:$0xff]
        %v525 = vld [vmem:[#allocation2 + $0xa8] sm:$0xff]
        %v526 = vld [vmem:[#allocation2 + $0xb0] sm:$0xff]
        %v527 = vld [vmem:[#allocation2 + $0xc0] sm:$0xff]
        %v528 = vld [vmem:[#allocation2 + $0xc8] sm:$0xff]
        %v529 = vld [vmem:[#allocation2 + $0xd8] sm:$0xff]
        %v530 = vld [vmem:[#allocation2 + $0xe0] sm:$0xff]
        %v531 = vld [vmem:[#allocation2 + $0xf0] sm:$0xff]
        %v532 = vld [vmem:[#allocation2 + $0xf8] sm:$0xff]
        %v533 = vld [vmem:[#allocation2 + $0x108] sm:$0xff]
        %v534 = vld [vmem:[#allocation2 + $0x110] sm:$0xff]
        %v535 = vld [vmem:[#allocation2 + $0x120] sm:$0xff]
        %v536 = vld [vmem:[#allocation2 + $0x128] sm:$0xff]
        %v537 = vld [vmem:[#allocation2 + $0x138] sm:$0xff]
        %v538 = vld [vmem:[#allocation2 + $0x140] sm:$0xff]
        %v539 = vld [vmem:[#allocation2 + $0x150] sm:$0xff]
        %v540 = vld [vmem:[#allocation2 + $0x158] sm:$0xff]
        %v541 = vld [vmem:[#allocation2 + $0x168] sm:$0xff]
        %v542 = vld [vmem:[#allocation2 + $0x170] sm:$0xff]
        %v543 = vld [vmem:[%s1] sm:$0x1]
        %545 = vset.pattern.permute.xlu0 0
        %546 = vperm.xlu0 %545, %v511
        %v547 = vpop.permute.xlu0 %546
        %550 = vset.pattern.permute.xlu0 0
        %551 = vperm.xlu0 %550, %v512
        %v552 = vpop.permute.xlu0 %551
        %555 = vset.pattern.permute.xlu0 0
        %556 = vperm.xlu0 %555, %v513
        %v557 = vpop.permute.xlu0 %556
        %560 = vset.pattern.permute.xlu0 0
        %561 = vperm.xlu0 %560, %v514
        %v562 = vpop.permute.xlu0 %561
        %565 = vset.pattern.permute.xlu0 0
        %566 = vperm.xlu0 %565, %v515
        %v567 = vpop.permute.xlu0 %566
        %570 = vset.pattern.permute.xlu0 0
        %571 = vperm.xlu0 %570, %v516
        %v572 = vpop.permute.xlu0 %571
        %575 = vset.pattern.permute.xlu0 0
        %576 = vperm.xlu0 %575, %v517
        %v577 = vpop.permute.xlu0 %576
        %580 = vset.pattern.permute.xlu0 0
        %581 = vperm.xlu0 %580, %v518
        %v582 = vpop.permute.xlu0 %581
        %585 = vset.pattern.permute.xlu0 0
        %586 = vperm.xlu0 %585, %v519
        %v587 = vpop.permute.xlu0 %586
        %590 = vset.pattern.permute.xlu0 0
        %591 = vperm.xlu0 %590, %v520
        %v592 = vpop.permute.xlu0 %591
        %595 = vset.pattern.permute.xlu0 0
        %596 = vperm.xlu0 %595, %v521
        %v597 = vpop.permute.xlu0 %596
        %600 = vset.pattern.permute.xlu0 0
        %601 = vperm.xlu0 %600, %v522
        %v602 = vpop.permute.xlu0 %601
        %605 = vset.pattern.permute.xlu0 0
        %606 = vperm.xlu0 %605, %v523
        %v607 = vpop.permute.xlu0 %606
        %610 = vset.pattern.permute.xlu0 0
        %611 = vperm.xlu0 %610, %v524
        %v612 = vpop.permute.xlu0 %611
        %615 = vset.pattern.permute.xlu0 0
        %616 = vperm.xlu0 %615, %v525
        %v617 = vpop.permute.xlu0 %616
        %620 = vset.pattern.permute.xlu0 0
        %621 = vperm.xlu0 %620, %v526
        %v622 = vpop.permute.xlu0 %621
        %625 = vset.pattern.permute.xlu0 0
        %626 = vperm.xlu0 %625, %v527
        %v627 = vpop.permute.xlu0 %626
        %630 = vset.pattern.permute.xlu0 0
        %631 = vperm.xlu0 %630, %v528
        %v632 = vpop.permute.xlu0 %631
        %635 = vset.pattern.permute.xlu0 0
        %636 = vperm.xlu0 %635, %v529
        %v637 = vpop.permute.xlu0 %636
        %640 = vset.pattern.permute.xlu0 0
        %641 = vperm.xlu0 %640, %v530
        %v642 = vpop.permute.xlu0 %641
        %645 = vset.pattern.permute.xlu0 0
        %646 = vperm.xlu0 %645, %v531
        %v647 = vpop.permute.xlu0 %646
        %650 = vset.pattern.permute.xlu0 0
        %651 = vperm.xlu0 %650, %v532
        %v652 = vpop.permute.xlu0 %651
        %655 = vset.pattern.permute.xlu0 0
        %656 = vperm.xlu0 %655, %v533
        %v657 = vpop.permute.xlu0 %656
        %660 = vset.pattern.permute.xlu0 0
        %661 = vperm.xlu0 %660, %v534
        %v662 = vpop.permute.xlu0 %661
        %665 = vset.pattern.permute.xlu0 0
        %666 = vperm.xlu0 %665, %v535
        %v667 = vpop.permute.xlu0 %666
        %670 = vset.pattern.permute.xlu0 0
        %671 = vperm.xlu0 %670, %v536
        %v672 = vpop.permute.xlu0 %671
        %675 = vset.pattern.permute.xlu0 0
        %676 = vperm.xlu0 %675, %v537
        %v677 = vpop.permute.xlu0 %676
        %680 = vset.pattern.permute.xlu0 0
        %681 = vperm.xlu0 %680, %v538
        %v682 = vpop.permute.xlu0 %681
        %685 = vset.pattern.permute.xlu0 0
        %686 = vperm.xlu0 %685, %v539
        %v687 = vpop.permute.xlu0 %686
        %690 = vset.pattern.permute.xlu0 0
        %691 = vperm.xlu0 %690, %v540
        %v692 = vpop.permute.xlu0 %691
        %695 = vset.pattern.permute.xlu0 0
        %696 = vperm.xlu0 %695, %v541
        %v697 = vpop.permute.xlu0 %696
        %700 = vset.pattern.permute.xlu0 0
        %701 = vperm.xlu0 %700, %v542
        %v702 = vpop.permute.xlu0 %701
        %v704 = vlaneseq
        %v705 = vshrl.u32 %v704, 7
        %v706 = vsub.s32 0, %v705
        %v707 = vrot.slane %v543, %v706
        %v708 = vmul.f32 %v547, %v707
        %v709 = vmul.f32 %v552, %v707
        %v710 = vmul.f32 %v557, %v707
        %v711 = vmul.f32 %v562, %v707
        %v712 = vmul.f32 %v567, %v707
        %v713 = vmul.f32 %v572, %v707
        %v714 = vmul.f32 %v577, %v707
        %v715 = vmul.f32 %v582, %v707
        %v716 = vmul.f32 %v587, %v707
        %v717 = vmul.f32 %v592, %v707
        %v718 = vmul.f32 %v597, %v707
        %v719 = vmul.f32 %v602, %v707
        %v720 = vmul.f32 %v607, %v707
        %v721 = vmul.f32 %v612, %v707
        %v722 = vmul.f32 %v617, %v707
        %v723 = vmul.f32 %v622, %v707
        %v724 = vmul.f32 %v627, %v707
        %v725 = vmul.f32 %v632, %v707
        %v726 = vmul.f32 %v637, %v707
        %v727 = vmul.f32 %v642, %v707
        %v728 = vmul.f32 %v647, %v707
        %v729 = vmul.f32 %v652, %v707
        %v730 = vmul.f32 %v657, %v707
        %v731 = vmul.f32 %v662, %v707
        %v732 = vmul.f32 %v667, %v707
        %v733 = vmul.f32 %v672, %v707
        %v734 = vmul.f32 %v677, %v707
        %v735 = vmul.f32 %v682, %v707
        %v736 = vmul.f32 %v687, %v707
        %v737 = vmul.f32 %v692, %v707
        %v738 = vmul.f32 %v697, %v707
        %v739 = vmul.f32 %v702, %v707
        %v740 = vadd.f32 %v708, 0.0
        %v741 = vadd.f32 %v709, 0.0
        %v742 = vadd.f32 %v710, 0.0
        %v743 = vadd.f32 %v711, 0.0
        %v744 = vadd.f32 %v712, 0.0
        %v745 = vadd.f32 %v713, 0.0
        %v746 = vadd.f32 %v714, 0.0
        %v747 = vadd.f32 %v715, 0.0
        %v748 = vadd.f32 %v716, 0.0
        %v749 = vadd.f32 %v717, 0.0
        %v750 = vadd.f32 %v718, 0.0
        %v751 = vadd.f32 %v719, 0.0
        %v752 = vadd.f32 %v720, 0.0
        %v753 = vadd.f32 %v721, 0.0
        %v754 = vadd.f32 %v722, 0.0
        %v755 = vadd.f32 %v723, 0.0
        %v756 = vadd.f32 %v724, 0.0
        %v757 = vadd.f32 %v725, 0.0
        %v758 = vadd.f32 %v726, 0.0
        %v759 = vadd.f32 %v727, 0.0
        %v760 = vadd.f32 %v728, 0.0
        %v761 = vadd.f32 %v729, 0.0
        %v762 = vadd.f32 %v730, 0.0
        %v763 = vadd.f32 %v731, 0.0
        %v764 = vadd.f32 %v732, 0.0
        %v765 = vadd.f32 %v733, 0.0
        %v766 = vadd.f32 %v734, 0.0
        %v767 = vadd.f32 %v735, 0.0
        %v768 = vadd.f32 %v736, 0.0
        %v769 = vadd.f32 %v737, 0.0
        %v770 = vadd.f32 %v738, 0.0
        %v771 = vadd.f32 %v739, 0.0
        %v772 = vld [vmem:[#allocation2 + $0x1] sm:$0xff]
        %v773 = vld [vmem:[#allocation2 + $0x9] sm:$0xff]
        %v774 = vld [vmem:[#allocation2 + $0x19] sm:$0xff]
        %v775 = vld [vmem:[#allocation2 + $0x21] sm:$0xff]
        %v776 = vld [vmem:[#allocation2 + $0x31] sm:$0xff]
        %v777 = vld [vmem:[#allocation2 + $0x39] sm:$0xff]
        %v778 = vld [vmem:[#allocation2 + $0x49] sm:$0xff]
        %v779 = vld [vmem:[#allocation2 + $0x51] sm:$0xff]
        %v780 = vld [vmem:[#allocation2 + $0x61] sm:$0xff]
        %v781 = vld [vmem:[#allocation2 + $0x69] sm:$0xff]
        %v782 = vld [vmem:[#allocation2 + $0x79] sm:$0xff]
        %v783 = vld [vmem:[#allocation2 + $0x81] sm:$0xff]
        %v784 = vld [vmem:[#allocation2 + $0x91] sm:$0xff]
        %v785 = vld [vmem:[#allocation2 + $0x99] sm:$0xff]
        %v786 = vld [vmem:[#allocation2 + $0xa9] sm:$0xff]
        %v787 = vld [vmem:[#allocation2 + $0xb1] sm:$0xff]
        %v788 = vld [vmem:[#allocation2 + $0xc1] sm:$0xff]
        %v789 = vld [vmem:[#allocation2 + $0xc9] sm:$0xff]
        %v790 = vld [vmem:[#allocation2 + $0xd9] sm:$0xff]
        %v791 = vld [vmem:[#allocation2 + $0xe1] sm:$0xff]
        %v792 = vld [vmem:[#allocation2 + $0xf1] sm:$0xff]
        %v793 = vld [vmem:[#allocation2 + $0xf9] sm:$0xff]
        %v794 = vld [vmem:[#allocation2 + $0x109] sm:$0xff]
        %v795 = vld [vmem:[#allocation2 + $0x111] sm:$0xff]
        %v796 = vld [vmem:[#allocation2 + $0x121] sm:$0xff]
        %v797 = vld [vmem:[#allocation2 + $0x129] sm:$0xff]
        %v798 = vld [vmem:[#allocation2 + $0x139] sm:$0xff]
        %v799 = vld [vmem:[#allocation2 + $0x141] sm:$0xff]
        %v800 = vld [vmem:[#allocation2 + $0x151] sm:$0xff]
        %v801 = vld [vmem:[#allocation2 + $0x159] sm:$0xff]
        %v802 = vld [vmem:[#allocation2 + $0x169] sm:$0xff]
        %v803 = vld [vmem:[#allocation2 + $0x171] sm:$0xff]
        %v804 = vld [vmem:[%s1 + $0x1] sm:$0x1]
        %806 = vset.pattern.permute.xlu0 0
        %807 = vperm.xlu0 %806, %v772
        %v808 = vpop.permute.xlu0 %807
        %811 = vset.pattern.permute.xlu0 0
        %812 = vperm.xlu0 %811, %v773
        %v813 = vpop.permute.xlu0 %812
        %816 = vset.pattern.permute.xlu0 0
        %817 = vperm.xlu0 %816, %v774
        %v818 = vpop.permute.xlu0 %817
        %821 = vset.pattern.permute.xlu0 0
        %822 = vperm.xlu0 %821, %v775
        %v823 = vpop.permute.xlu0 %822
        %826 = vset.pattern.permute.xlu0 0
        %827 = vperm.xlu0 %826, %v776
        %v828 = vpop.permute.xlu0 %827
        %831 = vset.pattern.permute.xlu0 0
        %832 = vperm.xlu0 %831, %v777
        %v833 = vpop.permute.xlu0 %832
        %836 = vset.pattern.permute.xlu0 0
        %837 = vperm.xlu0 %836, %v778
        %v838 = vpop.permute.xlu0 %837
        %841 = vset.pattern.permute.xlu0 0
        %842 = vperm.xlu0 %841, %v779
        %v843 = vpop.permute.xlu0 %842
        %846 = vset.pattern.permute.xlu0 0
        %847 = vperm.xlu0 %846, %v780
        %v848 = vpop.permute.xlu0 %847
        %851 = vset.pattern.permute.xlu0 0
        %852 = vperm.xlu0 %851, %v781
        %v853 = vpop.permute.xlu0 %852
        %856 = vset.pattern.permute.xlu0 0
        %857 = vperm.xlu0 %856, %v782
        %v858 = vpop.permute.xlu0 %857
        %861 = vset.pattern.permute.xlu0 0
        %862 = vperm.xlu0 %861, %v783
        %v863 = vpop.permute.xlu0 %862
        %866 = vset.pattern.permute.xlu0 0
        %867 = vperm.xlu0 %866, %v784
        %v868 = vpop.permute.xlu0 %867
        %871 = vset.pattern.permute.xlu0 0
        %872 = vperm.xlu0 %871, %v785
        %v873 = vpop.permute.xlu0 %872
        %876 = vset.pattern.permute.xlu0 0
        %877 = vperm.xlu0 %876, %v786
        %v878 = vpop.permute.xlu0 %877
        %881 = vset.pattern.permute.xlu0 0
        %882 = vperm.xlu0 %881, %v787
        %v883 = vpop.permute.xlu0 %882
        %886 = vset.pattern.permute.xlu0 0
        %887 = vperm.xlu0 %886, %v788
        %v888 = vpop.permute.xlu0 %887
        %891 = vset.pattern.permute.xlu0 0
        %892 = vperm.xlu0 %891, %v789
        %v893 = vpop.permute.xlu0 %892
        %896 = vset.pattern.permute.xlu0 0
        %897 = vperm.xlu0 %896, %v790
        %v898 = vpop.permute.xlu0 %897
        %901 = vset.pattern.permute.xlu0 0
        %902 = vperm.xlu0 %901, %v791
        %v903 = vpop.permute.xlu0 %902
        %906 = vset.pattern.permute.xlu0 0
        %907 = vperm.xlu0 %906, %v792
        %v908 = vpop.permute.xlu0 %907
        %911 = vset.pattern.permute.xlu0 0
        %912 = vperm.xlu0 %911, %v793
        %v913 = vpop.permute.xlu0 %912
        %916 = vset.pattern.permute.xlu0 0
        %917 = vperm.xlu0 %916, %v794
        %v918 = vpop.permute.xlu0 %917
        %921 = vset.pattern.permute.xlu0 0
        %922 = vperm.xlu0 %921, %v795
        %v923 = vpop.permute.xlu0 %922
        %926 = vset.pattern.permute.xlu0 0
        %927 = vperm.xlu0 %926, %v796
        %v928 = vpop.permute.xlu0 %927
        %931 = vset.pattern.permute.xlu0 0
        %932 = vperm.xlu0 %931, %v797
        %v933 = vpop.permute.xlu0 %932
        %936 = vset.pattern.permute.xlu0 0
        %937 = vperm.xlu0 %936, %v798
        %v938 = vpop.permute.xlu0 %937
        %941 = vset.pattern.permute.xlu0 0
        %942 = vperm.xlu0 %941, %v799
        %v943 = vpop.permute.xlu0 %942
        %946 = vset.pattern.permute.xlu0 0
        %947 = vperm.xlu0 %946, %v800
        %v948 = vpop.permute.xlu0 %947
        %951 = vset.pattern.permute.xlu0 0
        %952 = vperm.xlu0 %951, %v801
        %v953 = vpop.permute.xlu0 %952
        %956 = vset.pattern.permute.xlu0 0
        %957 = vperm.xlu0 %956, %v802
        %v958 = vpop.permute.xlu0 %957
        %961 = vset.pattern.permute.xlu0 0
        %962 = vperm.xlu0 %961, %v803
        %v963 = vpop.permute.xlu0 %962
        %v965 = vlaneseq
        %v966 = vshrl.u32 %v965, 7
        %v967 = vsub.s32 0, %v966
        %v968 = vrot.slane %v804, %v967
        %v969 = vmul.f32 %v808, %v968
        %v970 = vmul.f32 %v813, %v968
        %v971 = vmul.f32 %v818, %v968
        %v972 = vmul.f32 %v823, %v968
        %v973 = vmul.f32 %v828, %v968
        %v974 = vmul.f32 %v833, %v968
        %v975 = vmul.f32 %v838, %v968
        %v976 = vmul.f32 %v843, %v968
        %v977 = vmul.f32 %v848, %v968
        %v978 = vmul.f32 %v853, %v968
        %v979 = vmul.f32 %v858, %v968
        %v980 = vmul.f32 %v863, %v968
        %v981 = vmul.f32 %v868, %v968
        %v982 = vmul.f32 %v873, %v968
        %v983 = vmul.f32 %v878, %v968
        %v984 = vmul.f32 %v883, %v968
        %v985 = vmul.f32 %v888, %v968
        %v986 = vmul.f32 %v893, %v968
        %v987 = vmul.f32 %v898, %v968
        %v988 = vmul.f32 %v903, %v968
        %v989 = vmul.f32 %v908, %v968
        %v990 = vmul.f32 %v913, %v968
        %v991 = vmul.f32 %v918, %v968
        %v992 = vmul.f32 %v923, %v968
        %v993 = vmul.f32 %v928, %v968
        %v994 = vmul.f32 %v933, %v968
        %v995 = vmul.f32 %v938, %v968
        %v996 = vmul.f32 %v943, %v968
        %v997 = vmul.f32 %v948, %v968
        %v998 = vmul.f32 %v953, %v968
        %v999 = vmul.f32 %v958, %v968
        %v1000 = vmul.f32 %v963, %v968
        %v1001 = vadd.f32 %v740, %v969
        %v1002 = vadd.f32 %v741, %v970
        %v1003 = vadd.f32 %v742, %v971
        %v1004 = vadd.f32 %v743, %v972
        %v1005 = vadd.f32 %v744, %v973
        %v1006 = vadd.f32 %v745, %v974
        %v1007 = vadd.f32 %v746, %v975
        %v1008 = vadd.f32 %v747, %v976
        %v1009 = vadd.f32 %v748, %v977
        %v1010 = vadd.f32 %v749, %v978
        %v1011 = vadd.f32 %v750, %v979
        %v1012 = vadd.f32 %v751, %v980
        %v1013 = vadd.f32 %v752, %v981
        %v1014 = vadd.f32 %v753, %v982
        %v1015 = vadd.f32 %v754, %v983
        %v1016 = vadd.f32 %v755, %v984
        %v1017 = vadd.f32 %v756, %v985
        %v1018 = vadd.f32 %v757, %v986
        %v1019 = vadd.f32 %v758, %v987
        %v1020 = vadd.f32 %v759, %v988
        %v1021 = vadd.f32 %v760, %v989
        %v1022 = vadd.f32 %v761, %v990
        %v1023 = vadd.f32 %v762, %v991
        %v1024 = vadd.f32 %v763, %v992
        %v1025 = vadd.f32 %v764, %v993
        %v1026 = vadd.f32 %v765, %v994
        %v1027 = vadd.f32 %v766, %v995
        %v1028 = vadd.f32 %v767, %v996
        %v1029 = vadd.f32 %v768, %v997
        %v1030 = vadd.f32 %v769, %v998
        %v1031 = vadd.f32 %v770, %v999
        %v1032 = vadd.f32 %v771, %v1000
        %v1033 = vld [vmem:[#allocation2 + $0x2] sm:$0xff]
        %v1034 = vld [vmem:[#allocation2 + $0xa] sm:$0xff]
        %v1035 = vld [vmem:[#allocation2 + $0x1a] sm:$0xff]
        %v1036 = vld [vmem:[#allocation2 + $0x22] sm:$0xff]
        %v1037 = vld [vmem:[#allocation2 + $0x32] sm:$0xff]
        %v1038 = vld [vmem:[#allocation2 + $0x3a] sm:$0xff]
        %v1039 = vld [vmem:[#allocation2 + $0x4a] sm:$0xff]
        %v1040 = vld [vmem:[#allocation2 + $0x52] sm:$0xff]
        %v1041 = vld [vmem:[#allocation2 + $0x62] sm:$0xff]
        %v1042 = vld [vmem:[#allocation2 + $0x6a] sm:$0xff]
        %v1043 = vld [vmem:[#allocation2 + $0x7a] sm:$0xff]
        %v1044 = vld [vmem:[#allocation2 + $0x82] sm:$0xff]
        %v1045 = vld [vmem:[#allocation2 + $0x92] sm:$0xff]
        %v1046 = vld [vmem:[#allocation2 + $0x9a] sm:$0xff]
        %v1047 = vld [vmem:[#allocation2 + $0xaa] sm:$0xff]
        %v1048 = vld [vmem:[#allocation2 + $0xb2] sm:$0xff]
        %v1049 = vld [vmem:[#allocation2 + $0xc2] sm:$0xff]
        %v1050 = vld [vmem:[#allocation2 + $0xca] sm:$0xff]
        %v1051 = vld [vmem:[#allocation2 + $0xda] sm:$0xff]
        %v1052 = vld [vmem:[#allocation2 + $0xe2] sm:$0xff]
        %v1053 = vld [vmem:[#allocation2 + $0xf2] sm:$0xff]
        %v1054 = vld [vmem:[#allocation2 + $0xfa] sm:$0xff]
        %v1055 = vld [vmem:[#allocation2 + $0x10a] sm:$0xff]
        %v1056 = vld [vmem:[#allocation2 + $0x112] sm:$0xff]
        %v1057 = vld [vmem:[#allocation2 + $0x122] sm:$0xff]
        %v1058 = vld [vmem:[#allocation2 + $0x12a] sm:$0xff]
        %v1059 = vld [vmem:[#allocation2 + $0x13a] sm:$0xff]
        %v1060 = vld [vmem:[#allocation2 + $0x142] sm:$0xff]
        %v1061 = vld [vmem:[#allocation2 + $0x152] sm:$0xff]
        %v1062 = vld [vmem:[#allocation2 + $0x15a] sm:$0xff]
        %v1063 = vld [vmem:[#allocation2 + $0x16a] sm:$0xff]
        %v1064 = vld [vmem:[#allocation2 + $0x172] sm:$0xff]
        %v1065 = vld [vmem:[%s1 + $0x2] sm:$0x1]
        %1067 = vset.pattern.permute.xlu0 0
        %1068 = vperm.xlu0 %1067, %v1033
        %v1069 = vpop.permute.xlu0 %1068
        %1072 = vset.pattern.permute.xlu0 0
        %1073 = vperm.xlu0 %1072, %v1034
        %v1074 = vpop.permute.xlu0 %1073
        %1077 = vset.pattern.permute.xlu0 0
        %1078 = vperm.xlu0 %1077, %v1035
        %v1079 = vpop.permute.xlu0 %1078
        %1082 = vset.pattern.permute.xlu0 0
        %1083 = vperm.xlu0 %1082, %v1036
        %v1084 = vpop.permute.xlu0 %1083
        %1087 = vset.pattern.permute.xlu0 0
        %1088 = vperm.xlu0 %1087, %v1037
        %v1089 = vpop.permute.xlu0 %1088
        %1092 = vset.pattern.permute.xlu0 0
        %1093 = vperm.xlu0 %1092, %v1038
        %v1094 = vpop.permute.xlu0 %1093
        %1097 = vset.pattern.permute.xlu0 0
        %1098 = vperm.xlu0 %1097, %v1039
        %v1099 = vpop.permute.xlu0 %1098
        %1102 = vset.pattern.permute.xlu0 0
        %1103 = vperm.xlu0 %1102, %v1040
        %v1104 = vpop.permute.xlu0 %1103
        %1107 = vset.pattern.permute.xlu0 0
        %1108 = vperm.xlu0 %1107, %v1041
        %v1109 = vpop.permute.xlu0 %1108
        %1112 = vset.pattern.permute.xlu0 0
        %1113 = vperm.xlu0 %1112, %v1042
        %v1114 = vpop.permute.xlu0 %1113
        %1117 = vset.pattern.permute.xlu0 0
        %1118 = vperm.xlu0 %1117, %v1043
        %v1119 = vpop.permute.xlu0 %1118
        %1122 = vset.pattern.permute.xlu0 0
        %1123 = vperm.xlu0 %1122, %v1044
        %v1124 = vpop.permute.xlu0 %1123
        %1127 = vset.pattern.permute.xlu0 0
        %1128 = vperm.xlu0 %1127, %v1045
        %v1129 = vpop.permute.xlu0 %1128
        %1132 = vset.pattern.permute.xlu0 0
        %1133 = vperm.xlu0 %1132, %v1046
        %v1134 = vpop.permute.xlu0 %1133
        %1137 = vset.pattern.permute.xlu0 0
        %1138 = vperm.xlu0 %1137, %v1047
        %v1139 = vpop.permute.xlu0 %1138
        %1142 = vset.pattern.permute.xlu0 0
        %1143 = vperm.xlu0 %1142, %v1048
        %v1144 = vpop.permute.xlu0 %1143
        %1147 = vset.pattern.permute.xlu0 0
        %1148 = vperm.xlu0 %1147, %v1049
        %v1149 = vpop.permute.xlu0 %1148
        %1152 = vset.pattern.permute.xlu0 0
        %1153 = vperm.xlu0 %1152, %v1050
        %v1154 = vpop.permute.xlu0 %1153
        %1157 = vset.pattern.permute.xlu0 0
        %1158 = vperm.xlu0 %1157, %v1051
        %v1159 = vpop.permute.xlu0 %1158
        %1162 = vset.pattern.permute.xlu0 0
        %1163 = vperm.xlu0 %1162, %v1052
        %v1164 = vpop.permute.xlu0 %1163
        %1167 = vset.pattern.permute.xlu0 0
        %1168 = vperm.xlu0 %1167, %v1053
        %v1169 = vpop.permute.xlu0 %1168
        %1172 = vset.pattern.permute.xlu0 0
        %1173 = vperm.xlu0 %1172, %v1054
        %v1174 = vpop.permute.xlu0 %1173
        %1177 = vset.pattern.permute.xlu0 0
        %1178 = vperm.xlu0 %1177, %v1055
        %v1179 = vpop.permute.xlu0 %1178
        %1182 = vset.pattern.permute.xlu0 0
        %1183 = vperm.xlu0 %1182, %v1056
        %v1184 = vpop.permute.xlu0 %1183
        %1187 = vset.pattern.permute.xlu0 0
        %1188 = vperm.xlu0 %1187, %v1057
        %v1189 = vpop.permute.xlu0 %1188
        %1192 = vset.pattern.permute.xlu0 0
        %1193 = vperm.xlu0 %1192, %v1058
        %v1194 = vpop.permute.xlu0 %1193
        %1197 = vset.pattern.permute.xlu0 0
        %1198 = vperm.xlu0 %1197, %v1059
        %v1199 = vpop.permute.xlu0 %1198
        %1202 = vset.pattern.permute.xlu0 0
        %1203 = vperm.xlu0 %1202, %v1060
        %v1204 = vpop.permute.xlu0 %1203
        %1207 = vset.pattern.permute.xlu0 0
        %1208 = vperm.xlu0 %1207, %v1061
        %v1209 = vpop.permute.xlu0 %1208
        %1212 = vset.pattern.permute.xlu0 0
        %1213 = vperm.xlu0 %1212, %v1062
        %v1214 = vpop.permute.xlu0 %1213
        %1217 = vset.pattern.permute.xlu0 0
        %1218 = vperm.xlu0 %1217, %v1063
        %v1219 = vpop.permute.xlu0 %1218
        %1222 = vset.pattern.permute.xlu0 0
        %1223 = vperm.xlu0 %1222, %v1064
        %v1224 = vpop.permute.xlu0 %1223
        %v1226 = vlaneseq
        %v1227 = vshrl.u32 %v1226, 7
        %v1228 = vsub.s32 0, %v1227
        %v1229 = vrot.slane %v1065, %v1228
        %v1230 = vmul.f32 %v1069, %v1229
        %v1231 = vmul.f32 %v1074, %v1229
        %v1232 = vmul.f32 %v1079, %v1229
        %v1233 = vmul.f32 %v1084, %v1229
        %v1234 = vmul.f32 %v1089, %v1229
        %v1235 = vmul.f32 %v1094, %v1229
        %v1236 = vmul.f32 %v1099, %v1229
        %v1237 = vmul.f32 %v1104, %v1229
        %v1238 = vmul.f32 %v1109, %v1229
        %v1239 = vmul.f32 %v1114, %v1229
        %v1240 = vmul.f32 %v1119, %v1229
        %v1241 = vmul.f32 %v1124, %v1229
        %v1242 = vmul.f32 %v1129, %v1229
        %v1243 = vmul.f32 %v1134, %v1229
        %v1244 = vmul.f32 %v1139, %v1229
        %v1245 = vmul.f32 %v1144, %v1229
        %v1246 = vmul.f32 %v1149, %v1229
        %v1247 = vmul.f32 %v1154, %v1229
        %v1248 = vmul.f32 %v1159, %v1229
        %v1249 = vmul.f32 %v1164, %v1229
        %v1250 = vmul.f32 %v1169, %v1229
        %v1251 = vmul.f32 %v1174, %v1229
        %v1252 = vmul.f32 %v1179, %v1229
        %v1253 = vmul.f32 %v1184, %v1229
        %v1254 = vmul.f32 %v1189, %v1229
        %v1255 = vmul.f32 %v1194, %v1229
        %v1256 = vmul.f32 %v1199, %v1229
        %v1257 = vmul.f32 %v1204, %v1229
        %v1258 = vmul.f32 %v1209, %v1229
        %v1259 = vmul.f32 %v1214, %v1229
        %v1260 = vmul.f32 %v1219, %v1229
        %v1261 = vmul.f32 %v1224, %v1229
        %v1262 = vadd.f32 %v1001, %v1230
        %v1263 = vadd.f32 %v1002, %v1231
        %v1264 = vadd.f32 %v1003, %v1232
        %v1265 = vadd.f32 %v1004, %v1233
        %v1266 = vadd.f32 %v1005, %v1234
        %v1267 = vadd.f32 %v1006, %v1235
        %v1268 = vadd.f32 %v1007, %v1236
        %v1269 = vadd.f32 %v1008, %v1237
        %v1270 = vadd.f32 %v1009, %v1238
        %v1271 = vadd.f32 %v1010, %v1239
        %v1272 = vadd.f32 %v1011, %v1240
        %v1273 = vadd.f32 %v1012, %v1241
        %v1274 = vadd.f32 %v1013, %v1242
        %v1275 = vadd.f32 %v1014, %v1243
        %v1276 = vadd.f32 %v1015, %v1244
        %v1277 = vadd.f32 %v1016, %v1245
        %v1278 = vadd.f32 %v1017, %v1246
        %v1279 = vadd.f32 %v1018, %v1247
        %v1280 = vadd.f32 %v1019, %v1248
        %v1281 = vadd.f32 %v1020, %v1249
        %v1282 = vadd.f32 %v1021, %v1250
        %v1283 = vadd.f32 %v1022, %v1251
        %v1284 = vadd.f32 %v1023, %v1252
        %v1285 = vadd.f32 %v1024, %v1253
        %v1286 = vadd.f32 %v1025, %v1254
        %v1287 = vadd.f32 %v1026, %v1255
        %v1288 = vadd.f32 %v1027, %v1256
        %v1289 = vadd.f32 %v1028, %v1257
        %v1290 = vadd.f32 %v1029, %v1258
        %v1291 = vadd.f32 %v1030, %v1259
        %v1292 = vadd.f32 %v1031, %v1260
        %v1293 = vadd.f32 %v1032, %v1261
        %v1294 = vld [vmem:[%s478] sm:$0xff]
        %v1295 = vld [vmem:[%s478 + $0x8] sm:$0xff]
        %v1296 = vld [vmem:[%s478 + $0x18] sm:$0xff]
        %v1297 = vld [vmem:[%s478 + $0x20] sm:$0xff]
        %v1298 = vld [vmem:[%s478 + $0x30] sm:$0xff]
        %v1299 = vld [vmem:[%s478 + $0x38] sm:$0xff]
        %v1300 = vld [vmem:[%s478 + $0x48] sm:$0xff]
        %v1301 = vld [vmem:[%s478 + $0x50] sm:$0xff]
        %v1302 = vld [vmem:[%s478 + $0x60] sm:$0xff]
        %v1303 = vld [vmem:[%s478 + $0x68] sm:$0xff]
        %v1304 = vld [vmem:[%s478 + $0x78] sm:$0xff]
        %v1305 = vld [vmem:[%s478 + $0x80] sm:$0xff]
        %v1306 = vld [vmem:[%s478 + $0x90] sm:$0xff]
        %v1307 = vld [vmem:[%s478 + $0x98] sm:$0xff]
        %v1308 = vld [vmem:[%s478 + $0xa8] sm:$0xff]
        %v1309 = vld [vmem:[%s478 + $0xb0] sm:$0xff]
        %v1310 = vld [vmem:[%s478 + $0xc0] sm:$0xff]
        %v1311 = vld [vmem:[%s478 + $0xc8] sm:$0xff]
        %v1312 = vld [vmem:[%s478 + $0xd8] sm:$0xff]
        %v1313 = vld [vmem:[%s478 + $0xe0] sm:$0xff]
        %v1314 = vld [vmem:[%s478 + $0xf0] sm:$0xff]
        %v1315 = vld [vmem:[%s478 + $0xf8] sm:$0xff]
        %v1316 = vld [vmem:[%s478 + $0x108] sm:$0xff]
        %v1317 = vld [vmem:[%s478 + $0x110] sm:$0xff]
        %v1318 = vld [vmem:[%s478 + $0x120] sm:$0xff]
        %v1319 = vld [vmem:[%s478 + $0x128] sm:$0xff]
        %v1320 = vld [vmem:[%s478 + $0x138] sm:$0xff]
        %v1321 = vld [vmem:[%s478 + $0x140] sm:$0xff]
        %v1322 = vld [vmem:[%s478 + $0x150] sm:$0xff]
        %v1323 = vld [vmem:[%s478 + $0x158] sm:$0xff]
        %v1324 = vld [vmem:[%s478 + $0x168] sm:$0xff]
        %v1325 = vld [vmem:[%s478 + $0x170] sm:$0xff]
        %v1326 = vld [vmem:[%s1 + $0x3] sm:$0x1]
        %1328 = vset.pattern.permute.xlu0 0
        %1329 = vperm.xlu0 %1328, %v1294
        %v1330 = vpop.permute.xlu0 %1329
        %1333 = vset.pattern.permute.xlu0 0
        %1334 = vperm.xlu0 %1333, %v1295
        %v1335 = vpop.permute.xlu0 %1334
        %1338 = vset.pattern.permute.xlu0 0
        %1339 = vperm.xlu0 %1338, %v1296
        %v1340 = vpop.permute.xlu0 %1339
        %1343 = vset.pattern.permute.xlu0 0
        %1344 = vperm.xlu0 %1343, %v1297
        %v1345 = vpop.permute.xlu0 %1344
        %1348 = vset.pattern.permute.xlu0 0
        %1349 = vperm.xlu0 %1348, %v1298
        %v1350 = vpop.permute.xlu0 %1349
        %1353 = vset.pattern.permute.xlu0 0
        %1354 = vperm.xlu0 %1353, %v1299
        %v1355 = vpop.permute.xlu0 %1354
        %1358 = vset.pattern.permute.xlu0 0
        %1359 = vperm.xlu0 %1358, %v1300
        %v1360 = vpop.permute.xlu0 %1359
        %1363 = vset.pattern.permute.xlu0 0
        %1364 = vperm.xlu0 %1363, %v1301
        %v1365 = vpop.permute.xlu0 %1364
        %1368 = vset.pattern.permute.xlu0 0
        %1369 = vperm.xlu0 %1368, %v1302
        %v1370 = vpop.permute.xlu0 %1369
        %1373 = vset.pattern.permute.xlu0 0
        %1374 = vperm.xlu0 %1373, %v1303
        %v1375 = vpop.permute.xlu0 %1374
        %1378 = vset.pattern.permute.xlu0 0
        %1379 = vperm.xlu0 %1378, %v1304
        %v1380 = vpop.permute.xlu0 %1379
        %1383 = vset.pattern.permute.xlu0 0
        %1384 = vperm.xlu0 %1383, %v1305
        %v1385 = vpop.permute.xlu0 %1384
        %1388 = vset.pattern.permute.xlu0 0
        %1389 = vperm.xlu0 %1388, %v1306
        %v1390 = vpop.permute.xlu0 %1389
        %1393 = vset.pattern.permute.xlu0 0
        %1394 = vperm.xlu0 %1393, %v1307
        %v1395 = vpop.permute.xlu0 %1394
        %1398 = vset.pattern.permute.xlu0 0
        %1399 = vperm.xlu0 %1398, %v1308
        %v1400 = vpop.permute.xlu0 %1399
        %1403 = vset.pattern.permute.xlu0 0
        %1404 = vperm.xlu0 %1403, %v1309
        %v1405 = vpop.permute.xlu0 %1404
        %1408 = vset.pattern.permute.xlu0 0
        %1409 = vperm.xlu0 %1408, %v1310
        %v1410 = vpop.permute.xlu0 %1409
        %1413 = vset.pattern.permute.xlu0 0
        %1414 = vperm.xlu0 %1413, %v1311
        %v1415 = vpop.permute.xlu0 %1414
        %1418 = vset.pattern.permute.xlu0 0
        %1419 = vperm.xlu0 %1418, %v1312
        %v1420 = vpop.permute.xlu0 %1419
        %1423 = vset.pattern.permute.xlu0 0
        %1424 = vperm.xlu0 %1423, %v1313
        %v1425 = vpop.permute.xlu0 %1424
        %1428 = vset.pattern.permute.xlu0 0
        %1429 = vperm.xlu0 %1428, %v1314
        %v1430 = vpop.permute.xlu0 %1429
        %1433 = vset.pattern.permute.xlu0 0
        %1434 = vperm.xlu0 %1433, %v1315
        %v1435 = vpop.permute.xlu0 %1434
        %1438 = vset.pattern.permute.xlu0 0
        %1439 = vperm.xlu0 %1438, %v1316
        %v1440 = vpop.permute.xlu0 %1439
        %1443 = vset.pattern.permute.xlu0 0
        %1444 = vperm.xlu0 %1443, %v1317
        %v1445 = vpop.permute.xlu0 %1444
        %1448 = vset.pattern.permute.xlu0 0
        %1449 = vperm.xlu0 %1448, %v1318
        %v1450 = vpop.permute.xlu0 %1449
        %1453 = vset.pattern.permute.xlu0 0
        %1454 = vperm.xlu0 %1453, %v1319
        %v1455 = vpop.permute.xlu0 %1454
        %1458 = vset.pattern.permute.xlu0 0
        %1459 = vperm.xlu0 %1458, %v1320
        %v1460 = vpop.permute.xlu0 %1459
        %1463 = vset.pattern.permute.xlu0 0
        %1464 = vperm.xlu0 %1463, %v1321
        %v1465 = vpop.permute.xlu0 %1464
        %1468 = vset.pattern.permute.xlu0 0
        %1469 = vperm.xlu0 %1468, %v1322
        %v1470 = vpop.permute.xlu0 %1469
        %1473 = vset.pattern.permute.xlu0 0
        %1474 = vperm.xlu0 %1473, %v1323
        %v1475 = vpop.permute.xlu0 %1474
        %1478 = vset.pattern.permute.xlu0 0
        %1479 = vperm.xlu0 %1478, %v1324
        %v1480 = vpop.permute.xlu0 %1479
        %1483 = vset.pattern.permute.xlu0 0
        %1484 = vperm.xlu0 %1483, %v1325
        %v1485 = vpop.permute.xlu0 %1484
        %v1487 = vlaneseq
        %v1488 = vshrl.u32 %v1487, 7
        %v1489 = vsub.s32 0, %v1488
        %v1490 = vrot.slane %v1326, %v1489
        %v1491 = vmul.f32 %v1330, %v1490
        %v1492 = vmul.f32 %v1335, %v1490
        %v1493 = vmul.f32 %v1340, %v1490
        %v1494 = vmul.f32 %v1345, %v1490
        %v1495 = vmul.f32 %v1350, %v1490
        %v1496 = vmul.f32 %v1355, %v1490
        %v1497 = vmul.f32 %v1360, %v1490
        %v1498 = vmul.f32 %v1365, %v1490
        %v1499 = vmul.f32 %v1370, %v1490
        %v1500 = vmul.f32 %v1375, %v1490
        %v1501 = vmul.f32 %v1380, %v1490
        %v1502 = vmul.f32 %v1385, %v1490
        %v1503 = vmul.f32 %v1390, %v1490
        %v1504 = vmul.f32 %v1395, %v1490
        %v1505 = vmul.f32 %v1400, %v1490
        %v1506 = vmul.f32 %v1405, %v1490
        %v1507 = vmul.f32 %v1410, %v1490
        %v1508 = vmul.f32 %v1415, %v1490
        %v1509 = vmul.f32 %v1420, %v1490
        %v1510 = vmul.f32 %v1425, %v1490
        %v1511 = vmul.f32 %v1430, %v1490
        %v1512 = vmul.f32 %v1435, %v1490
        %v1513 = vmul.f32 %v1440, %v1490
        %v1514 = vmul.f32 %v1445, %v1490
        %v1515 = vmul.f32 %v1450, %v1490
        %v1516 = vmul.f32 %v1455, %v1490
        %v1517 = vmul.f32 %v1460, %v1490
        %v1518 = vmul.f32 %v1465, %v1490
        %v1519 = vmul.f32 %v1470, %v1490
        %v1520 = vmul.f32 %v1475, %v1490
        %v1521 = vmul.f32 %v1480, %v1490
        %v1522 = vmul.f32 %v1485, %v1490
        %v1523 = vadd.f32 %v1262, %v1491
        %v1524 = vadd.f32 %v1263, %v1492
        %v1525 = vadd.f32 %v1264, %v1493
        %v1526 = vadd.f32 %v1265, %v1494
        %v1527 = vadd.f32 %v1266, %v1495
        %v1528 = vadd.f32 %v1267, %v1496
        %v1529 = vadd.f32 %v1268, %v1497
        %v1530 = vadd.f32 %v1269, %v1498
        %v1531 = vadd.f32 %v1270, %v1499
        %v1532 = vadd.f32 %v1271, %v1500
        %v1533 = vadd.f32 %v1272, %v1501
        %v1534 = vadd.f32 %v1273, %v1502
        %v1535 = vadd.f32 %v1274, %v1503
        %v1536 = vadd.f32 %v1275, %v1504
        %v1537 = vadd.f32 %v1276, %v1505
        %v1538 = vadd.f32 %v1277, %v1506
        %v1539 = vadd.f32 %v1278, %v1507
        %v1540 = vadd.f32 %v1279, %v1508
        %v1541 = vadd.f32 %v1280, %v1509
        %v1542 = vadd.f32 %v1281, %v1510
        %v1543 = vadd.f32 %v1282, %v1511
        %v1544 = vadd.f32 %v1283, %v1512
        %v1545 = vadd.f32 %v1284, %v1513
        %v1546 = vadd.f32 %v1285, %v1514
        %v1547 = vadd.f32 %v1286, %v1515
        %v1548 = vadd.f32 %v1287, %v1516
        %v1549 = vadd.f32 %v1288, %v1517
        %v1550 = vadd.f32 %v1289, %v1518
        %v1551 = vadd.f32 %v1290, %v1519
        %v1552 = vadd.f32 %v1291, %v1520
        %v1553 = vadd.f32 %v1292, %v1521
        %v1554 = vadd.f32 %v1293, %v1522
        %v1555 = vld [vmem:[%s478 + $0x1] sm:$0xff]
        %v1556 = vld [vmem:[%s478 + $0x9] sm:$0xff]
        %v1557 = vld [vmem:[%s478 + $0x19] sm:$0xff]
        %v1558 = vld [vmem:[%s478 + $0x21] sm:$0xff]
        %v1559 = vld [vmem:[%s478 + $0x31] sm:$0xff]
        %v1560 = vld [vmem:[%s478 + $0x39] sm:$0xff]
        %v1561 = vld [vmem:[%s478 + $0x49] sm:$0xff]
        %v1562 = vld [vmem:[%s478 + $0x51] sm:$0xff]
        %v1563 = vld [vmem:[%s478 + $0x61] sm:$0xff]
        %v1564 = vld [vmem:[%s478 + $0x69] sm:$0xff]
        %v1565 = vld [vmem:[%s478 + $0x79] sm:$0xff]
        %v1566 = vld [vmem:[%s478 + $0x81] sm:$0xff]
        %v1567 = vld [vmem:[%s478 + $0x91] sm:$0xff]
        %v1568 = vld [vmem:[%s478 + $0x99] sm:$0xff]
        %v1569 = vld [vmem:[%s478 + $0xa9] sm:$0xff]
        %v1570 = vld [vmem:[%s478 + $0xb1] sm:$0xff]
        %v1571 = vld [vmem:[%s478 + $0xc1] sm:$0xff]
        %v1572 = vld [vmem:[%s478 + $0xc9] sm:$0xff]
        %v1573 = vld [vmem:[%s478 + $0xd9] sm:$0xff]
        %v1574 = vld [vmem:[%s478 + $0xe1] sm:$0xff]
        %v1575 = vld [vmem:[%s478 + $0xf1] sm:$0xff]
        %v1576 = vld [vmem:[%s478 + $0xf9] sm:$0xff]
        %v1577 = vld [vmem:[%s478 + $0x109] sm:$0xff]
        %v1578 = vld [vmem:[%s478 + $0x111] sm:$0xff]
        %v1579 = vld [vmem:[%s478 + $0x121] sm:$0xff]
        %v1580 = vld [vmem:[%s478 + $0x129] sm:$0xff]
        %v1581 = vld [vmem:[%s478 + $0x139] sm:$0xff]
        %v1582 = vld [vmem:[%s478 + $0x141] sm:$0xff]
        %v1583 = vld [vmem:[%s478 + $0x151] sm:$0xff]
        %v1584 = vld [vmem:[%s478 + $0x159] sm:$0xff]
        %v1585 = vld [vmem:[%s478 + $0x169] sm:$0xff]
        %v1586 = vld [vmem:[%s478 + $0x171] sm:$0xff]
        %v1587 = vld [vmem:[%s1 + $0x4] sm:$0x1]
        %1589 = vset.pattern.permute.xlu0 0
        %1590 = vperm.xlu0 %1589, %v1555
        %v1591 = vpop.permute.xlu0 %1590
        %1594 = vset.pattern.permute.xlu0 0
        %1595 = vperm.xlu0 %1594, %v1556
        %v1596 = vpop.permute.xlu0 %1595
        %1599 = vset.pattern.permute.xlu0 0
        %1600 = vperm.xlu0 %1599, %v1557
        %v1601 = vpop.permute.xlu0 %1600
        %1604 = vset.pattern.permute.xlu0 0
        %1605 = vperm.xlu0 %1604, %v1558
        %v1606 = vpop.permute.xlu0 %1605
        %1609 = vset.pattern.permute.xlu0 0
        %1610 = vperm.xlu0 %1609, %v1559
        %v1611 = vpop.permute.xlu0 %1610
        %1614 = vset.pattern.permute.xlu0 0
        %1615 = vperm.xlu0 %1614, %v1560
        %v1616 = vpop.permute.xlu0 %1615
        %1619 = vset.pattern.permute.xlu0 0
        %1620 = vperm.xlu0 %1619, %v1561
        %v1621 = vpop.permute.xlu0 %1620
        %1624 = vset.pattern.permute.xlu0 0
        %1625 = vperm.xlu0 %1624, %v1562
        %v1626 = vpop.permute.xlu0 %1625
        %1629 = vset.pattern.permute.xlu0 0
        %1630 = vperm.xlu0 %1629, %v1563
        %v1631 = vpop.permute.xlu0 %1630
        %1634 = vset.pattern.permute.xlu0 0
        %1635 = vperm.xlu0 %1634, %v1564
        %v1636 = vpop.permute.xlu0 %1635
        %1639 = vset.pattern.permute.xlu0 0
        %1640 = vperm.xlu0 %1639, %v1565
        %v1641 = vpop.permute.xlu0 %1640
        %1644 = vset.pattern.permute.xlu0 0
        %1645 = vperm.xlu0 %1644, %v1566
        %v1646 = vpop.permute.xlu0 %1645
        %1649 = vset.pattern.permute.xlu0 0
        %1650 = vperm.xlu0 %1649, %v1567
        %v1651 = vpop.permute.xlu0 %1650
        %1654 = vset.pattern.permute.xlu0 0
        %1655 = vperm.xlu0 %1654, %v1568
        %v1656 = vpop.permute.xlu0 %1655
        %1659 = vset.pattern.permute.xlu0 0
        %1660 = vperm.xlu0 %1659, %v1569
        %v1661 = vpop.permute.xlu0 %1660
        %1664 = vset.pattern.permute.xlu0 0
        %1665 = vperm.xlu0 %1664, %v1570
        %v1666 = vpop.permute.xlu0 %1665
        %1669 = vset.pattern.permute.xlu0 0
        %1670 = vperm.xlu0 %1669, %v1571
        %v1671 = vpop.permute.xlu0 %1670
        %1674 = vset.pattern.permute.xlu0 0
        %1675 = vperm.xlu0 %1674, %v1572
        %v1676 = vpop.permute.xlu0 %1675
        %1679 = vset.pattern.permute.xlu0 0
        %1680 = vperm.xlu0 %1679, %v1573
        %v1681 = vpop.permute.xlu0 %1680
        %1684 = vset.pattern.permute.xlu0 0
        %1685 = vperm.xlu0 %1684, %v1574
        %v1686 = vpop.permute.xlu0 %1685
        %1689 = vset.pattern.permute.xlu0 0
        %1690 = vperm.xlu0 %1689, %v1575
        %v1691 = vpop.permute.xlu0 %1690
        %1694 = vset.pattern.permute.xlu0 0
        %1695 = vperm.xlu0 %1694, %v1576
        %v1696 = vpop.permute.xlu0 %1695
        %1699 = vset.pattern.permute.xlu0 0
        %1700 = vperm.xlu0 %1699, %v1577
        %v1701 = vpop.permute.xlu0 %1700
        %1704 = vset.pattern.permute.xlu0 0
        %1705 = vperm.xlu0 %1704, %v1578
        %v1706 = vpop.permute.xlu0 %1705
        %1709 = vset.pattern.permute.xlu0 0
        %1710 = vperm.xlu0 %1709, %v1579
        %v1711 = vpop.permute.xlu0 %1710
        %1714 = vset.pattern.permute.xlu0 0
        %1715 = vperm.xlu0 %1714, %v1580
        %v1716 = vpop.permute.xlu0 %1715
        %1719 = vset.pattern.permute.xlu0 0
        %1720 = vperm.xlu0 %1719, %v1581
        %v1721 = vpop.permute.xlu0 %1720
        %1724 = vset.pattern.permute.xlu0 0
        %1725 = vperm.xlu0 %1724, %v1582
        %v1726 = vpop.permute.xlu0 %1725
        %1729 = vset.pattern.permute.xlu0 0
        %1730 = vperm.xlu0 %1729, %v1583
        %v1731 = vpop.permute.xlu0 %1730
        %1734 = vset.pattern.permute.xlu0 0
        %1735 = vperm.xlu0 %1734, %v1584
        %v1736 = vpop.permute.xlu0 %1735
        %1739 = vset.pattern.permute.xlu0 0
        %1740 = vperm.xlu0 %1739, %v1585
        %v1741 = vpop.permute.xlu0 %1740
        %1744 = vset.pattern.permute.xlu0 0
        %1745 = vperm.xlu0 %1744, %v1586
        %v1746 = vpop.permute.xlu0 %1745
        %v1748 = vlaneseq
        %v1749 = vshrl.u32 %v1748, 7
        %v1750 = vsub.s32 0, %v1749
        %v1751 = vrot.slane %v1587, %v1750
        %v1752 = vmul.f32 %v1591, %v1751
        %v1753 = vmul.f32 %v1596, %v1751
        %v1754 = vmul.f32 %v1601, %v1751
        %v1755 = vmul.f32 %v1606, %v1751
        %v1756 = vmul.f32 %v1611, %v1751
        %v1757 = vmul.f32 %v1616, %v1751
        %v1758 = vmul.f32 %v1621, %v1751
        %v1759 = vmul.f32 %v1626, %v1751
        %v1760 = vmul.f32 %v1631, %v1751
        %v1761 = vmul.f32 %v1636, %v1751
        %v1762 = vmul.f32 %v1641, %v1751
        %v1763 = vmul.f32 %v1646, %v1751
        %v1764 = vmul.f32 %v1651, %v1751
        %v1765 = vmul.f32 %v1656, %v1751
        %v1766 = vmul.f32 %v1661, %v1751
        %v1767 = vmul.f32 %v1666, %v1751
        %v1768 = vmul.f32 %v1671, %v1751
        %v1769 = vmul.f32 %v1676, %v1751
        %v1770 = vmul.f32 %v1681, %v1751
        %v1771 = vmul.f32 %v1686, %v1751
        %v1772 = vmul.f32 %v1691, %v1751
        %v1773 = vmul.f32 %v1696, %v1751
        %v1774 = vmul.f32 %v1701, %v1751
        %v1775 = vmul.f32 %v1706, %v1751
        %v1776 = vmul.f32 %v1711, %v1751
        %v1777 = vmul.f32 %v1716, %v1751
        %v1778 = vmul.f32 %v1721, %v1751
        %v1779 = vmul.f32 %v1726, %v1751
        %v1780 = vmul.f32 %v1731, %v1751
        %v1781 = vmul.f32 %v1736, %v1751
        %v1782 = vmul.f32 %v1741, %v1751
        %v1783 = vmul.f32 %v1746, %v1751
        %v1784 = vadd.f32 %v1523, %v1752
        %v1785 = vadd.f32 %v1524, %v1753
        %v1786 = vadd.f32 %v1525, %v1754
        %v1787 = vadd.f32 %v1526, %v1755
        %v1788 = vadd.f32 %v1527, %v1756
        %v1789 = vadd.f32 %v1528, %v1757
        %v1790 = vadd.f32 %v1529, %v1758
        %v1791 = vadd.f32 %v1530, %v1759
        %v1792 = vadd.f32 %v1531, %v1760
        %v1793 = vadd.f32 %v1532, %v1761
        %v1794 = vadd.f32 %v1533, %v1762
        %v1795 = vadd.f32 %v1534, %v1763
        %v1796 = vadd.f32 %v1535, %v1764
        %v1797 = vadd.f32 %v1536, %v1765
        %v1798 = vadd.f32 %v1537, %v1766
        %v1799 = vadd.f32 %v1538, %v1767
        %v1800 = vadd.f32 %v1539, %v1768
        %v1801 = vadd.f32 %v1540, %v1769
        %v1802 = vadd.f32 %v1541, %v1770
        %v1803 = vadd.f32 %v1542, %v1771
        %v1804 = vadd.f32 %v1543, %v1772
        %v1805 = vadd.f32 %v1544, %v1773
        %v1806 = vadd.f32 %v1545, %v1774
        %v1807 = vadd.f32 %v1546, %v1775
        %v1808 = vadd.f32 %v1547, %v1776
        %v1809 = vadd.f32 %v1548, %v1777
        %v1810 = vadd.f32 %v1549, %v1778
        %v1811 = vadd.f32 %v1550, %v1779
        %v1812 = vadd.f32 %v1551, %v1780
        %v1813 = vadd.f32 %v1552, %v1781
        %v1814 = vadd.f32 %v1553, %v1782
        %v1815 = vadd.f32 %v1554, %v1783
        %v1816 = vld [vmem:[%s478 + $0x2] sm:$0xff]
        %v1817 = vld [vmem:[%s478 + $0xa] sm:$0xff]
        %v1818 = vld [vmem:[%s478 + $0x1a] sm:$0xff]
        %v1819 = vld [vmem:[%s478 + $0x22] sm:$0xff]
        %v1820 = vld [vmem:[%s478 + $0x32] sm:$0xff]
        %v1821 = vld [vmem:[%s478 + $0x3a] sm:$0xff]
        %v1822 = vld [vmem:[%s478 + $0x4a] sm:$0xff]
        %v1823 = vld [vmem:[%s478 + $0x52] sm:$0xff]
        %v1824 = vld [vmem:[%s478 + $0x62] sm:$0xff]
        %v1825 = vld [vmem:[%s478 + $0x6a] sm:$0xff]
        %v1826 = vld [vmem:[%s478 + $0x7a] sm:$0xff]
        %v1827 = vld [vmem:[%s478 + $0x82] sm:$0xff]
        %v1828 = vld [vmem:[%s478 + $0x92] sm:$0xff]
        %v1829 = vld [vmem:[%s478 + $0x9a] sm:$0xff]
        %v1830 = vld [vmem:[%s478 + $0xaa] sm:$0xff]
        %v1831 = vld [vmem:[%s478 + $0xb2] sm:$0xff]
        %v1832 = vld [vmem:[%s478 + $0xc2] sm:$0xff]
        %v1833 = vld [vmem:[%s478 + $0xca] sm:$0xff]
        %v1834 = vld [vmem:[%s478 + $0xda] sm:$0xff]
        %v1835 = vld [vmem:[%s478 + $0xe2] sm:$0xff]
        %v1836 = vld [vmem:[%s478 + $0xf2] sm:$0xff]
        %v1837 = vld [vmem:[%s478 + $0xfa] sm:$0xff]
        %v1838 = vld [vmem:[%s478 + $0x10a] sm:$0xff]
        %v1839 = vld [vmem:[%s478 + $0x112] sm:$0xff]
        %v1840 = vld [vmem:[%s478 + $0x122] sm:$0xff]
        %v1841 = vld [vmem:[%s478 + $0x12a] sm:$0xff]
        %v1842 = vld [vmem:[%s478 + $0x13a] sm:$0xff]
        %v1843 = vld [vmem:[%s478 + $0x142] sm:$0xff]
        %v1844 = vld [vmem:[%s478 + $0x152] sm:$0xff]
        %v1845 = vld [vmem:[%s478 + $0x15a] sm:$0xff]
        %v1846 = vld [vmem:[%s478 + $0x16a] sm:$0xff]
        %v1847 = vld [vmem:[%s478 + $0x172] sm:$0xff]
        %v1848 = vld [vmem:[%s1 + $0x5] sm:$0x1]
        %1850 = vset.pattern.permute.xlu0 0
        %1851 = vperm.xlu0 %1850, %v1816
        %v1852 = vpop.permute.xlu0 %1851
        %1855 = vset.pattern.permute.xlu0 0
        %1856 = vperm.xlu0 %1855, %v1817
        %v1857 = vpop.permute.xlu0 %1856
        %1860 = vset.pattern.permute.xlu0 0
        %1861 = vperm.xlu0 %1860, %v1818
        %v1862 = vpop.permute.xlu0 %1861
        %1865 = vset.pattern.permute.xlu0 0
        %1866 = vperm.xlu0 %1865, %v1819
        %v1867 = vpop.permute.xlu0 %1866
        %1870 = vset.pattern.permute.xlu0 0
        %1871 = vperm.xlu0 %1870, %v1820
        %v1872 = vpop.permute.xlu0 %1871
        %1875 = vset.pattern.permute.xlu0 0
        %1876 = vperm.xlu0 %1875, %v1821
        %v1877 = vpop.permute.xlu0 %1876
        %1880 = vset.pattern.permute.xlu0 0
        %1881 = vperm.xlu0 %1880, %v1822
        %v1882 = vpop.permute.xlu0 %1881
        %1885 = vset.pattern.permute.xlu0 0
        %1886 = vperm.xlu0 %1885, %v1823
        %v1887 = vpop.permute.xlu0 %1886
        %1890 = vset.pattern.permute.xlu0 0
        %1891 = vperm.xlu0 %1890, %v1824
        %v1892 = vpop.permute.xlu0 %1891
        %1895 = vset.pattern.permute.xlu0 0
        %1896 = vperm.xlu0 %1895, %v1825
        %v1897 = vpop.permute.xlu0 %1896
        %1900 = vset.pattern.permute.xlu0 0
        %1901 = vperm.xlu0 %1900, %v1826
        %v1902 = vpop.permute.xlu0 %1901
        %1905 = vset.pattern.permute.xlu0 0
        %1906 = vperm.xlu0 %1905, %v1827
        %v1907 = vpop.permute.xlu0 %1906
        %1910 = vset.pattern.permute.xlu0 0
        %1911 = vperm.xlu0 %1910, %v1828
        %v1912 = vpop.permute.xlu0 %1911
        %1915 = vset.pattern.permute.xlu0 0
        %1916 = vperm.xlu0 %1915, %v1829
        %v1917 = vpop.permute.xlu0 %1916
        %1920 = vset.pattern.permute.xlu0 0
        %1921 = vperm.xlu0 %1920, %v1830
        %v1922 = vpop.permute.xlu0 %1921
        %1925 = vset.pattern.permute.xlu0 0
        %1926 = vperm.xlu0 %1925, %v1831
        %v1927 = vpop.permute.xlu0 %1926
        %1930 = vset.pattern.permute.xlu0 0
        %1931 = vperm.xlu0 %1930, %v1832
        %v1932 = vpop.permute.xlu0 %1931
        %1935 = vset.pattern.permute.xlu0 0
        %1936 = vperm.xlu0 %1935, %v1833
        %v1937 = vpop.permute.xlu0 %1936
        %1940 = vset.pattern.permute.xlu0 0
        %1941 = vperm.xlu0 %1940, %v1834
        %v1942 = vpop.permute.xlu0 %1941
        %1945 = vset.pattern.permute.xlu0 0
        %1946 = vperm.xlu0 %1945, %v1835
        %v1947 = vpop.permute.xlu0 %1946
        %1950 = vset.pattern.permute.xlu0 0
        %1951 = vperm.xlu0 %1950, %v1836
        %v1952 = vpop.permute.xlu0 %1951
        %1955 = vset.pattern.permute.xlu0 0
        %1956 = vperm.xlu0 %1955, %v1837
        %v1957 = vpop.permute.xlu0 %1956
        %1960 = vset.pattern.permute.xlu0 0
        %1961 = vperm.xlu0 %1960, %v1838
        %v1962 = vpop.permute.xlu0 %1961
        %1965 = vset.pattern.permute.xlu0 0
        %1966 = vperm.xlu0 %1965, %v1839
        %v1967 = vpop.permute.xlu0 %1966
        %1970 = vset.pattern.permute.xlu0 0
        %1971 = vperm.xlu0 %1970, %v1840
        %v1972 = vpop.permute.xlu0 %1971
        %1975 = vset.pattern.permute.xlu0 0
        %1976 = vperm.xlu0 %1975, %v1841
        %v1977 = vpop.permute.xlu0 %1976
        %1980 = vset.pattern.permute.xlu0 0
        %1981 = vperm.xlu0 %1980, %v1842
        %v1982 = vpop.permute.xlu0 %1981
        %1985 = vset.pattern.permute.xlu0 0
        %1986 = vperm.xlu0 %1985, %v1843
        %v1987 = vpop.permute.xlu0 %1986
        %1990 = vset.pattern.permute.xlu0 0
        %1991 = vperm.xlu0 %1990, %v1844
        %v1992 = vpop.permute.xlu0 %1991
        %1995 = vset.pattern.permute.xlu0 0
        %1996 = vperm.xlu0 %1995, %v1845
        %v1997 = vpop.permute.xlu0 %1996
        %2000 = vset.pattern.permute.xlu0 0
        %2001 = vperm.xlu0 %2000, %v1846
        %v2002 = vpop.permute.xlu0 %2001
        %2005 = vset.pattern.permute.xlu0 0
        %2006 = vperm.xlu0 %2005, %v1847
        %v2007 = vpop.permute.xlu0 %2006
        %v2009 = vlaneseq
        %v2010 = vshrl.u32 %v2009, 7
        %v2011 = vsub.s32 0, %v2010
        %v2012 = vrot.slane %v1848, %v2011
        %v2013 = vmul.f32 %v1852, %v2012
        %v2014 = vmul.f32 %v1857, %v2012
        %v2015 = vmul.f32 %v1862, %v2012
        %v2016 = vmul.f32 %v1867, %v2012
        %v2017 = vmul.f32 %v1872, %v2012
        %v2018 = vmul.f32 %v1877, %v2012
        %v2019 = vmul.f32 %v1882, %v2012
        %v2020 = vmul.f32 %v1887, %v2012
        %v2021 = vmul.f32 %v1892, %v2012
        %v2022 = vmul.f32 %v1897, %v2012
        %v2023 = vmul.f32 %v1902, %v2012
        %v2024 = vmul.f32 %v1907, %v2012
        %v2025 = vmul.f32 %v1912, %v2012
        %v2026 = vmul.f32 %v1917, %v2012
        %v2027 = vmul.f32 %v1922, %v2012
        %v2028 = vmul.f32 %v1927, %v2012
        %v2029 = vmul.f32 %v1932, %v2012
        %v2030 = vmul.f32 %v1937, %v2012
        %v2031 = vmul.f32 %v1942, %v2012
        %v2032 = vmul.f32 %v1947, %v2012
        %v2033 = vmul.f32 %v1952, %v2012
        %v2034 = vmul.f32 %v1957, %v2012
        %v2035 = vmul.f32 %v1962, %v2012
        %v2036 = vmul.f32 %v1967, %v2012
        %v2037 = vmul.f32 %v1972, %v2012
        %v2038 = vmul.f32 %v1977, %v2012
        %v2039 = vmul.f32 %v1982, %v2012
        %v2040 = vmul.f32 %v1987, %v2012
        %v2041 = vmul.f32 %v1992, %v2012
        %v2042 = vmul.f32 %v1997, %v2012
        %v2043 = vmul.f32 %v2002, %v2012
        %v2044 = vmul.f32 %v2007, %v2012
        %v2045 = vadd.f32 %v1784, %v2013
        %v2046 = vadd.f32 %v1785, %v2014
        %v2047 = vadd.f32 %v1786, %v2015
        %v2048 = vadd.f32 %v1787, %v2016
        %v2049 = vadd.f32 %v1788, %v2017
        %v2050 = vadd.f32 %v1789, %v2018
        %v2051 = vadd.f32 %v1790, %v2019
        %v2052 = vadd.f32 %v1791, %v2020
        %v2053 = vadd.f32 %v1792, %v2021
        %v2054 = vadd.f32 %v1793, %v2022
        %v2055 = vadd.f32 %v1794, %v2023
        %v2056 = vadd.f32 %v1795, %v2024
        %v2057 = vadd.f32 %v1796, %v2025
        %v2058 = vadd.f32 %v1797, %v2026
        %v2059 = vadd.f32 %v1798, %v2027
        %v2060 = vadd.f32 %v1799, %v2028
        %v2061 = vadd.f32 %v1800, %v2029
        %v2062 = vadd.f32 %v1801, %v2030
        %v2063 = vadd.f32 %v1802, %v2031
        %v2064 = vadd.f32 %v1803, %v2032
        %v2065 = vadd.f32 %v1804, %v2033
        %v2066 = vadd.f32 %v1805, %v2034
        %v2067 = vadd.f32 %v1806, %v2035
        %v2068 = vadd.f32 %v1807, %v2036
        %v2069 = vadd.f32 %v1808, %v2037
        %v2070 = vadd.f32 %v1809, %v2038
        %v2071 = vadd.f32 %v1810, %v2039
        %v2072 = vadd.f32 %v1811, %v2040
        %v2073 = vadd.f32 %v1812, %v2041
        %v2074 = vadd.f32 %v1813, %v2042
        %v2075 = vadd.f32 %v1814, %v2043
        %v2076 = vadd.f32 %v1815, %v2044
        %s2077 = scalar_lea.vmem [#allocation2], 48
        %v2078 = vld [vmem:[%s2077] sm:$0xff]
        %v2079 = vld [vmem:[%s2077 + $0x8] sm:$0xff]
        %v2080 = vld [vmem:[%s2077 + $0x18] sm:$0xff]
        %v2081 = vld [vmem:[%s2077 + $0x20] sm:$0xff]
        %v2082 = vld [vmem:[%s2077 + $0x30] sm:$0xff]
        %v2083 = vld [vmem:[%s2077 + $0x38] sm:$0xff]
        %v2084 = vld [vmem:[%s2077 + $0x48] sm:$0xff]
        %v2085 = vld [vmem:[%s2077 + $0x50] sm:$0xff]
        %v2086 = vld [vmem:[%s2077 + $0x60] sm:$0xff]
        %v2087 = vld [vmem:[%s2077 + $0x68] sm:$0xff]
        %v2088 = vld [vmem:[%s2077 + $0x78] sm:$0xff]
        %v2089 = vld [vmem:[%s2077 + $0x80] sm:$0xff]
        %v2090 = vld [vmem:[%s2077 + $0x90] sm:$0xff]
        %v2091 = vld [vmem:[%s2077 + $0x98] sm:$0xff]
        %v2092 = vld [vmem:[%s2077 + $0xa8] sm:$0xff]
        %v2093 = vld [vmem:[%s2077 + $0xb0] sm:$0xff]
        %v2094 = vld [vmem:[%s2077 + $0xc0] sm:$0xff]
        %v2095 = vld [vmem:[%s2077 + $0xc8] sm:$0xff]
        %v2096 = vld [vmem:[%s2077 + $0xd8] sm:$0xff]
        %v2097 = vld [vmem:[%s2077 + $0xe0] sm:$0xff]
        %v2098 = vld [vmem:[%s2077 + $0xf0] sm:$0xff]
        %v2099 = vld [vmem:[%s2077 + $0xf8] sm:$0xff]
        %v2100 = vld [vmem:[%s2077 + $0x108] sm:$0xff]
        %v2101 = vld [vmem:[%s2077 + $0x110] sm:$0xff]
        %v2102 = vld [vmem:[%s2077 + $0x120] sm:$0xff]
        %v2103 = vld [vmem:[%s2077 + $0x128] sm:$0xff]
        %v2104 = vld [vmem:[%s2077 + $0x138] sm:$0xff]
        %v2105 = vld [vmem:[%s2077 + $0x140] sm:$0xff]
        %v2106 = vld [vmem:[%s2077 + $0x150] sm:$0xff]
        %v2107 = vld [vmem:[%s2077 + $0x158] sm:$0xff]
        %v2108 = vld [vmem:[%s2077 + $0x168] sm:$0xff]
        %v2109 = vld [vmem:[%s2077 + $0x170] sm:$0xff]
        %v2110 = vld [vmem:[%s1 + $0x6] sm:$0x1]
        %2112 = vset.pattern.permute.xlu0 0
        %2113 = vperm.xlu0 %2112, %v2078
        %v2114 = vpop.permute.xlu0 %2113
        %2117 = vset.pattern.permute.xlu0 0
        %2118 = vperm.xlu0 %2117, %v2079
        %v2119 = vpop.permute.xlu0 %2118
        %2122 = vset.pattern.permute.xlu0 0
        %2123 = vperm.xlu0 %2122, %v2080
        %v2124 = vpop.permute.xlu0 %2123
        %2127 = vset.pattern.permute.xlu0 0
        %2128 = vperm.xlu0 %2127, %v2081
        %v2129 = vpop.permute.xlu0 %2128
        %2132 = vset.pattern.permute.xlu0 0
        %2133 = vperm.xlu0 %2132, %v2082
        %v2134 = vpop.permute.xlu0 %2133
        %2137 = vset.pattern.permute.xlu0 0
        %2138 = vperm.xlu0 %2137, %v2083
        %v2139 = vpop.permute.xlu0 %2138
        %2142 = vset.pattern.permute.xlu0 0
        %2143 = vperm.xlu0 %2142, %v2084
        %v2144 = vpop.permute.xlu0 %2143
        %2147 = vset.pattern.permute.xlu0 0
        %2148 = vperm.xlu0 %2147, %v2085
        %v2149 = vpop.permute.xlu0 %2148
        %2152 = vset.pattern.permute.xlu0 0
        %2153 = vperm.xlu0 %2152, %v2086
        %v2154 = vpop.permute.xlu0 %2153
        %2157 = vset.pattern.permute.xlu0 0
        %2158 = vperm.xlu0 %2157, %v2087
        %v2159 = vpop.permute.xlu0 %2158
        %2162 = vset.pattern.permute.xlu0 0
        %2163 = vperm.xlu0 %2162, %v2088
        %v2164 = vpop.permute.xlu0 %2163
        %2167 = vset.pattern.permute.xlu0 0
        %2168 = vperm.xlu0 %2167, %v2089
        %v2169 = vpop.permute.xlu0 %2168
        %2172 = vset.pattern.permute.xlu0 0
        %2173 = vperm.xlu0 %2172, %v2090
        %v2174 = vpop.permute.xlu0 %2173
        %2177 = vset.pattern.permute.xlu0 0
        %2178 = vperm.xlu0 %2177, %v2091
        %v2179 = vpop.permute.xlu0 %2178
        %2182 = vset.pattern.permute.xlu0 0
        %2183 = vperm.xlu0 %2182, %v2092
        %v2184 = vpop.permute.xlu0 %2183
        %2187 = vset.pattern.permute.xlu0 0
        %2188 = vperm.xlu0 %2187, %v2093
        %v2189 = vpop.permute.xlu0 %2188
        %2192 = vset.pattern.permute.xlu0 0
        %2193 = vperm.xlu0 %2192, %v2094
        %v2194 = vpop.permute.xlu0 %2193
        %2197 = vset.pattern.permute.xlu0 0
        %2198 = vperm.xlu0 %2197, %v2095
        %v2199 = vpop.permute.xlu0 %2198
        %2202 = vset.pattern.permute.xlu0 0
        %2203 = vperm.xlu0 %2202, %v2096
        %v2204 = vpop.permute.xlu0 %2203
        %2207 = vset.pattern.permute.xlu0 0
        %2208 = vperm.xlu0 %2207, %v2097
        %v2209 = vpop.permute.xlu0 %2208
        %2212 = vset.pattern.permute.xlu0 0
        %2213 = vperm.xlu0 %2212, %v2098
        %v2214 = vpop.permute.xlu0 %2213
        %2217 = vset.pattern.permute.xlu0 0
        %2218 = vperm.xlu0 %2217, %v2099
        %v2219 = vpop.permute.xlu0 %2218
        %2222 = vset.pattern.permute.xlu0 0
        %2223 = vperm.xlu0 %2222, %v2100
        %v2224 = vpop.permute.xlu0 %2223
        %2227 = vset.pattern.permute.xlu0 0
        %2228 = vperm.xlu0 %2227, %v2101
        %v2229 = vpop.permute.xlu0 %2228
        %2232 = vset.pattern.permute.xlu0 0
        %2233 = vperm.xlu0 %2232, %v2102
        %v2234 = vpop.permute.xlu0 %2233
        %2237 = vset.pattern.permute.xlu0 0
        %2238 = vperm.xlu0 %2237, %v2103
        %v2239 = vpop.permute.xlu0 %2238
        %2242 = vset.pattern.permute.xlu0 0
        %2243 = vperm.xlu0 %2242, %v2104
        %v2244 = vpop.permute.xlu0 %2243
        %2247 = vset.pattern.permute.xlu0 0
        %2248 = vperm.xlu0 %2247, %v2105
        %v2249 = vpop.permute.xlu0 %2248
        %2252 = vset.pattern.permute.xlu0 0
        %2253 = vperm.xlu0 %2252, %v2106
        %v2254 = vpop.permute.xlu0 %2253
        %2257 = vset.pattern.permute.xlu0 0
        %2258 = vperm.xlu0 %2257, %v2107
        %v2259 = vpop.permute.xlu0 %2258
        %2262 = vset.pattern.permute.xlu0 0
        %2263 = vperm.xlu0 %2262, %v2108
        %v2264 = vpop.permute.xlu0 %2263
        %2267 = vset.pattern.permute.xlu0 0
        %2268 = vperm.xlu0 %2267, %v2109
        %v2269 = vpop.permute.xlu0 %2268
        %v2271 = vlaneseq
        %v2272 = vshrl.u32 %v2271, 7
        %v2273 = vsub.s32 0, %v2272
        %v2274 = vrot.slane %v2110, %v2273
        %v2275 = vmul.f32 %v2114, %v2274
        %v2276 = vmul.f32 %v2119, %v2274
        %v2277 = vmul.f32 %v2124, %v2274
        %v2278 = vmul.f32 %v2129, %v2274
        %v2279 = vmul.f32 %v2134, %v2274
        %v2280 = vmul.f32 %v2139, %v2274
        %v2281 = vmul.f32 %v2144, %v2274
        %v2282 = vmul.f32 %v2149, %v2274
        %v2283 = vmul.f32 %v2154, %v2274
        %v2284 = vmul.f32 %v2159, %v2274
        %v2285 = vmul.f32 %v2164, %v2274
        %v2286 = vmul.f32 %v2169, %v2274
        %v2287 = vmul.f32 %v2174, %v2274
        %v2288 = vmul.f32 %v2179, %v2274
        %v2289 = vmul.f32 %v2184, %v2274
        %v2290 = vmul.f32 %v2189, %v2274
        %v2291 = vmul.f32 %v2194, %v2274
        %v2292 = vmul.f32 %v2199, %v2274
        %v2293 = vmul.f32 %v2204, %v2274
        %v2294 = vmul.f32 %v2209, %v2274
        %v2295 = vmul.f32 %v2214, %v2274
        %v2296 = vmul.f32 %v2219, %v2274
        %v2297 = vmul.f32 %v2224, %v2274
        %v2298 = vmul.f32 %v2229, %v2274
        %v2299 = vmul.f32 %v2234, %v2274
        %v2300 = vmul.f32 %v2239, %v2274
        %v2301 = vmul.f32 %v2244, %v2274
        %v2302 = vmul.f32 %v2249, %v2274
        %v2303 = vmul.f32 %v2254, %v2274
        %v2304 = vmul.f32 %v2259, %v2274
        %v2305 = vmul.f32 %v2264, %v2274
        %v2306 = vmul.f32 %v2269, %v2274
        %v2307 = vadd.f32 %v2045, %v2275
        %v2308 = vadd.f32 %v2046, %v2276
        %v2309 = vadd.f32 %v2047, %v2277
        %v2310 = vadd.f32 %v2048, %v2278
        %v2311 = vadd.f32 %v2049, %v2279
        %v2312 = vadd.f32 %v2050, %v2280
        %v2313 = vadd.f32 %v2051, %v2281
        %v2314 = vadd.f32 %v2052, %v2282
        %v2315 = vadd.f32 %v2053, %v2283
        %v2316 = vadd.f32 %v2054, %v2284
        %v2317 = vadd.f32 %v2055, %v2285
        %v2318 = vadd.f32 %v2056, %v2286
        %v2319 = vadd.f32 %v2057, %v2287
        %v2320 = vadd.f32 %v2058, %v2288
        %v2321 = vadd.f32 %v2059, %v2289
        %v2322 = vadd.f32 %v2060, %v2290
        %v2323 = vadd.f32 %v2061, %v2291
        %v2324 = vadd.f32 %v2062, %v2292
        %v2325 = vadd.f32 %v2063, %v2293
        %v2326 = vadd.f32 %v2064, %v2294
        %v2327 = vadd.f32 %v2065, %v2295
        %v2328 = vadd.f32 %v2066, %v2296
        %v2329 = vadd.f32 %v2067, %v2297
        %v2330 = vadd.f32 %v2068, %v2298
        %v2331 = vadd.f32 %v2069, %v2299
        %v2332 = vadd.f32 %v2070, %v2300
        %v2333 = vadd.f32 %v2071, %v2301
        %v2334 = vadd.f32 %v2072, %v2302
        %v2335 = vadd.f32 %v2073, %v2303
        %v2336 = vadd.f32 %v2074, %v2304
        %v2337 = vadd.f32 %v2075, %v2305
        %v2338 = vadd.f32 %v2076, %v2306
        %v2339 = vld [vmem:[%s2077 + $0x1] sm:$0xff]
        %v2340 = vld [vmem:[%s2077 + $0x9] sm:$0xff]
        %v2341 = vld [vmem:[%s2077 + $0x19] sm:$0xff]
        %v2342 = vld [vmem:[%s2077 + $0x21] sm:$0xff]
        %v2343 = vld [vmem:[%s2077 + $0x31] sm:$0xff]
        %v2344 = vld [vmem:[%s2077 + $0x39] sm:$0xff]
        %v2345 = vld [vmem:[%s2077 + $0x49] sm:$0xff]
        %v2346 = vld [vmem:[%s2077 + $0x51] sm:$0xff]
        %v2347 = vld [vmem:[%s2077 + $0x61] sm:$0xff]
        %v2348 = vld [vmem:[%s2077 + $0x69] sm:$0xff]
        %v2349 = vld [vmem:[%s2077 + $0x79] sm:$0xff]
        %v2350 = vld [vmem:[%s2077 + $0x81] sm:$0xff]
        %v2351 = vld [vmem:[%s2077 + $0x91] sm:$0xff]
        %v2352 = vld [vmem:[%s2077 + $0x99] sm:$0xff]
        %v2353 = vld [vmem:[%s2077 + $0xa9] sm:$0xff]
        %v2354 = vld [vmem:[%s2077 + $0xb1] sm:$0xff]
        %v2355 = vld [vmem:[%s2077 + $0xc1] sm:$0xff]
        %v2356 = vld [vmem:[%s2077 + $0xc9] sm:$0xff]
        %v2357 = vld [vmem:[%s2077 + $0xd9] sm:$0xff]
        %v2358 = vld [vmem:[%s2077 + $0xe1] sm:$0xff]
        %v2359 = vld [vmem:[%s2077 + $0xf1] sm:$0xff]
        %v2360 = vld [vmem:[%s2077 + $0xf9] sm:$0xff]
        %v2361 = vld [vmem:[%s2077 + $0x109] sm:$0xff]
        %v2362 = vld [vmem:[%s2077 + $0x111] sm:$0xff]
        %v2363 = vld [vmem:[%s2077 + $0x121] sm:$0xff]
        %v2364 = vld [vmem:[%s2077 + $0x129] sm:$0xff]
        %v2365 = vld [vmem:[%s2077 + $0x139] sm:$0xff]
        %v2366 = vld [vmem:[%s2077 + $0x141] sm:$0xff]
        %v2367 = vld [vmem:[%s2077 + $0x151] sm:$0xff]
        %v2368 = vld [vmem:[%s2077 + $0x159] sm:$0xff]
        %v2369 = vld [vmem:[%s2077 + $0x169] sm:$0xff]
        %v2370 = vld [vmem:[%s2077 + $0x171] sm:$0xff]
        %v2371 = vld [vmem:[%s1 + $0x7] sm:$0x1]
        %2373 = vset.pattern.permute.xlu0 0
        %2374 = vperm.xlu0 %2373, %v2339
        %v2375 = vpop.permute.xlu0 %2374
        %2378 = vset.pattern.permute.xlu0 0
        %2379 = vperm.xlu0 %2378, %v2340
        %v2380 = vpop.permute.xlu0 %2379
        %2383 = vset.pattern.permute.xlu0 0
        %2384 = vperm.xlu0 %2383, %v2341
        %v2385 = vpop.permute.xlu0 %2384
        %2388 = vset.pattern.permute.xlu0 0
        %2389 = vperm.xlu0 %2388, %v2342
        %v2390 = vpop.permute.xlu0 %2389
        %2393 = vset.pattern.permute.xlu0 0
        %2394 = vperm.xlu0 %2393, %v2343
        %v2395 = vpop.permute.xlu0 %2394
        %2398 = vset.pattern.permute.xlu0 0
        %2399 = vperm.xlu0 %2398, %v2344
        %v2400 = vpop.permute.xlu0 %2399
        %2403 = vset.pattern.permute.xlu0 0
        %2404 = vperm.xlu0 %2403, %v2345
        %v2405 = vpop.permute.xlu0 %2404
        %2408 = vset.pattern.permute.xlu0 0
        %2409 = vperm.xlu0 %2408, %v2346
        %v2410 = vpop.permute.xlu0 %2409
        %2413 = vset.pattern.permute.xlu0 0
        %2414 = vperm.xlu0 %2413, %v2347
        %v2415 = vpop.permute.xlu0 %2414
        %2418 = vset.pattern.permute.xlu0 0
        %2419 = vperm.xlu0 %2418, %v2348
        %v2420 = vpop.permute.xlu0 %2419
        %2423 = vset.pattern.permute.xlu0 0
        %2424 = vperm.xlu0 %2423, %v2349
        %v2425 = vpop.permute.xlu0 %2424
        %2428 = vset.pattern.permute.xlu0 0
        %2429 = vperm.xlu0 %2428, %v2350
        %v2430 = vpop.permute.xlu0 %2429
        %2433 = vset.pattern.permute.xlu0 0
        %2434 = vperm.xlu0 %2433, %v2351
        %v2435 = vpop.permute.xlu0 %2434
        %2438 = vset.pattern.permute.xlu0 0
        %2439 = vperm.xlu0 %2438, %v2352
        %v2440 = vpop.permute.xlu0 %2439
        %2443 = vset.pattern.permute.xlu0 0
        %2444 = vperm.xlu0 %2443, %v2353
        %v2445 = vpop.permute.xlu0 %2444
        %2448 = vset.pattern.permute.xlu0 0
        %2449 = vperm.xlu0 %2448, %v2354
        %v2450 = vpop.permute.xlu0 %2449
        %2453 = vset.pattern.permute.xlu0 0
        %2454 = vperm.xlu0 %2453, %v2355
        %v2455 = vpop.permute.xlu0 %2454
        %2458 = vset.pattern.permute.xlu0 0
        %2459 = vperm.xlu0 %2458, %v2356
        %v2460 = vpop.permute.xlu0 %2459
        %2463 = vset.pattern.permute.xlu0 0
        %2464 = vperm.xlu0 %2463, %v2357
        %v2465 = vpop.permute.xlu0 %2464
        %2468 = vset.pattern.permute.xlu0 0
        %2469 = vperm.xlu0 %2468, %v2358
        %v2470 = vpop.permute.xlu0 %2469
        %2473 = vset.pattern.permute.xlu0 0
        %2474 = vperm.xlu0 %2473, %v2359
        %v2475 = vpop.permute.xlu0 %2474
        %2478 = vset.pattern.permute.xlu0 0
        %2479 = vperm.xlu0 %2478, %v2360
        %v2480 = vpop.permute.xlu0 %2479
        %2483 = vset.pattern.permute.xlu0 0
        %2484 = vperm.xlu0 %2483, %v2361
        %v2485 = vpop.permute.xlu0 %2484
        %2488 = vset.pattern.permute.xlu0 0
        %2489 = vperm.xlu0 %2488, %v2362
        %v2490 = vpop.permute.xlu0 %2489
        %2493 = vset.pattern.permute.xlu0 0
        %2494 = vperm.xlu0 %2493, %v2363
        %v2495 = vpop.permute.xlu0 %2494
        %2498 = vset.pattern.permute.xlu0 0
        %2499 = vperm.xlu0 %2498, %v2364
        %v2500 = vpop.permute.xlu0 %2499
        %2503 = vset.pattern.permute.xlu0 0
        %2504 = vperm.xlu0 %2503, %v2365
        %v2505 = vpop.permute.xlu0 %2504
        %2508 = vset.pattern.permute.xlu0 0
        %2509 = vperm.xlu0 %2508, %v2366
        %v2510 = vpop.permute.xlu0 %2509
        %2513 = vset.pattern.permute.xlu0 0
        %2514 = vperm.xlu0 %2513, %v2367
        %v2515 = vpop.permute.xlu0 %2514
        %2518 = vset.pattern.permute.xlu0 0
        %2519 = vperm.xlu0 %2518, %v2368
        %v2520 = vpop.permute.xlu0 %2519
        %2523 = vset.pattern.permute.xlu0 0
        %2524 = vperm.xlu0 %2523, %v2369
        %v2525 = vpop.permute.xlu0 %2524
        %2528 = vset.pattern.permute.xlu0 0
        %2529 = vperm.xlu0 %2528, %v2370
        %v2530 = vpop.permute.xlu0 %2529
        %v2532 = vlaneseq
        %v2533 = vshrl.u32 %v2532, 7
        %v2534 = vsub.s32 0, %v2533
        %v2535 = vrot.slane %v2371, %v2534
        %v2536 = vmul.f32 %v2375, %v2535
        %v2537 = vmul.f32 %v2380, %v2535
        %v2538 = vmul.f32 %v2385, %v2535
        %v2539 = vmul.f32 %v2390, %v2535
        %v2540 = vmul.f32 %v2395, %v2535
        %v2541 = vmul.f32 %v2400, %v2535
        %v2542 = vmul.f32 %v2405, %v2535
        %v2543 = vmul.f32 %v2410, %v2535
        %v2544 = vmul.f32 %v2415, %v2535
        %v2545 = vmul.f32 %v2420, %v2535
        %v2546 = vmul.f32 %v2425, %v2535
        %v2547 = vmul.f32 %v2430, %v2535
        %v2548 = vmul.f32 %v2435, %v2535
        %v2549 = vmul.f32 %v2440, %v2535
        %v2550 = vmul.f32 %v2445, %v2535
        %v2551 = vmul.f32 %v2450, %v2535
        %v2552 = vmul.f32 %v2455, %v2535
        %v2553 = vmul.f32 %v2460, %v2535
        %v2554 = vmul.f32 %v2465, %v2535
        %v2555 = vmul.f32 %v2470, %v2535
        %v2556 = vmul.f32 %v2475, %v2535
        %v2557 = vmul.f32 %v2480, %v2535
        %v2558 = vmul.f32 %v2485, %v2535
        %v2559 = vmul.f32 %v2490, %v2535
        %v2560 = vmul.f32 %v2495, %v2535
        %v2561 = vmul.f32 %v2500, %v2535
        %v2562 = vmul.f32 %v2505, %v2535
        %v2563 = vmul.f32 %v2510, %v2535
        %v2564 = vmul.f32 %v2515, %v2535
        %v2565 = vmul.f32 %v2520, %v2535
        %v2566 = vmul.f32 %v2525, %v2535
        %v2567 = vmul.f32 %v2530, %v2535
        %v2568 = vadd.f32 %v2307, %v2536
        %v2569 = vadd.f32 %v2308, %v2537
        %v2570 = vadd.f32 %v2309, %v2538
        %v2571 = vadd.f32 %v2310, %v2539
        %v2572 = vadd.f32 %v2311, %v2540
        %v2573 = vadd.f32 %v2312, %v2541
        %v2574 = vadd.f32 %v2313, %v2542
        %v2575 = vadd.f32 %v2314, %v2543
        %v2576 = vadd.f32 %v2315, %v2544
        %v2577 = vadd.f32 %v2316, %v2545
        %v2578 = vadd.f32 %v2317, %v2546
        %v2579 = vadd.f32 %v2318, %v2547
        %v2580 = vadd.f32 %v2319, %v2548
        %v2581 = vadd.f32 %v2320, %v2549
        %v2582 = vadd.f32 %v2321, %v2550
        %v2583 = vadd.f32 %v2322, %v2551
        %v2584 = vadd.f32 %v2323, %v2552
        %v2585 = vadd.f32 %v2324, %v2553
        %v2586 = vadd.f32 %v2325, %v2554
        %v2587 = vadd.f32 %v2326, %v2555
        %v2588 = vadd.f32 %v2327, %v2556
        %v2589 = vadd.f32 %v2328, %v2557
        %v2590 = vadd.f32 %v2329, %v2558
        %v2591 = vadd.f32 %v2330, %v2559
        %v2592 = vadd.f32 %v2331, %v2560
        %v2593 = vadd.f32 %v2332, %v2561
        %v2594 = vadd.f32 %v2333, %v2562
        %v2595 = vadd.f32 %v2334, %v2563
        %v2596 = vadd.f32 %v2335, %v2564
        %v2597 = vadd.f32 %v2336, %v2565
        %v2598 = vadd.f32 %v2337, %v2566
        %v2599 = vadd.f32 %v2338, %v2567
        %v2600 = vld [vmem:[%s2077 + $0x2] sm:$0xff]
        %v2601 = vld [vmem:[%s2077 + $0xa] sm:$0xff]
        %v2602 = vld [vmem:[%s2077 + $0x1a] sm:$0xff]
        %v2603 = vld [vmem:[%s2077 + $0x22] sm:$0xff]
        %v2604 = vld [vmem:[%s2077 + $0x32] sm:$0xff]
        %v2605 = vld [vmem:[%s2077 + $0x3a] sm:$0xff]
        %v2606 = vld [vmem:[%s2077 + $0x4a] sm:$0xff]
        %v2607 = vld [vmem:[%s2077 + $0x52] sm:$0xff]
        %v2608 = vld [vmem:[%s2077 + $0x62] sm:$0xff]
        %v2609 = vld [vmem:[%s2077 + $0x6a] sm:$0xff]
        %v2610 = vld [vmem:[%s2077 + $0x7a] sm:$0xff]
        %v2611 = vld [vmem:[%s2077 + $0x82] sm:$0xff]
        %v2612 = vld [vmem:[%s2077 + $0x92] sm:$0xff]
        %v2613 = vld [vmem:[%s2077 + $0x9a] sm:$0xff]
        %v2614 = vld [vmem:[%s2077 + $0xaa] sm:$0xff]
        %v2615 = vld [vmem:[%s2077 + $0xb2] sm:$0xff]
        %v2616 = vld [vmem:[%s2077 + $0xc2] sm:$0xff]
        %v2617 = vld [vmem:[%s2077 + $0xca] sm:$0xff]
        %v2618 = vld [vmem:[%s2077 + $0xda] sm:$0xff]
        %v2619 = vld [vmem:[%s2077 + $0xe2] sm:$0xff]
        %v2620 = vld [vmem:[%s2077 + $0xf2] sm:$0xff]
        %v2621 = vld [vmem:[%s2077 + $0xfa] sm:$0xff]
        %v2622 = vld [vmem:[%s2077 + $0x10a] sm:$0xff]
        %v2623 = vld [vmem:[%s2077 + $0x112] sm:$0xff]
        %v2624 = vld [vmem:[%s2077 + $0x122] sm:$0xff]
        %v2625 = vld [vmem:[%s2077 + $0x12a] sm:$0xff]
        %v2626 = vld [vmem:[%s2077 + $0x13a] sm:$0xff]
        %v2627 = vld [vmem:[%s2077 + $0x142] sm:$0xff]
        %v2628 = vld [vmem:[%s2077 + $0x152] sm:$0xff]
        %v2629 = vld [vmem:[%s2077 + $0x15a] sm:$0xff]
        %v2630 = vld [vmem:[%s2077 + $0x16a] sm:$0xff]
        %v2631 = vld [vmem:[%s2077 + $0x172] sm:$0xff]
        %v2632 = vld [vmem:[%s1 + $0x8] sm:$0x1]
        %2634 = vset.pattern.permute.xlu0 0
        %2635 = vperm.xlu0 %2634, %v2600
        %v2636 = vpop.permute.xlu0 %2635
        %2639 = vset.pattern.permute.xlu0 0
        %2640 = vperm.xlu0 %2639, %v2601
        %v2641 = vpop.permute.xlu0 %2640
        %2644 = vset.pattern.permute.xlu0 0
        %2645 = vperm.xlu0 %2644, %v2602
        %v2646 = vpop.permute.xlu0 %2645
        %2649 = vset.pattern.permute.xlu0 0
        %2650 = vperm.xlu0 %2649, %v2603
        %v2651 = vpop.permute.xlu0 %2650
        %2654 = vset.pattern.permute.xlu0 0
        %2655 = vperm.xlu0 %2654, %v2604
        %v2656 = vpop.permute.xlu0 %2655
        %2659 = vset.pattern.permute.xlu0 0
        %2660 = vperm.xlu0 %2659, %v2605
        %v2661 = vpop.permute.xlu0 %2660
        %2664 = vset.pattern.permute.xlu0 0
        %2665 = vperm.xlu0 %2664, %v2606
        %v2666 = vpop.permute.xlu0 %2665
        %2669 = vset.pattern.permute.xlu0 0
        %2670 = vperm.xlu0 %2669, %v2607
        %v2671 = vpop.permute.xlu0 %2670
        %2674 = vset.pattern.permute.xlu0 0
        %2675 = vperm.xlu0 %2674, %v2608
        %v2676 = vpop.permute.xlu0 %2675
        %2679 = vset.pattern.permute.xlu0 0
        %2680 = vperm.xlu0 %2679, %v2609
        %v2681 = vpop.permute.xlu0 %2680
        %2684 = vset.pattern.permute.xlu0 0
        %2685 = vperm.xlu0 %2684, %v2610
        %v2686 = vpop.permute.xlu0 %2685
        %2689 = vset.pattern.permute.xlu0 0
        %2690 = vperm.xlu0 %2689, %v2611
        %v2691 = vpop.permute.xlu0 %2690
        %2694 = vset.pattern.permute.xlu0 0
        %2695 = vperm.xlu0 %2694, %v2612
        %v2696 = vpop.permute.xlu0 %2695
        %2699 = vset.pattern.permute.xlu0 0
        %2700 = vperm.xlu0 %2699, %v2613
        %v2701 = vpop.permute.xlu0 %2700
        %2704 = vset.pattern.permute.xlu0 0
        %2705 = vperm.xlu0 %2704, %v2614
        %v2706 = vpop.permute.xlu0 %2705
        %2709 = vset.pattern.permute.xlu0 0
        %2710 = vperm.xlu0 %2709, %v2615
        %v2711 = vpop.permute.xlu0 %2710
        %2714 = vset.pattern.permute.xlu0 0
        %2715 = vperm.xlu0 %2714, %v2616
        %v2716 = vpop.permute.xlu0 %2715
        %2719 = vset.pattern.permute.xlu0 0
        %2720 = vperm.xlu0 %2719, %v2617
        %v2721 = vpop.permute.xlu0 %2720
        %2724 = vset.pattern.permute.xlu0 0
        %2725 = vperm.xlu0 %2724, %v2618
        %v2726 = vpop.permute.xlu0 %2725
        %2729 = vset.pattern.permute.xlu0 0
        %2730 = vperm.xlu0 %2729, %v2619
        %v2731 = vpop.permute.xlu0 %2730
        %2734 = vset.pattern.permute.xlu0 0
        %2735 = vperm.xlu0 %2734, %v2620
        %v2736 = vpop.permute.xlu0 %2735
        %2739 = vset.pattern.permute.xlu0 0
        %2740 = vperm.xlu0 %2739, %v2621
        %v2741 = vpop.permute.xlu0 %2740
        %2744 = vset.pattern.permute.xlu0 0
        %2745 = vperm.xlu0 %2744, %v2622
        %v2746 = vpop.permute.xlu0 %2745
        %2749 = vset.pattern.permute.xlu0 0
        %2750 = vperm.xlu0 %2749, %v2623
        %v2751 = vpop.permute.xlu0 %2750
        %2754 = vset.pattern.permute.xlu0 0
        %2755 = vperm.xlu0 %2754, %v2624
        %v2756 = vpop.permute.xlu0 %2755
        %2759 = vset.pattern.permute.xlu0 0
        %2760 = vperm.xlu0 %2759, %v2625
        %v2761 = vpop.permute.xlu0 %2760
        %2764 = vset.pattern.permute.xlu0 0
        %2765 = vperm.xlu0 %2764, %v2626
        %v2766 = vpop.permute.xlu0 %2765
        %2769 = vset.pattern.permute.xlu0 0
        %2770 = vperm.xlu0 %2769, %v2627
        %v2771 = vpop.permute.xlu0 %2770
        %2774 = vset.pattern.permute.xlu0 0
        %2775 = vperm.xlu0 %2774, %v2628
        %v2776 = vpop.permute.xlu0 %2775
        %2779 = vset.pattern.permute.xlu0 0
        %2780 = vperm.xlu0 %2779, %v2629
        %v2781 = vpop.permute.xlu0 %2780
        %2784 = vset.pattern.permute.xlu0 0
        %2785 = vperm.xlu0 %2784, %v2630
        %v2786 = vpop.permute.xlu0 %2785
        %2789 = vset.pattern.permute.xlu0 0
        %2790 = vperm.xlu0 %2789, %v2631
        %v2791 = vpop.permute.xlu0 %2790
        %v2793 = vlaneseq
        %v2794 = vshrl.u32 %v2793, 7
        %v2795 = vsub.s32 0, %v2794
        %v2796 = vrot.slane %v2632, %v2795
        %v2797 = vmul.f32 %v2636, %v2796
        %v2798 = vmul.f32 %v2641, %v2796
        %v2799 = vmul.f32 %v2646, %v2796
        %v2800 = vmul.f32 %v2651, %v2796
        %v2801 = vmul.f32 %v2656, %v2796
        %v2802 = vmul.f32 %v2661, %v2796
        %v2803 = vmul.f32 %v2666, %v2796
        %v2804 = vmul.f32 %v2671, %v2796
        %v2805 = vmul.f32 %v2676, %v2796
        %v2806 = vmul.f32 %v2681, %v2796
        %v2807 = vmul.f32 %v2686, %v2796
        %v2808 = vmul.f32 %v2691, %v2796
        %v2809 = vmul.f32 %v2696, %v2796
        %v2810 = vmul.f32 %v2701, %v2796
        %v2811 = vmul.f32 %v2706, %v2796
        %v2812 = vmul.f32 %v2711, %v2796
        %v2813 = vmul.f32 %v2716, %v2796
        %v2814 = vmul.f32 %v2721, %v2796
        %v2815 = vmul.f32 %v2726, %v2796
        %v2816 = vmul.f32 %v2731, %v2796
        %v2817 = vmul.f32 %v2736, %v2796
        %v2818 = vmul.f32 %v2741, %v2796
        %v2819 = vmul.f32 %v2746, %v2796
        %v2820 = vmul.f32 %v2751, %v2796
        %v2821 = vmul.f32 %v2756, %v2796
        %v2822 = vmul.f32 %v2761, %v2796
        %v2823 = vmul.f32 %v2766, %v2796
        %v2824 = vmul.f32 %v2771, %v2796
        %v2825 = vmul.f32 %v2776, %v2796
        %v2826 = vmul.f32 %v2781, %v2796
        %v2827 = vmul.f32 %v2786, %v2796
        %v2828 = vmul.f32 %v2791, %v2796
        %v2829 = vadd.f32 %v2568, %v2797
        %v2830 = vadd.f32 %v2569, %v2798
        %v2831 = vadd.f32 %v2570, %v2799
        %v2832 = vadd.f32 %v2571, %v2800
        %v2833 = vadd.f32 %v2572, %v2801
        %v2834 = vadd.f32 %v2573, %v2802
        %v2835 = vadd.f32 %v2574, %v2803
        %v2836 = vadd.f32 %v2575, %v2804
        %v2837 = vadd.f32 %v2576, %v2805
        %v2838 = vadd.f32 %v2577, %v2806
        %v2839 = vadd.f32 %v2578, %v2807
        %v2840 = vadd.f32 %v2579, %v2808
        %v2841 = vadd.f32 %v2580, %v2809
        %v2842 = vadd.f32 %v2581, %v2810
        %v2843 = vadd.f32 %v2582, %v2811
        %v2844 = vadd.f32 %v2583, %v2812
        %v2845 = vadd.f32 %v2584, %v2813
        %v2846 = vadd.f32 %v2585, %v2814
        %v2847 = vadd.f32 %v2586, %v2815
        %v2848 = vadd.f32 %v2587, %v2816
        %v2849 = vadd.f32 %v2588, %v2817
        %v2850 = vadd.f32 %v2589, %v2818
        %v2851 = vadd.f32 %v2590, %v2819
        %v2852 = vadd.f32 %v2591, %v2820
        %v2853 = vadd.f32 %v2592, %v2821
        %v2854 = vadd.f32 %v2593, %v2822
        %v2855 = vadd.f32 %v2594, %v2823
        %v2856 = vadd.f32 %v2595, %v2824
        %v2857 = vadd.f32 %v2596, %v2825
        %v2858 = vadd.f32 %v2597, %v2826
        %v2859 = vadd.f32 %v2598, %v2827
        %v2860 = vadd.f32 %v2599, %v2828
        %v2861 = vld [vmem:[%s2] sm:$0x1]
        %v2863 = vlaneseq
        %v2864 = vshrl.u32 %v2863, 7
        %v2865 = vsub.s32 0, %v2864
        %v2866 = vrot.slane %v2861, %v2865
        %v2868 = vadd.f32 %v2829, %v2866
        %v2869 = vadd.f32 %v2830, %v2866
        %v2870 = vadd.f32 %v2831, %v2866
        %v2871 = vadd.f32 %v2832, %v2866
        %v2872 = vadd.f32 %v2833, %v2866
        %v2873 = vadd.f32 %v2834, %v2866
        %v2874 = vadd.f32 %v2835, %v2866
        %v2875 = vadd.f32 %v2836, %v2866
        %v2876 = vadd.f32 %v2837, %v2866
        %v2877 = vadd.f32 %v2838, %v2866
        %v2878 = vadd.f32 %v2839, %v2866
        %v2879 = vadd.f32 %v2840, %v2866
        %v2880 = vadd.f32 %v2841, %v2866
        %v2881 = vadd.f32 %v2842, %v2866
        %v2882 = vadd.f32 %v2843, %v2866
        %v2883 = vadd.f32 %v2844, %v2866
        %v2884 = vadd.f32 %v2845, %v2866
        %v2885 = vadd.f32 %v2846, %v2866
        %v2886 = vadd.f32 %v2847, %v2866
        %v2887 = vadd.f32 %v2848, %v2866
        %v2888 = vadd.f32 %v2849, %v2866
        %v2889 = vadd.f32 %v2850, %v2866
        %v2890 = vadd.f32 %v2851, %v2866
        %v2891 = vadd.f32 %v2852, %v2866
        %v2892 = vadd.f32 %v2853, %v2866
        %v2893 = vadd.f32 %v2854, %v2866
        %v2894 = vadd.f32 %v2855, %v2866
        %v2895 = vadd.f32 %v2856, %v2866
        %v2896 = vadd.f32 %v2857, %v2866
        %v2897 = vadd.f32 %v2858, %v2866
        %v2898 = vadd.f32 %v2859, %v2866
        %v2899 = vadd.f32 %v2860, %v2866
        %v2900 = vmax.f32 %v2868, 0.0
        %v2901 = vmax.f32 %v2869, 0.0
        %v2902 = vmax.f32 %v2870, 0.0
        %v2903 = vmax.f32 %v2871, 0.0
        %v2904 = vmax.f32 %v2872, 0.0
        %v2905 = vmax.f32 %v2873, 0.0
        %v2906 = vmax.f32 %v2874, 0.0
        %v2907 = vmax.f32 %v2875, 0.0
        %v2908 = vmax.f32 %v2876, 0.0
        %v2909 = vmax.f32 %v2877, 0.0
        %v2910 = vmax.f32 %v2878, 0.0
        %v2911 = vmax.f32 %v2879, 0.0
        %v2912 = vmax.f32 %v2880, 0.0
        %v2913 = vmax.f32 %v2881, 0.0
        %v2914 = vmax.f32 %v2882, 0.0
        %v2915 = vmax.f32 %v2883, 0.0
        %v2916 = vmax.f32 %v2884, 0.0
        %v2917 = vmax.f32 %v2885, 0.0
        %v2918 = vmax.f32 %v2886, 0.0
        %v2919 = vmax.f32 %v2887, 0.0
        %v2920 = vmax.f32 %v2888, 0.0
        %v2921 = vmax.f32 %v2889, 0.0
        %v2922 = vmax.f32 %v2890, 0.0
        %v2923 = vmax.f32 %v2891, 0.0
        %v2924 = vmax.f32 %v2892, 0.0
        %v2925 = vmax.f32 %v2893, 0.0
        %v2926 = vmax.f32 %v2894, 0.0
        %v2927 = vmax.f32 %v2895, 0.0
        %v2928 = vmax.f32 %v2896, 0.0
        %v2929 = vmax.f32 %v2897, 0.0
        %v2930 = vmax.f32 %v2898, 0.0
        %v2931 = vmax.f32 %v2899, 0.0
        %v2932 = vpack.c.bf16 %v2901, %v2900
        %v2933 = vpack.c.bf16 %v2903, %v2902
        %v2934 = vpack.c.bf16 %v2905, %v2904
        %v2935 = vpack.c.bf16 %v2907, %v2906
        %v2936 = vpack.c.bf16 %v2909, %v2908
        %v2937 = vpack.c.bf16 %v2911, %v2910
        %v2938 = vpack.c.bf16 %v2913, %v2912
        %v2939 = vpack.c.bf16 %v2915, %v2914
        %v2940 = vpack.c.bf16 %v2917, %v2916
        %v2941 = vpack.c.bf16 %v2919, %v2918
        %v2942 = vpack.c.bf16 %v2921, %v2920
        %v2943 = vpack.c.bf16 %v2923, %v2922
        %v2944 = vpack.c.bf16 %v2925, %v2924
        %v2945 = vpack.c.bf16 %v2927, %v2926
        %v2946 = vpack.c.bf16 %v2929, %v2928
        %v2947 = vpack.c.bf16 %v2931, %v2930
        %v2964 = vunpack.c.l.b16 %v2932
        %v2965 = vunpack.c.h.b16 %v2932
        %v2966 = vunpack.c.l.b16 %v2933
        %v2967 = vunpack.c.h.b16 %v2933
        %v2968 = vunpack.c.l.b16 %v2934
        %v2969 = vunpack.c.h.b16 %v2934
        %v2970 = vunpack.c.l.b16 %v2935
        %v2971 = vunpack.c.h.b16 %v2935
        %v2972 = vunpack.c.l.b16 %v2936
        %v2973 = vunpack.c.h.b16 %v2936
        %v2974 = vunpack.c.l.b16 %v2937
        %v2975 = vunpack.c.h.b16 %v2937
        %v2976 = vunpack.c.l.b16 %v2938
        %v2977 = vunpack.c.h.b16 %v2938
        %v2978 = vunpack.c.l.b16 %v2939
        %v2979 = vunpack.c.h.b16 %v2939
        %v2980 = vunpack.c.l.b16 %v2940
        %v2981 = vunpack.c.h.b16 %v2940
        %v2982 = vunpack.c.l.b16 %v2941
        %v2983 = vunpack.c.h.b16 %v2941
        %v2984 = vunpack.c.l.b16 %v2942
        %v2985 = vunpack.c.h.b16 %v2942
        %v2986 = vunpack.c.l.b16 %v2943
        %v2987 = vunpack.c.h.b16 %v2943
        %v2988 = vunpack.c.l.b16 %v2944
        %v2989 = vunpack.c.h.b16 %v2944
        %v2990 = vunpack.c.l.b16 %v2945
        %v2991 = vunpack.c.h.b16 %v2945
        %v2992 = vunpack.c.l.b16 %v2946
        %v2993 = vunpack.c.h.b16 %v2946
        %v2994 = vunpack.c.l.b16 %v2947
        %v2995 = vunpack.c.h.b16 %v2947
        %v2996 = vpack.c.b16 %v2964, %v2964
        %v2997 = vpack.c.b16 %v2965, %v2965
        %v2998 = vpack.c.b16 %v2966, %v2966
        %v2999 = vpack.c.b16 %v2967, %v2967
        %v3000 = vpack.c.b16 %v2968, %v2968
        %v3001 = vpack.c.b16 %v2969, %v2969
        %v3002 = vpack.c.b16 %v2970, %v2970
        %v3003 = vpack.c.b16 %v2971, %v2971
        %v3004 = vpack.c.b16 %v2972, %v2972
        %v3005 = vpack.c.b16 %v2973, %v2973
        %v3006 = vpack.c.b16 %v2974, %v2974
        %v3007 = vpack.c.b16 %v2975, %v2975
        %v3008 = vpack.c.b16 %v2976, %v2976
        %v3009 = vpack.c.b16 %v2977, %v2977
        %v3010 = vpack.c.b16 %v2978, %v2978
        %v3011 = vpack.c.b16 %v2979, %v2979
        %v3012 = vpack.c.b16 %v2980, %v2980
        %v3013 = vpack.c.b16 %v2981, %v2981
        %v3014 = vpack.c.b16 %v2982, %v2982
        %v3015 = vpack.c.b16 %v2983, %v2983
        %v3016 = vpack.c.b16 %v2984, %v2984
        %v3017 = vpack.c.b16 %v2985, %v2985
        %v3018 = vpack.c.b16 %v2986, %v2986
        %v3019 = vpack.c.b16 %v2987, %v2987
        %v3020 = vpack.c.b16 %v2988, %v2988
        %v3021 = vpack.c.b16 %v2989, %v2989
        %v3022 = vpack.c.b16 %v2990, %v2990
        %v3023 = vpack.c.b16 %v2991, %v2991
        %v3024 = vpack.c.b16 %v2992, %v2992
        %v3025 = vpack.c.b16 %v2993, %v2993
        %v3026 = vpack.c.b16 %v2994, %v2994
        %v3027 = vpack.c.b16 %v2995, %v2995
        %vm3028 = vsmask.f32 4368
        %vm3029 = vmor %vm334, %vm3028
        %v3031 = vshrl.u32 %v2996, 16
        %v3033 = vrot.slane %v3031, 7
        %v3034 = vshll.u32 %v2996, 16
        %v3036 = vor.u32 %v3033, %v3034
        %v3037 = vrot.slane %v3033, 4
        %v3039 = vshrl.u32 %v2997, 16
        %v3041 = vrot.slane %v3039, 7
        %v3042 = vshll.u32 %v2997, 16
        %v3044 = vor.u32 %v3041, %v3042
        %v3045 = vsel %vm3029, %v3037, %v3044
        %v3046 = vrot.slane %v3041, 4
        %v3048 = vshrl.u32 %v2998, 16
        %v3050 = vrot.slane %v3048, 7
        %v3051 = vshll.u32 %v2998, 16
        %v3053 = vor.u32 %v3050, %v3051
        %v3054 = vrot.slane %v3050, 4
        %v3056 = vshrl.u32 %v2999, 16
        %v3058 = vrot.slane %v3056, 7
        %v3059 = vshll.u32 %v2999, 16
        %v3061 = vor.u32 %v3058, %v3059
        %v3062 = vsel %vm3029, %v3054, %v3061
        %v3063 = vrot.slane %v3058, 4
        %v3065 = vshrl.u32 %v3000, 16
        %v3067 = vrot.slane %v3065, 7
        %v3068 = vshll.u32 %v3000, 16
        %v3070 = vor.u32 %v3067, %v3068
        %v3071 = vrot.slane %v3067, 4
        %v3073 = vshrl.u32 %v3001, 16
        %v3075 = vrot.slane %v3073, 7
        %v3076 = vshll.u32 %v3001, 16
        %v3078 = vor.u32 %v3075, %v3076
        %v3079 = vsel %vm3029, %v3071, %v3078
        %v3080 = vrot.slane %v3075, 4
        %v3082 = vshrl.u32 %v3002, 16
        %v3084 = vrot.slane %v3082, 7
        %v3085 = vshll.u32 %v3002, 16
        %v3087 = vor.u32 %v3084, %v3085
        %v3088 = vrot.slane %v3084, 4
        %v3090 = vshrl.u32 %v3003, 16
        %v3092 = vrot.slane %v3090, 7
        %v3093 = vshll.u32 %v3003, 16
        %v3095 = vor.u32 %v3092, %v3093
        %v3096 = vsel %vm3029, %v3088, %v3095
        %v3097 = vrot.slane %v3092, 4
        %v3099 = vshrl.u32 %v3004, 16
        %v3101 = vrot.slane %v3099, 7
        %v3102 = vshll.u32 %v3004, 16
        %v3104 = vor.u32 %v3101, %v3102
        %v3105 = vrot.slane %v3101, 4
        %v3107 = vshrl.u32 %v3005, 16
        %v3109 = vrot.slane %v3107, 7
        %v3110 = vshll.u32 %v3005, 16
        %v3112 = vor.u32 %v3109, %v3110
        %v3113 = vsel %vm3029, %v3105, %v3112
        %v3114 = vrot.slane %v3109, 4
        %v3116 = vshrl.u32 %v3006, 16
        %v3118 = vrot.slane %v3116, 7
        %v3119 = vshll.u32 %v3006, 16
        %v3121 = vor.u32 %v3118, %v3119
        %v3122 = vrot.slane %v3118, 4
        %v3124 = vshrl.u32 %v3007, 16
        %v3126 = vrot.slane %v3124, 7
        %v3127 = vshll.u32 %v3007, 16
        %v3129 = vor.u32 %v3126, %v3127
        %v3130 = vsel %vm3029, %v3122, %v3129
        %v3131 = vrot.slane %v3126, 4
        %v3133 = vshrl.u32 %v3008, 16
        %v3135 = vrot.slane %v3133, 7
        %v3136 = vshll.u32 %v3008, 16
        %v3138 = vor.u32 %v3135, %v3136
        %v3139 = vrot.slane %v3135, 4
        %v3141 = vshrl.u32 %v3009, 16
        %v3143 = vrot.slane %v3141, 7
        %v3144 = vshll.u32 %v3009, 16
        %v3146 = vor.u32 %v3143, %v3144
        %v3147 = vsel %vm3029, %v3139, %v3146
        %v3148 = vrot.slane %v3143, 4
        %v3150 = vshrl.u32 %v3010, 16
        %v3152 = vrot.slane %v3150, 7
        %v3153 = vshll.u32 %v3010, 16
        %v3155 = vor.u32 %v3152, %v3153
        %v3156 = vrot.slane %v3152, 4
        %v3158 = vshrl.u32 %v3011, 16
        %v3160 = vrot.slane %v3158, 7
        %v3161 = vshll.u32 %v3011, 16
        %v3163 = vor.u32 %v3160, %v3161
        %v3164 = vsel %vm3029, %v3156, %v3163
        %v3165 = vrot.slane %v3160, 4
        %v3167 = vshrl.u32 %v3012, 16
        %v3169 = vrot.slane %v3167, 7
        %v3170 = vshll.u32 %v3012, 16
        %v3172 = vor.u32 %v3169, %v3170
        %v3173 = vrot.slane %v3169, 4
        %v3175 = vshrl.u32 %v3013, 16
        %v3177 = vrot.slane %v3175, 7
        %v3178 = vshll.u32 %v3013, 16
        %v3180 = vor.u32 %v3177, %v3178
        %v3181 = vsel %vm3029, %v3173, %v3180
        %v3182 = vrot.slane %v3177, 4
        %v3184 = vshrl.u32 %v3014, 16
        %v3186 = vrot.slane %v3184, 7
        %v3187 = vshll.u32 %v3014, 16
        %v3189 = vor.u32 %v3186, %v3187
        %v3190 = vrot.slane %v3186, 4
        %v3192 = vshrl.u32 %v3015, 16
        %v3194 = vrot.slane %v3192, 7
        %v3195 = vshll.u32 %v3015, 16
        %v3197 = vor.u32 %v3194, %v3195
        %v3198 = vsel %vm3029, %v3190, %v3197
        %v3199 = vrot.slane %v3194, 4
        %v3201 = vshrl.u32 %v3016, 16
        %v3203 = vrot.slane %v3201, 7
        %v3204 = vshll.u32 %v3016, 16
        %v3206 = vor.u32 %v3203, %v3204
        %v3207 = vrot.slane %v3203, 4
        %v3209 = vshrl.u32 %v3017, 16
        %v3211 = vrot.slane %v3209, 7
        %v3212 = vshll.u32 %v3017, 16
        %v3214 = vor.u32 %v3211, %v3212
        %v3215 = vsel %vm3029, %v3207, %v3214
        %v3216 = vrot.slane %v3211, 4
        %v3218 = vshrl.u32 %v3018, 16
        %v3220 = vrot.slane %v3218, 7
        %v3221 = vshll.u32 %v3018, 16
        %v3223 = vor.u32 %v3220, %v3221
        %v3224 = vrot.slane %v3220, 4
        %v3226 = vshrl.u32 %v3019, 16
        %v3228 = vrot.slane %v3226, 7
        %v3229 = vshll.u32 %v3019, 16
        %v3231 = vor.u32 %v3228, %v3229
        %v3232 = vsel %vm3029, %v3224, %v3231
        %v3233 = vrot.slane %v3228, 4
        %v3235 = vshrl.u32 %v3020, 16
        %v3237 = vrot.slane %v3235, 7
        %v3238 = vshll.u32 %v3020, 16
        %v3240 = vor.u32 %v3237, %v3238
        %v3241 = vrot.slane %v3237, 4
        %v3243 = vshrl.u32 %v3021, 16
        %v3245 = vrot.slane %v3243, 7
        %v3246 = vshll.u32 %v3021, 16
        %v3248 = vor.u32 %v3245, %v3246
        %v3249 = vsel %vm3029, %v3241, %v3248
        %v3250 = vrot.slane %v3245, 4
        %v3252 = vshrl.u32 %v3022, 16
        %v3254 = vrot.slane %v3252, 7
        %v3255 = vshll.u32 %v3022, 16
        %v3257 = vor.u32 %v3254, %v3255
        %v3258 = vrot.slane %v3254, 4
        %v3260 = vshrl.u32 %v3023, 16
        %v3262 = vrot.slane %v3260, 7
        %v3263 = vshll.u32 %v3023, 16
        %v3265 = vor.u32 %v3262, %v3263
        %v3266 = vsel %vm3029, %v3258, %v3265
        %v3267 = vrot.slane %v3262, 4
        %v3269 = vshrl.u32 %v3024, 16
        %v3271 = vrot.slane %v3269, 7
        %v3272 = vshll.u32 %v3024, 16
        %v3274 = vor.u32 %v3271, %v3272
        %v3275 = vrot.slane %v3271, 4
        %v3277 = vshrl.u32 %v3025, 16
        %v3279 = vrot.slane %v3277, 7
        %v3280 = vshll.u32 %v3025, 16
        %v3282 = vor.u32 %v3279, %v3280
        %v3283 = vsel %vm3029, %v3275, %v3282
        %v3284 = vrot.slane %v3279, 4
        %v3286 = vshrl.u32 %v3026, 16
        %v3288 = vrot.slane %v3286, 7
        %v3289 = vshll.u32 %v3026, 16
        %v3291 = vor.u32 %v3288, %v3289
        %v3292 = vrot.slane %v3288, 4
        %v3294 = vshrl.u32 %v3027, 16
        %v3296 = vrot.slane %v3294, 7
        %v3297 = vshll.u32 %v3027, 16
        %v3299 = vor.u32 %v3296, %v3297
        %v3300 = vsel %vm3029, %v3292, %v3299
        %v3301 = vrot.slane %v3296, 4
        %s3350 = scalar_lea.vmem [#allocation3], 12
        %vm3351 = vcmask 257024
        %vm3352 = vmand %vm3351, %vm390
        %v3353 = vld [vmem:[%s3350] sm:$0xf]
        %v3354 = vsel %vm3352, %v3036, %v3353
        %3355 = vst [vmem:[%s3350] sm:$0xf] %v3354
        %3356 = vst.msk [vmem:[%s3350 + $0x4] sm:$0xf] %vm324, %v3045
        %v3357 = vld [vmem:[%s3350 + $0x8] sm:$0x1]
        %v3358 = vsel %vm335, %v3046, %v3357
        %3359 = vst [vmem:[%s3350 + $0x8] sm:$0x1] %v3358
        %v3360 = vld [vmem:[%s3350 + $0xc] sm:$0xf]
        %v3361 = vsel %vm3352, %v3053, %v3360
        %3362 = vst [vmem:[%s3350 + $0xc] sm:$0xf] %v3361
        %3363 = vst.msk [vmem:[%s3350 + $0x10] sm:$0xf] %vm324, %v3062
        %v3364 = vld [vmem:[%s3350 + $0x14] sm:$0x1]
        %v3365 = vsel %vm335, %v3063, %v3364
        %3366 = vst [vmem:[%s3350 + $0x14] sm:$0x1] %v3365
        %v3367 = vld [vmem:[%s3350 + $0x18] sm:$0xf]
        %v3368 = vsel %vm3352, %v3070, %v3367
        %3369 = vst [vmem:[%s3350 + $0x18] sm:$0xf] %v3368
        %3370 = vst.msk [vmem:[%s3350 + $0x1c] sm:$0xf] %vm324, %v3079
        %v3371 = vld [vmem:[%s3350 + $0x20] sm:$0x1]
        %v3372 = vsel %vm335, %v3080, %v3371
        %3373 = vst [vmem:[%s3350 + $0x20] sm:$0x1] %v3372
        %v3374 = vld [vmem:[%s3350 + $0x24] sm:$0xf]
        %v3375 = vsel %vm3352, %v3087, %v3374
        %3376 = vst [vmem:[%s3350 + $0x24] sm:$0xf] %v3375
        %3377 = vst.msk [vmem:[%s3350 + $0x28] sm:$0xf] %vm324, %v3096
        %v3378 = vld [vmem:[%s3350 + $0x2c] sm:$0x1]
        %v3379 = vsel %vm335, %v3097, %v3378
        %3380 = vst [vmem:[%s3350 + $0x2c] sm:$0x1] %v3379
        %v3381 = vld [vmem:[%s3350 + $0x30] sm:$0xf]
        %v3382 = vsel %vm3352, %v3104, %v3381
        %3383 = vst [vmem:[%s3350 + $0x30] sm:$0xf] %v3382
        %3384 = vst.msk [vmem:[%s3350 + $0x34] sm:$0xf] %vm324, %v3113
        %v3385 = vld [vmem:[%s3350 + $0x38] sm:$0x1]
        %v3386 = vsel %vm335, %v3114, %v3385
        %3387 = vst [vmem:[%s3350 + $0x38] sm:$0x1] %v3386
        %v3388 = vld [vmem:[%s3350 + $0x3c] sm:$0xf]
        %v3389 = vsel %vm3352, %v3121, %v3388
        %3390 = vst [vmem:[%s3350 + $0x3c] sm:$0xf] %v3389
        %3391 = vst.msk [vmem:[%s3350 + $0x40] sm:$0xf] %vm324, %v3130
        %v3392 = vld [vmem:[%s3350 + $0x44] sm:$0x1]
        %v3393 = vsel %vm335, %v3131, %v3392
        %3394 = vst [vmem:[%s3350 + $0x44] sm:$0x1] %v3393
        %v3395 = vld [vmem:[%s3350 + $0x48] sm:$0xf]
        %v3396 = vsel %vm3352, %v3138, %v3395
        %3397 = vst [vmem:[%s3350 + $0x48] sm:$0xf] %v3396
        %3398 = vst.msk [vmem:[%s3350 + $0x4c] sm:$0xf] %vm324, %v3147
        %v3399 = vld [vmem:[%s3350 + $0x50] sm:$0x1]
        %v3400 = vsel %vm335, %v3148, %v3399
        %3401 = vst [vmem:[%s3350 + $0x50] sm:$0x1] %v3400
        %v3402 = vld [vmem:[%s3350 + $0x54] sm:$0xf]
        %v3403 = vsel %vm3352, %v3155, %v3402
        %3404 = vst [vmem:[%s3350 + $0x54] sm:$0xf] %v3403
        %3405 = vst.msk [vmem:[%s3350 + $0x58] sm:$0xf] %vm324, %v3164
        %v3406 = vld [vmem:[%s3350 + $0x5c] sm:$0x1]
        %v3407 = vsel %vm335, %v3165, %v3406
        %3408 = vst [vmem:[%s3350 + $0x5c] sm:$0x1] %v3407
        %v3409 = vld [vmem:[%s3350 + $0x60] sm:$0xf]
        %v3410 = vsel %vm3352, %v3172, %v3409
        %3411 = vst [vmem:[%s3350 + $0x60] sm:$0xf] %v3410
        %3412 = vst.msk [vmem:[%s3350 + $0x64] sm:$0xf] %vm324, %v3181
        %v3413 = vld [vmem:[%s3350 + $0x68] sm:$0x1]
        %v3414 = vsel %vm335, %v3182, %v3413
        %3415 = vst [vmem:[%s3350 + $0x68] sm:$0x1] %v3414
        %v3416 = vld [vmem:[%s3350 + $0x6c] sm:$0xf]
        %v3417 = vsel %vm3352, %v3189, %v3416
        %3418 = vst [vmem:[%s3350 + $0x6c] sm:$0xf] %v3417
        %3419 = vst.msk [vmem:[%s3350 + $0x70] sm:$0xf] %vm324, %v3198
        %v3420 = vld [vmem:[%s3350 + $0x74] sm:$0x1]
        %v3421 = vsel %vm335, %v3199, %v3420
        %3422 = vst [vmem:[%s3350 + $0x74] sm:$0x1] %v3421
        %v3423 = vld [vmem:[%s3350 + $0x78] sm:$0xf]
        %v3424 = vsel %vm3352, %v3206, %v3423
        %3425 = vst [vmem:[%s3350 + $0x78] sm:$0xf] %v3424
        %3426 = vst.msk [vmem:[%s3350 + $0x7c] sm:$0xf] %vm324, %v3215
        %v3427 = vld [vmem:[%s3350 + $0x80] sm:$0x1]
        %v3428 = vsel %vm335, %v3216, %v3427
        %3429 = vst [vmem:[%s3350 + $0x80] sm:$0x1] %v3428
        %v3430 = vld [vmem:[%s3350 + $0x84] sm:$0xf]
        %v3431 = vsel %vm3352, %v3223, %v3430
        %3432 = vst [vmem:[%s3350 + $0x84] sm:$0xf] %v3431
        %3433 = vst.msk [vmem:[%s3350 + $0x88] sm:$0xf] %vm324, %v3232
        %v3434 = vld [vmem:[%s3350 + $0x8c] sm:$0x1]
        %v3435 = vsel %vm335, %v3233, %v3434
        %3436 = vst [vmem:[%s3350 + $0x8c] sm:$0x1] %v3435
        %v3437 = vld [vmem:[%s3350 + $0x90] sm:$0xf]
        %v3438 = vsel %vm3352, %v3240, %v3437
        %3439 = vst [vmem:[%s3350 + $0x90] sm:$0xf] %v3438
        %3440 = vst.msk [vmem:[%s3350 + $0x94] sm:$0xf] %vm324, %v3249
        %v3441 = vld [vmem:[%s3350 + $0x98] sm:$0x1]
        %v3442 = vsel %vm335, %v3250, %v3441
        %3443 = vst [vmem:[%s3350 + $0x98] sm:$0x1] %v3442
        %v3444 = vld [vmem:[%s3350 + $0x9c] sm:$0xf]
        %v3445 = vsel %vm3352, %v3257, %v3444
        %3446 = vst [vmem:[%s3350 + $0x9c] sm:$0xf] %v3445
        %3447 = vst.msk [vmem:[%s3350 + $0xa0] sm:$0xf] %vm324, %v3266
        %v3448 = vld [vmem:[%s3350 + $0xa4] sm:$0x1]
        %v3449 = vsel %vm335, %v3267, %v3448
        %3450 = vst [vmem:[%s3350 + $0xa4] sm:$0x1] %v3449
        %v3451 = vld [vmem:[%s3350 + $0xa8] sm:$0xf]
        %v3452 = vsel %vm3352, %v3274, %v3451
        %3453 = vst [vmem:[%s3350 + $0xa8] sm:$0xf] %v3452
        %3454 = vst.msk [vmem:[%s3350 + $0xac] sm:$0xf] %vm324, %v3283
        %v3455 = vld [vmem:[%s3350 + $0xb0] sm:$0x1]
        %v3456 = vsel %vm335, %v3284, %v3455
        %3457 = vst [vmem:[%s3350 + $0xb0] sm:$0x1] %v3456
        %v3458 = vld [vmem:[%s3350 + $0xb4] sm:$0xf]
        %v3459 = vsel %vm3352, %v3291, %v3458
        %3460 = vst [vmem:[%s3350 + $0xb4] sm:$0xf] %v3459
        %3461 = vst.msk [vmem:[%s3350 + $0xb8] sm:$0xf] %vm324, %v3300
        %v3462 = vld [vmem:[%s3350 + $0xbc] sm:$0x1]
        %v3463 = vsel %vm335, %v3301, %v3462
        %3464 = vst [vmem:[%s3350 + $0xbc] sm:$0x1] %v3463
        %v3465 = vld [vmem:[#allocation3] sm:$0xf]
        %v3466 = vld [vmem:[#allocation3 + $0x4] sm:$0xf]
        %v3467 = vld [vmem:[#allocation3 + $0xc] sm:$0xf]
        %v3468 = vld [vmem:[#allocation3 + $0x10] sm:$0xf]
        %v3469 = vld [vmem:[#allocation3 + $0x18] sm:$0xf]
        %v3470 = vld [vmem:[#allocation3 + $0x1c] sm:$0xf]
        %v3471 = vld [vmem:[#allocation3 + $0x24] sm:$0xf]
        %v3472 = vld [vmem:[#allocation3 + $0x28] sm:$0xf]
        %v3473 = vld [vmem:[#allocation3 + $0x30] sm:$0xf]
        %v3474 = vld [vmem:[#allocation3 + $0x34] sm:$0xf]
        %v3475 = vld [vmem:[#allocation3 + $0x3c] sm:$0xf]
        %v3476 = vld [vmem:[#allocation3 + $0x40] sm:$0xf]
        %v3477 = vld [vmem:[#allocation3 + $0x48] sm:$0xf]
        %v3478 = vld [vmem:[#allocation3 + $0x4c] sm:$0xf]
        %v3479 = vld [vmem:[#allocation3 + $0x54] sm:$0xf]
        %v3480 = vld [vmem:[#allocation3 + $0x58] sm:$0xf]
        %v3481 = vld [vmem:[#allocation3 + $0x60] sm:$0xf]
        %v3482 = vld [vmem:[#allocation3 + $0x64] sm:$0xf]
        %v3483 = vld [vmem:[#allocation3 + $0x6c] sm:$0xf]
        %v3484 = vld [vmem:[#allocation3 + $0x70] sm:$0xf]
        %v3485 = vld [vmem:[#allocation3 + $0x78] sm:$0xf]
        %v3486 = vld [vmem:[#allocation3 + $0x7c] sm:$0xf]
        %v3487 = vld [vmem:[#allocation3 + $0x84] sm:$0xf]
        %v3488 = vld [vmem:[#allocation3 + $0x88] sm:$0xf]
        %v3489 = vld [vmem:[#allocation3 + $0x90] sm:$0xf]
        %v3490 = vld [vmem:[#allocation3 + $0x94] sm:$0xf]
        %v3491 = vld [vmem:[#allocation3 + $0x9c] sm:$0xf]
        %v3492 = vld [vmem:[#allocation3 + $0xa0] sm:$0xf]
        %v3493 = vld [vmem:[#allocation3 + $0xa8] sm:$0xf]
        %v3494 = vld [vmem:[#allocation3 + $0xac] sm:$0xf]
        %v3495 = vld [vmem:[#allocation3 + $0xb4] sm:$0xf]
        %v3496 = vld [vmem:[#allocation3 + $0xb8] sm:$0xf]
        %v3529 = vunpack.c.l.b16 %v3465
        %v3530 = vunpack.c.l.b16 %v3466
        %v3531 = vunpack.c.l.b16 %v3467
        %v3532 = vunpack.c.l.b16 %v3468
        %v3533 = vunpack.c.l.b16 %v3469
        %v3534 = vunpack.c.l.b16 %v3470
        %v3535 = vunpack.c.l.b16 %v3471
        %v3536 = vunpack.c.l.b16 %v3472
        %v3537 = vunpack.c.l.b16 %v3473
        %v3538 = vunpack.c.l.b16 %v3474
        %v3539 = vunpack.c.l.b16 %v3475
        %v3540 = vunpack.c.l.b16 %v3476
        %v3541 = vunpack.c.l.b16 %v3477
        %v3542 = vunpack.c.l.b16 %v3478
        %v3543 = vunpack.c.l.b16 %v3479
        %v3544 = vunpack.c.l.b16 %v3480
        %v3545 = vunpack.c.l.b16 %v3481
        %v3546 = vunpack.c.l.b16 %v3482
        %v3547 = vunpack.c.l.b16 %v3483
        %v3548 = vunpack.c.l.b16 %v3484
        %v3549 = vunpack.c.l.b16 %v3485
        %v3550 = vunpack.c.l.b16 %v3486
        %v3551 = vunpack.c.l.b16 %v3487
        %v3552 = vunpack.c.l.b16 %v3488
        %v3553 = vunpack.c.l.b16 %v3489
        %v3554 = vunpack.c.l.b16 %v3490
        %v3555 = vunpack.c.l.b16 %v3491
        %v3556 = vunpack.c.l.b16 %v3492
        %v3557 = vunpack.c.l.b16 %v3493
        %v3558 = vunpack.c.l.b16 %v3494
        %v3559 = vunpack.c.l.b16 %v3495
        %v3560 = vunpack.c.l.b16 %v3496
        %v3561 = vpack.c.b16 %v3530, %v3529
        %v3562 = vpack.c.b16 %v3532, %v3531
        %v3563 = vpack.c.b16 %v3534, %v3533
        %v3564 = vpack.c.b16 %v3536, %v3535
        %v3565 = vpack.c.b16 %v3538, %v3537
        %v3566 = vpack.c.b16 %v3540, %v3539
        %v3567 = vpack.c.b16 %v3542, %v3541
        %v3568 = vpack.c.b16 %v3544, %v3543
        %v3569 = vpack.c.b16 %v3546, %v3545
        %v3570 = vpack.c.b16 %v3548, %v3547
        %v3571 = vpack.c.b16 %v3550, %v3549
        %v3572 = vpack.c.b16 %v3552, %v3551
        %v3573 = vpack.c.b16 %v3554, %v3553
        %v3574 = vpack.c.b16 %v3556, %v3555
        %v3575 = vpack.c.b16 %v3558, %v3557
        %v3576 = vpack.c.b16 %v3560, %v3559
        %vm3593 = vcmask 261120
        %3594 = vst.msk [vmem:[#allocation4] sm:$0xff] %vm3593, %v3561
        %3595 = vst.msk [vmem:[#allocation4 + $0x18] sm:$0xff] %vm3593, %v3562
        %3596 = vst.msk [vmem:[#allocation4 + $0x30] sm:$0xff] %vm3593, %v3563
        %3597 = vst.msk [vmem:[#allocation4 + $0x48] sm:$0xff] %vm3593, %v3564
        %3598 = vst.msk [vmem:[#allocation4 + $0x60] sm:$0xff] %vm3593, %v3565
        %3599 = vst.msk [vmem:[#allocation4 + $0x78] sm:$0xff] %vm3593, %v3566
        %3600 = vst.msk [vmem:[#allocation4 + $0x90] sm:$0xff] %vm3593, %v3567
        %3601 = vst.msk [vmem:[#allocation4 + $0xa8] sm:$0xff] %vm3593, %v3568
        %3602 = vst.msk [vmem:[#allocation4 + $0xc0] sm:$0xff] %vm3593, %v3569
        %3603 = vst.msk [vmem:[#allocation4 + $0xd8] sm:$0xff] %vm3593, %v3570
        %3604 = vst.msk [vmem:[#allocation4 + $0xf0] sm:$0xff] %vm3593, %v3571
        %3605 = vst.msk [vmem:[#allocation4 + $0x108] sm:$0xff] %vm3593, %v3572
        %3606 = vst.msk [vmem:[#allocation4 + $0x120] sm:$0xff] %vm3593, %v3573
        %3607 = vst.msk [vmem:[#allocation4 + $0x138] sm:$0xff] %vm3593, %v3574
        %3608 = vst.msk [vmem:[#allocation4 + $0x150] sm:$0xff] %vm3593, %v3575
        %3609 = vst.msk [vmem:[#allocation4 + $0x168] sm:$0xff] %vm3593, %v3576
        %v3610 = vld [vmem:[#allocation3] sm:$0xf]
        %v3611 = vld [vmem:[#allocation3 + $0x4] sm:$0xf]
        %v3612 = vld [vmem:[#allocation3 + $0x8] sm:$0x1]
        %v3613 = vld [vmem:[#allocation3 + $0xc] sm:$0xf]
        %v3614 = vld [vmem:[#allocation3 + $0x10] sm:$0xf]
        %v3615 = vld [vmem:[#allocation3 + $0x14] sm:$0x1]
        %v3616 = vld [vmem:[#allocation3 + $0x18] sm:$0xf]
        %v3617 = vld [vmem:[#allocation3 + $0x1c] sm:$0xf]
        %v3618 = vld [vmem:[#allocation3 + $0x20] sm:$0x1]
        %v3619 = vld [vmem:[#allocation3 + $0x24] sm:$0xf]
        %v3620 = vld [vmem:[#allocation3 + $0x28] sm:$0xf]
        %v3621 = vld [vmem:[#allocation3 + $0x2c] sm:$0x1]
        %v3622 = vld [vmem:[#allocation3 + $0x30] sm:$0xf]
        %v3623 = vld [vmem:[#allocation3 + $0x34] sm:$0xf]
        %v3624 = vld [vmem:[#allocation3 + $0x38] sm:$0x1]
        %v3625 = vld [vmem:[#allocation3 + $0x3c] sm:$0xf]
        %v3626 = vld [vmem:[#allocation3 + $0x40] sm:$0xf]
        %v3627 = vld [vmem:[#allocation3 + $0x44] sm:$0x1]
        %v3628 = vld [vmem:[#allocation3 + $0x48] sm:$0xf]
        %v3629 = vld [vmem:[#allocation3 + $0x4c] sm:$0xf]
        %v3630 = vld [vmem:[#allocation3 + $0x50] sm:$0x1]
        %v3631 = vld [vmem:[#allocation3 + $0x54] sm:$0xf]
        %v3632 = vld [vmem:[#allocation3 + $0x58] sm:$0xf]
        %v3633 = vld [vmem:[#allocation3 + $0x5c] sm:$0x1]
        %v3634 = vld [vmem:[#allocation3 + $0x60] sm:$0xf]
        %v3635 = vld [vmem:[#allocation3 + $0x64] sm:$0xf]
        %v3636 = vld [vmem:[#allocation3 + $0x68] sm:$0x1]
        %v3637 = vld [vmem:[#allocation3 + $0x6c] sm:$0xf]
        %v3638 = vld [vmem:[#allocation3 + $0x70] sm:$0xf]
        %v3639 = vld [vmem:[#allocation3 + $0x74] sm:$0x1]
        %v3640 = vld [vmem:[#allocation3 + $0x78] sm:$0xf]
        %v3641 = vld [vmem:[#allocation3 + $0x7c] sm:$0xf]
        %v3642 = vld [vmem:[#allocation3 + $0x80] sm:$0x1]
        %v3643 = vld [vmem:[#allocation3 + $0x84] sm:$0xf]
        %v3644 = vld [vmem:[#allocation3 + $0x88] sm:$0xf]
        %v3645 = vld [vmem:[#allocation3 + $0x8c] sm:$0x1]
        %v3646 = vld [vmem:[#allocation3 + $0x90] sm:$0xf]
        %v3647 = vld [vmem:[#allocation3 + $0x94] sm:$0xf]
        %v3648 = vld [vmem:[#allocation3 + $0x98] sm:$0x1]
        %v3649 = vld [vmem:[#allocation3 + $0x9c] sm:$0xf]
        %v3650 = vld [vmem:[#allocation3 + $0xa0] sm:$0xf]
        %v3651 = vld [vmem:[#allocation3 + $0xa4] sm:$0x1]
        %v3652 = vld [vmem:[#allocation3 + $0xa8] sm:$0xf]
        %v3653 = vld [vmem:[#allocation3 + $0xac] sm:$0xf]
        %v3654 = vld [vmem:[#allocation3 + $0xb0] sm:$0x1]
        %v3655 = vld [vmem:[#allocation3 + $0xb4] sm:$0xf]
        %v3656 = vld [vmem:[#allocation3 + $0xb8] sm:$0xf]
        %v3657 = vld [vmem:[#allocation3 + $0xbc] sm:$0x1]
        %vm3658 = vsmask.f32 3328
        %vm3659 = vsmask.f32 7440
        %vm3660 = vmor %vm3658, %vm3659
        %v3662 = vshrl.u32 %v3610, 16
        %v3664 = vrot.slane %v3662, 4
        %v3665 = vshll.u32 %v3610, 16
        %v3667 = vrot.slane %v3665, 5
        %v3668 = vor.u32 %v3664, %v3667
        %v3669 = vrot.slane %v3668, 4
        %v3671 = vshll.u32 %v3611, 16
        %v3673 = vrot.slane %v3671, 5
        %v3674 = vsel %vm3660, %v3669, %v3673
        %v3675 = vshrl.u32 %v3611, 16
        %v3677 = vrot.slane %v3675, 4
        %v3678 = vor.u32 %v3677, %v3673
        %v3679 = vrot.slane %v3678, 4
        %v3681 = vshll.u32 %v3612, 16
        %v3683 = vrot.slane %v3681, 5
        %v3684 = vsel %vm3660, %v3679, %v3683
        %v3686 = vshrl.u32 %v3613, 16
        %v3688 = vrot.slane %v3686, 4
        %v3689 = vshll.u32 %v3613, 16
        %v3691 = vrot.slane %v3689, 5
        %v3692 = vor.u32 %v3688, %v3691
        %v3693 = vrot.slane %v3692, 4
        %v3695 = vshll.u32 %v3614, 16
        %v3697 = vrot.slane %v3695, 5
        %v3698 = vsel %vm3660, %v3693, %v3697
        %v3699 = vshrl.u32 %v3614, 16
        %v3701 = vrot.slane %v3699, 4
        %v3702 = vor.u32 %v3701, %v3697
        %v3703 = vrot.slane %v3702, 4
        %v3705 = vshll.u32 %v3615, 16
        %v3707 = vrot.slane %v3705, 5
        %v3708 = vsel %vm3660, %v3703, %v3707
        %v3710 = vshrl.u32 %v3616, 16
        %v3712 = vrot.slane %v3710, 4
        %v3713 = vshll.u32 %v3616, 16
        %v3715 = vrot.slane %v3713, 5
        %v3716 = vor.u32 %v3712, %v3715
        %v3717 = vrot.slane %v3716, 4
        %v3719 = vshll.u32 %v3617, 16
        %v3721 = vrot.slane %v3719, 5
        %v3722 = vsel %vm3660, %v3717, %v3721
        %v3723 = vshrl.u32 %v3617, 16
        %v3725 = vrot.slane %v3723, 4
        %v3726 = vor.u32 %v3725, %v3721
        %v3727 = vrot.slane %v3726, 4
        %v3729 = vshll.u32 %v3618, 16
        %v3731 = vrot.slane %v3729, 5
        %v3732 = vsel %vm3660, %v3727, %v3731
        %v3734 = vshrl.u32 %v3619, 16
        %v3736 = vrot.slane %v3734, 4
        %v3737 = vshll.u32 %v3619, 16
        %v3739 = vrot.slane %v3737, 5
        %v3740 = vor.u32 %v3736, %v3739
        %v3741 = vrot.slane %v3740, 4
        %v3743 = vshll.u32 %v3620, 16
        %v3745 = vrot.slane %v3743, 5
        %v3746 = vsel %vm3660, %v3741, %v3745
        %v3747 = vshrl.u32 %v3620, 16
        %v3749 = vrot.slane %v3747, 4
        %v3750 = vor.u32 %v3749, %v3745
        %v3751 = vrot.slane %v3750, 4
        %v3753 = vshll.u32 %v3621, 16
        %v3755 = vrot.slane %v3753, 5
        %v3756 = vsel %vm3660, %v3751, %v3755
        %v3758 = vshrl.u32 %v3622, 16
        %v3760 = vrot.slane %v3758, 4
        %v3761 = vshll.u32 %v3622, 16
        %v3763 = vrot.slane %v3761, 5
        %v3764 = vor.u32 %v3760, %v3763
        %v3765 = vrot.slane %v3764, 4
        %v3767 = vshll.u32 %v3623, 16
        %v3769 = vrot.slane %v3767, 5
        %v3770 = vsel %vm3660, %v3765, %v3769
        %v3771 = vshrl.u32 %v3623, 16
        %v3773 = vrot.slane %v3771, 4
        %v3774 = vor.u32 %v3773, %v3769
        %v3775 = vrot.slane %v3774, 4
        %v3777 = vshll.u32 %v3624, 16
        %v3779 = vrot.slane %v3777, 5
        %v3780 = vsel %vm3660, %v3775, %v3779
        %v3782 = vshrl.u32 %v3625, 16
        %v3784 = vrot.slane %v3782, 4
        %v3785 = vshll.u32 %v3625, 16
        %v3787 = vrot.slane %v3785, 5
        %v3788 = vor.u32 %v3784, %v3787
        %v3789 = vrot.slane %v3788, 4
        %v3791 = vshll.u32 %v3626, 16
        %v3793 = vrot.slane %v3791, 5
        %v3794 = vsel %vm3660, %v3789, %v3793
        %v3795 = vshrl.u32 %v3626, 16
        %v3797 = vrot.slane %v3795, 4
        %v3798 = vor.u32 %v3797, %v3793
        %v3799 = vrot.slane %v3798, 4
        %v3801 = vshll.u32 %v3627, 16
        %v3803 = vrot.slane %v3801, 5
        %v3804 = vsel %vm3660, %v3799, %v3803
        %v3806 = vshrl.u32 %v3628, 16
        %v3808 = vrot.slane %v3806, 4
        %v3809 = vshll.u32 %v3628, 16
        %v3811 = vrot.slane %v3809, 5
        %v3812 = vor.u32 %v3808, %v3811
        %v3813 = vrot.slane %v3812, 4
        %v3815 = vshll.u32 %v3629, 16
        %v3817 = vrot.slane %v3815, 5
        %v3818 = vsel %vm3660, %v3813, %v3817
        %v3819 = vshrl.u32 %v3629, 16
        %v3821 = vrot.slane %v3819, 4
        %v3822 = vor.u32 %v3821, %v3817
        %v3823 = vrot.slane %v3822, 4
        %v3825 = vshll.u32 %v3630, 16
        %v3827 = vrot.slane %v3825, 5
        %v3828 = vsel %vm3660, %v3823, %v3827
        %v3830 = vshrl.u32 %v3631, 16
        %v3832 = vrot.slane %v3830, 4
        %v3833 = vshll.u32 %v3631, 16
        %v3835 = vrot.slane %v3833, 5
        %v3836 = vor.u32 %v3832, %v3835
        %v3837 = vrot.slane %v3836, 4
        %v3839 = vshll.u32 %v3632, 16
        %v3841 = vrot.slane %v3839, 5
        %v3842 = vsel %vm3660, %v3837, %v3841
        %v3843 = vshrl.u32 %v3632, 16
        %v3845 = vrot.slane %v3843, 4
        %v3846 = vor.u32 %v3845, %v3841
        %v3847 = vrot.slane %v3846, 4
        %v3849 = vshll.u32 %v3633, 16
        %v3851 = vrot.slane %v3849, 5
        %v3852 = vsel %vm3660, %v3847, %v3851
        %v3854 = vshrl.u32 %v3634, 16
        %v3856 = vrot.slane %v3854, 4
        %v3857 = vshll.u32 %v3634, 16
        %v3859 = vrot.slane %v3857, 5
        %v3860 = vor.u32 %v3856, %v3859
        %v3861 = vrot.slane %v3860, 4
        %v3863 = vshll.u32 %v3635, 16
        %v3865 = vrot.slane %v3863, 5
        %v3866 = vsel %vm3660, %v3861, %v3865
        %v3867 = vshrl.u32 %v3635, 16
        %v3869 = vrot.slane %v3867, 4
        %v3870 = vor.u32 %v3869, %v3865
        %v3871 = vrot.slane %v3870, 4
        %v3873 = vshll.u32 %v3636, 16
        %v3875 = vrot.slane %v3873, 5
        %v3876 = vsel %vm3660, %v3871, %v3875
        %v3878 = vshrl.u32 %v3637, 16
        %v3880 = vrot.slane %v3878, 4
        %v3881 = vshll.u32 %v3637, 16
        %v3883 = vrot.slane %v3881, 5
        %v3884 = vor.u32 %v3880, %v3883
        %v3885 = vrot.slane %v3884, 4
        %v3887 = vshll.u32 %v3638, 16
        %v3889 = vrot.slane %v3887, 5
        %v3890 = vsel %vm3660, %v3885, %v3889
        %v3891 = vshrl.u32 %v3638, 16
        %v3893 = vrot.slane %v3891, 4
        %v3894 = vor.u32 %v3893, %v3889
        %v3895 = vrot.slane %v3894, 4
        %v3897 = vshll.u32 %v3639, 16
        %v3899 = vrot.slane %v3897, 5
        %v3900 = vsel %vm3660, %v3895, %v3899
        %v3902 = vshrl.u32 %v3640, 16
        %v3904 = vrot.slane %v3902, 4
        %v3905 = vshll.u32 %v3640, 16
        %v3907 = vrot.slane %v3905, 5
        %v3908 = vor.u32 %v3904, %v3907
        %v3909 = vrot.slane %v3908, 4
        %v3911 = vshll.u32 %v3641, 16
        %v3913 = vrot.slane %v3911, 5
        %v3914 = vsel %vm3660, %v3909, %v3913
        %v3915 = vshrl.u32 %v3641, 16
        %v3917 = vrot.slane %v3915, 4
        %v3918 = vor.u32 %v3917, %v3913
        %v3919 = vrot.slane %v3918, 4
        %v3921 = vshll.u32 %v3642, 16
        %v3923 = vrot.slane %v3921, 5
        %v3924 = vsel %vm3660, %v3919, %v3923
        %v3926 = vshrl.u32 %v3643, 16
        %v3928 = vrot.slane %v3926, 4
        %v3929 = vshll.u32 %v3643, 16
        %v3931 = vrot.slane %v3929, 5
        %v3932 = vor.u32 %v3928, %v3931
        %v3933 = vrot.slane %v3932, 4
        %v3935 = vshll.u32 %v3644, 16
        %v3937 = vrot.slane %v3935, 5
        %v3938 = vsel %vm3660, %v3933, %v3937
        %v3939 = vshrl.u32 %v3644, 16
        %v3941 = vrot.slane %v3939, 4
        %v3942 = vor.u32 %v3941, %v3937
        %v3943 = vrot.slane %v3942, 4
        %v3945 = vshll.u32 %v3645, 16
        %v3947 = vrot.slane %v3945, 5
        %v3948 = vsel %vm3660, %v3943, %v3947
        %v3950 = vshrl.u32 %v3646, 16
        %v3952 = vrot.slane %v3950, 4
        %v3953 = vshll.u32 %v3646, 16
        %v3955 = vrot.slane %v3953, 5
        %v3956 = vor.u32 %v3952, %v3955
        %v3957 = vrot.slane %v3956, 4
        %v3959 = vshll.u32 %v3647, 16
        %v3961 = vrot.slane %v3959, 5
        %v3962 = vsel %vm3660, %v3957, %v3961
        %v3963 = vshrl.u32 %v3647, 16
        %v3965 = vrot.slane %v3963, 4
        %v3966 = vor.u32 %v3965, %v3961
        %v3967 = vrot.slane %v3966, 4
        %v3969 = vshll.u32 %v3648, 16
        %v3971 = vrot.slane %v3969, 5
        %v3972 = vsel %vm3660, %v3967, %v3971
        %v3974 = vshrl.u32 %v3649, 16
        %v3976 = vrot.slane %v3974, 4
        %v3977 = vshll.u32 %v3649, 16
        %v3979 = vrot.slane %v3977, 5
        %v3980 = vor.u32 %v3976, %v3979
        %v3981 = vrot.slane %v3980, 4
        %v3983 = vshll.u32 %v3650, 16
        %v3985 = vrot.slane %v3983, 5
        %v3986 = vsel %vm3660, %v3981, %v3985
        %v3987 = vshrl.u32 %v3650, 16
        %v3989 = vrot.slane %v3987, 4
        %v3990 = vor.u32 %v3989, %v3985
        %v3991 = vrot.slane %v3990, 4
        %v3993 = vshll.u32 %v3651, 16
        %v3995 = vrot.slane %v3993, 5
        %v3996 = vsel %vm3660, %v3991, %v3995
        %v3998 = vshrl.u32 %v3652, 16
        %v4000 = vrot.slane %v3998, 4
        %v4001 = vshll.u32 %v3652, 16
        %v4003 = vrot.slane %v4001, 5
        %v4004 = vor.u32 %v4000, %v4003
        %v4005 = vrot.slane %v4004, 4
        %v4007 = vshll.u32 %v3653, 16
        %v4009 = vrot.slane %v4007, 5
        %v4010 = vsel %vm3660, %v4005, %v4009
        %v4011 = vshrl.u32 %v3653, 16
        %v4013 = vrot.slane %v4011, 4
        %v4014 = vor.u32 %v4013, %v4009
        %v4015 = vrot.slane %v4014, 4
        %v4017 = vshll.u32 %v3654, 16
        %v4019 = vrot.slane %v4017, 5
        %v4020 = vsel %vm3660, %v4015, %v4019
        %v4022 = vshrl.u32 %v3655, 16
        %v4024 = vrot.slane %v4022, 4
        %v4025 = vshll.u32 %v3655, 16
        %v4027 = vrot.slane %v4025, 5
        %v4028 = vor.u32 %v4024, %v4027
        %v4029 = vrot.slane %v4028, 4
        %v4031 = vshll.u32 %v3656, 16
        %v4033 = vrot.slane %v4031, 5
        %v4034 = vsel %vm3660, %v4029, %v4033
        %v4035 = vshrl.u32 %v3656, 16
        %v4037 = vrot.slane %v4035, 4
        %v4038 = vor.u32 %v4037, %v4033
        %v4039 = vrot.slane %v4038, 4
        %v4041 = vshll.u32 %v3657, 16
        %v4043 = vrot.slane %v4041, 5
        %v4044 = vsel %vm3660, %v4039, %v4043
        %v4045 = vunpack.c.l.b16 %v3674
        %v4046 = vunpack.c.l.b16 %v3684
        %v4047 = vunpack.c.l.b16 %v3698
        %v4048 = vunpack.c.l.b16 %v3708
        %v4049 = vunpack.c.l.b16 %v3722
        %v4050 = vunpack.c.l.b16 %v3732
        %v4051 = vunpack.c.l.b16 %v3746
        %v4052 = vunpack.c.l.b16 %v3756
        %v4053 = vunpack.c.l.b16 %v3770
        %v4054 = vunpack.c.l.b16 %v3780
        %v4055 = vunpack.c.l.b16 %v3794
        %v4056 = vunpack.c.l.b16 %v3804
        %v4057 = vunpack.c.l.b16 %v3818
        %v4058 = vunpack.c.l.b16 %v3828
        %v4059 = vunpack.c.l.b16 %v3842
        %v4060 = vunpack.c.l.b16 %v3852
        %v4061 = vunpack.c.l.b16 %v3866
        %v4062 = vunpack.c.l.b16 %v3876
        %v4063 = vunpack.c.l.b16 %v3890
        %v4064 = vunpack.c.l.b16 %v3900
        %v4065 = vunpack.c.l.b16 %v3914
        %v4066 = vunpack.c.l.b16 %v3924
        %v4067 = vunpack.c.l.b16 %v3938
        %v4068 = vunpack.c.l.b16 %v3948
        %v4069 = vunpack.c.l.b16 %v3962
        %v4070 = vunpack.c.l.b16 %v3972
        %v4071 = vunpack.c.l.b16 %v3986
        %v4072 = vunpack.c.l.b16 %v3996
        %v4073 = vunpack.c.l.b16 %v4010
        %v4074 = vunpack.c.l.b16 %v4020
        %v4075 = vunpack.c.l.b16 %v4034
        %v4076 = vunpack.c.l.b16 %v4044
        %v4077 = vpack.c.b16 %v4046, %v4045
        %v4078 = vpack.c.b16 %v4048, %v4047
        %v4079 = vpack.c.b16 %v4050, %v4049
        %v4080 = vpack.c.b16 %v4052, %v4051
        %v4081 = vpack.c.b16 %v4054, %v4053
        %v4082 = vpack.c.b16 %v4056, %v4055
        %v4083 = vpack.c.b16 %v4058, %v4057
        %v4084 = vpack.c.b16 %v4060, %v4059
        %v4085 = vpack.c.b16 %v4062, %v4061
        %v4086 = vpack.c.b16 %v4064, %v4063
        %v4087 = vpack.c.b16 %v4066, %v4065
        %v4088 = vpack.c.b16 %v4068, %v4067
        %v4089 = vpack.c.b16 %v4070, %v4069
        %v4090 = vpack.c.b16 %v4072, %v4071
        %v4091 = vpack.c.b16 %v4074, %v4073
        %v4092 = vpack.c.b16 %v4076, %v4075
        %4093 = vrot.lane.b32.xlu0 %v4077, 32
        %v4094 = vpop.permute.xlu0 %4093
        %4095 = vrot.lane.b32.xlu0 %v4078, 32
        %v4096 = vpop.permute.xlu0 %4095
        %4097 = vrot.lane.b32.xlu0 %v4079, 32
        %v4098 = vpop.permute.xlu0 %4097
        %4099 = vrot.lane.b32.xlu0 %v4080, 32
        %v4100 = vpop.permute.xlu0 %4099
        %4101 = vrot.lane.b32.xlu0 %v4081, 32
        %v4102 = vpop.permute.xlu0 %4101
        %4103 = vrot.lane.b32.xlu0 %v4082, 32
        %v4104 = vpop.permute.xlu0 %4103
        %4105 = vrot.lane.b32.xlu0 %v4083, 32
        %v4106 = vpop.permute.xlu0 %4105
        %4107 = vrot.lane.b32.xlu0 %v4084, 32
        %v4108 = vpop.permute.xlu0 %4107
        %4109 = vrot.lane.b32.xlu0 %v4085, 32
        %v4110 = vpop.permute.xlu0 %4109
        %4111 = vrot.lane.b32.xlu0 %v4086, 32
        %v4112 = vpop.permute.xlu0 %4111
        %4113 = vrot.lane.b32.xlu0 %v4087, 32
        %v4114 = vpop.permute.xlu0 %4113
        %4115 = vrot.lane.b32.xlu0 %v4088, 32
        %v4116 = vpop.permute.xlu0 %4115
        %4117 = vrot.lane.b32.xlu0 %v4089, 32
        %v4118 = vpop.permute.xlu0 %4117
        %4119 = vrot.lane.b32.xlu0 %v4090, 32
        %v4120 = vpop.permute.xlu0 %4119
        %4121 = vrot.lane.b32.xlu0 %v4091, 32
        %v4122 = vpop.permute.xlu0 %4121
        %4123 = vrot.lane.b32.xlu0 %v4092, 32
        %v4124 = vpop.permute.xlu0 %4123
        %vm4141 = vcmask 523520
        %4142 = vst.msk [vmem:[#allocation4] sm:$0xff] %vm4141, %v4094
        %4143 = vst.msk [vmem:[#allocation4 + $0x18] sm:$0xff] %vm4141, %v4096
        %4144 = vst.msk [vmem:[#allocation4 + $0x30] sm:$0xff] %vm4141, %v4098
        %4145 = vst.msk [vmem:[#allocation4 + $0x48] sm:$0xff] %vm4141, %v4100
        %4146 = vst.msk [vmem:[#allocation4 + $0x60] sm:$0xff] %vm4141, %v4102
        %4147 = vst.msk [vmem:[#allocation4 + $0x78] sm:$0xff] %vm4141, %v4104
        %4148 = vst.msk [vmem:[#allocation4 + $0x90] sm:$0xff] %vm4141, %v4106
        %4149 = vst.msk [vmem:[#allocation4 + $0xa8] sm:$0xff] %vm4141, %v4108
        %4150 = vst.msk [vmem:[#allocation4 + $0xc0] sm:$0xff] %vm4141, %v4110
        %4151 = vst.msk [vmem:[#allocation4 + $0xd8] sm:$0xff] %vm4141, %v4112
        %4152 = vst.msk [vmem:[#allocation4 + $0xf0] sm:$0xff] %vm4141, %v4114
        %4153 = vst.msk [vmem:[#allocation4 + $0x108] sm:$0xff] %vm4141, %v4116
        %4154 = vst.msk [vmem:[#allocation4 + $0x120] sm:$0xff] %vm4141, %v4118
        %4155 = vst.msk [vmem:[#allocation4 + $0x138] sm:$0xff] %vm4141, %v4120
        %4156 = vst.msk [vmem:[#allocation4 + $0x150] sm:$0xff] %vm4141, %v4122
        %4157 = vst.msk [vmem:[#allocation4 + $0x168] sm:$0xff] %vm4141, %v4124
        %v4158 = vld [vmem:[#allocation3] sm:$0xe]
        %v4159 = vld [vmem:[#allocation3 + $0x4] sm:$0xf]
        %v4160 = vld [vmem:[#allocation3 + $0x8] sm:$0x1]
        %v4161 = vld [vmem:[#allocation3 + $0xc] sm:$0xe]
        %v4162 = vld [vmem:[#allocation3 + $0x10] sm:$0xf]
        %v4163 = vld [vmem:[#allocation3 + $0x14] sm:$0x1]
        %v4164 = vld [vmem:[#allocation3 + $0x18] sm:$0xe]
        %v4165 = vld [vmem:[#allocation3 + $0x1c] sm:$0xf]
        %v4166 = vld [vmem:[#allocation3 + $0x20] sm:$0x1]
        %v4167 = vld [vmem:[#allocation3 + $0x24] sm:$0xe]
        %v4168 = vld [vmem:[#allocation3 + $0x28] sm:$0xf]
        %v4169 = vld [vmem:[#allocation3 + $0x2c] sm:$0x1]
        %v4170 = vld [vmem:[#allocation3 + $0x30] sm:$0xe]
        %v4171 = vld [vmem:[#allocation3 + $0x34] sm:$0xf]
        %v4172 = vld [vmem:[#allocation3 + $0x38] sm:$0x1]
        %v4173 = vld [vmem:[#allocation3 + $0x3c] sm:$0xe]
        %v4174 = vld [vmem:[#allocation3 + $0x40] sm:$0xf]
        %v4175 = vld [vmem:[#allocation3 + $0x44] sm:$0x1]
        %v4176 = vld [vmem:[#allocation3 + $0x48] sm:$0xe]
        %v4177 = vld [vmem:[#allocation3 + $0x4c] sm:$0xf]
        %v4178 = vld [vmem:[#allocation3 + $0x50] sm:$0x1]
        %v4179 = vld [vmem:[#allocation3 + $0x54] sm:$0xe]
        %v4180 = vld [vmem:[#allocation3 + $0x58] sm:$0xf]
        %v4181 = vld [vmem:[#allocation3 + $0x5c] sm:$0x1]
        %v4182 = vld [vmem:[#allocation3 + $0x60] sm:$0xe]
        %v4183 = vld [vmem:[#allocation3 + $0x64] sm:$0xf]
        %v4184 = vld [vmem:[#allocation3 + $0x68] sm:$0x1]
        %v4185 = vld [vmem:[#allocation3 + $0x6c] sm:$0xe]
        %v4186 = vld [vmem:[#allocation3 + $0x70] sm:$0xf]
        %v4187 = vld [vmem:[#allocation3 + $0x74] sm:$0x1]
        %v4188 = vld [vmem:[#allocation3 + $0x78] sm:$0xe]
        %v4189 = vld [vmem:[#allocation3 + $0x7c] sm:$0xf]
        %v4190 = vld [vmem:[#allocation3 + $0x80] sm:$0x1]
        %v4191 = vld [vmem:[#allocation3 + $0x84] sm:$0xe]
        %v4192 = vld [vmem:[#allocation3 + $0x88] sm:$0xf]
        %v4193 = vld [vmem:[#allocation3 + $0x8c] sm:$0x1]
        %v4194 = vld [vmem:[#allocation3 + $0x90] sm:$0xe]
        %v4195 = vld [vmem:[#allocation3 + $0x94] sm:$0xf]
        %v4196 = vld [vmem:[#allocation3 + $0x98] sm:$0x1]
        %v4197 = vld [vmem:[#allocation3 + $0x9c] sm:$0xe]
        %v4198 = vld [vmem:[#allocation3 + $0xa0] sm:$0xf]
        %v4199 = vld [vmem:[#allocation3 + $0xa4] sm:$0x1]
        %v4200 = vld [vmem:[#allocation3 + $0xa8] sm:$0xe]
        %v4201 = vld [vmem:[#allocation3 + $0xac] sm:$0xf]
        %v4202 = vld [vmem:[#allocation3 + $0xb0] sm:$0x1]
        %v4203 = vld [vmem:[#allocation3 + $0xb4] sm:$0xe]
        %v4204 = vld [vmem:[#allocation3 + $0xb8] sm:$0xf]
        %v4205 = vld [vmem:[#allocation3 + $0xbc] sm:$0x1]
        %vm4254 = vcmask 1042432
        %vm4255 = vcmask 1046532
        %vm4256 = vmor %vm4254, %vm4255
        %v4257 = vrot.slane %v4158, 5
        %v4258 = vrot.slane %v4257, 4
        %v4259 = vrot.slane %v4159, 5
        %v4260 = vsel %vm4256, %v4258, %v4259
        %v4261 = vrot.slane %v4259, 4
        %v4262 = vrot.slane %v4160, 5
        %v4263 = vsel %vm4256, %v4261, %v4262
        %v4264 = vrot.slane %v4161, 5
        %v4265 = vrot.slane %v4264, 4
        %v4266 = vrot.slane %v4162, 5
        %v4267 = vsel %vm4256, %v4265, %v4266
        %v4268 = vrot.slane %v4266, 4
        %v4269 = vrot.slane %v4163, 5
        %v4270 = vsel %vm4256, %v4268, %v4269
        %v4271 = vrot.slane %v4164, 5
        %v4272 = vrot.slane %v4271, 4
        %v4273 = vrot.slane %v4165, 5
        %v4274 = vsel %vm4256, %v4272, %v4273
        %v4275 = vrot.slane %v4273, 4
        %v4276 = vrot.slane %v4166, 5
        %v4277 = vsel %vm4256, %v4275, %v4276
        %v4278 = vrot.slane %v4167, 5
        %v4279 = vrot.slane %v4278, 4
        %v4280 = vrot.slane %v4168, 5
        %v4281 = vsel %vm4256, %v4279, %v4280
        %v4282 = vrot.slane %v4280, 4
        %v4283 = vrot.slane %v4169, 5
        %v4284 = vsel %vm4256, %v4282, %v4283
        %v4285 = vrot.slane %v4170, 5
        %v4286 = vrot.slane %v4285, 4
        %v4287 = vrot.slane %v4171, 5
        %v4288 = vsel %vm4256, %v4286, %v4287
        %v4289 = vrot.slane %v4287, 4
        %v4290 = vrot.slane %v4172, 5
        %v4291 = vsel %vm4256, %v4289, %v4290
        %v4292 = vrot.slane %v4173, 5
        %v4293 = vrot.slane %v4292, 4
        %v4294 = vrot.slane %v4174, 5
        %v4295 = vsel %vm4256, %v4293, %v4294
        %v4296 = vrot.slane %v4294, 4
        %v4297 = vrot.slane %v4175, 5
        %v4298 = vsel %vm4256, %v4296, %v4297
        %v4299 = vrot.slane %v4176, 5
        %v4300 = vrot.slane %v4299, 4
        %v4301 = vrot.slane %v4177, 5
        %v4302 = vsel %vm4256, %v4300, %v4301
        %v4303 = vrot.slane %v4301, 4
        %v4304 = vrot.slane %v4178, 5
        %v4305 = vsel %vm4256, %v4303, %v4304
        %v4306 = vrot.slane %v4179, 5
        %v4307 = vrot.slane %v4306, 4
        %v4308 = vrot.slane %v4180, 5
        %v4309 = vsel %vm4256, %v4307, %v4308
        %v4310 = vrot.slane %v4308, 4
        %v4311 = vrot.slane %v4181, 5
        %v4312 = vsel %vm4256, %v4310, %v4311
        %v4313 = vrot.slane %v4182, 5
        %v4314 = vrot.slane %v4313, 4
        %v4315 = vrot.slane %v4183, 5
        %v4316 = vsel %vm4256, %v4314, %v4315
        %v4317 = vrot.slane %v4315, 4
        %v4318 = vrot.slane %v4184, 5
        %v4319 = vsel %vm4256, %v4317, %v4318
        %v4320 = vrot.slane %v4185, 5
        %v4321 = vrot.slane %v4320, 4
        %v4322 = vrot.slane %v4186, 5
        %v4323 = vsel %vm4256, %v4321, %v4322
        %v4324 = vrot.slane %v4322, 4
        %v4325 = vrot.slane %v4187, 5
        %v4326 = vsel %vm4256, %v4324, %v4325
        %v4327 = vrot.slane %v4188, 5
        %v4328 = vrot.slane %v4327, 4
        %v4329 = vrot.slane %v4189, 5
        %v4330 = vsel %vm4256, %v4328, %v4329
        %v4331 = vrot.slane %v4329, 4
        %v4332 = vrot.slane %v4190, 5
        %v4333 = vsel %vm4256, %v4331, %v4332
        %v4334 = vrot.slane %v4191, 5
        %v4335 = vrot.slane %v4334, 4
        %v4336 = vrot.slane %v4192, 5
        %v4337 = vsel %vm4256, %v4335, %v4336
        %v4338 = vrot.slane %v4336, 4
        %v4339 = vrot.slane %v4193, 5
        %v4340 = vsel %vm4256, %v4338, %v4339
        %v4341 = vrot.slane %v4194, 5
        %v4342 = vrot.slane %v4341, 4
        %v4343 = vrot.slane %v4195, 5
        %v4344 = vsel %vm4256, %v4342, %v4343
        %v4345 = vrot.slane %v4343, 4
        %v4346 = vrot.slane %v4196, 5
        %v4347 = vsel %vm4256, %v4345, %v4346
        %v4348 = vrot.slane %v4197, 5
        %v4349 = vrot.slane %v4348, 4
        %v4350 = vrot.slane %v4198, 5
        %v4351 = vsel %vm4256, %v4349, %v4350
        %v4352 = vrot.slane %v4350, 4
        %v4353 = vrot.slane %v4199, 5
        %v4354 = vsel %vm4256, %v4352, %v4353
        %v4355 = vrot.slane %v4200, 5
        %v4356 = vrot.slane %v4355, 4
        %v4357 = vrot.slane %v4201, 5
        %v4358 = vsel %vm4256, %v4356, %v4357
        %v4359 = vrot.slane %v4357, 4
        %v4360 = vrot.slane %v4202, 5
        %v4361 = vsel %vm4256, %v4359, %v4360
        %v4362 = vrot.slane %v4203, 5
        %v4363 = vrot.slane %v4362, 4
        %v4364 = vrot.slane %v4204, 5
        %v4365 = vsel %vm4256, %v4363, %v4364
        %v4366 = vrot.slane %v4364, 4
        %v4367 = vrot.slane %v4205, 5
        %v4368 = vsel %vm4256, %v4366, %v4367
        %v4369 = vunpack.c.l.b16 %v4260
        %v4370 = vunpack.c.l.b16 %v4263
        %v4371 = vunpack.c.l.b16 %v4267
        %v4372 = vunpack.c.l.b16 %v4270
        %v4373 = vunpack.c.l.b16 %v4274
        %v4374 = vunpack.c.l.b16 %v4277
        %v4375 = vunpack.c.l.b16 %v4281
        %v4376 = vunpack.c.l.b16 %v4284
        %v4377 = vunpack.c.l.b16 %v4288
        %v4378 = vunpack.c.l.b16 %v4291
        %v4379 = vunpack.c.l.b16 %v4295
        %v4380 = vunpack.c.l.b16 %v4298
        %v4381 = vunpack.c.l.b16 %v4302
        %v4382 = vunpack.c.l.b16 %v4305
        %v4383 = vunpack.c.l.b16 %v4309
        %v4384 = vunpack.c.l.b16 %v4312
        %v4385 = vunpack.c.l.b16 %v4316
        %v4386 = vunpack.c.l.b16 %v4319
        %v4387 = vunpack.c.l.b16 %v4323
        %v4388 = vunpack.c.l.b16 %v4326
        %v4389 = vunpack.c.l.b16 %v4330
        %v4390 = vunpack.c.l.b16 %v4333
        %v4391 = vunpack.c.l.b16 %v4337
        %v4392 = vunpack.c.l.b16 %v4340
        %v4393 = vunpack.c.l.b16 %v4344
        %v4394 = vunpack.c.l.b16 %v4347
        %v4395 = vunpack.c.l.b16 %v4351
        %v4396 = vunpack.c.l.b16 %v4354
        %v4397 = vunpack.c.l.b16 %v4358
        %v4398 = vunpack.c.l.b16 %v4361
        %v4399 = vunpack.c.l.b16 %v4365
        %v4400 = vunpack.c.l.b16 %v4368
        %v4401 = vpack.c.b16 %v4370, %v4369
        %v4402 = vpack.c.b16 %v4372, %v4371
        %v4403 = vpack.c.b16 %v4374, %v4373
        %v4404 = vpack.c.b16 %v4376, %v4375
        %v4405 = vpack.c.b16 %v4378, %v4377
        %v4406 = vpack.c.b16 %v4380, %v4379
        %v4407 = vpack.c.b16 %v4382, %v4381
        %v4408 = vpack.c.b16 %v4384, %v4383
        %v4409 = vpack.c.b16 %v4386, %v4385
        %v4410 = vpack.c.b16 %v4388, %v4387
        %v4411 = vpack.c.b16 %v4390, %v4389
        %v4412 = vpack.c.b16 %v4392, %v4391
        %v4413 = vpack.c.b16 %v4394, %v4393
        %v4414 = vpack.c.b16 %v4396, %v4395
        %v4415 = vpack.c.b16 %v4398, %v4397
        %v4416 = vpack.c.b16 %v4400, %v4399
        %4417 = vrot.lane.b32.xlu0 %v4401, 64
        %v4418 = vpop.permute.xlu0 %4417
        %4419 = vrot.lane.b32.xlu0 %v4402, 64
        %v4420 = vpop.permute.xlu0 %4419
        %4421 = vrot.lane.b32.xlu0 %v4403, 64
        %v4422 = vpop.permute.xlu0 %4421
        %4423 = vrot.lane.b32.xlu0 %v4404, 64
        %v4424 = vpop.permute.xlu0 %4423
        %4425 = vrot.lane.b32.xlu0 %v4405, 64
        %v4426 = vpop.permute.xlu0 %4425
        %4427 = vrot.lane.b32.xlu0 %v4406, 64
        %v4428 = vpop.permute.xlu0 %4427
        %4429 = vrot.lane.b32.xlu0 %v4407, 64
        %v4430 = vpop.permute.xlu0 %4429
        %4431 = vrot.lane.b32.xlu0 %v4408, 64
        %v4432 = vpop.permute.xlu0 %4431
        %4433 = vrot.lane.b32.xlu0 %v4409, 64
        %v4434 = vpop.permute.xlu0 %4433
        %4435 = vrot.lane.b32.xlu0 %v4410, 64
        %v4436 = vpop.permute.xlu0 %4435
        %4437 = vrot.lane.b32.xlu0 %v4411, 64
        %v4438 = vpop.permute.xlu0 %4437
        %4439 = vrot.lane.b32.xlu0 %v4412, 64
        %v4440 = vpop.permute.xlu0 %4439
        %4441 = vrot.lane.b32.xlu0 %v4413, 64
        %v4442 = vpop.permute.xlu0 %4441
        %4443 = vrot.lane.b32.xlu0 %v4414, 64
        %v4444 = vpop.permute.xlu0 %4443
        %4445 = vrot.lane.b32.xlu0 %v4415, 64
        %v4446 = vpop.permute.xlu0 %4445
        %4447 = vrot.lane.b32.xlu0 %v4416, 64
        %v4448 = vpop.permute.xlu0 %4447
        %vm4465 = vcmask 785920
        %4466 = vst.msk [vmem:[#allocation4] sm:$0xff] %vm4465, %v4418
        %4467 = vst.msk [vmem:[#allocation4 + $0x18] sm:$0xff] %vm4465, %v4420
        %4468 = vst.msk [vmem:[#allocation4 + $0x30] sm:$0xff] %vm4465, %v4422
        %4469 = vst.msk [vmem:[#allocation4 + $0x48] sm:$0xff] %vm4465, %v4424
        %4470 = vst.msk [vmem:[#allocation4 + $0x60] sm:$0xff] %vm4465, %v4426
        %4471 = vst.msk [vmem:[#allocation4 + $0x78] sm:$0xff] %vm4465, %v4428
        %4472 = vst.msk [vmem:[#allocation4 + $0x90] sm:$0xff] %vm4465, %v4430
        %4473 = vst.msk [vmem:[#allocation4 + $0xa8] sm:$0xff] %vm4465, %v4432
        %4474 = vst.msk [vmem:[#allocation4 + $0xc0] sm:$0xff] %vm4465, %v4434
        %4475 = vst.msk [vmem:[#allocation4 + $0xd8] sm:$0xff] %vm4465, %v4436
        %4476 = vst.msk [vmem:[#allocation4 + $0xf0] sm:$0xff] %vm4465, %v4438
        %4477 = vst.msk [vmem:[#allocation4 + $0x108] sm:$0xff] %vm4465, %v4440
        %4478 = vst.msk [vmem:[#allocation4 + $0x120] sm:$0xff] %vm4465, %v4442
        %4479 = vst.msk [vmem:[#allocation4 + $0x138] sm:$0xff] %vm4465, %v4444
        %4480 = vst.msk [vmem:[#allocation4 + $0x150] sm:$0xff] %vm4465, %v4446
        %4481 = vst.msk [vmem:[#allocation4 + $0x168] sm:$0xff] %vm4465, %v4448
        %v4482 = vld [vmem:[%s3350] sm:$0xf]
        %v4483 = vld [vmem:[%s3350 + $0x4] sm:$0xf]
        %v4484 = vld [vmem:[%s3350 + $0xc] sm:$0xf]
        %v4485 = vld [vmem:[%s3350 + $0x10] sm:$0xf]
        %v4486 = vld [vmem:[%s3350 + $0x18] sm:$0xf]
        %v4487 = vld [vmem:[%s3350 + $0x1c] sm:$0xf]
        %v4488 = vld [vmem:[%s3350 + $0x24] sm:$0xf]
        %v4489 = vld [vmem:[%s3350 + $0x28] sm:$0xf]
        %v4490 = vld [vmem:[%s3350 + $0x30] sm:$0xf]
        %v4491 = vld [vmem:[%s3350 + $0x34] sm:$0xf]
        %v4492 = vld [vmem:[%s3350 + $0x3c] sm:$0xf]
        %v4493 = vld [vmem:[%s3350 + $0x40] sm:$0xf]
        %v4494 = vld [vmem:[%s3350 + $0x48] sm:$0xf]
        %v4495 = vld [vmem:[%s3350 + $0x4c] sm:$0xf]
        %v4496 = vld [vmem:[%s3350 + $0x54] sm:$0xf]
        %v4497 = vld [vmem:[%s3350 + $0x58] sm:$0xf]
        %v4498 = vld [vmem:[%s3350 + $0x60] sm:$0xf]
        %v4499 = vld [vmem:[%s3350 + $0x64] sm:$0xf]
        %v4500 = vld [vmem:[%s3350 + $0x6c] sm:$0xf]
        %v4501 = vld [vmem:[%s3350 + $0x70] sm:$0xf]
        %v4502 = vld [vmem:[%s3350 + $0x78] sm:$0xf]
        %v4503 = vld [vmem:[%s3350 + $0x7c] sm:$0xf]
        %v4504 = vld [vmem:[%s3350 + $0x84] sm:$0xf]
        %v4505 = vld [vmem:[%s3350 + $0x88] sm:$0xf]
        %v4506 = vld [vmem:[%s3350 + $0x90] sm:$0xf]
        %v4507 = vld [vmem:[%s3350 + $0x94] sm:$0xf]
        %v4508 = vld [vmem:[%s3350 + $0x9c] sm:$0xf]
        %v4509 = vld [vmem:[%s3350 + $0xa0] sm:$0xf]
        %v4510 = vld [vmem:[%s3350 + $0xa8] sm:$0xf]
        %v4511 = vld [vmem:[%s3350 + $0xac] sm:$0xf]
        %v4512 = vld [vmem:[%s3350 + $0xb4] sm:$0xf]
        %v4513 = vld [vmem:[%s3350 + $0xb8] sm:$0xf]
        %v4546 = vunpack.c.l.b16 %v4482
        %v4547 = vunpack.c.l.b16 %v4483
        %v4548 = vunpack.c.l.b16 %v4484
        %v4549 = vunpack.c.l.b16 %v4485
        %v4550 = vunpack.c.l.b16 %v4486
        %v4551 = vunpack.c.l.b16 %v4487
        %v4552 = vunpack.c.l.b16 %v4488
        %v4553 = vunpack.c.l.b16 %v4489
        %v4554 = vunpack.c.l.b16 %v4490
        %v4555 = vunpack.c.l.b16 %v4491
        %v4556 = vunpack.c.l.b16 %v4492
        %v4557 = vunpack.c.l.b16 %v4493
        %v4558 = vunpack.c.l.b16 %v4494
        %v4559 = vunpack.c.l.b16 %v4495
        %v4560 = vunpack.c.l.b16 %v4496
        %v4561 = vunpack.c.l.b16 %v4497
        %v4562 = vunpack.c.l.b16 %v4498
        %v4563 = vunpack.c.l.b16 %v4499
        %v4564 = vunpack.c.l.b16 %v4500
        %v4565 = vunpack.c.l.b16 %v4501
        %v4566 = vunpack.c.l.b16 %v4502
        %v4567 = vunpack.c.l.b16 %v4503
        %v4568 = vunpack.c.l.b16 %v4504
        %v4569 = vunpack.c.l.b16 %v4505
        %v4570 = vunpack.c.l.b16 %v4506
        %v4571 = vunpack.c.l.b16 %v4507
        %v4572 = vunpack.c.l.b16 %v4508
        %v4573 = vunpack.c.l.b16 %v4509
        %v4574 = vunpack.c.l.b16 %v4510
        %v4575 = vunpack.c.l.b16 %v4511
        %v4576 = vunpack.c.l.b16 %v4512
        %v4577 = vunpack.c.l.b16 %v4513
        %v4578 = vpack.c.b16 %v4547, %v4546
        %v4579 = vpack.c.b16 %v4549, %v4548
        %v4580 = vpack.c.b16 %v4551, %v4550
        %v4581 = vpack.c.b16 %v4553, %v4552
        %v4582 = vpack.c.b16 %v4555, %v4554
        %v4583 = vpack.c.b16 %v4557, %v4556
        %v4584 = vpack.c.b16 %v4559, %v4558
        %v4585 = vpack.c.b16 %v4561, %v4560
        %v4586 = vpack.c.b16 %v4563, %v4562
        %v4587 = vpack.c.b16 %v4565, %v4564
        %v4588 = vpack.c.b16 %v4567, %v4566
        %v4589 = vpack.c.b16 %v4569, %v4568
        %v4590 = vpack.c.b16 %v4571, %v4570
        %v4591 = vpack.c.b16 %v4573, %v4572
        %v4592 = vpack.c.b16 %v4575, %v4574
        %v4593 = vpack.c.b16 %v4577, %v4576
        %4594 = vrot.lane.b32.xlu0 %v4578, 96
        %v4595 = vpop.permute.xlu0 %4594
        %4596 = vrot.lane.b32.xlu0 %v4579, 96
        %v4597 = vpop.permute.xlu0 %4596
        %4598 = vrot.lane.b32.xlu0 %v4580, 96
        %v4599 = vpop.permute.xlu0 %4598
        %4600 = vrot.lane.b32.xlu0 %v4581, 96
        %v4601 = vpop.permute.xlu0 %4600
        %4602 = vrot.lane.b32.xlu0 %v4582, 96
        %v4603 = vpop.permute.xlu0 %4602
        %4604 = vrot.lane.b32.xlu0 %v4583, 96
        %v4605 = vpop.permute.xlu0 %4604
        %4606 = vrot.lane.b32.xlu0 %v4584, 96
        %v4607 = vpop.permute.xlu0 %4606
        %4608 = vrot.lane.b32.xlu0 %v4585, 96
        %v4609 = vpop.permute.xlu0 %4608
        %4610 = vrot.lane.b32.xlu0 %v4586, 96
        %v4611 = vpop.permute.xlu0 %4610
        %4612 = vrot.lane.b32.xlu0 %v4587, 96
        %v4613 = vpop.permute.xlu0 %4612
        %4614 = vrot.lane.b32.xlu0 %v4588, 96
        %v4615 = vpop.permute.xlu0 %4614
        %4616 = vrot.lane.b32.xlu0 %v4589, 96
        %v4617 = vpop.permute.xlu0 %4616
        %4618 = vrot.lane.b32.xlu0 %v4590, 96
        %v4619 = vpop.permute.xlu0 %4618
        %4620 = vrot.lane.b32.xlu0 %v4591, 96
        %v4621 = vpop.permute.xlu0 %4620
        %4622 = vrot.lane.b32.xlu0 %v4592, 96
        %v4623 = vpop.permute.xlu0 %4622
        %4624 = vrot.lane.b32.xlu0 %v4593, 96
        %v4625 = vpop.permute.xlu0 %4624
        %vm4642 = vcmask 1048320
        %4643 = vst.msk [vmem:[#allocation4] sm:$0xff] %vm4642, %v4595
        %4644 = vst.msk [vmem:[#allocation4 + $0x18] sm:$0xff] %vm4642, %v4597
        %4645 = vst.msk [vmem:[#allocation4 + $0x30] sm:$0xff] %vm4642, %v4599
        %4646 = vst.msk [vmem:[#allocation4 + $0x48] sm:$0xff] %vm4642, %v4601
        %4647 = vst.msk [vmem:[#allocation4 + $0x60] sm:$0xff] %vm4642, %v4603
        %4648 = vst.msk [vmem:[#allocation4 + $0x78] sm:$0xff] %vm4642, %v4605
        %4649 = vst.msk [vmem:[#allocation4 + $0x90] sm:$0xff] %vm4642, %v4607
        %4650 = vst.msk [vmem:[#allocation4 + $0xa8] sm:$0xff] %vm4642, %v4609
        %4651 = vst.msk [vmem:[#allocation4 + $0xc0] sm:$0xff] %vm4642, %v4611
        %4652 = vst.msk [vmem:[#allocation4 + $0xd8] sm:$0xff] %vm4642, %v4613
        %4653 = vst.msk [vmem:[#allocation4 + $0xf0] sm:$0xff] %vm4642, %v4615
        %4654 = vst.msk [vmem:[#allocation4 + $0x108] sm:$0xff] %vm4642, %v4617
        %4655 = vst.msk [vmem:[#allocation4 + $0x120] sm:$0xff] %vm4642, %v4619
        %4656 = vst.msk [vmem:[#allocation4 + $0x138] sm:$0xff] %vm4642, %v4621
        %4657 = vst.msk [vmem:[#allocation4 + $0x150] sm:$0xff] %vm4642, %v4623
        %4658 = vst.msk [vmem:[#allocation4 + $0x168] sm:$0xff] %vm4642, %v4625
        %v4659 = vld [vmem:[%s3350] sm:$0xf]
        %v4660 = vld [vmem:[%s3350 + $0x4] sm:$0xf]
        %v4661 = vld [vmem:[%s3350 + $0x8] sm:$0x1]
        %v4662 = vld [vmem:[%s3350 + $0xc] sm:$0xf]
        %v4663 = vld [vmem:[%s3350 + $0x10] sm:$0xf]
        %v4664 = vld [vmem:[%s3350 + $0x14] sm:$0x1]
        %v4665 = vld [vmem:[%s3350 + $0x18] sm:$0xf]
        %v4666 = vld [vmem:[%s3350 + $0x1c] sm:$0xf]
        %v4667 = vld [vmem:[%s3350 + $0x20] sm:$0x1]
        %v4668 = vld [vmem:[%s3350 + $0x24] sm:$0xf]
        %v4669 = vld [vmem:[%s3350 + $0x28] sm:$0xf]
        %v4670 = vld [vmem:[%s3350 + $0x2c] sm:$0x1]
        %v4671 = vld [vmem:[%s3350 + $0x30] sm:$0xf]
        %v4672 = vld [vmem:[%s3350 + $0x34] sm:$0xf]
        %v4673 = vld [vmem:[%s3350 + $0x38] sm:$0x1]
        %v4674 = vld [vmem:[%s3350 + $0x3c] sm:$0xf]
        %v4675 = vld [vmem:[%s3350 + $0x40] sm:$0xf]
        %v4676 = vld [vmem:[%s3350 + $0x44] sm:$0x1]
        %v4677 = vld [vmem:[%s3350 + $0x48] sm:$0xf]
        %v4678 = vld [vmem:[%s3350 + $0x4c] sm:$0xf]
        %v4679 = vld [vmem:[%s3350 + $0x50] sm:$0x1]
        %v4680 = vld [vmem:[%s3350 + $0x54] sm:$0xf]
        %v4681 = vld [vmem:[%s3350 + $0x58] sm:$0xf]
        %v4682 = vld [vmem:[%s3350 + $0x5c] sm:$0x1]
        %v4683 = vld [vmem:[%s3350 + $0x60] sm:$0xf]
        %v4684 = vld [vmem:[%s3350 + $0x64] sm:$0xf]
        %v4685 = vld [vmem:[%s3350 + $0x68] sm:$0x1]
        %v4686 = vld [vmem:[%s3350 + $0x6c] sm:$0xf]
        %v4687 = vld [vmem:[%s3350 + $0x70] sm:$0xf]
        %v4688 = vld [vmem:[%s3350 + $0x74] sm:$0x1]
        %v4689 = vld [vmem:[%s3350 + $0x78] sm:$0xf]
        %v4690 = vld [vmem:[%s3350 + $0x7c] sm:$0xf]
        %v4691 = vld [vmem:[%s3350 + $0x80] sm:$0x1]
        %v4692 = vld [vmem:[%s3350 + $0x84] sm:$0xf]
        %v4693 = vld [vmem:[%s3350 + $0x88] sm:$0xf]
        %v4694 = vld [vmem:[%s3350 + $0x8c] sm:$0x1]
        %v4695 = vld [vmem:[%s3350 + $0x90] sm:$0xf]
        %v4696 = vld [vmem:[%s3350 + $0x94] sm:$0xf]
        %v4697 = vld [vmem:[%s3350 + $0x98] sm:$0x1]
        %v4698 = vld [vmem:[%s3350 + $0x9c] sm:$0xf]
        %v4699 = vld [vmem:[%s3350 + $0xa0] sm:$0xf]
        %v4700 = vld [vmem:[%s3350 + $0xa4] sm:$0x1]
        %v4701 = vld [vmem:[%s3350 + $0xa8] sm:$0xf]
        %v4702 = vld [vmem:[%s3350 + $0xac] sm:$0xf]
        %v4703 = vld [vmem:[%s3350 + $0xb0] sm:$0x1]
        %v4704 = vld [vmem:[%s3350 + $0xb4] sm:$0xf]
        %v4705 = vld [vmem:[%s3350 + $0xb8] sm:$0xf]
        %v4706 = vld [vmem:[%s3350 + $0xbc] sm:$0x1]
        %v4708 = vshrl.u32 %v4659, 16
        %v4710 = vrot.slane %v4708, 4
        %v4711 = vshll.u32 %v4659, 16
        %v4713 = vrot.slane %v4711, 5
        %v4714 = vor.u32 %v4710, %v4713
        %v4715 = vrot.slane %v4714, 4
        %v4717 = vshll.u32 %v4660, 16
        %v4719 = vrot.slane %v4717, 5
        %v4720 = vsel %vm3660, %v4715, %v4719
        %v4721 = vshrl.u32 %v4660, 16
        %v4723 = vrot.slane %v4721, 4
        %v4724 = vor.u32 %v4723, %v4719
        %v4725 = vrot.slane %v4724, 4
        %v4727 = vshll.u32 %v4661, 16
        %v4729 = vrot.slane %v4727, 5
        %v4730 = vsel %vm3660, %v4725, %v4729
        %v4732 = vshrl.u32 %v4662, 16
        %v4734 = vrot.slane %v4732, 4
        %v4735 = vshll.u32 %v4662, 16
        %v4737 = vrot.slane %v4735, 5
        %v4738 = vor.u32 %v4734, %v4737
        %v4739 = vrot.slane %v4738, 4
        %v4741 = vshll.u32 %v4663, 16
        %v4743 = vrot.slane %v4741, 5
        %v4744 = vsel %vm3660, %v4739, %v4743
        %v4745 = vshrl.u32 %v4663, 16
        %v4747 = vrot.slane %v4745, 4
        %v4748 = vor.u32 %v4747, %v4743
        %v4749 = vrot.slane %v4748, 4
        %v4751 = vshll.u32 %v4664, 16
        %v4753 = vrot.slane %v4751, 5
        %v4754 = vsel %vm3660, %v4749, %v4753
        %v4756 = vshrl.u32 %v4665, 16
        %v4758 = vrot.slane %v4756, 4
        %v4759 = vshll.u32 %v4665, 16
        %v4761 = vrot.slane %v4759, 5
        %v4762 = vor.u32 %v4758, %v4761
        %v4763 = vrot.slane %v4762, 4
        %v4765 = vshll.u32 %v4666, 16
        %v4767 = vrot.slane %v4765, 5
        %v4768 = vsel %vm3660, %v4763, %v4767
        %v4769 = vshrl.u32 %v4666, 16
        %v4771 = vrot.slane %v4769, 4
        %v4772 = vor.u32 %v4771, %v4767
        %v4773 = vrot.slane %v4772, 4
        %v4775 = vshll.u32 %v4667, 16
        %v4777 = vrot.slane %v4775, 5
        %v4778 = vsel %vm3660, %v4773, %v4777
        %v4780 = vshrl.u32 %v4668, 16
        %v4782 = vrot.slane %v4780, 4
        %v4783 = vshll.u32 %v4668, 16
        %v4785 = vrot.slane %v4783, 5
        %v4786 = vor.u32 %v4782, %v4785
        %v4787 = vrot.slane %v4786, 4
        %v4789 = vshll.u32 %v4669, 16
        %v4791 = vrot.slane %v4789, 5
        %v4792 = vsel %vm3660, %v4787, %v4791
        %v4793 = vshrl.u32 %v4669, 16
        %v4795 = vrot.slane %v4793, 4
        %v4796 = vor.u32 %v4795, %v4791
        %v4797 = vrot.slane %v4796, 4
        %v4799 = vshll.u32 %v4670, 16
        %v4801 = vrot.slane %v4799, 5
        %v4802 = vsel %vm3660, %v4797, %v4801
        %v4804 = vshrl.u32 %v4671, 16
        %v4806 = vrot.slane %v4804, 4
        %v4807 = vshll.u32 %v4671, 16
        %v4809 = vrot.slane %v4807, 5
        %v4810 = vor.u32 %v4806, %v4809
        %v4811 = vrot.slane %v4810, 4
        %v4813 = vshll.u32 %v4672, 16
        %v4815 = vrot.slane %v4813, 5
        %v4816 = vsel %vm3660, %v4811, %v4815
        %v4817 = vshrl.u32 %v4672, 16
        %v4819 = vrot.slane %v4817, 4
        %v4820 = vor.u32 %v4819, %v4815
        %v4821 = vrot.slane %v4820, 4
        %v4823 = vshll.u32 %v4673, 16
        %v4825 = vrot.slane %v4823, 5
        %v4826 = vsel %vm3660, %v4821, %v4825
        %v4828 = vshrl.u32 %v4674, 16
        %v4830 = vrot.slane %v4828, 4
        %v4831 = vshll.u32 %v4674, 16
        %v4833 = vrot.slane %v4831, 5
        %v4834 = vor.u32 %v4830, %v4833
        %v4835 = vrot.slane %v4834, 4
        %v4837 = vshll.u32 %v4675, 16
        %v4839 = vrot.slane %v4837, 5
        %v4840 = vsel %vm3660, %v4835, %v4839
        %v4841 = vshrl.u32 %v4675, 16
        %v4843 = vrot.slane %v4841, 4
        %v4844 = vor.u32 %v4843, %v4839
        %v4845 = vrot.slane %v4844, 4
        %v4847 = vshll.u32 %v4676, 16
        %v4849 = vrot.slane %v4847, 5
        %v4850 = vsel %vm3660, %v4845, %v4849
        %v4852 = vshrl.u32 %v4677, 16
        %v4854 = vrot.slane %v4852, 4
        %v4855 = vshll.u32 %v4677, 16
        %v4857 = vrot.slane %v4855, 5
        %v4858 = vor.u32 %v4854, %v4857
        %v4859 = vrot.slane %v4858, 4
        %v4861 = vshll.u32 %v4678, 16
        %v4863 = vrot.slane %v4861, 5
        %v4864 = vsel %vm3660, %v4859, %v4863
        %v4865 = vshrl.u32 %v4678, 16
        %v4867 = vrot.slane %v4865, 4
        %v4868 = vor.u32 %v4867, %v4863
        %v4869 = vrot.slane %v4868, 4
        %v4871 = vshll.u32 %v4679, 16
        %v4873 = vrot.slane %v4871, 5
        %v4874 = vsel %vm3660, %v4869, %v4873
        %v4876 = vshrl.u32 %v4680, 16
        %v4878 = vrot.slane %v4876, 4
        %v4879 = vshll.u32 %v4680, 16
        %v4881 = vrot.slane %v4879, 5
        %v4882 = vor.u32 %v4878, %v4881
        %v4883 = vrot.slane %v4882, 4
        %v4885 = vshll.u32 %v4681, 16
        %v4887 = vrot.slane %v4885, 5
        %v4888 = vsel %vm3660, %v4883, %v4887
        %v4889 = vshrl.u32 %v4681, 16
        %v4891 = vrot.slane %v4889, 4
        %v4892 = vor.u32 %v4891, %v4887
        %v4893 = vrot.slane %v4892, 4
        %v4895 = vshll.u32 %v4682, 16
        %v4897 = vrot.slane %v4895, 5
        %v4898 = vsel %vm3660, %v4893, %v4897
        %v4900 = vshrl.u32 %v4683, 16
        %v4902 = vrot.slane %v4900, 4
        %v4903 = vshll.u32 %v4683, 16
        %v4905 = vrot.slane %v4903, 5
        %v4906 = vor.u32 %v4902, %v4905
        %v4907 = vrot.slane %v4906, 4
        %v4909 = vshll.u32 %v4684, 16
        %v4911 = vrot.slane %v4909, 5
        %v4912 = vsel %vm3660, %v4907, %v4911
        %v4913 = vshrl.u32 %v4684, 16
        %v4915 = vrot.slane %v4913, 4
        %v4916 = vor.u32 %v4915, %v4911
        %v4917 = vrot.slane %v4916, 4
        %v4919 = vshll.u32 %v4685, 16
        %v4921 = vrot.slane %v4919, 5
        %v4922 = vsel %vm3660, %v4917, %v4921
        %v4924 = vshrl.u32 %v4686, 16
        %v4926 = vrot.slane %v4924, 4
        %v4927 = vshll.u32 %v4686, 16
        %v4929 = vrot.slane %v4927, 5
        %v4930 = vor.u32 %v4926, %v4929
        %v4931 = vrot.slane %v4930, 4
        %v4933 = vshll.u32 %v4687, 16
        %v4935 = vrot.slane %v4933, 5
        %v4936 = vsel %vm3660, %v4931, %v4935
        %v4937 = vshrl.u32 %v4687, 16
        %v4939 = vrot.slane %v4937, 4
        %v4940 = vor.u32 %v4939, %v4935
        %v4941 = vrot.slane %v4940, 4
        %v4943 = vshll.u32 %v4688, 16
        %v4945 = vrot.slane %v4943, 5
        %v4946 = vsel %vm3660, %v4941, %v4945
        %v4948 = vshrl.u32 %v4689, 16
        %v4950 = vrot.slane %v4948, 4
        %v4951 = vshll.u32 %v4689, 16
        %v4953 = vrot.slane %v4951, 5
        %v4954 = vor.u32 %v4950, %v4953
        %v4955 = vrot.slane %v4954, 4
        %v4957 = vshll.u32 %v4690, 16
        %v4959 = vrot.slane %v4957, 5
        %v4960 = vsel %vm3660, %v4955, %v4959
        %v4961 = vshrl.u32 %v4690, 16
        %v4963 = vrot.slane %v4961, 4
        %v4964 = vor.u32 %v4963, %v4959
        %v4965 = vrot.slane %v4964, 4
        %v4967 = vshll.u32 %v4691, 16
        %v4969 = vrot.slane %v4967, 5
        %v4970 = vsel %vm3660, %v4965, %v4969
        %v4972 = vshrl.u32 %v4692, 16
        %v4974 = vrot.slane %v4972, 4
        %v4975 = vshll.u32 %v4692, 16
        %v4977 = vrot.slane %v4975, 5
        %v4978 = vor.u32 %v4974, %v4977
        %v4979 = vrot.slane %v4978, 4
        %v4981 = vshll.u32 %v4693, 16
        %v4983 = vrot.slane %v4981, 5
        %v4984 = vsel %vm3660, %v4979, %v4983
        %v4985 = vshrl.u32 %v4693, 16
        %v4987 = vrot.slane %v4985, 4
        %v4988 = vor.u32 %v4987, %v4983
        %v4989 = vrot.slane %v4988, 4
        %v4991 = vshll.u32 %v4694, 16
        %v4993 = vrot.slane %v4991, 5
        %v4994 = vsel %vm3660, %v4989, %v4993
        %v4996 = vshrl.u32 %v4695, 16
        %v4998 = vrot.slane %v4996, 4
        %v4999 = vshll.u32 %v4695, 16
        %v5001 = vrot.slane %v4999, 5
        %v5002 = vor.u32 %v4998, %v5001
        %v5003 = vrot.slane %v5002, 4
        %v5005 = vshll.u32 %v4696, 16
        %v5007 = vrot.slane %v5005, 5
        %v5008 = vsel %vm3660, %v5003, %v5007
        %v5009 = vshrl.u32 %v4696, 16
        %v5011 = vrot.slane %v5009, 4
        %v5012 = vor.u32 %v5011, %v5007
        %v5013 = vrot.slane %v5012, 4
        %v5015 = vshll.u32 %v4697, 16
        %v5017 = vrot.slane %v5015, 5
        %v5018 = vsel %vm3660, %v5013, %v5017
        %v5020 = vshrl.u32 %v4698, 16
        %v5022 = vrot.slane %v5020, 4
        %v5023 = vshll.u32 %v4698, 16
        %v5025 = vrot.slane %v5023, 5
        %v5026 = vor.u32 %v5022, %v5025
        %v5027 = vrot.slane %v5026, 4
        %v5029 = vshll.u32 %v4699, 16
        %v5031 = vrot.slane %v5029, 5
        %v5032 = vsel %vm3660, %v5027, %v5031
        %v5033 = vshrl.u32 %v4699, 16
        %v5035 = vrot.slane %v5033, 4
        %v5036 = vor.u32 %v5035, %v5031
        %v5037 = vrot.slane %v5036, 4
        %v5039 = vshll.u32 %v4700, 16
        %v5041 = vrot.slane %v5039, 5
        %v5042 = vsel %vm3660, %v5037, %v5041
        %v5044 = vshrl.u32 %v4701, 16
        %v5046 = vrot.slane %v5044, 4
        %v5047 = vshll.u32 %v4701, 16
        %v5049 = vrot.slane %v5047, 5
        %v5050 = vor.u32 %v5046, %v5049
        %v5051 = vrot.slane %v5050, 4
        %v5053 = vshll.u32 %v4702, 16
        %v5055 = vrot.slane %v5053, 5
        %v5056 = vsel %vm3660, %v5051, %v5055
        %v5057 = vshrl.u32 %v4702, 16
        %v5059 = vrot.slane %v5057, 4
        %v5060 = vor.u32 %v5059, %v5055
        %v5061 = vrot.slane %v5060, 4
        %v5063 = vshll.u32 %v4703, 16
        %v5065 = vrot.slane %v5063, 5
        %v5066 = vsel %vm3660, %v5061, %v5065
        %v5068 = vshrl.u32 %v4704, 16
        %v5070 = vrot.slane %v5068, 4
        %v5071 = vshll.u32 %v4704, 16
        %v5073 = vrot.slane %v5071, 5
        %v5074 = vor.u32 %v5070, %v5073
        %v5075 = vrot.slane %v5074, 4
        %v5077 = vshll.u32 %v4705, 16
        %v5079 = vrot.slane %v5077, 5
        %v5080 = vsel %vm3660, %v5075, %v5079
        %v5081 = vshrl.u32 %v4705, 16
        %v5083 = vrot.slane %v5081, 4
        %v5084 = vor.u32 %v5083, %v5079
        %v5085 = vrot.slane %v5084, 4
        %v5087 = vshll.u32 %v4706, 16
        %v5089 = vrot.slane %v5087, 5
        %v5090 = vsel %vm3660, %v5085, %v5089
        %v5091 = vunpack.c.l.b16 %v4720
        %v5092 = vunpack.c.l.b16 %v4730
        %v5093 = vunpack.c.l.b16 %v4744
        %v5094 = vunpack.c.l.b16 %v4754
        %v5095 = vunpack.c.l.b16 %v4768
        %v5096 = vunpack.c.l.b16 %v4778
        %v5097 = vunpack.c.l.b16 %v4792
        %v5098 = vunpack.c.l.b16 %v4802
        %v5099 = vunpack.c.l.b16 %v4816
        %v5100 = vunpack.c.l.b16 %v4826
        %v5101 = vunpack.c.l.b16 %v4840
        %v5102 = vunpack.c.l.b16 %v4850
        %v5103 = vunpack.c.l.b16 %v4864
        %v5104 = vunpack.c.l.b16 %v4874
        %v5105 = vunpack.c.l.b16 %v4888
        %v5106 = vunpack.c.l.b16 %v4898
        %v5107 = vunpack.c.l.b16 %v4912
        %v5108 = vunpack.c.l.b16 %v4922
        %v5109 = vunpack.c.l.b16 %v4936
        %v5110 = vunpack.c.l.b16 %v4946
        %v5111 = vunpack.c.l.b16 %v4960
        %v5112 = vunpack.c.l.b16 %v4970
        %v5113 = vunpack.c.l.b16 %v4984
        %v5114 = vunpack.c.l.b16 %v4994
        %v5115 = vunpack.c.l.b16 %v5008
        %v5116 = vunpack.c.l.b16 %v5018
        %v5117 = vunpack.c.l.b16 %v5032
        %v5118 = vunpack.c.l.b16 %v5042
        %v5119 = vunpack.c.l.b16 %v5056
        %v5120 = vunpack.c.l.b16 %v5066
        %v5121 = vunpack.c.l.b16 %v5080
        %v5122 = vunpack.c.l.b16 %v5090
        %v5123 = vpack.c.b16 %v5092, %v5091
        %v5124 = vpack.c.b16 %v5094, %v5093
        %v5125 = vpack.c.b16 %v5096, %v5095
        %v5126 = vpack.c.b16 %v5098, %v5097
        %v5127 = vpack.c.b16 %v5100, %v5099
        %v5128 = vpack.c.b16 %v5102, %v5101
        %v5129 = vpack.c.b16 %v5104, %v5103
        %v5130 = vpack.c.b16 %v5106, %v5105
        %v5131 = vpack.c.b16 %v5108, %v5107
        %v5132 = vpack.c.b16 %v5110, %v5109
        %v5133 = vpack.c.b16 %v5112, %v5111
        %v5134 = vpack.c.b16 %v5114, %v5113
        %v5135 = vpack.c.b16 %v5116, %v5115
        %v5136 = vpack.c.b16 %v5118, %v5117
        %v5137 = vpack.c.b16 %v5120, %v5119
        %v5138 = vpack.c.b16 %v5122, %v5121
        %5155 = vst.msk [vmem:[#allocation4 + $0x8] sm:$0xff] %vm3593, %v5123
        %5156 = vst.msk [vmem:[#allocation4 + $0x20] sm:$0xff] %vm3593, %v5124
        %5157 = vst.msk [vmem:[#allocation4 + $0x38] sm:$0xff] %vm3593, %v5125
        %5158 = vst.msk [vmem:[#allocation4 + $0x50] sm:$0xff] %vm3593, %v5126
        %5159 = vst.msk [vmem:[#allocation4 + $0x68] sm:$0xff] %vm3593, %v5127
        %5160 = vst.msk [vmem:[#allocation4 + $0x80] sm:$0xff] %vm3593, %v5128
        %5161 = vst.msk [vmem:[#allocation4 + $0x98] sm:$0xff] %vm3593, %v5129
        %5162 = vst.msk [vmem:[#allocation4 + $0xb0] sm:$0xff] %vm3593, %v5130
        %5163 = vst.msk [vmem:[#allocation4 + $0xc8] sm:$0xff] %vm3593, %v5131
        %5164 = vst.msk [vmem:[#allocation4 + $0xe0] sm:$0xff] %vm3593, %v5132
        %5165 = vst.msk [vmem:[#allocation4 + $0xf8] sm:$0xff] %vm3593, %v5133
        %5166 = vst.msk [vmem:[#allocation4 + $0x110] sm:$0xff] %vm3593, %v5134
        %5167 = vst.msk [vmem:[#allocation4 + $0x128] sm:$0xff] %vm3593, %v5135
        %5168 = vst.msk [vmem:[#allocation4 + $0x140] sm:$0xff] %vm3593, %v5136
        %5169 = vst.msk [vmem:[#allocation4 + $0x158] sm:$0xff] %vm3593, %v5137
        %5170 = vst.msk [vmem:[#allocation4 + $0x170] sm:$0xff] %vm3593, %v5138
        %v5171 = vld [vmem:[%s3350] sm:$0xe]
        %v5172 = vld [vmem:[%s3350 + $0x4] sm:$0xf]
        %v5173 = vld [vmem:[%s3350 + $0x8] sm:$0x1]
        %v5174 = vld [vmem:[%s3350 + $0xc] sm:$0xe]
        %v5175 = vld [vmem:[%s3350 + $0x10] sm:$0xf]
        %v5176 = vld [vmem:[%s3350 + $0x14] sm:$0x1]
        %v5177 = vld [vmem:[%s3350 + $0x18] sm:$0xe]
        %v5178 = vld [vmem:[%s3350 + $0x1c] sm:$0xf]
        %v5179 = vld [vmem:[%s3350 + $0x20] sm:$0x1]
        %v5180 = vld [vmem:[%s3350 + $0x24] sm:$0xe]
        %v5181 = vld [vmem:[%s3350 + $0x28] sm:$0xf]
        %v5182 = vld [vmem:[%s3350 + $0x2c] sm:$0x1]
        %v5183 = vld [vmem:[%s3350 + $0x30] sm:$0xe]
        %v5184 = vld [vmem:[%s3350 + $0x34] sm:$0xf]
        %v5185 = vld [vmem:[%s3350 + $0x38] sm:$0x1]
        %v5186 = vld [vmem:[%s3350 + $0x3c] sm:$0xe]
        %v5187 = vld [vmem:[%s3350 + $0x40] sm:$0xf]
        %v5188 = vld [vmem:[%s3350 + $0x44] sm:$0x1]
        %v5189 = vld [vmem:[%s3350 + $0x48] sm:$0xe]
        %v5190 = vld [vmem:[%s3350 + $0x4c] sm:$0xf]
        %v5191 = vld [vmem:[%s3350 + $0x50] sm:$0x1]
        %v5192 = vld [vmem:[%s3350 + $0x54] sm:$0xe]
        %v5193 = vld [vmem:[%s3350 + $0x58] sm:$0xf]
        %v5194 = vld [vmem:[%s3350 + $0x5c] sm:$0x1]
        %v5195 = vld [vmem:[%s3350 + $0x60] sm:$0xe]
        %v5196 = vld [vmem:[%s3350 + $0x64] sm:$0xf]
        %v5197 = vld [vmem:[%s3350 + $0x68] sm:$0x1]
        %v5198 = vld [vmem:[%s3350 + $0x6c] sm:$0xe]
        %v5199 = vld [vmem:[%s3350 + $0x70] sm:$0xf]
        %v5200 = vld [vmem:[%s3350 + $0x74] sm:$0x1]
        %v5201 = vld [vmem:[%s3350 + $0x78] sm:$0xe]
        %v5202 = vld [vmem:[%s3350 + $0x7c] sm:$0xf]
        %v5203 = vld [vmem:[%s3350 + $0x80] sm:$0x1]
        %v5204 = vld [vmem:[%s3350 + $0x84] sm:$0xe]
        %v5205 = vld [vmem:[%s3350 + $0x88] sm:$0xf]
        %v5206 = vld [vmem:[%s3350 + $0x8c] sm:$0x1]
        %v5207 = vld [vmem:[%s3350 + $0x90] sm:$0xe]
        %v5208 = vld [vmem:[%s3350 + $0x94] sm:$0xf]
        %v5209 = vld [vmem:[%s3350 + $0x98] sm:$0x1]
        %v5210 = vld [vmem:[%s3350 + $0x9c] sm:$0xe]
        %v5211 = vld [vmem:[%s3350 + $0xa0] sm:$0xf]
        %v5212 = vld [vmem:[%s3350 + $0xa4] sm:$0x1]
        %v5213 = vld [vmem:[%s3350 + $0xa8] sm:$0xe]
        %v5214 = vld [vmem:[%s3350 + $0xac] sm:$0xf]
        %v5215 = vld [vmem:[%s3350 + $0xb0] sm:$0x1]
        %v5216 = vld [vmem:[%s3350 + $0xb4] sm:$0xe]
        %v5217 = vld [vmem:[%s3350 + $0xb8] sm:$0xf]
        %v5218 = vld [vmem:[%s3350 + $0xbc] sm:$0x1]
        %v5267 = vrot.slane %v5171, 5
        %v5268 = vrot.slane %v5267, 4
        %v5269 = vrot.slane %v5172, 5
        %v5270 = vsel %vm4256, %v5268, %v5269
        %v5271 = vrot.slane %v5269, 4
        %v5272 = vrot.slane %v5173, 5
        %v5273 = vsel %vm4256, %v5271, %v5272
        %v5274 = vrot.slane %v5174, 5
        %v5275 = vrot.slane %v5274, 4
        %v5276 = vrot.slane %v5175, 5
        %v5277 = vsel %vm4256, %v5275, %v5276
        %v5278 = vrot.slane %v5276, 4
        %v5279 = vrot.slane %v5176, 5
        %v5280 = vsel %vm4256, %v5278, %v5279
        %v5281 = vrot.slane %v5177, 5
        %v5282 = vrot.slane %v5281, 4
        %v5283 = vrot.slane %v5178, 5
        %v5284 = vsel %vm4256, %v5282, %v5283
        %v5285 = vrot.slane %v5283, 4
        %v5286 = vrot.slane %v5179, 5
        %v5287 = vsel %vm4256, %v5285, %v5286
        %v5288 = vrot.slane %v5180, 5
        %v5289 = vrot.slane %v5288, 4
        %v5290 = vrot.slane %v5181, 5
        %v5291 = vsel %vm4256, %v5289, %v5290
        %v5292 = vrot.slane %v5290, 4
        %v5293 = vrot.slane %v5182, 5
        %v5294 = vsel %vm4256, %v5292, %v5293
        %v5295 = vrot.slane %v5183, 5
        %v5296 = vrot.slane %v5295, 4
        %v5297 = vrot.slane %v5184, 5
        %v5298 = vsel %vm4256, %v5296, %v5297
        %v5299 = vrot.slane %v5297, 4
        %v5300 = vrot.slane %v5185, 5
        %v5301 = vsel %vm4256, %v5299, %v5300
        %v5302 = vrot.slane %v5186, 5
        %v5303 = vrot.slane %v5302, 4
        %v5304 = vrot.slane %v5187, 5
        %v5305 = vsel %vm4256, %v5303, %v5304
        %v5306 = vrot.slane %v5304, 4
        %v5307 = vrot.slane %v5188, 5
        %v5308 = vsel %vm4256, %v5306, %v5307
        %v5309 = vrot.slane %v5189, 5
        %v5310 = vrot.slane %v5309, 4
        %v5311 = vrot.slane %v5190, 5
        %v5312 = vsel %vm4256, %v5310, %v5311
        %v5313 = vrot.slane %v5311, 4
        %v5314 = vrot.slane %v5191, 5
        %v5315 = vsel %vm4256, %v5313, %v5314
        %v5316 = vrot.slane %v5192, 5
        %v5317 = vrot.slane %v5316, 4
        %v5318 = vrot.slane %v5193, 5
        %v5319 = vsel %vm4256, %v5317, %v5318
        %v5320 = vrot.slane %v5318, 4
        %v5321 = vrot.slane %v5194, 5
        %v5322 = vsel %vm4256, %v5320, %v5321
        %v5323 = vrot.slane %v5195, 5
        %v5324 = vrot.slane %v5323, 4
        %v5325 = vrot.slane %v5196, 5
        %v5326 = vsel %vm4256, %v5324, %v5325
        %v5327 = vrot.slane %v5325, 4
        %v5328 = vrot.slane %v5197, 5
        %v5329 = vsel %vm4256, %v5327, %v5328
        %v5330 = vrot.slane %v5198, 5
        %v5331 = vrot.slane %v5330, 4
        %v5332 = vrot.slane %v5199, 5
        %v5333 = vsel %vm4256, %v5331, %v5332
        %v5334 = vrot.slane %v5332, 4
        %v5335 = vrot.slane %v5200, 5
        %v5336 = vsel %vm4256, %v5334, %v5335
        %v5337 = vrot.slane %v5201, 5
        %v5338 = vrot.slane %v5337, 4
        %v5339 = vrot.slane %v5202, 5
        %v5340 = vsel %vm4256, %v5338, %v5339
        %v5341 = vrot.slane %v5339, 4
        %v5342 = vrot.slane %v5203, 5
        %v5343 = vsel %vm4256, %v5341, %v5342
        %v5344 = vrot.slane %v5204, 5
        %v5345 = vrot.slane %v5344, 4
        %v5346 = vrot.slane %v5205, 5
        %v5347 = vsel %vm4256, %v5345, %v5346
        %v5348 = vrot.slane %v5346, 4
        %v5349 = vrot.slane %v5206, 5
        %v5350 = vsel %vm4256, %v5348, %v5349
        %v5351 = vrot.slane %v5207, 5
        %v5352 = vrot.slane %v5351, 4
        %v5353 = vrot.slane %v5208, 5
        %v5354 = vsel %vm4256, %v5352, %v5353
        %v5355 = vrot.slane %v5353, 4
        %v5356 = vrot.slane %v5209, 5
        %v5357 = vsel %vm4256, %v5355, %v5356
        %v5358 = vrot.slane %v5210, 5
        %v5359 = vrot.slane %v5358, 4
        %v5360 = vrot.slane %v5211, 5
        %v5361 = vsel %vm4256, %v5359, %v5360
        %v5362 = vrot.slane %v5360, 4
        %v5363 = vrot.slane %v5212, 5
        %v5364 = vsel %vm4256, %v5362, %v5363
        %v5365 = vrot.slane %v5213, 5
        %v5366 = vrot.slane %v5365, 4
        %v5367 = vrot.slane %v5214, 5
        %v5368 = vsel %vm4256, %v5366, %v5367
        %v5369 = vrot.slane %v5367, 4
        %v5370 = vrot.slane %v5215, 5
        %v5371 = vsel %vm4256, %v5369, %v5370
        %v5372 = vrot.slane %v5216, 5
        %v5373 = vrot.slane %v5372, 4
        %v5374 = vrot.slane %v5217, 5
        %v5375 = vsel %vm4256, %v5373, %v5374
        %v5376 = vrot.slane %v5374, 4
        %v5377 = vrot.slane %v5218, 5
        %v5378 = vsel %vm4256, %v5376, %v5377
        %v5379 = vunpack.c.l.b16 %v5270
        %v5380 = vunpack.c.l.b16 %v5273
        %v5381 = vunpack.c.l.b16 %v5277
        %v5382 = vunpack.c.l.b16 %v5280
        %v5383 = vunpack.c.l.b16 %v5284
        %v5384 = vunpack.c.l.b16 %v5287
        %v5385 = vunpack.c.l.b16 %v5291
        %v5386 = vunpack.c.l.b16 %v5294
        %v5387 = vunpack.c.l.b16 %v5298
        %v5388 = vunpack.c.l.b16 %v5301
        %v5389 = vunpack.c.l.b16 %v5305
        %v5390 = vunpack.c.l.b16 %v5308
        %v5391 = vunpack.c.l.b16 %v5312
        %v5392 = vunpack.c.l.b16 %v5315
        %v5393 = vunpack.c.l.b16 %v5319
        %v5394 = vunpack.c.l.b16 %v5322
        %v5395 = vunpack.c.l.b16 %v5326
        %v5396 = vunpack.c.l.b16 %v5329
        %v5397 = vunpack.c.l.b16 %v5333
        %v5398 = vunpack.c.l.b16 %v5336
        %v5399 = vunpack.c.l.b16 %v5340
        %v5400 = vunpack.c.l.b16 %v5343
        %v5401 = vunpack.c.l.b16 %v5347
        %v5402 = vunpack.c.l.b16 %v5350
        %v5403 = vunpack.c.l.b16 %v5354
        %v5404 = vunpack.c.l.b16 %v5357
        %v5405 = vunpack.c.l.b16 %v5361
        %v5406 = vunpack.c.l.b16 %v5364
        %v5407 = vunpack.c.l.b16 %v5368
        %v5408 = vunpack.c.l.b16 %v5371
        %v5409 = vunpack.c.l.b16 %v5375
        %v5410 = vunpack.c.l.b16 %v5378
        %v5411 = vpack.c.b16 %v5380, %v5379
        %v5412 = vpack.c.b16 %v5382, %v5381
        %v5413 = vpack.c.b16 %v5384, %v5383
        %v5414 = vpack.c.b16 %v5386, %v5385
        %v5415 = vpack.c.b16 %v5388, %v5387
        %v5416 = vpack.c.b16 %v5390, %v5389
        %v5417 = vpack.c.b16 %v5392, %v5391
        %v5418 = vpack.c.b16 %v5394, %v5393
        %v5419 = vpack.c.b16 %v5396, %v5395
        %v5420 = vpack.c.b16 %v5398, %v5397
        %v5421 = vpack.c.b16 %v5400, %v5399
        %v5422 = vpack.c.b16 %v5402, %v5401
        %v5423 = vpack.c.b16 %v5404, %v5403
        %v5424 = vpack.c.b16 %v5406, %v5405
        %v5425 = vpack.c.b16 %v5408, %v5407
        %v5426 = vpack.c.b16 %v5410, %v5409
        %5427 = vrot.lane.b32.xlu0 %v5411, 32
        %v5428 = vpop.permute.xlu0 %5427
        %5429 = vrot.lane.b32.xlu0 %v5412, 32
        %v5430 = vpop.permute.xlu0 %5429
        %5431 = vrot.lane.b32.xlu0 %v5413, 32
        %v5432 = vpop.permute.xlu0 %5431
        %5433 = vrot.lane.b32.xlu0 %v5414, 32
        %v5434 = vpop.permute.xlu0 %5433
        %5435 = vrot.lane.b32.xlu0 %v5415, 32
        %v5436 = vpop.permute.xlu0 %5435
        %5437 = vrot.lane.b32.xlu0 %v5416, 32
        %v5438 = vpop.permute.xlu0 %5437
        %5439 = vrot.lane.b32.xlu0 %v5417, 32
        %v5440 = vpop.permute.xlu0 %5439
        %5441 = vrot.lane.b32.xlu0 %v5418, 32
        %v5442 = vpop.permute.xlu0 %5441
        %5443 = vrot.lane.b32.xlu0 %v5419, 32
        %v5444 = vpop.permute.xlu0 %5443
        %5445 = vrot.lane.b32.xlu0 %v5420, 32
        %v5446 = vpop.permute.xlu0 %5445
        %5447 = vrot.lane.b32.xlu0 %v5421, 32
        %v5448 = vpop.permute.xlu0 %5447
        %5449 = vrot.lane.b32.xlu0 %v5422, 32
        %v5450 = vpop.permute.xlu0 %5449
        %5451 = vrot.lane.b32.xlu0 %v5423, 32
        %v5452 = vpop.permute.xlu0 %5451
        %5453 = vrot.lane.b32.xlu0 %v5424, 32
        %v5454 = vpop.permute.xlu0 %5453
        %5455 = vrot.lane.b32.xlu0 %v5425, 32
        %v5456 = vpop.permute.xlu0 %5455
        %5457 = vrot.lane.b32.xlu0 %v5426, 32
        %v5458 = vpop.permute.xlu0 %5457
        %5475 = vst.msk [vmem:[#allocation4 + $0x8] sm:$0xff] %vm4141, %v5428
        %5476 = vst.msk [vmem:[#allocation4 + $0x20] sm:$0xff] %vm4141, %v5430
        %5477 = vst.msk [vmem:[#allocation4 + $0x38] sm:$0xff] %vm4141, %v5432
        %5478 = vst.msk [vmem:[#allocation4 + $0x50] sm:$0xff] %vm4141, %v5434
        %5479 = vst.msk [vmem:[#allocation4 + $0x68] sm:$0xff] %vm4141, %v5436
        %5480 = vst.msk [vmem:[#allocation4 + $0x80] sm:$0xff] %vm4141, %v5438
        %5481 = vst.msk [vmem:[#allocation4 + $0x98] sm:$0xff] %vm4141, %v5440
        %5482 = vst.msk [vmem:[#allocation4 + $0xb0] sm:$0xff] %vm4141, %v5442
        %5483 = vst.msk [vmem:[#allocation4 + $0xc8] sm:$0xff] %vm4141, %v5444
        %5484 = vst.msk [vmem:[#allocation4 + $0xe0] sm:$0xff] %vm4141, %v5446
        %5485 = vst.msk [vmem:[#allocation4 + $0xf8] sm:$0xff] %vm4141, %v5448
        %5486 = vst.msk [vmem:[#allocation4 + $0x110] sm:$0xff] %vm4141, %v5450
        %5487 = vst.msk [vmem:[#allocation4 + $0x128] sm:$0xff] %vm4141, %v5452
        %5488 = vst.msk [vmem:[#allocation4 + $0x140] sm:$0xff] %vm4141, %v5454
        %5489 = vst.msk [vmem:[#allocation4 + $0x158] sm:$0xff] %vm4141, %v5456
        %5490 = vst.msk [vmem:[#allocation4 + $0x170] sm:$0xff] %vm4141, %v5458
        %s5491 = scalar_lea.vmem [#allocation3], 24
        %v5492 = vld [vmem:[%s5491] sm:$0xf]
        %v5493 = vld [vmem:[%s5491 + $0x4] sm:$0xf]
        %v5494 = vld [vmem:[%s5491 + $0xc] sm:$0xf]
        %v5495 = vld [vmem:[%s5491 + $0x10] sm:$0xf]
        %v5496 = vld [vmem:[%s5491 + $0x18] sm:$0xf]
        %v5497 = vld [vmem:[%s5491 + $0x1c] sm:$0xf]
        %v5498 = vld [vmem:[%s5491 + $0x24] sm:$0xf]
        %v5499 = vld [vmem:[%s5491 + $0x28] sm:$0xf]
        %v5500 = vld [vmem:[%s5491 + $0x30] sm:$0xf]
        %v5501 = vld [vmem:[%s5491 + $0x34] sm:$0xf]
        %v5502 = vld [vmem:[%s5491 + $0x3c] sm:$0xf]
        %v5503 = vld [vmem:[%s5491 + $0x40] sm:$0xf]
        %v5504 = vld [vmem:[%s5491 + $0x48] sm:$0xf]
        %v5505 = vld [vmem:[%s5491 + $0x4c] sm:$0xf]
        %v5506 = vld [vmem:[%s5491 + $0x54] sm:$0xf]
        %v5507 = vld [vmem:[%s5491 + $0x58] sm:$0xf]
        %v5508 = vld [vmem:[%s5491 + $0x60] sm:$0xf]
        %v5509 = vld [vmem:[%s5491 + $0x64] sm:$0xf]
        %v5510 = vld [vmem:[%s5491 + $0x6c] sm:$0xf]
        %v5511 = vld [vmem:[%s5491 + $0x70] sm:$0xf]
        %v5512 = vld [vmem:[%s5491 + $0x78] sm:$0xf]
        %v5513 = vld [vmem:[%s5491 + $0x7c] sm:$0xf]
        %v5514 = vld [vmem:[%s5491 + $0x84] sm:$0xf]
        %v5515 = vld [vmem:[%s5491 + $0x88] sm:$0xf]
        %v5516 = vld [vmem:[%s5491 + $0x90] sm:$0xf]
        %v5517 = vld [vmem:[%s5491 + $0x94] sm:$0xf]
        %v5518 = vld [vmem:[%s5491 + $0x9c] sm:$0xf]
        %v5519 = vld [vmem:[%s5491 + $0xa0] sm:$0xf]
        %v5520 = vld [vmem:[%s5491 + $0xa8] sm:$0xf]
        %v5521 = vld [vmem:[%s5491 + $0xac] sm:$0xf]
        %v5522 = vld [vmem:[%s5491 + $0xb4] sm:$0xf]
        %v5523 = vld [vmem:[%s5491 + $0xb8] sm:$0xf]
        %v5556 = vunpack.c.l.b16 %v5492
        %v5557 = vunpack.c.l.b16 %v5493
        %v5558 = vunpack.c.l.b16 %v5494
        %v5559 = vunpack.c.l.b16 %v5495
        %v5560 = vunpack.c.l.b16 %v5496
        %v5561 = vunpack.c.l.b16 %v5497
        %v5562 = vunpack.c.l.b16 %v5498
        %v5563 = vunpack.c.l.b16 %v5499
        %v5564 = vunpack.c.l.b16 %v5500
        %v5565 = vunpack.c.l.b16 %v5501
        %v5566 = vunpack.c.l.b16 %v5502
        %v5567 = vunpack.c.l.b16 %v5503
        %v5568 = vunpack.c.l.b16 %v5504
        %v5569 = vunpack.c.l.b16 %v5505
        %v5570 = vunpack.c.l.b16 %v5506
        %v5571 = vunpack.c.l.b16 %v5507
        %v5572 = vunpack.c.l.b16 %v5508
        %v5573 = vunpack.c.l.b16 %v5509
        %v5574 = vunpack.c.l.b16 %v5510
        %v5575 = vunpack.c.l.b16 %v5511
        %v5576 = vunpack.c.l.b16 %v5512
        %v5577 = vunpack.c.l.b16 %v5513
        %v5578 = vunpack.c.l.b16 %v5514
        %v5579 = vunpack.c.l.b16 %v5515
        %v5580 = vunpack.c.l.b16 %v5516
        %v5581 = vunpack.c.l.b16 %v5517
        %v5582 = vunpack.c.l.b16 %v5518
        %v5583 = vunpack.c.l.b16 %v5519
        %v5584 = vunpack.c.l.b16 %v5520
        %v5585 = vunpack.c.l.b16 %v5521
        %v5586 = vunpack.c.l.b16 %v5522
        %v5587 = vunpack.c.l.b16 %v5523
        %v5588 = vpack.c.b16 %v5557, %v5556
        %v5589 = vpack.c.b16 %v5559, %v5558
        %v5590 = vpack.c.b16 %v5561, %v5560
        %v5591 = vpack.c.b16 %v5563, %v5562
        %v5592 = vpack.c.b16 %v5565, %v5564
        %v5593 = vpack.c.b16 %v5567, %v5566
        %v5594 = vpack.c.b16 %v5569, %v5568
        %v5595 = vpack.c.b16 %v5571, %v5570
        %v5596 = vpack.c.b16 %v5573, %v5572
        %v5597 = vpack.c.b16 %v5575, %v5574
        %v5598 = vpack.c.b16 %v5577, %v5576
        %v5599 = vpack.c.b16 %v5579, %v5578
        %v5600 = vpack.c.b16 %v5581, %v5580
        %v5601 = vpack.c.b16 %v5583, %v5582
        %v5602 = vpack.c.b16 %v5585, %v5584
        %v5603 = vpack.c.b16 %v5587, %v5586
        %5604 = vrot.lane.b32.xlu0 %v5588, 64
        %v5605 = vpop.permute.xlu0 %5604
        %5606 = vrot.lane.b32.xlu0 %v5589, 64
        %v5607 = vpop.permute.xlu0 %5606
        %5608 = vrot.lane.b32.xlu0 %v5590, 64
        %v5609 = vpop.permute.xlu0 %5608
        %5610 = vrot.lane.b32.xlu0 %v5591, 64
        %v5611 = vpop.permute.xlu0 %5610
        %5612 = vrot.lane.b32.xlu0 %v5592, 64
        %v5613 = vpop.permute.xlu0 %5612
        %5614 = vrot.lane.b32.xlu0 %v5593, 64
        %v5615 = vpop.permute.xlu0 %5614
        %5616 = vrot.lane.b32.xlu0 %v5594, 64
        %v5617 = vpop.permute.xlu0 %5616
        %5618 = vrot.lane.b32.xlu0 %v5595, 64
        %v5619 = vpop.permute.xlu0 %5618
        %5620 = vrot.lane.b32.xlu0 %v5596, 64
        %v5621 = vpop.permute.xlu0 %5620
        %5622 = vrot.lane.b32.xlu0 %v5597, 64
        %v5623 = vpop.permute.xlu0 %5622
        %5624 = vrot.lane.b32.xlu0 %v5598, 64
        %v5625 = vpop.permute.xlu0 %5624
        %5626 = vrot.lane.b32.xlu0 %v5599, 64
        %v5627 = vpop.permute.xlu0 %5626
        %5628 = vrot.lane.b32.xlu0 %v5600, 64
        %v5629 = vpop.permute.xlu0 %5628
        %5630 = vrot.lane.b32.xlu0 %v5601, 64
        %v5631 = vpop.permute.xlu0 %5630
        %5632 = vrot.lane.b32.xlu0 %v5602, 64
        %v5633 = vpop.permute.xlu0 %5632
        %5634 = vrot.lane.b32.xlu0 %v5603, 64
        %v5635 = vpop.permute.xlu0 %5634
        %5652 = vst.msk [vmem:[#allocation4 + $0x8] sm:$0xff] %vm4465, %v5605
        %5653 = vst.msk [vmem:[#allocation4 + $0x20] sm:$0xff] %vm4465, %v5607
        %5654 = vst.msk [vmem:[#allocation4 + $0x38] sm:$0xff] %vm4465, %v5609
        %5655 = vst.msk [vmem:[#allocation4 + $0x50] sm:$0xff] %vm4465, %v5611
        %5656 = vst.msk [vmem:[#allocation4 + $0x68] sm:$0xff] %vm4465, %v5613
        %5657 = vst.msk [vmem:[#allocation4 + $0x80] sm:$0xff] %vm4465, %v5615
        %5658 = vst.msk [vmem:[#allocation4 + $0x98] sm:$0xff] %vm4465, %v5617
        %5659 = vst.msk [vmem:[#allocation4 + $0xb0] sm:$0xff] %vm4465, %v5619
        %5660 = vst.msk [vmem:[#allocation4 + $0xc8] sm:$0xff] %vm4465, %v5621
        %5661 = vst.msk [vmem:[#allocation4 + $0xe0] sm:$0xff] %vm4465, %v5623
        %5662 = vst.msk [vmem:[#allocation4 + $0xf8] sm:$0xff] %vm4465, %v5625
        %5663 = vst.msk [vmem:[#allocation4 + $0x110] sm:$0xff] %vm4465, %v5627
        %5664 = vst.msk [vmem:[#allocation4 + $0x128] sm:$0xff] %vm4465, %v5629
        %5665 = vst.msk [vmem:[#allocation4 + $0x140] sm:$0xff] %vm4465, %v5631
        %5666 = vst.msk [vmem:[#allocation4 + $0x158] sm:$0xff] %vm4465, %v5633
        %5667 = vst.msk [vmem:[#allocation4 + $0x170] sm:$0xff] %vm4465, %v5635
        %v5668 = vld [vmem:[%s5491] sm:$0xf]
        %v5669 = vld [vmem:[%s5491 + $0x4] sm:$0xf]
        %v5670 = vld [vmem:[%s5491 + $0x8] sm:$0x1]
        %v5671 = vld [vmem:[%s5491 + $0xc] sm:$0xf]
        %v5672 = vld [vmem:[%s5491 + $0x10] sm:$0xf]
        %v5673 = vld [vmem:[%s5491 + $0x14] sm:$0x1]
        %v5674 = vld [vmem:[%s5491 + $0x18] sm:$0xf]
        %v5675 = vld [vmem:[%s5491 + $0x1c] sm:$0xf]
        %v5676 = vld [vmem:[%s5491 + $0x20] sm:$0x1]
        %v5677 = vld [vmem:[%s5491 + $0x24] sm:$0xf]
        %v5678 = vld [vmem:[%s5491 + $0x28] sm:$0xf]
        %v5679 = vld [vmem:[%s5491 + $0x2c] sm:$0x1]
        %v5680 = vld [vmem:[%s5491 + $0x30] sm:$0xf]
        %v5681 = vld [vmem:[%s5491 + $0x34] sm:$0xf]
        %v5682 = vld [vmem:[%s5491 + $0x38] sm:$0x1]
        %v5683 = vld [vmem:[%s5491 + $0x3c] sm:$0xf]
        %v5684 = vld [vmem:[%s5491 + $0x40] sm:$0xf]
        %v5685 = vld [vmem:[%s5491 + $0x44] sm:$0x1]
        %v5686 = vld [vmem:[%s5491 + $0x48] sm:$0xf]
        %v5687 = vld [vmem:[%s5491 + $0x4c] sm:$0xf]
        %v5688 = vld [vmem:[%s5491 + $0x50] sm:$0x1]
        %v5689 = vld [vmem:[%s5491 + $0x54] sm:$0xf]
        %v5690 = vld [vmem:[%s5491 + $0x58] sm:$0xf]
        %v5691 = vld [vmem:[%s5491 + $0x5c] sm:$0x1]
        %v5692 = vld [vmem:[%s5491 + $0x60] sm:$0xf]
        %v5693 = vld [vmem:[%s5491 + $0x64] sm:$0xf]
        %v5694 = vld [vmem:[%s5491 + $0x68] sm:$0x1]
        %v5695 = vld [vmem:[%s5491 + $0x6c] sm:$0xf]
        %v5696 = vld [vmem:[%s5491 + $0x70] sm:$0xf]
        %v5697 = vld [vmem:[%s5491 + $0x74] sm:$0x1]
        %v5698 = vld [vmem:[%s5491 + $0x78] sm:$0xf]
        %v5699 = vld [vmem:[%s5491 + $0x7c] sm:$0xf]
        %v5700 = vld [vmem:[%s5491 + $0x80] sm:$0x1]
        %v5701 = vld [vmem:[%s5491 + $0x84] sm:$0xf]
        %v5702 = vld [vmem:[%s5491 + $0x88] sm:$0xf]
        %v5703 = vld [vmem:[%s5491 + $0x8c] sm:$0x1]
        %v5704 = vld [vmem:[%s5491 + $0x90] sm:$0xf]
        %v5705 = vld [vmem:[%s5491 + $0x94] sm:$0xf]
        %v5706 = vld [vmem:[%s5491 + $0x98] sm:$0x1]
        %v5707 = vld [vmem:[%s5491 + $0x9c] sm:$0xf]
        %v5708 = vld [vmem:[%s5491 + $0xa0] sm:$0xf]
        %v5709 = vld [vmem:[%s5491 + $0xa4] sm:$0x1]
        %v5710 = vld [vmem:[%s5491 + $0xa8] sm:$0xf]
        %v5711 = vld [vmem:[%s5491 + $0xac] sm:$0xf]
        %v5712 = vld [vmem:[%s5491 + $0xb0] sm:$0x1]
        %v5713 = vld [vmem:[%s5491 + $0xb4] sm:$0xf]
        %v5714 = vld [vmem:[%s5491 + $0xb8] sm:$0xf]
        %v5715 = vld [vmem:[%s5491 + $0xbc] sm:$0x1]
        %v5717 = vshrl.u32 %v5668, 16
        %v5719 = vrot.slane %v5717, 4
        %v5720 = vshll.u32 %v5668, 16
        %v5722 = vrot.slane %v5720, 5
        %v5723 = vor.u32 %v5719, %v5722
        %v5724 = vrot.slane %v5723, 4
        %v5726 = vshll.u32 %v5669, 16
        %v5728 = vrot.slane %v5726, 5
        %v5729 = vsel %vm3660, %v5724, %v5728
        %v5730 = vshrl.u32 %v5669, 16
        %v5732 = vrot.slane %v5730, 4
        %v5733 = vor.u32 %v5732, %v5728
        %v5734 = vrot.slane %v5733, 4
        %v5736 = vshll.u32 %v5670, 16
        %v5738 = vrot.slane %v5736, 5
        %v5739 = vsel %vm3660, %v5734, %v5738
        %v5741 = vshrl.u32 %v5671, 16
        %v5743 = vrot.slane %v5741, 4
        %v5744 = vshll.u32 %v5671, 16
        %v5746 = vrot.slane %v5744, 5
        %v5747 = vor.u32 %v5743, %v5746
        %v5748 = vrot.slane %v5747, 4
        %v5750 = vshll.u32 %v5672, 16
        %v5752 = vrot.slane %v5750, 5
        %v5753 = vsel %vm3660, %v5748, %v5752
        %v5754 = vshrl.u32 %v5672, 16
        %v5756 = vrot.slane %v5754, 4
        %v5757 = vor.u32 %v5756, %v5752
        %v5758 = vrot.slane %v5757, 4
        %v5760 = vshll.u32 %v5673, 16
        %v5762 = vrot.slane %v5760, 5
        %v5763 = vsel %vm3660, %v5758, %v5762
        %v5765 = vshrl.u32 %v5674, 16
        %v5767 = vrot.slane %v5765, 4
        %v5768 = vshll.u32 %v5674, 16
        %v5770 = vrot.slane %v5768, 5
        %v5771 = vor.u32 %v5767, %v5770
        %v5772 = vrot.slane %v5771, 4
        %v5774 = vshll.u32 %v5675, 16
        %v5776 = vrot.slane %v5774, 5
        %v5777 = vsel %vm3660, %v5772, %v5776
        %v5778 = vshrl.u32 %v5675, 16
        %v5780 = vrot.slane %v5778, 4
        %v5781 = vor.u32 %v5780, %v5776
        %v5782 = vrot.slane %v5781, 4
        %v5784 = vshll.u32 %v5676, 16
        %v5786 = vrot.slane %v5784, 5
        %v5787 = vsel %vm3660, %v5782, %v5786
        %v5789 = vshrl.u32 %v5677, 16
        %v5791 = vrot.slane %v5789, 4
        %v5792 = vshll.u32 %v5677, 16
        %v5794 = vrot.slane %v5792, 5
        %v5795 = vor.u32 %v5791, %v5794
        %v5796 = vrot.slane %v5795, 4
        %v5798 = vshll.u32 %v5678, 16
        %v5800 = vrot.slane %v5798, 5
        %v5801 = vsel %vm3660, %v5796, %v5800
        %v5802 = vshrl.u32 %v5678, 16
        %v5804 = vrot.slane %v5802, 4
        %v5805 = vor.u32 %v5804, %v5800
        %v5806 = vrot.slane %v5805, 4
        %v5808 = vshll.u32 %v5679, 16
        %v5810 = vrot.slane %v5808, 5
        %v5811 = vsel %vm3660, %v5806, %v5810
        %v5813 = vshrl.u32 %v5680, 16
        %v5815 = vrot.slane %v5813, 4
        %v5816 = vshll.u32 %v5680, 16
        %v5818 = vrot.slane %v5816, 5
        %v5819 = vor.u32 %v5815, %v5818
        %v5820 = vrot.slane %v5819, 4
        %v5822 = vshll.u32 %v5681, 16
        %v5824 = vrot.slane %v5822, 5
        %v5825 = vsel %vm3660, %v5820, %v5824
        %v5826 = vshrl.u32 %v5681, 16
        %v5828 = vrot.slane %v5826, 4
        %v5829 = vor.u32 %v5828, %v5824
        %v5830 = vrot.slane %v5829, 4
        %v5832 = vshll.u32 %v5682, 16
        %v5834 = vrot.slane %v5832, 5
        %v5835 = vsel %vm3660, %v5830, %v5834
        %v5837 = vshrl.u32 %v5683, 16
        %v5839 = vrot.slane %v5837, 4
        %v5840 = vshll.u32 %v5683, 16
        %v5842 = vrot.slane %v5840, 5
        %v5843 = vor.u32 %v5839, %v5842
        %v5844 = vrot.slane %v5843, 4
        %v5846 = vshll.u32 %v5684, 16
        %v5848 = vrot.slane %v5846, 5
        %v5849 = vsel %vm3660, %v5844, %v5848
        %v5850 = vshrl.u32 %v5684, 16
        %v5852 = vrot.slane %v5850, 4
        %v5853 = vor.u32 %v5852, %v5848
        %v5854 = vrot.slane %v5853, 4
        %v5856 = vshll.u32 %v5685, 16
        %v5858 = vrot.slane %v5856, 5
        %v5859 = vsel %vm3660, %v5854, %v5858
        %v5861 = vshrl.u32 %v5686, 16
        %v5863 = vrot.slane %v5861, 4
        %v5864 = vshll.u32 %v5686, 16
        %v5866 = vrot.slane %v5864, 5
        %v5867 = vor.u32 %v5863, %v5866
        %v5868 = vrot.slane %v5867, 4
        %v5870 = vshll.u32 %v5687, 16
        %v5872 = vrot.slane %v5870, 5
        %v5873 = vsel %vm3660, %v5868, %v5872
        %v5874 = vshrl.u32 %v5687, 16
        %v5876 = vrot.slane %v5874, 4
        %v5877 = vor.u32 %v5876, %v5872
        %v5878 = vrot.slane %v5877, 4
        %v5880 = vshll.u32 %v5688, 16
        %v5882 = vrot.slane %v5880, 5
        %v5883 = vsel %vm3660, %v5878, %v5882
        %v5885 = vshrl.u32 %v5689, 16
        %v5887 = vrot.slane %v5885, 4
        %v5888 = vshll.u32 %v5689, 16
        %v5890 = vrot.slane %v5888, 5
        %v5891 = vor.u32 %v5887, %v5890
        %v5892 = vrot.slane %v5891, 4
        %v5894 = vshll.u32 %v5690, 16
        %v5896 = vrot.slane %v5894, 5
        %v5897 = vsel %vm3660, %v5892, %v5896
        %v5898 = vshrl.u32 %v5690, 16
        %v5900 = vrot.slane %v5898, 4
        %v5901 = vor.u32 %v5900, %v5896
        %v5902 = vrot.slane %v5901, 4
        %v5904 = vshll.u32 %v5691, 16
        %v5906 = vrot.slane %v5904, 5
        %v5907 = vsel %vm3660, %v5902, %v5906
        %v5909 = vshrl.u32 %v5692, 16
        %v5911 = vrot.slane %v5909, 4
        %v5912 = vshll.u32 %v5692, 16
        %v5914 = vrot.slane %v5912, 5
        %v5915 = vor.u32 %v5911, %v5914
        %v5916 = vrot.slane %v5915, 4
        %v5918 = vshll.u32 %v5693, 16
        %v5920 = vrot.slane %v5918, 5
        %v5921 = vsel %vm3660, %v5916, %v5920
        %v5922 = vshrl.u32 %v5693, 16
        %v5924 = vrot.slane %v5922, 4
        %v5925 = vor.u32 %v5924, %v5920
        %v5926 = vrot.slane %v5925, 4
        %v5928 = vshll.u32 %v5694, 16
        %v5930 = vrot.slane %v5928, 5
        %v5931 = vsel %vm3660, %v5926, %v5930
        %v5933 = vshrl.u32 %v5695, 16
        %v5935 = vrot.slane %v5933, 4
        %v5936 = vshll.u32 %v5695, 16
        %v5938 = vrot.slane %v5936, 5
        %v5939 = vor.u32 %v5935, %v5938
        %v5940 = vrot.slane %v5939, 4
        %v5942 = vshll.u32 %v5696, 16
        %v5944 = vrot.slane %v5942, 5
        %v5945 = vsel %vm3660, %v5940, %v5944
        %v5946 = vshrl.u32 %v5696, 16
        %v5948 = vrot.slane %v5946, 4
        %v5949 = vor.u32 %v5948, %v5944
        %v5950 = vrot.slane %v5949, 4
        %v5952 = vshll.u32 %v5697, 16
        %v5954 = vrot.slane %v5952, 5
        %v5955 = vsel %vm3660, %v5950, %v5954
        %v5957 = vshrl.u32 %v5698, 16
        %v5959 = vrot.slane %v5957, 4
        %v5960 = vshll.u32 %v5698, 16
        %v5962 = vrot.slane %v5960, 5
        %v5963 = vor.u32 %v5959, %v5962
        %v5964 = vrot.slane %v5963, 4
        %v5966 = vshll.u32 %v5699, 16
        %v5968 = vrot.slane %v5966, 5
        %v5969 = vsel %vm3660, %v5964, %v5968
        %v5970 = vshrl.u32 %v5699, 16
        %v5972 = vrot.slane %v5970, 4
        %v5973 = vor.u32 %v5972, %v5968
        %v5974 = vrot.slane %v5973, 4
        %v5976 = vshll.u32 %v5700, 16
        %v5978 = vrot.slane %v5976, 5
        %v5979 = vsel %vm3660, %v5974, %v5978
        %v5981 = vshrl.u32 %v5701, 16
        %v5983 = vrot.slane %v5981, 4
        %v5984 = vshll.u32 %v5701, 16
        %v5986 = vrot.slane %v5984, 5
        %v5987 = vor.u32 %v5983, %v5986
        %v5988 = vrot.slane %v5987, 4
        %v5990 = vshll.u32 %v5702, 16
        %v5992 = vrot.slane %v5990, 5
        %v5993 = vsel %vm3660, %v5988, %v5992
        %v5994 = vshrl.u32 %v5702, 16
        %v5996 = vrot.slane %v5994, 4
        %v5997 = vor.u32 %v5996, %v5992
        %v5998 = vrot.slane %v5997, 4
        %v6000 = vshll.u32 %v5703, 16
        %v6002 = vrot.slane %v6000, 5
        %v6003 = vsel %vm3660, %v5998, %v6002
        %v6005 = vshrl.u32 %v5704, 16
        %v6007 = vrot.slane %v6005, 4
        %v6008 = vshll.u32 %v5704, 16
        %v6010 = vrot.slane %v6008, 5
        %v6011 = vor.u32 %v6007, %v6010
        %v6012 = vrot.slane %v6011, 4
        %v6014 = vshll.u32 %v5705, 16
        %v6016 = vrot.slane %v6014, 5
        %v6017 = vsel %vm3660, %v6012, %v6016
        %v6018 = vshrl.u32 %v5705, 16
        %v6020 = vrot.slane %v6018, 4
        %v6021 = vor.u32 %v6020, %v6016
        %v6022 = vrot.slane %v6021, 4
        %v6024 = vshll.u32 %v5706, 16
        %v6026 = vrot.slane %v6024, 5
        %v6027 = vsel %vm3660, %v6022, %v6026
        %v6029 = vshrl.u32 %v5707, 16
        %v6031 = vrot.slane %v6029, 4
        %v6032 = vshll.u32 %v5707, 16
        %v6034 = vrot.slane %v6032, 5
        %v6035 = vor.u32 %v6031, %v6034
        %v6036 = vrot.slane %v6035, 4
        %v6038 = vshll.u32 %v5708, 16
        %v6040 = vrot.slane %v6038, 5
        %v6041 = vsel %vm3660, %v6036, %v6040
        %v6042 = vshrl.u32 %v5708, 16
        %v6044 = vrot.slane %v6042, 4
        %v6045 = vor.u32 %v6044, %v6040
        %v6046 = vrot.slane %v6045, 4
        %v6048 = vshll.u32 %v5709, 16
        %v6050 = vrot.slane %v6048, 5
        %v6051 = vsel %vm3660, %v6046, %v6050
        %v6053 = vshrl.u32 %v5710, 16
        %v6055 = vrot.slane %v6053, 4
        %v6056 = vshll.u32 %v5710, 16
        %v6058 = vrot.slane %v6056, 5
        %v6059 = vor.u32 %v6055, %v6058
        %v6060 = vrot.slane %v6059, 4
        %v6062 = vshll.u32 %v5711, 16
        %v6064 = vrot.slane %v6062, 5
        %v6065 = vsel %vm3660, %v6060, %v6064
        %v6066 = vshrl.u32 %v5711, 16
        %v6068 = vrot.slane %v6066, 4
        %v6069 = vor.u32 %v6068, %v6064
        %v6070 = vrot.slane %v6069, 4
        %v6072 = vshll.u32 %v5712, 16
        %v6074 = vrot.slane %v6072, 5
        %v6075 = vsel %vm3660, %v6070, %v6074
        %v6077 = vshrl.u32 %v5713, 16
        %v6079 = vrot.slane %v6077, 4
        %v6080 = vshll.u32 %v5713, 16
        %v6082 = vrot.slane %v6080, 5
        %v6083 = vor.u32 %v6079, %v6082
        %v6084 = vrot.slane %v6083, 4
        %v6086 = vshll.u32 %v5714, 16
        %v6088 = vrot.slane %v6086, 5
        %v6089 = vsel %vm3660, %v6084, %v6088
        %v6090 = vshrl.u32 %v5714, 16
        %v6092 = vrot.slane %v6090, 4
        %v6093 = vor.u32 %v6092, %v6088
        %v6094 = vrot.slane %v6093, 4
        %v6096 = vshll.u32 %v5715, 16
        %v6098 = vrot.slane %v6096, 5
        %v6099 = vsel %vm3660, %v6094, %v6098
        %v6100 = vunpack.c.l.b16 %v5729
        %v6101 = vunpack.c.l.b16 %v5739
        %v6102 = vunpack.c.l.b16 %v5753
        %v6103 = vunpack.c.l.b16 %v5763
        %v6104 = vunpack.c.l.b16 %v5777
        %v6105 = vunpack.c.l.b16 %v5787
        %v6106 = vunpack.c.l.b16 %v5801
        %v6107 = vunpack.c.l.b16 %v5811
        %v6108 = vunpack.c.l.b16 %v5825
        %v6109 = vunpack.c.l.b16 %v5835
        %v6110 = vunpack.c.l.b16 %v5849
        %v6111 = vunpack.c.l.b16 %v5859
        %v6112 = vunpack.c.l.b16 %v5873
        %v6113 = vunpack.c.l.b16 %v5883
        %v6114 = vunpack.c.l.b16 %v5897
        %v6115 = vunpack.c.l.b16 %v5907
        %v6116 = vunpack.c.l.b16 %v5921
        %v6117 = vunpack.c.l.b16 %v5931
        %v6118 = vunpack.c.l.b16 %v5945
        %v6119 = vunpack.c.l.b16 %v5955
        %v6120 = vunpack.c.l.b16 %v5969
        %v6121 = vunpack.c.l.b16 %v5979
        %v6122 = vunpack.c.l.b16 %v5993
        %v6123 = vunpack.c.l.b16 %v6003
        %v6124 = vunpack.c.l.b16 %v6017
        %v6125 = vunpack.c.l.b16 %v6027
        %v6126 = vunpack.c.l.b16 %v6041
        %v6127 = vunpack.c.l.b16 %v6051
        %v6128 = vunpack.c.l.b16 %v6065
        %v6129 = vunpack.c.l.b16 %v6075
        %v6130 = vunpack.c.l.b16 %v6089
        %v6131 = vunpack.c.l.b16 %v6099
        %v6132 = vpack.c.b16 %v6101, %v6100
        %v6133 = vpack.c.b16 %v6103, %v6102
        %v6134 = vpack.c.b16 %v6105, %v6104
        %v6135 = vpack.c.b16 %v6107, %v6106
        %v6136 = vpack.c.b16 %v6109, %v6108
        %v6137 = vpack.c.b16 %v6111, %v6110
        %v6138 = vpack.c.b16 %v6113, %v6112
        %v6139 = vpack.c.b16 %v6115, %v6114
        %v6140 = vpack.c.b16 %v6117, %v6116
        %v6141 = vpack.c.b16 %v6119, %v6118
        %v6142 = vpack.c.b16 %v6121, %v6120
        %v6143 = vpack.c.b16 %v6123, %v6122
        %v6144 = vpack.c.b16 %v6125, %v6124
        %v6145 = vpack.c.b16 %v6127, %v6126
        %v6146 = vpack.c.b16 %v6129, %v6128
        %v6147 = vpack.c.b16 %v6131, %v6130
        %6148 = vrot.lane.b32.xlu0 %v6132, 96
        %v6149 = vpop.permute.xlu0 %6148
        %6150 = vrot.lane.b32.xlu0 %v6133, 96
        %v6151 = vpop.permute.xlu0 %6150
        %6152 = vrot.lane.b32.xlu0 %v6134, 96
        %v6153 = vpop.permute.xlu0 %6152
        %6154 = vrot.lane.b32.xlu0 %v6135, 96
        %v6155 = vpop.permute.xlu0 %6154
        %6156 = vrot.lane.b32.xlu0 %v6136, 96
        %v6157 = vpop.permute.xlu0 %6156
        %6158 = vrot.lane.b32.xlu0 %v6137, 96
        %v6159 = vpop.permute.xlu0 %6158
        %6160 = vrot.lane.b32.xlu0 %v6138, 96
        %v6161 = vpop.permute.xlu0 %6160
        %6162 = vrot.lane.b32.xlu0 %v6139, 96
        %v6163 = vpop.permute.xlu0 %6162
        %6164 = vrot.lane.b32.xlu0 %v6140, 96
        %v6165 = vpop.permute.xlu0 %6164
        %6166 = vrot.lane.b32.xlu0 %v6141, 96
        %v6167 = vpop.permute.xlu0 %6166
        %6168 = vrot.lane.b32.xlu0 %v6142, 96
        %v6169 = vpop.permute.xlu0 %6168
        %6170 = vrot.lane.b32.xlu0 %v6143, 96
        %v6171 = vpop.permute.xlu0 %6170
        %6172 = vrot.lane.b32.xlu0 %v6144, 96
        %v6173 = vpop.permute.xlu0 %6172
        %6174 = vrot.lane.b32.xlu0 %v6145, 96
        %v6175 = vpop.permute.xlu0 %6174
        %6176 = vrot.lane.b32.xlu0 %v6146, 96
        %v6177 = vpop.permute.xlu0 %6176
        %6178 = vrot.lane.b32.xlu0 %v6147, 96
        %v6179 = vpop.permute.xlu0 %6178
        %6196 = vst.msk [vmem:[#allocation4 + $0x8] sm:$0xff] %vm4642, %v6149
        %6197 = vst.msk [vmem:[#allocation4 + $0x20] sm:$0xff] %vm4642, %v6151
        %6198 = vst.msk [vmem:[#allocation4 + $0x38] sm:$0xff] %vm4642, %v6153
        %6199 = vst.msk [vmem:[#allocation4 + $0x50] sm:$0xff] %vm4642, %v6155
        %6200 = vst.msk [vmem:[#allocation4 + $0x68] sm:$0xff] %vm4642, %v6157
        %6201 = vst.msk [vmem:[#allocation4 + $0x80] sm:$0xff] %vm4642, %v6159
        %6202 = vst.msk [vmem:[#allocation4 + $0x98] sm:$0xff] %vm4642, %v6161
        %6203 = vst.msk [vmem:[#allocation4 + $0xb0] sm:$0xff] %vm4642, %v6163
        %6204 = vst.msk [vmem:[#allocation4 + $0xc8] sm:$0xff] %vm4642, %v6165
        %6205 = vst.msk [vmem:[#allocation4 + $0xe0] sm:$0xff] %vm4642, %v6167
        %6206 = vst.msk [vmem:[#allocation4 + $0xf8] sm:$0xff] %vm4642, %v6169
        %6207 = vst.msk [vmem:[#allocation4 + $0x110] sm:$0xff] %vm4642, %v6171
        %6208 = vst.msk [vmem:[#allocation4 + $0x128] sm:$0xff] %vm4642, %v6173
        %6209 = vst.msk [vmem:[#allocation4 + $0x140] sm:$0xff] %vm4642, %v6175
        %6210 = vst.msk [vmem:[#allocation4 + $0x158] sm:$0xff] %vm4642, %v6177
        %6211 = vst.msk [vmem:[#allocation4 + $0x170] sm:$0xff] %vm4642, %v6179
        %v6212 = vld [vmem:[%s5491] sm:$0xe]
        %v6213 = vld [vmem:[%s5491 + $0x4] sm:$0xf]
        %v6214 = vld [vmem:[%s5491 + $0x8] sm:$0x1]
        %v6215 = vld [vmem:[%s5491 + $0xc] sm:$0xe]
        %v6216 = vld [vmem:[%s5491 + $0x10] sm:$0xf]
        %v6217 = vld [vmem:[%s5491 + $0x14] sm:$0x1]
        %v6218 = vld [vmem:[%s5491 + $0x18] sm:$0xe]
        %v6219 = vld [vmem:[%s5491 + $0x1c] sm:$0xf]
        %v6220 = vld [vmem:[%s5491 + $0x20] sm:$0x1]
        %v6221 = vld [vmem:[%s5491 + $0x24] sm:$0xe]
        %v6222 = vld [vmem:[%s5491 + $0x28] sm:$0xf]
        %v6223 = vld [vmem:[%s5491 + $0x2c] sm:$0x1]
        %v6224 = vld [vmem:[%s5491 + $0x30] sm:$0xe]
        %v6225 = vld [vmem:[%s5491 + $0x34] sm:$0xf]
        %v6226 = vld [vmem:[%s5491 + $0x38] sm:$0x1]
        %v6227 = vld [vmem:[%s5491 + $0x3c] sm:$0xe]
        %v6228 = vld [vmem:[%s5491 + $0x40] sm:$0xf]
        %v6229 = vld [vmem:[%s5491 + $0x44] sm:$0x1]
        %v6230 = vld [vmem:[%s5491 + $0x48] sm:$0xe]
        %v6231 = vld [vmem:[%s5491 + $0x4c] sm:$0xf]
        %v6232 = vld [vmem:[%s5491 + $0x50] sm:$0x1]
        %v6233 = vld [vmem:[%s5491 + $0x54] sm:$0xe]
        %v6234 = vld [vmem:[%s5491 + $0x58] sm:$0xf]
        %v6235 = vld [vmem:[%s5491 + $0x5c] sm:$0x1]
        %v6236 = vld [vmem:[%s5491 + $0x60] sm:$0xe]
        %v6237 = vld [vmem:[%s5491 + $0x64] sm:$0xf]
        %v6238 = vld [vmem:[%s5491 + $0x68] sm:$0x1]
        %v6239 = vld [vmem:[%s5491 + $0x6c] sm:$0xe]
        %v6240 = vld [vmem:[%s5491 + $0x70] sm:$0xf]
        %v6241 = vld [vmem:[%s5491 + $0x74] sm:$0x1]
        %v6242 = vld [vmem:[%s5491 + $0x78] sm:$0xe]
        %v6243 = vld [vmem:[%s5491 + $0x7c] sm:$0xf]
        %v6244 = vld [vmem:[%s5491 + $0x80] sm:$0x1]
        %v6245 = vld [vmem:[%s5491 + $0x84] sm:$0xe]
        %v6246 = vld [vmem:[%s5491 + $0x88] sm:$0xf]
        %v6247 = vld [vmem:[%s5491 + $0x8c] sm:$0x1]
        %v6248 = vld [vmem:[%s5491 + $0x90] sm:$0xe]
        %v6249 = vld [vmem:[%s5491 + $0x94] sm:$0xf]
        %v6250 = vld [vmem:[%s5491 + $0x98] sm:$0x1]
        %v6251 = vld [vmem:[%s5491 + $0x9c] sm:$0xe]
        %v6252 = vld [vmem:[%s5491 + $0xa0] sm:$0xf]
        %v6253 = vld [vmem:[%s5491 + $0xa4] sm:$0x1]
        %v6254 = vld [vmem:[%s5491 + $0xa8] sm:$0xe]
        %v6255 = vld [vmem:[%s5491 + $0xac] sm:$0xf]
        %v6256 = vld [vmem:[%s5491 + $0xb0] sm:$0x1]
        %v6257 = vld [vmem:[%s5491 + $0xb4] sm:$0xe]
        %v6258 = vld [vmem:[%s5491 + $0xb8] sm:$0xf]
        %v6259 = vld [vmem:[%s5491 + $0xbc] sm:$0x1]
        %v6308 = vrot.slane %v6212, 5
        %v6309 = vrot.slane %v6308, 4
        %v6310 = vrot.slane %v6213, 5
        %v6311 = vsel %vm4256, %v6309, %v6310
        %v6312 = vrot.slane %v6310, 4
        %v6313 = vrot.slane %v6214, 5
        %v6314 = vsel %vm4256, %v6312, %v6313
        %v6315 = vrot.slane %v6215, 5
        %v6316 = vrot.slane %v6315, 4
        %v6317 = vrot.slane %v6216, 5
        %v6318 = vsel %vm4256, %v6316, %v6317
        %v6319 = vrot.slane %v6317, 4
        %v6320 = vrot.slane %v6217, 5
        %v6321 = vsel %vm4256, %v6319, %v6320
        %v6322 = vrot.slane %v6218, 5
        %v6323 = vrot.slane %v6322, 4
        %v6324 = vrot.slane %v6219, 5
        %v6325 = vsel %vm4256, %v6323, %v6324
        %v6326 = vrot.slane %v6324, 4
        %v6327 = vrot.slane %v6220, 5
        %v6328 = vsel %vm4256, %v6326, %v6327
        %v6329 = vrot.slane %v6221, 5
        %v6330 = vrot.slane %v6329, 4
        %v6331 = vrot.slane %v6222, 5
        %v6332 = vsel %vm4256, %v6330, %v6331
        %v6333 = vrot.slane %v6331, 4
        %v6334 = vrot.slane %v6223, 5
        %v6335 = vsel %vm4256, %v6333, %v6334
        %v6336 = vrot.slane %v6224, 5
        %v6337 = vrot.slane %v6336, 4
        %v6338 = vrot.slane %v6225, 5
        %v6339 = vsel %vm4256, %v6337, %v6338
        %v6340 = vrot.slane %v6338, 4
        %v6341 = vrot.slane %v6226, 5
        %v6342 = vsel %vm4256, %v6340, %v6341
        %v6343 = vrot.slane %v6227, 5
        %v6344 = vrot.slane %v6343, 4
        %v6345 = vrot.slane %v6228, 5
        %v6346 = vsel %vm4256, %v6344, %v6345
        %v6347 = vrot.slane %v6345, 4
        %v6348 = vrot.slane %v6229, 5
        %v6349 = vsel %vm4256, %v6347, %v6348
        %v6350 = vrot.slane %v6230, 5
        %v6351 = vrot.slane %v6350, 4
        %v6352 = vrot.slane %v6231, 5
        %v6353 = vsel %vm4256, %v6351, %v6352
        %v6354 = vrot.slane %v6352, 4
        %v6355 = vrot.slane %v6232, 5
        %v6356 = vsel %vm4256, %v6354, %v6355
        %v6357 = vrot.slane %v6233, 5
        %v6358 = vrot.slane %v6357, 4
        %v6359 = vrot.slane %v6234, 5
        %v6360 = vsel %vm4256, %v6358, %v6359
        %v6361 = vrot.slane %v6359, 4
        %v6362 = vrot.slane %v6235, 5
        %v6363 = vsel %vm4256, %v6361, %v6362
        %v6364 = vrot.slane %v6236, 5
        %v6365 = vrot.slane %v6364, 4
        %v6366 = vrot.slane %v6237, 5
        %v6367 = vsel %vm4256, %v6365, %v6366
        %v6368 = vrot.slane %v6366, 4
        %v6369 = vrot.slane %v6238, 5
        %v6370 = vsel %vm4256, %v6368, %v6369
        %v6371 = vrot.slane %v6239, 5
        %v6372 = vrot.slane %v6371, 4
        %v6373 = vrot.slane %v6240, 5
        %v6374 = vsel %vm4256, %v6372, %v6373
        %v6375 = vrot.slane %v6373, 4
        %v6376 = vrot.slane %v6241, 5
        %v6377 = vsel %vm4256, %v6375, %v6376
        %v6378 = vrot.slane %v6242, 5
        %v6379 = vrot.slane %v6378, 4
        %v6380 = vrot.slane %v6243, 5
        %v6381 = vsel %vm4256, %v6379, %v6380
        %v6382 = vrot.slane %v6380, 4
        %v6383 = vrot.slane %v6244, 5
        %v6384 = vsel %vm4256, %v6382, %v6383
        %v6385 = vrot.slane %v6245, 5
        %v6386 = vrot.slane %v6385, 4
        %v6387 = vrot.slane %v6246, 5
        %v6388 = vsel %vm4256, %v6386, %v6387
        %v6389 = vrot.slane %v6387, 4
        %v6390 = vrot.slane %v6247, 5
        %v6391 = vsel %vm4256, %v6389, %v6390
        %v6392 = vrot.slane %v6248, 5
        %v6393 = vrot.slane %v6392, 4
        %v6394 = vrot.slane %v6249, 5
        %v6395 = vsel %vm4256, %v6393, %v6394
        %v6396 = vrot.slane %v6394, 4
        %v6397 = vrot.slane %v6250, 5
        %v6398 = vsel %vm4256, %v6396, %v6397
        %v6399 = vrot.slane %v6251, 5
        %v6400 = vrot.slane %v6399, 4
        %v6401 = vrot.slane %v6252, 5
        %v6402 = vsel %vm4256, %v6400, %v6401
        %v6403 = vrot.slane %v6401, 4
        %v6404 = vrot.slane %v6253, 5
        %v6405 = vsel %vm4256, %v6403, %v6404
        %v6406 = vrot.slane %v6254, 5
        %v6407 = vrot.slane %v6406, 4
        %v6408 = vrot.slane %v6255, 5
        %v6409 = vsel %vm4256, %v6407, %v6408
        %v6410 = vrot.slane %v6408, 4
        %v6411 = vrot.slane %v6256, 5
        %v6412 = vsel %vm4256, %v6410, %v6411
        %v6413 = vrot.slane %v6257, 5
        %v6414 = vrot.slane %v6413, 4
        %v6415 = vrot.slane %v6258, 5
        %v6416 = vsel %vm4256, %v6414, %v6415
        %v6417 = vrot.slane %v6415, 4
        %v6418 = vrot.slane %v6259, 5
        %v6419 = vsel %vm4256, %v6417, %v6418
        %v6420 = vunpack.c.l.b16 %v6311
        %v6421 = vunpack.c.l.b16 %v6314
        %v6422 = vunpack.c.l.b16 %v6318
        %v6423 = vunpack.c.l.b16 %v6321
        %v6424 = vunpack.c.l.b16 %v6325
        %v6425 = vunpack.c.l.b16 %v6328
        %v6426 = vunpack.c.l.b16 %v6332
        %v6427 = vunpack.c.l.b16 %v6335
        %v6428 = vunpack.c.l.b16 %v6339
        %v6429 = vunpack.c.l.b16 %v6342
        %v6430 = vunpack.c.l.b16 %v6346
        %v6431 = vunpack.c.l.b16 %v6349
        %v6432 = vunpack.c.l.b16 %v6353
        %v6433 = vunpack.c.l.b16 %v6356
        %v6434 = vunpack.c.l.b16 %v6360
        %v6435 = vunpack.c.l.b16 %v6363
        %v6436 = vunpack.c.l.b16 %v6367
        %v6437 = vunpack.c.l.b16 %v6370
        %v6438 = vunpack.c.l.b16 %v6374
        %v6439 = vunpack.c.l.b16 %v6377
        %v6440 = vunpack.c.l.b16 %v6381
        %v6441 = vunpack.c.l.b16 %v6384
        %v6442 = vunpack.c.l.b16 %v6388
        %v6443 = vunpack.c.l.b16 %v6391
        %v6444 = vunpack.c.l.b16 %v6395
        %v6445 = vunpack.c.l.b16 %v6398
        %v6446 = vunpack.c.l.b16 %v6402
        %v6447 = vunpack.c.l.b16 %v6405
        %v6448 = vunpack.c.l.b16 %v6409
        %v6449 = vunpack.c.l.b16 %v6412
        %v6450 = vunpack.c.l.b16 %v6416
        %v6451 = vunpack.c.l.b16 %v6419
        %v6452 = vpack.c.b16 %v6421, %v6420
        %v6453 = vpack.c.b16 %v6423, %v6422
        %v6454 = vpack.c.b16 %v6425, %v6424
        %v6455 = vpack.c.b16 %v6427, %v6426
        %v6456 = vpack.c.b16 %v6429, %v6428
        %v6457 = vpack.c.b16 %v6431, %v6430
        %v6458 = vpack.c.b16 %v6433, %v6432
        %v6459 = vpack.c.b16 %v6435, %v6434
        %v6460 = vpack.c.b16 %v6437, %v6436
        %v6461 = vpack.c.b16 %v6439, %v6438
        %v6462 = vpack.c.b16 %v6441, %v6440
        %v6463 = vpack.c.b16 %v6443, %v6442
        %v6464 = vpack.c.b16 %v6445, %v6444
        %v6465 = vpack.c.b16 %v6447, %v6446
        %v6466 = vpack.c.b16 %v6449, %v6448
        %v6467 = vpack.c.b16 %v6451, %v6450
        %6484 = vst.msk [vmem:[#allocation4 + $0x10] sm:$0xff] %vm3593, %v6452
        %6485 = vst.msk [vmem:[#allocation4 + $0x28] sm:$0xff] %vm3593, %v6453
        %6486 = vst.msk [vmem:[#allocation4 + $0x40] sm:$0xff] %vm3593, %v6454
        %6487 = vst.msk [vmem:[#allocation4 + $0x58] sm:$0xff] %vm3593, %v6455
        %6488 = vst.msk [vmem:[#allocation4 + $0x70] sm:$0xff] %vm3593, %v6456
        %6489 = vst.msk [vmem:[#allocation4 + $0x88] sm:$0xff] %vm3593, %v6457
        %6490 = vst.msk [vmem:[#allocation4 + $0xa0] sm:$0xff] %vm3593, %v6458
        %6491 = vst.msk [vmem:[#allocation4 + $0xb8] sm:$0xff] %vm3593, %v6459
        %6492 = vst.msk [vmem:[#allocation4 + $0xd0] sm:$0xff] %vm3593, %v6460
        %6493 = vst.msk [vmem:[#allocation4 + $0xe8] sm:$0xff] %vm3593, %v6461
        %6494 = vst.msk [vmem:[#allocation4 + $0x100] sm:$0xff] %vm3593, %v6462
        %6495 = vst.msk [vmem:[#allocation4 + $0x118] sm:$0xff] %vm3593, %v6463
        %6496 = vst.msk [vmem:[#allocation4 + $0x130] sm:$0xff] %vm3593, %v6464
        %6497 = vst.msk [vmem:[#allocation4 + $0x148] sm:$0xff] %vm3593, %v6465
        %6498 = vst.msk [vmem:[#allocation4 + $0x160] sm:$0xff] %vm3593, %v6466
        %6499 = vst.msk [vmem:[#allocation4 + $0x178] sm:$0xff] %vm3593, %v6467
        %v6500 = vld [vmem:[#allocation4] sm:$0xff]
        %v6501 = vld [vmem:[#allocation4 + $0x8] sm:$0xff]
        %v6502 = vld [vmem:[#allocation4 + $0x10] sm:$0xff]
        %v6503 = vld [vmem:[#allocation4 + $0x18] sm:$0xff]
        %v6504 = vld [vmem:[#allocation4 + $0x20] sm:$0xff]
        %v6505 = vld [vmem:[#allocation4 + $0x28] sm:$0xff]
        %v6506 = vld [vmem:[#allocation4 + $0x30] sm:$0xff]
        %v6507 = vld [vmem:[#allocation4 + $0x38] sm:$0xff]
        %v6508 = vld [vmem:[#allocation4 + $0x40] sm:$0xff]
        %v6509 = vld [vmem:[#allocation4 + $0x48] sm:$0xff]
        %v6510 = vld [vmem:[#allocation4 + $0x50] sm:$0xff]
        %v6511 = vld [vmem:[#allocation4 + $0x58] sm:$0xff]
        %v6512 = vld [vmem:[#allocation4 + $0x60] sm:$0xff]
        %v6513 = vld [vmem:[#allocation4 + $0x68] sm:$0xff]
        %v6514 = vld [vmem:[#allocation4 + $0x70] sm:$0xff]
        %v6515 = vld [vmem:[#allocation4 + $0x78] sm:$0xff]
        %v6516 = vld [vmem:[#allocation4 + $0x80] sm:$0xff]
        %v6517 = vld [vmem:[#allocation4 + $0x88] sm:$0xff]
        %v6518 = vld [vmem:[#allocation4 + $0x90] sm:$0xff]
        %v6519 = vld [vmem:[#allocation4 + $0x98] sm:$0xff]
        %v6520 = vld [vmem:[#allocation4 + $0xa0] sm:$0xff]
        %v6521 = vld [vmem:[#allocation4 + $0xa8] sm:$0xff]
        %v6522 = vld [vmem:[#allocation4 + $0xb0] sm:$0xff]
        %v6523 = vld [vmem:[#allocation4 + $0xb8] sm:$0xff]
        %v6524 = vld [vmem:[#allocation4 + $0xc0] sm:$0xff]
        %v6525 = vld [vmem:[#allocation4 + $0xc8] sm:$0xff]
        %v6526 = vld [vmem:[#allocation4 + $0xd0] sm:$0xff]
        %v6527 = vld [vmem:[#allocation4 + $0xd8] sm:$0xff]
        %v6528 = vld [vmem:[#allocation4 + $0xe0] sm:$0xff]
        %v6529 = vld [vmem:[#allocation4 + $0xe8] sm:$0xff]
        %v6530 = vld [vmem:[#allocation4 + $0xf0] sm:$0xff]
        %v6531 = vld [vmem:[#allocation4 + $0xf8] sm:$0xff]
        %v6532 = vld [vmem:[#allocation4 + $0x100] sm:$0xff]
        %v6533 = vld [vmem:[#allocation4 + $0x108] sm:$0xff]
        %v6534 = vld [vmem:[#allocation4 + $0x110] sm:$0xff]
        %v6535 = vld [vmem:[#allocation4 + $0x118] sm:$0xff]
        %v6536 = vld [vmem:[#allocation4 + $0x120] sm:$0xff]
        %v6537 = vld [vmem:[#allocation4 + $0x128] sm:$0xff]
        %v6538 = vld [vmem:[#allocation4 + $0x130] sm:$0xff]
        %v6539 = vld [vmem:[#allocation4 + $0x138] sm:$0xff]
        %v6540 = vld [vmem:[#allocation4 + $0x140] sm:$0xff]
        %v6541 = vld [vmem:[#allocation4 + $0x148] sm:$0xff]
        %v6542 = vld [vmem:[#allocation4 + $0x150] sm:$0xff]
        %v6543 = vld [vmem:[#allocation4 + $0x158] sm:$0xff]
        %v6544 = vld [vmem:[#allocation4 + $0x160] sm:$0xff]
        %v6545 = vld [vmem:[#allocation4 + $0x168] sm:$0xff]
        %v6546 = vld [vmem:[#allocation4 + $0x170] sm:$0xff]
        %v6547 = vld [vmem:[#allocation4 + $0x178] sm:$0xff]
        %v6548 = vld [vmem:[%s3] sm:$0xf]
        %v6549 = vld [vmem:[%s3 + $0x4] sm:$0xf]
        %v6550 = vld [vmem:[%s3 + $0x8] sm:$0xf]
        %v6551 = vld [vmem:[%s3 + $0xc] sm:$0xf]
        %v6552 = vld [vmem:[%s3 + $0x10] sm:$0xf]
        %v6553 = vld [vmem:[%s3 + $0x14] sm:$0xf]
        %v6554 = vld [vmem:[%s3 + $0x18] sm:$0xf]
        %v6555 = vld [vmem:[%s3 + $0x1c] sm:$0xf]
        %v6556 = vld [vmem:[%s3 + $0x20] sm:$0xf]
        %v6557 = vld [vmem:[%s3 + $0x24] sm:$0xf]
        %v6558 = vld [vmem:[%s3 + $0x28] sm:$0xf]
        %v6559 = vld [vmem:[%s3 + $0x2c] sm:$0xf]
        %v6560 = vld [vmem:[%s3 + $0x30] sm:$0xf]
        %v6561 = vld [vmem:[%s3 + $0x34] sm:$0xf]
        %v6562 = vld [vmem:[%s3 + $0x38] sm:$0xf]
        %v6563 = vld [vmem:[%s3 + $0x3c] sm:$0xf]
        %v6564 = vld [vmem:[%s3 + $0x40] sm:$0xf]
        %v6565 = vld [vmem:[%s3 + $0x44] sm:$0xf]
        %v6566 = vld [vmem:[%s3 + $0x48] sm:$0xf]
        %v6567 = vld [vmem:[%s3 + $0x4c] sm:$0xf]
        %v6568 = vld [vmem:[%s3 + $0x50] sm:$0xf]
        %v6569 = vld [vmem:[%s3 + $0x54] sm:$0xf]
        %v6570 = vld [vmem:[%s3 + $0x58] sm:$0xf]
        %v6571 = vld [vmem:[%s3 + $0x5c] sm:$0xf]
        %v6572 = vld [vmem:[%s3 + $0x60] sm:$0xf]
        %v6573 = vld [vmem:[%s3 + $0x64] sm:$0xf]
        %v6574 = vld [vmem:[%s3 + $0x68] sm:$0xf]
        %v6575 = vld [vmem:[%s3 + $0x6c] sm:$0xf]
        %v6576 = vld [vmem:[%s3 + $0x70] sm:$0xf]
        %v6577 = vld [vmem:[%s3 + $0x74] sm:$0xf]
        %v6578 = vld [vmem:[%s3 + $0x78] sm:$0xf]
        %v6579 = vld [vmem:[%s3 + $0x7c] sm:$0xf]
        %v6580 = vld [vmem:[%s3 + $0x80] sm:$0xf]
        %v6581 = vld [vmem:[%s3 + $0x84] sm:$0xf]
        %v6582 = vld [vmem:[%s3 + $0x88] sm:$0xf]
        %v6583 = vld [vmem:[%s3 + $0x8c] sm:$0xf]
        %v6584 = vld [vmem:[%s4] sm:$0x1]
        %v6586 = vlaneseq
        %v6587 = vshrl.u32 %v6586, 7
        %v6588 = vsub.s32 0, %v6587
        %v6589 = vrot.slane %v6584, %v6588
        %v6627 = vunpack.c.l.b16 %v6548
        %v6628 = vunpack.c.l.b16 %v6549
        %v6629 = vunpack.c.l.b16 %v6550
        %v6630 = vunpack.c.l.b16 %v6551
        %v6631 = vunpack.c.l.b16 %v6552
        %v6632 = vunpack.c.l.b16 %v6553
        %v6633 = vunpack.c.l.b16 %v6554
        %v6634 = vunpack.c.l.b16 %v6555
        %v6635 = vunpack.c.l.b16 %v6556
        %v6636 = vunpack.c.l.b16 %v6557
        %v6637 = vunpack.c.l.b16 %v6558
        %v6638 = vunpack.c.l.b16 %v6559
        %v6639 = vunpack.c.l.b16 %v6560
        %v6640 = vunpack.c.l.b16 %v6561
        %v6641 = vunpack.c.l.b16 %v6562
        %v6642 = vunpack.c.l.b16 %v6563
        %v6643 = vunpack.c.l.b16 %v6564
        %v6644 = vunpack.c.l.b16 %v6565
        %v6645 = vunpack.c.l.b16 %v6566
        %v6646 = vunpack.c.l.b16 %v6567
        %v6647 = vunpack.c.l.b16 %v6568
        %v6648 = vunpack.c.l.b16 %v6569
        %v6649 = vunpack.c.l.b16 %v6570
        %v6650 = vunpack.c.l.b16 %v6571
        %v6651 = vunpack.c.l.b16 %v6572
        %v6652 = vunpack.c.l.b16 %v6573
        %v6653 = vunpack.c.l.b16 %v6574
        %v6654 = vunpack.c.l.b16 %v6575
        %v6655 = vunpack.c.l.b16 %v6576
        %v6656 = vunpack.c.l.b16 %v6577
        %v6657 = vunpack.c.l.b16 %v6578
        %v6658 = vunpack.c.l.b16 %v6579
        %v6659 = vunpack.c.l.b16 %v6580
        %v6660 = vunpack.c.l.b16 %v6581
        %v6661 = vunpack.c.l.b16 %v6582
        %v6662 = vunpack.c.l.b16 %v6583
        %v6663 = vpack.c.b16 %v6628, %v6627
        %v6664 = vpack.c.b16 %v6630, %v6629
        %v6665 = vpack.c.b16 %v6632, %v6631
        %v6666 = vpack.c.b16 %v6634, %v6633
        %v6667 = vpack.c.b16 %v6636, %v6635
        %v6668 = vpack.c.b16 %v6638, %v6637
        %v6669 = vpack.c.b16 %v6640, %v6639
        %v6670 = vpack.c.b16 %v6642, %v6641
        %v6671 = vpack.c.b16 %v6644, %v6643
        %v6672 = vpack.c.b16 %v6646, %v6645
        %v6673 = vpack.c.b16 %v6648, %v6647
        %v6674 = vpack.c.b16 %v6650, %v6649
        %v6675 = vpack.c.b16 %v6652, %v6651
        %v6676 = vpack.c.b16 %v6654, %v6653
        %v6677 = vpack.c.b16 %v6656, %v6655
        %v6678 = vpack.c.b16 %v6658, %v6657
        %v6679 = vpack.c.b16 %v6660, %v6659
        %v6680 = vpack.c.b16 %v6662, %v6661
        %v6700 = vsel %vm3593, %v6502, 0
        %v6703 = vsel %vm3593, %v6505, 0
        %v6706 = vsel %vm3593, %v6508, 0
        %v6709 = vsel %vm3593, %v6511, 0
        %v6712 = vsel %vm3593, %v6514, 0
        %v6715 = vsel %vm3593, %v6517, 0
        %v6718 = vsel %vm3593, %v6520, 0
        %v6721 = vsel %vm3593, %v6523, 0
        %v6724 = vsel %vm3593, %v6526, 0
        %v6727 = vsel %vm3593, %v6529, 0
        %v6730 = vsel %vm3593, %v6532, 0
        %v6733 = vsel %vm3593, %v6535, 0
        %v6736 = vsel %vm3593, %v6538, 0
        %v6739 = vsel %vm3593, %v6541, 0
        %v6742 = vsel %vm3593, %v6544, 0
        %v6745 = vsel %vm3593, %v6547, 0
        %6747 = vmatprep.subr.bf16.mxu0 0
        %6748 = vmatpush1.bf16.msra.mxu0 %v6663
        %6749 = vmatprep.subr.bf16.mxu0 0
        %6750 = vmatpush1.bf16.msra.mxu0 %v6664
        %6751 = vmatprep.subr.bf16.mxu0 0
        %6752 = vmatpush1.bf16.msra.mxu0 %v6665
        %6753 = vmatprep.subr.bf16.mxu0 0
        %6754 = vmatpush1.bf16.msra.mxu0 %v6666
        %6755 = vmatprep.subr.bf16.mxu0 0
        %6756 = vmatpush1.bf16.msra.mxu0 %v6667
        %6757 = vmatprep.subr.bf16.mxu0 0
        %6758 = vmatpush1.bf16.msra.mxu0 %v6668
        %6759 = vmatprep.subr.bf16.mxu0 0
        %6760 = vmatpush1.bf16.msra.mxu0 %v6669
        %6761 = vmatprep.subr.bf16.mxu0 0
        %6762 = vmatpush1.bf16.msra.mxu0 %v6670
        %6763 = vmatprep.subr.bf16.mxu0 0
        %6764 = vmatpush1.bf16.msra.mxu0 %v6671
        %6765 = vmatprep.subr.bf16.mxu0 0
        %6766 = vmatpush1.bf16.msra.mxu0 %v6672
        %6767 = vmatprep.subr.bf16.mxu0 0
        %6768 = vmatpush1.bf16.msra.mxu0 %v6673
        %6769 = vmatprep.subr.bf16.mxu0 0
        %6770 = vmatpush1.bf16.msra.mxu0 %v6674
        %6771 = vmatprep.subr.bf16.mxu0 0
        %6772 = vmatpush1.bf16.msra.mxu0 %v6675
        %6773 = vmatprep.subr.bf16.mxu0 0
        %6774 = vmatpush1.bf16.msra.mxu0 %v6676
        %6775 = vmatprep.subr.bf16.mxu0 0
        %6776 = vmatpush1.bf16.msra.mxu0 %v6677
        %6777 = vmatprep.subr.bf16.mxu0 0
        %6778 = vmatpush1.bf16.msra.mxu0 %v6678
        %6779 = vmatprep.mubr.bf16.mxu0 %v6501
        %6780 = vmatmul.mubr.bf16.gmra.mrb[0].mxu0 %v6500
        %v6781 = vpop.f32.mrb[0].mxu0
        %v6782 = vadd.f32 %v6589, %v6781
        %v6783 = vpop.f32.mrb[0].mxu0
        %v6784 = vpop.f32.mrb[0].mxu0
        %v6785 = vadd.f32 %v6589, %v6784
        %v6786 = vpop.f32.mrb[0].mxu0
        %6787 = vmatprep.mubr.bf16.mxu0 %v6504
        %6788 = vmatmul.mubr.bf16.gmra.mrb[0].mxu0 %v6503
        %v6789 = vpop.f32.mrb[0].mxu0
        %v6790 = vadd.f32 %v6589, %v6789
        %v6791 = vpop.f32.mrb[0].mxu0
        %v6792 = vpop.f32.mrb[0].mxu0
        %v6793 = vadd.f32 %v6589, %v6792
        %v6794 = vpop.f32.mrb[0].mxu0
        %6795 = vmatprep.mubr.bf16.mxu0 %v6507
        %6796 = vmatmul.mubr.bf16.gmra.mrb[0].mxu0 %v6506
        %v6797 = vpop.f32.mrb[0].mxu0
        %v6798 = vadd.f32 %v6589, %v6797
        %v6799 = vpop.f32.mrb[0].mxu0
        %v6800 = vpop.f32.mrb[0].mxu0
        %v6801 = vadd.f32 %v6589, %v6800
        %v6802 = vpop.f32.mrb[0].mxu0
        %6803 = vmatprep.mubr.bf16.mxu0 %v6510
        %6804 = vmatmul.mubr.bf16.gmra.mrb[0].mxu0 %v6509
        %v6805 = vpop.f32.mrb[0].mxu0
        %v6806 = vadd.f32 %v6589, %v6805
        %v6807 = vpop.f32.mrb[0].mxu0
        %v6808 = vpop.f32.mrb[0].mxu0
        %v6809 = vadd.f32 %v6589, %v6808
        %v6810 = vpop.f32.mrb[0].mxu0
        %6811 = vmatprep.mubr.bf16.mxu0 %v6513
        %6812 = vmatmul.mubr.bf16.gmra.mrb[0].mxu0 %v6512
        %v6813 = vpop.f32.mrb[0].mxu0
        %v6814 = vadd.f32 %v6589, %v6813
        %v6815 = vpop.f32.mrb[0].mxu0
        %v6816 = vpop.f32.mrb[0].mxu0
        %v6817 = vadd.f32 %v6589, %v6816
        %v6818 = vpop.f32.mrb[0].mxu0
        %6819 = vmatprep.mubr.bf16.mxu0 %v6516
        %6820 = vmatmul.mubr.bf16.gmra.mrb[0].mxu0 %v6515
        %v6821 = vpop.f32.mrb[0].mxu0
        %v6822 = vadd.f32 %v6589, %v6821
        %v6823 = vpop.f32.mrb[0].mxu0
        %v6824 = vpop.f32.mrb[0].mxu0
        %v6825 = vadd.f32 %v6589, %v6824
        %v6826 = vpop.f32.mrb[0].mxu0
        %6827 = vmatprep.mubr.bf16.mxu0 %v6519
        %6828 = vmatmul.mubr.bf16.gmra.mrb[0].mxu0 %v6518
        %v6829 = vpop.f32.mrb[0].mxu0
        %v6830 = vadd.f32 %v6589, %v6829
        %v6831 = vpop.f32.mrb[0].mxu0
        %v6832 = vpop.f32.mrb[0].mxu0
        %v6833 = vadd.f32 %v6589, %v6832
        %v6834 = vpop.f32.mrb[0].mxu0
        %6835 = vmatprep.mubr.bf16.mxu0 %v6522
        %6836 = vmatmul.mubr.bf16.gmra.mrb[0].mxu0 %v6521
        %v6837 = vpop.f32.mrb[0].mxu0
        %v6838 = vadd.f32 %v6589, %v6837
        %v6839 = vpop.f32.mrb[0].mxu0
        %v6840 = vpop.f32.mrb[0].mxu0
        %v6841 = vadd.f32 %v6589, %v6840
        %v6842 = vpop.f32.mrb[0].mxu0
        %6843 = vmatprep.mubr.bf16.mxu0 %v6525
        %6844 = vmatmul.mubr.bf16.gmra.mrb[0].mxu0 %v6524
        %v6845 = vpop.f32.mrb[0].mxu0
        %v6846 = vadd.f32 %v6589, %v6845
        %v6847 = vpop.f32.mrb[0].mxu0
        %v6848 = vpop.f32.mrb[0].mxu0
        %v6849 = vadd.f32 %v6589, %v6848
        %v6850 = vpop.f32.mrb[0].mxu0
        %6851 = vmatprep.mubr.bf16.mxu0 %v6528
        %6852 = vmatmul.mubr.bf16.gmra.mrb[0].mxu0 %v6527
        %v6853 = vpop.f32.mrb[0].mxu0
        %v6854 = vadd.f32 %v6589, %v6853
        %v6855 = vpop.f32.mrb[0].mxu0
        %v6856 = vpop.f32.mrb[0].mxu0
        %v6857 = vadd.f32 %v6589, %v6856
        %v6858 = vpop.f32.mrb[0].mxu0
        %6859 = vmatprep.mubr.bf16.mxu0 %v6531
        %6860 = vmatmul.mubr.bf16.gmra.mrb[0].mxu0 %v6530
        %v6861 = vpop.f32.mrb[0].mxu0
        %v6862 = vadd.f32 %v6589, %v6861
        %v6863 = vpop.f32.mrb[0].mxu0
        %v6864 = vpop.f32.mrb[0].mxu0
        %v6865 = vadd.f32 %v6589, %v6864
        %v6866 = vpop.f32.mrb[0].mxu0
        %6867 = vmatprep.mubr.bf16.mxu0 %v6534
        %6868 = vmatmul.mubr.bf16.gmra.mrb[0].mxu0 %v6533
        %v6869 = vpop.f32.mrb[0].mxu0
        %v6870 = vadd.f32 %v6589, %v6869
        %v6871 = vpop.f32.mrb[0].mxu0
        %v6872 = vpop.f32.mrb[0].mxu0
        %v6873 = vadd.f32 %v6589, %v6872
        %v6874 = vpop.f32.mrb[0].mxu0
        %6875 = vmatprep.mubr.bf16.mxu0 %v6537
        %6876 = vmatmul.mubr.bf16.gmra.mrb[0].mxu0 %v6536
        %v6877 = vpop.f32.mrb[0].mxu0
        %v6878 = vadd.f32 %v6589, %v6877
        %v6879 = vpop.f32.mrb[0].mxu0
        %v6880 = vpop.f32.mrb[0].mxu0
        %v6881 = vadd.f32 %v6589, %v6880
        %v6882 = vpop.f32.mrb[0].mxu0
        %6883 = vmatprep.mubr.bf16.mxu0 %v6540
        %6884 = vmatmul.mubr.bf16.gmra.mrb[0].mxu0 %v6539
        %v6885 = vpop.f32.mrb[0].mxu0
        %v6886 = vadd.f32 %v6589, %v6885
        %v6887 = vpop.f32.mrb[0].mxu0
        %v6888 = vpop.f32.mrb[0].mxu0
        %v6889 = vadd.f32 %v6589, %v6888
        %v6890 = vpop.f32.mrb[0].mxu0
        %6891 = vmatprep.mubr.bf16.mxu0 %v6543
        %6892 = vmatmul.mubr.bf16.gmra.mrb[0].mxu0 %v6542
        %v6893 = vpop.f32.mrb[0].mxu0
        %v6894 = vadd.f32 %v6589, %v6893
        %v6895 = vpop.f32.mrb[0].mxu0
        %v6896 = vpop.f32.mrb[0].mxu0
        %v6897 = vadd.f32 %v6589, %v6896
        %v6898 = vpop.f32.mrb[0].mxu0
        %6899 = vmatprep.mubr.bf16.mxu0 %v6546
        %6900 = vmatmul.mubr.bf16.gmra.mrb[0].mxu0 %v6545
        %v6901 = vpop.f32.mrb[0].mxu0
        %v6902 = vadd.f32 %v6589, %v6901
        %v6903 = vpop.f32.mrb[0].mxu0
        %v6904 = vpop.f32.mrb[0].mxu0
        %v6905 = vadd.f32 %v6589, %v6904
        %v6906 = vpop.f32.mrb[0].mxu0
        %6907 = vdwg.mxu0
        %6908 = vmatprep.subr.bf16.mxu0 0
        %6909 = vmatpush1.bf16.msra.mxu0 %v6679
        %6910 = vmatprep.subr.bf16.mxu0 0
        %6911 = vmatpush1.bf16.msra.mxu0 %v6680
        %6912 = vmatprep.subr.bf16.mxu0 0
        %6913 = vmatpush1.bf16.msra.mxu0 0
        %6914 = vmatprep.subr.bf16.mxu0 0
        %6915 = vmatpush1.bf16.msra.mxu0 0
        %6916 = vmatprep.subr.bf16.mxu0 0
        %6917 = vmatpush1.bf16.msra.mxu0 0
        %6918 = vmatprep.subr.bf16.mxu0 0
        %6919 = vmatpush1.bf16.msra.mxu0 0
        %6920 = vmatprep.subr.bf16.mxu0 0
        %6921 = vmatpush1.bf16.msra.mxu0 0
        %6922 = vmatprep.subr.bf16.mxu0 0
        %6923 = vmatpush1.bf16.msra.mxu0 0
        %6924 = vmatprep.subr.bf16.mxu0 0
        %6925 = vmatpush1.bf16.msra.mxu0 0
        %6926 = vmatprep.subr.bf16.mxu0 0
        %6927 = vmatpush1.bf16.msra.mxu0 0
        %6928 = vmatprep.subr.bf16.mxu0 0
        %6929 = vmatpush1.bf16.msra.mxu0 0
        %6930 = vmatprep.subr.bf16.mxu0 0
        %6931 = vmatpush1.bf16.msra.mxu0 0
        %6932 = vmatprep.subr.bf16.mxu0 0
        %6933 = vmatpush1.bf16.msra.mxu0 0
        %6934 = vmatprep.subr.bf16.mxu0 0
        %6935 = vmatpush1.bf16.msra.mxu0 0
        %6936 = vmatprep.subr.bf16.mxu0 0
        %6937 = vmatpush1.bf16.msra.mxu0 0
        %6938 = vmatprep.subr.bf16.mxu0 0
        %6939 = vmatpush1.bf16.msra.mxu0 0
        %6940 = vmatprep.mubr.bf16.mxu0 0
        %6941 = vmatmul.mubr.bf16.gmra.mrb[0].mxu0 %v6700
        %v6942 = vpop.f32.mrb[0].mxu0
        %v6943 = vadd.f32 %v6782, %v6942
        %v6944 = vpop.f32.mrb[0].mxu0
        %v6945 = vpop.f32.mrb[0].mxu0
        %v6946 = vadd.f32 %v6785, %v6945
        %v6947 = vpop.f32.mrb[0].mxu0
        %6948 = vmatprep.mubr.bf16.mxu0 0
        %6949 = vmatmul.mubr.bf16.gmra.mrb[0].mxu0 %v6703
        %v6950 = vpop.f32.mrb[0].mxu0
        %v6951 = vadd.f32 %v6790, %v6950
        %v6952 = vpop.f32.mrb[0].mxu0
        %v6953 = vpop.f32.mrb[0].mxu0
        %v6954 = vadd.f32 %v6793, %v6953
        %v6955 = vpop.f32.mrb[0].mxu0
        %6956 = vmatprep.mubr.bf16.mxu0 0
        %6957 = vmatmul.mubr.bf16.gmra.mrb[0].mxu0 %v6706
        %v6958 = vpop.f32.mrb[0].mxu0
        %v6959 = vadd.f32 %v6798, %v6958
        %v6960 = vpop.f32.mrb[0].mxu0
        %v6961 = vpop.f32.mrb[0].mxu0
        %v6962 = vadd.f32 %v6801, %v6961
        %v6963 = vpop.f32.mrb[0].mxu0
        %6964 = vmatprep.mubr.bf16.mxu0 0
        %6965 = vmatmul.mubr.bf16.gmra.mrb[0].mxu0 %v6709
        %v6966 = vpop.f32.mrb[0].mxu0
        %v6967 = vadd.f32 %v6806, %v6966
        %v6968 = vpop.f32.mrb[0].mxu0
        %v6969 = vpop.f32.mrb[0].mxu0
        %v6970 = vadd.f32 %v6809, %v6969
        %v6971 = vpop.f32.mrb[0].mxu0
        %6972 = vmatprep.mubr.bf16.mxu0 0
        %6973 = vmatmul.mubr.bf16.gmra.mrb[0].mxu0 %v6712
        %v6974 = vpop.f32.mrb[0].mxu0
        %v6975 = vadd.f32 %v6814, %v6974
        %v6976 = vpop.f32.mrb[0].mxu0
        %v6977 = vpop.f32.mrb[0].mxu0
        %v6978 = vadd.f32 %v6817, %v6977
        %v6979 = vpop.f32.mrb[0].mxu0
        %6980 = vmatprep.mubr.bf16.mxu0 0
        %6981 = vmatmul.mubr.bf16.gmra.mrb[0].mxu0 %v6715
        %v6982 = vpop.f32.mrb[0].mxu0
        %v6983 = vadd.f32 %v6822, %v6982
        %v6984 = vpop.f32.mrb[0].mxu0
        %v6985 = vpop.f32.mrb[0].mxu0
        %v6986 = vadd.f32 %v6825, %v6985
        %v6987 = vpop.f32.mrb[0].mxu0
        %6988 = vmatprep.mubr.bf16.mxu0 0
        %6989 = vmatmul.mubr.bf16.gmra.mrb[0].mxu0 %v6718
        %v6990 = vpop.f32.mrb[0].mxu0
        %v6991 = vadd.f32 %v6830, %v6990
        %v6992 = vpop.f32.mrb[0].mxu0
        %v6993 = vpop.f32.mrb[0].mxu0
        %v6994 = vadd.f32 %v6833, %v6993
        %v6995 = vpop.f32.mrb[0].mxu0
        %6996 = vmatprep.mubr.bf16.mxu0 0
        %6997 = vmatmul.mubr.bf16.gmra.mrb[0].mxu0 %v6721
        %v6998 = vpop.f32.mrb[0].mxu0
        %v6999 = vadd.f32 %v6838, %v6998
        %v7000 = vpop.f32.mrb[0].mxu0
        %v7001 = vpop.f32.mrb[0].mxu0
        %v7002 = vadd.f32 %v6841, %v7001
        %v7003 = vpop.f32.mrb[0].mxu0
        %7004 = vmatprep.mubr.bf16.mxu0 0
        %7005 = vmatmul.mubr.bf16.gmra.mrb[0].mxu0 %v6724
        %v7006 = vpop.f32.mrb[0].mxu0
        %v7007 = vadd.f32 %v6846, %v7006
        %v7008 = vpop.f32.mrb[0].mxu0
        %v7009 = vpop.f32.mrb[0].mxu0
        %v7010 = vadd.f32 %v6849, %v7009
        %v7011 = vpop.f32.mrb[0].mxu0
        %7012 = vmatprep.mubr.bf16.mxu0 0
        %7013 = vmatmul.mubr.bf16.gmra.mrb[0].mxu0 %v6727
        %v7014 = vpop.f32.mrb[0].mxu0
        %v7015 = vadd.f32 %v6854, %v7014
        %v7016 = vpop.f32.mrb[0].mxu0
        %v7017 = vpop.f32.mrb[0].mxu0
        %v7018 = vadd.f32 %v6857, %v7017
        %v7019 = vpop.f32.mrb[0].mxu0
        %7020 = vmatprep.mubr.bf16.mxu0 0
        %7021 = vmatmul.mubr.bf16.gmra.mrb[0].mxu0 %v6730
        %v7022 = vpop.f32.mrb[0].mxu0
        %v7023 = vadd.f32 %v6862, %v7022
        %v7024 = vpop.f32.mrb[0].mxu0
        %v7025 = vpop.f32.mrb[0].mxu0
        %v7026 = vadd.f32 %v6865, %v7025
        %v7027 = vpop.f32.mrb[0].mxu0
        %7028 = vmatprep.mubr.bf16.mxu0 0
        %7029 = vmatmul.mubr.bf16.gmra.mrb[0].mxu0 %v6733
        %v7030 = vpop.f32.mrb[0].mxu0
        %v7031 = vadd.f32 %v6870, %v7030
        %v7032 = vpop.f32.mrb[0].mxu0
        %v7033 = vpop.f32.mrb[0].mxu0
        %v7034 = vadd.f32 %v6873, %v7033
        %v7035 = vpop.f32.mrb[0].mxu0
        %7036 = vmatprep.mubr.bf16.mxu0 0
        %7037 = vmatmul.mubr.bf16.gmra.mrb[0].mxu0 %v6736
        %v7038 = vpop.f32.mrb[0].mxu0
        %v7039 = vadd.f32 %v6878, %v7038
        %v7040 = vpop.f32.mrb[0].mxu0
        %v7041 = vpop.f32.mrb[0].mxu0
        %v7042 = vadd.f32 %v6881, %v7041
        %v7043 = vpop.f32.mrb[0].mxu0
        %7044 = vmatprep.mubr.bf16.mxu0 0
        %7045 = vmatmul.mubr.bf16.gmra.mrb[0].mxu0 %v6739
        %v7046 = vpop.f32.mrb[0].mxu0
        %v7047 = vadd.f32 %v6886, %v7046
        %v7048 = vpop.f32.mrb[0].mxu0
        %v7049 = vpop.f32.mrb[0].mxu0
        %v7050 = vadd.f32 %v6889, %v7049
        %v7051 = vpop.f32.mrb[0].mxu0
        %7052 = vmatprep.mubr.bf16.mxu0 0
        %7053 = vmatmul.mubr.bf16.gmra.mrb[0].mxu0 %v6742
        %v7054 = vpop.f32.mrb[0].mxu0
        %v7055 = vadd.f32 %v6894, %v7054
        %v7056 = vpop.f32.mrb[0].mxu0
        %v7057 = vpop.f32.mrb[0].mxu0
        %v7058 = vadd.f32 %v6897, %v7057
        %v7059 = vpop.f32.mrb[0].mxu0
        %7060 = vmatprep.mubr.bf16.mxu0 0
        %7061 = vmatmul.mubr.bf16.gmra.mrb[0].mxu0 %v6745
        %v7062 = vpop.f32.mrb[0].mxu0
        %v7063 = vadd.f32 %v6902, %v7062
        %v7064 = vpop.f32.mrb[0].mxu0
        %v7065 = vpop.f32.mrb[0].mxu0
        %v7066 = vadd.f32 %v6905, %v7065
        %v7067 = vpop.f32.mrb[0].mxu0
        %7068 = vdwg.mxu0
        %v7069 = vmax.f32 %v6943, 0.0
        %v7070 = vmax.f32 %v6946, 0.0
        %v7071 = vmax.f32 %v6951, 0.0
        %v7072 = vmax.f32 %v6954, 0.0
        %v7073 = vmax.f32 %v6959, 0.0
        %v7074 = vmax.f32 %v6962, 0.0
        %v7075 = vmax.f32 %v6967, 0.0
        %v7076 = vmax.f32 %v6970, 0.0
        %v7077 = vmax.f32 %v6975, 0.0
        %v7078 = vmax.f32 %v6978, 0.0
        %v7079 = vmax.f32 %v6983, 0.0
        %v7080 = vmax.f32 %v6986, 0.0
        %v7081 = vmax.f32 %v6991, 0.0
        %v7082 = vmax.f32 %v6994, 0.0
        %v7083 = vmax.f32 %v6999, 0.0
        %v7084 = vmax.f32 %v7002, 0.0
        %v7085 = vmax.f32 %v7007, 0.0
        %v7086 = vmax.f32 %v7010, 0.0
        %v7087 = vmax.f32 %v7015, 0.0
        %v7088 = vmax.f32 %v7018, 0.0
        %v7089 = vmax.f32 %v7023, 0.0
        %v7090 = vmax.f32 %v7026, 0.0
        %v7091 = vmax.f32 %v7031, 0.0
        %v7092 = vmax.f32 %v7034, 0.0
        %v7093 = vmax.f32 %v7039, 0.0
        %v7094 = vmax.f32 %v7042, 0.0
        %v7095 = vmax.f32 %v7047, 0.0
        %v7096 = vmax.f32 %v7050, 0.0
        %v7097 = vmax.f32 %v7055, 0.0
        %v7098 = vmax.f32 %v7058, 0.0
        %v7099 = vmax.f32 %v7063, 0.0
        %v7100 = vmax.f32 %v7066, 0.0
        %v7101 = vpack.c.bf16 %v7070, %v7069
        %v7102 = vpack.c.bf16 %v7072, %v7071
        %v7103 = vpack.c.bf16 %v7074, %v7073
        %v7104 = vpack.c.bf16 %v7076, %v7075
        %v7105 = vpack.c.bf16 %v7078, %v7077
        %v7106 = vpack.c.bf16 %v7080, %v7079
        %v7107 = vpack.c.bf16 %v7082, %v7081
        %v7108 = vpack.c.bf16 %v7084, %v7083
        %v7109 = vpack.c.bf16 %v7086, %v7085
        %v7110 = vpack.c.bf16 %v7088, %v7087
        %v7111 = vpack.c.bf16 %v7090, %v7089
        %v7112 = vpack.c.bf16 %v7092, %v7091
        %v7113 = vpack.c.bf16 %v7094, %v7093
        %v7114 = vpack.c.bf16 %v7096, %v7095
        %v7115 = vpack.c.bf16 %v7098, %v7097
        %v7116 = vpack.c.bf16 %v7100, %v7099
        %v7133 = vunpack.c.l.b16 %v7101
        %v7134 = vunpack.c.h.b16 %v7101
        %v7135 = vunpack.c.l.b16 %v7102
        %v7136 = vunpack.c.h.b16 %v7102
        %v7137 = vunpack.c.l.b16 %v7103
        %v7138 = vunpack.c.h.b16 %v7103
        %v7139 = vunpack.c.l.b16 %v7104
        %v7140 = vunpack.c.h.b16 %v7104
        %v7141 = vunpack.c.l.b16 %v7105
        %v7142 = vunpack.c.h.b16 %v7105
        %v7143 = vunpack.c.l.b16 %v7106
        %v7144 = vunpack.c.h.b16 %v7106
        %v7145 = vunpack.c.l.b16 %v7107
        %v7146 = vunpack.c.h.b16 %v7107
        %v7147 = vunpack.c.l.b16 %v7108
        %v7148 = vunpack.c.h.b16 %v7108
        %v7149 = vunpack.c.l.b16 %v7109
        %v7150 = vunpack.c.h.b16 %v7109
        %v7151 = vunpack.c.l.b16 %v7110
        %v7152 = vunpack.c.h.b16 %v7110
        %v7153 = vunpack.c.l.b16 %v7111
        %v7154 = vunpack.c.h.b16 %v7111
        %v7155 = vunpack.c.l.b16 %v7112
        %v7156 = vunpack.c.h.b16 %v7112
        %v7157 = vunpack.c.l.b16 %v7113
        %v7158 = vunpack.c.h.b16 %v7113
        %v7159 = vunpack.c.l.b16 %v7114
        %v7160 = vunpack.c.h.b16 %v7114
        %v7161 = vunpack.c.l.b16 %v7115
        %v7162 = vunpack.c.h.b16 %v7115
        %v7163 = vunpack.c.l.b16 %v7116
        %v7164 = vunpack.c.h.b16 %v7116
        %v7165 = vpack.c.b16 %v7133, %v7133
        %v7166 = vpack.c.b16 %v7134, %v7134
        %v7167 = vpack.c.b16 %v7135, %v7135
        %v7168 = vpack.c.b16 %v7136, %v7136
        %v7169 = vpack.c.b16 %v7137, %v7137
        %v7170 = vpack.c.b16 %v7138, %v7138
        %v7171 = vpack.c.b16 %v7139, %v7139
        %v7172 = vpack.c.b16 %v7140, %v7140
        %v7173 = vpack.c.b16 %v7141, %v7141
        %v7174 = vpack.c.b16 %v7142, %v7142
        %v7175 = vpack.c.b16 %v7143, %v7143
        %v7176 = vpack.c.b16 %v7144, %v7144
        %v7177 = vpack.c.b16 %v7145, %v7145
        %v7178 = vpack.c.b16 %v7146, %v7146
        %v7179 = vpack.c.b16 %v7147, %v7147
        %v7180 = vpack.c.b16 %v7148, %v7148
        %v7181 = vpack.c.b16 %v7149, %v7149
        %v7182 = vpack.c.b16 %v7150, %v7150
        %v7183 = vpack.c.b16 %v7151, %v7151
        %v7184 = vpack.c.b16 %v7152, %v7152
        %v7185 = vpack.c.b16 %v7153, %v7153
        %v7186 = vpack.c.b16 %v7154, %v7154
        %v7187 = vpack.c.b16 %v7155, %v7155
        %v7188 = vpack.c.b16 %v7156, %v7156
        %v7189 = vpack.c.b16 %v7157, %v7157
        %v7190 = vpack.c.b16 %v7158, %v7158
        %v7191 = vpack.c.b16 %v7159, %v7159
        %v7192 = vpack.c.b16 %v7160, %v7160
        %v7193 = vpack.c.b16 %v7161, %v7161
        %v7194 = vpack.c.b16 %v7162, %v7162
        %v7195 = vpack.c.b16 %v7163, %v7163
        %v7196 = vpack.c.b16 %v7164, %v7164
        %v7198 = vshrl.u32 %v7165, 16
        %v7200 = vrot.slane %v7198, 7
        %v7201 = vshll.u32 %v7165, 16
        %v7203 = vor.u32 %v7200, %v7201
        %v7204 = vrot.slane %v7200, 4
        %v7206 = vshrl.u32 %v7166, 16
        %v7208 = vrot.slane %v7206, 7
        %v7209 = vshll.u32 %v7166, 16
        %v7211 = vor.u32 %v7208, %v7209
        %v7212 = vsel %vm3029, %v7204, %v7211
        %v7213 = vrot.slane %v7208, 4
        %v7215 = vshrl.u32 %v7167, 16
        %v7217 = vrot.slane %v7215, 7
        %v7218 = vshll.u32 %v7167, 16
        %v7220 = vor.u32 %v7217, %v7218
        %v7221 = vrot.slane %v7217, 4
        %v7223 = vshrl.u32 %v7168, 16
        %v7225 = vrot.slane %v7223, 7
        %v7226 = vshll.u32 %v7168, 16
        %v7228 = vor.u32 %v7225, %v7226
        %v7229 = vsel %vm3029, %v7221, %v7228
        %v7230 = vrot.slane %v7225, 4
        %v7232 = vshrl.u32 %v7169, 16
        %v7234 = vrot.slane %v7232, 7
        %v7235 = vshll.u32 %v7169, 16
        %v7237 = vor.u32 %v7234, %v7235
        %v7238 = vrot.slane %v7234, 4
        %v7240 = vshrl.u32 %v7170, 16
        %v7242 = vrot.slane %v7240, 7
        %v7243 = vshll.u32 %v7170, 16
        %v7245 = vor.u32 %v7242, %v7243
        %v7246 = vsel %vm3029, %v7238, %v7245
        %v7247 = vrot.slane %v7242, 4
        %v7249 = vshrl.u32 %v7171, 16
        %v7251 = vrot.slane %v7249, 7
        %v7252 = vshll.u32 %v7171, 16
        %v7254 = vor.u32 %v7251, %v7252
        %v7255 = vrot.slane %v7251, 4
        %v7257 = vshrl.u32 %v7172, 16
        %v7259 = vrot.slane %v7257, 7
        %v7260 = vshll.u32 %v7172, 16
        %v7262 = vor.u32 %v7259, %v7260
        %v7263 = vsel %vm3029, %v7255, %v7262
        %v7264 = vrot.slane %v7259, 4
        %v7266 = vshrl.u32 %v7173, 16
        %v7268 = vrot.slane %v7266, 7
        %v7269 = vshll.u32 %v7173, 16
        %v7271 = vor.u32 %v7268, %v7269
        %v7272 = vrot.slane %v7268, 4
        %v7274 = vshrl.u32 %v7174, 16
        %v7276 = vrot.slane %v7274, 7
        %v7277 = vshll.u32 %v7174, 16
        %v7279 = vor.u32 %v7276, %v7277
        %v7280 = vsel %vm3029, %v7272, %v7279
        %v7281 = vrot.slane %v7276, 4
        %v7283 = vshrl.u32 %v7175, 16
        %v7285 = vrot.slane %v7283, 7
        %v7286 = vshll.u32 %v7175, 16
        %v7288 = vor.u32 %v7285, %v7286
        %v7289 = vrot.slane %v7285, 4
        %v7291 = vshrl.u32 %v7176, 16
        %v7293 = vrot.slane %v7291, 7
        %v7294 = vshll.u32 %v7176, 16
        %v7296 = vor.u32 %v7293, %v7294
        %v7297 = vsel %vm3029, %v7289, %v7296
        %v7298 = vrot.slane %v7293, 4
        %v7300 = vshrl.u32 %v7177, 16
        %v7302 = vrot.slane %v7300, 7
        %v7303 = vshll.u32 %v7177, 16
        %v7305 = vor.u32 %v7302, %v7303
        %v7306 = vrot.slane %v7302, 4
        %v7308 = vshrl.u32 %v7178, 16
        %v7310 = vrot.slane %v7308, 7
        %v7311 = vshll.u32 %v7178, 16
        %v7313 = vor.u32 %v7310, %v7311
        %v7314 = vsel %vm3029, %v7306, %v7313
        %v7315 = vrot.slane %v7310, 4
        %v7317 = vshrl.u32 %v7179, 16
        %v7319 = vrot.slane %v7317, 7
        %v7320 = vshll.u32 %v7179, 16
        %v7322 = vor.u32 %v7319, %v7320
        %v7323 = vrot.slane %v7319, 4
        %v7325 = vshrl.u32 %v7180, 16
        %v7327 = vrot.slane %v7325, 7
        %v7328 = vshll.u32 %v7180, 16
        %v7330 = vor.u32 %v7327, %v7328
        %v7331 = vsel %vm3029, %v7323, %v7330
        %v7332 = vrot.slane %v7327, 4
        %v7334 = vshrl.u32 %v7181, 16
        %v7336 = vrot.slane %v7334, 7
        %v7337 = vshll.u32 %v7181, 16
        %v7339 = vor.u32 %v7336, %v7337
        %v7340 = vrot.slane %v7336, 4
        %v7342 = vshrl.u32 %v7182, 16
        %v7344 = vrot.slane %v7342, 7
        %v7345 = vshll.u32 %v7182, 16
        %v7347 = vor.u32 %v7344, %v7345
        %v7348 = vsel %vm3029, %v7340, %v7347
        %v7349 = vrot.slane %v7344, 4
        %v7351 = vshrl.u32 %v7183, 16
        %v7353 = vrot.slane %v7351, 7
        %v7354 = vshll.u32 %v7183, 16
        %v7356 = vor.u32 %v7353, %v7354
        %v7357 = vrot.slane %v7353, 4
        %v7359 = vshrl.u32 %v7184, 16
        %v7361 = vrot.slane %v7359, 7
        %v7362 = vshll.u32 %v7184, 16
        %v7364 = vor.u32 %v7361, %v7362
        %v7365 = vsel %vm3029, %v7357, %v7364
        %v7366 = vrot.slane %v7361, 4
        %v7368 = vshrl.u32 %v7185, 16
        %v7370 = vrot.slane %v7368, 7
        %v7371 = vshll.u32 %v7185, 16
        %v7373 = vor.u32 %v7370, %v7371
        %v7374 = vrot.slane %v7370, 4
        %v7376 = vshrl.u32 %v7186, 16
        %v7378 = vrot.slane %v7376, 7
        %v7379 = vshll.u32 %v7186, 16
        %v7381 = vor.u32 %v7378, %v7379
        %v7382 = vsel %vm3029, %v7374, %v7381
        %v7383 = vrot.slane %v7378, 4
        %v7385 = vshrl.u32 %v7187, 16
        %v7387 = vrot.slane %v7385, 7
        %v7388 = vshll.u32 %v7187, 16
        %v7390 = vor.u32 %v7387, %v7388
        %v7391 = vrot.slane %v7387, 4
        %v7393 = vshrl.u32 %v7188, 16
        %v7395 = vrot.slane %v7393, 7
        %v7396 = vshll.u32 %v7188, 16
        %v7398 = vor.u32 %v7395, %v7396
        %v7399 = vsel %vm3029, %v7391, %v7398
        %v7400 = vrot.slane %v7395, 4
        %v7402 = vshrl.u32 %v7189, 16
        %v7404 = vrot.slane %v7402, 7
        %v7405 = vshll.u32 %v7189, 16
        %v7407 = vor.u32 %v7404, %v7405
        %v7408 = vrot.slane %v7404, 4
        %v7410 = vshrl.u32 %v7190, 16
        %v7412 = vrot.slane %v7410, 7
        %v7413 = vshll.u32 %v7190, 16
        %v7415 = vor.u32 %v7412, %v7413
        %v7416 = vsel %vm3029, %v7408, %v7415
        %v7417 = vrot.slane %v7412, 4
        %v7419 = vshrl.u32 %v7191, 16
        %v7421 = vrot.slane %v7419, 7
        %v7422 = vshll.u32 %v7191, 16
        %v7424 = vor.u32 %v7421, %v7422
        %v7425 = vrot.slane %v7421, 4
        %v7427 = vshrl.u32 %v7192, 16
        %v7429 = vrot.slane %v7427, 7
        %v7430 = vshll.u32 %v7192, 16
        %v7432 = vor.u32 %v7429, %v7430
        %v7433 = vsel %vm3029, %v7425, %v7432
        %v7434 = vrot.slane %v7429, 4
        %v7436 = vshrl.u32 %v7193, 16
        %v7438 = vrot.slane %v7436, 7
        %v7439 = vshll.u32 %v7193, 16
        %v7441 = vor.u32 %v7438, %v7439
        %v7442 = vrot.slane %v7438, 4
        %v7444 = vshrl.u32 %v7194, 16
        %v7446 = vrot.slane %v7444, 7
        %v7447 = vshll.u32 %v7194, 16
        %v7449 = vor.u32 %v7446, %v7447
        %v7450 = vsel %vm3029, %v7442, %v7449
        %v7451 = vrot.slane %v7446, 4
        %v7453 = vshrl.u32 %v7195, 16
        %v7455 = vrot.slane %v7453, 7
        %v7456 = vshll.u32 %v7195, 16
        %v7458 = vor.u32 %v7455, %v7456
        %v7459 = vrot.slane %v7455, 4
        %v7461 = vshrl.u32 %v7196, 16
        %v7463 = vrot.slane %v7461, 7
        %v7464 = vshll.u32 %v7196, 16
        %v7466 = vor.u32 %v7463, %v7464
        %v7467 = vsel %vm3029, %v7459, %v7466
        %v7468 = vrot.slane %v7463, 4
        %v7517 = vld [vmem:[%s3350] sm:$0xf]
        %v7518 = vsel %vm3352, %v7203, %v7517
        %7519 = vst [vmem:[%s3350] sm:$0xf] %v7518
        %7520 = vst.msk [vmem:[%s3350 + $0x4] sm:$0xf] %vm324, %v7212
        %v7521 = vld [vmem:[%s3350 + $0x8] sm:$0x1]
        %v7522 = vsel %vm335, %v7213, %v7521
        %7523 = vst [vmem:[%s3350 + $0x8] sm:$0x1] %v7522
        %v7524 = vld [vmem:[%s3350 + $0xc] sm:$0xf]
        %v7525 = vsel %vm3352, %v7220, %v7524
        %7526 = vst [vmem:[%s3350 + $0xc] sm:$0xf] %v7525
        %7527 = vst.msk [vmem:[%s3350 + $0x10] sm:$0xf] %vm324, %v7229
        %v7528 = vld [vmem:[%s3350 + $0x14] sm:$0x1]
        %v7529 = vsel %vm335, %v7230, %v7528
        %7530 = vst [vmem:[%s3350 + $0x14] sm:$0x1] %v7529
        %v7531 = vld [vmem:[%s3350 + $0x18] sm:$0xf]
        %v7532 = vsel %vm3352, %v7237, %v7531
        %7533 = vst [vmem:[%s3350 + $0x18] sm:$0xf] %v7532
        %7534 = vst.msk [vmem:[%s3350 + $0x1c] sm:$0xf] %vm324, %v7246
        %v7535 = vld [vmem:[%s3350 + $0x20] sm:$0x1]
        %v7536 = vsel %vm335, %v7247, %v7535
        %7537 = vst [vmem:[%s3350 + $0x20] sm:$0x1] %v7536
        %v7538 = vld [vmem:[%s3350 + $0x24] sm:$0xf]
        %v7539 = vsel %vm3352, %v7254, %v7538
        %7540 = vst [vmem:[%s3350 + $0x24] sm:$0xf] %v7539
        %7541 = vst.msk [vmem:[%s3350 + $0x28] sm:$0xf] %vm324, %v7263
        %v7542 = vld [vmem:[%s3350 + $0x2c] sm:$0x1]
        %v7543 = vsel %vm335, %v7264, %v7542
        %7544 = vst [vmem:[%s3350 + $0x2c] sm:$0x1] %v7543
        %v7545 = vld [vmem:[%s3350 + $0x30] sm:$0xf]
        %v7546 = vsel %vm3352, %v7271, %v7545
        %7547 = vst [vmem:[%s3350 + $0x30] sm:$0xf] %v7546
        %7548 = vst.msk [vmem:[%s3350 + $0x34] sm:$0xf] %vm324, %v7280
        %v7549 = vld [vmem:[%s3350 + $0x38] sm:$0x1]
        %v7550 = vsel %vm335, %v7281, %v7549
        %7551 = vst [vmem:[%s3350 + $0x38] sm:$0x1] %v7550
        %v7552 = vld [vmem:[%s3350 + $0x3c] sm:$0xf]
        %v7553 = vsel %vm3352, %v7288, %v7552
        %7554 = vst [vmem:[%s3350 + $0x3c] sm:$0xf] %v7553
        %7555 = vst.msk [vmem:[%s3350 + $0x40] sm:$0xf] %vm324, %v7297
        %v7556 = vld [vmem:[%s3350 + $0x44] sm:$0x1]
        %v7557 = vsel %vm335, %v7298, %v7556
        %7558 = vst [vmem:[%s3350 + $0x44] sm:$0x1] %v7557
        %v7559 = vld [vmem:[%s3350 + $0x48] sm:$0xf]
        %v7560 = vsel %vm3352, %v7305, %v7559
        %7561 = vst [vmem:[%s3350 + $0x48] sm:$0xf] %v7560
        %7562 = vst.msk [vmem:[%s3350 + $0x4c] sm:$0xf] %vm324, %v7314
        %v7563 = vld [vmem:[%s3350 + $0x50] sm:$0x1]
        %v7564 = vsel %vm335, %v7315, %v7563
        %7565 = vst [vmem:[%s3350 + $0x50] sm:$0x1] %v7564
        %v7566 = vld [vmem:[%s3350 + $0x54] sm:$0xf]
        %v7567 = vsel %vm3352, %v7322, %v7566
        %7568 = vst [vmem:[%s3350 + $0x54] sm:$0xf] %v7567
        %7569 = vst.msk [vmem:[%s3350 + $0x58] sm:$0xf] %vm324, %v7331
        %v7570 = vld [vmem:[%s3350 + $0x5c] sm:$0x1]
        %v7571 = vsel %vm335, %v7332, %v7570
        %7572 = vst [vmem:[%s3350 + $0x5c] sm:$0x1] %v7571
        %v7573 = vld [vmem:[%s3350 + $0x60] sm:$0xf]
        %v7574 = vsel %vm3352, %v7339, %v7573
        %7575 = vst [vmem:[%s3350 + $0x60] sm:$0xf] %v7574
        %7576 = vst.msk [vmem:[%s3350 + $0x64] sm:$0xf] %vm324, %v7348
        %v7577 = vld [vmem:[%s3350 + $0x68] sm:$0x1]
        %v7578 = vsel %vm335, %v7349, %v7577
        %7579 = vst [vmem:[%s3350 + $0x68] sm:$0x1] %v7578
        %v7580 = vld [vmem:[%s3350 + $0x6c] sm:$0xf]
        %v7581 = vsel %vm3352, %v7356, %v7580
        %7582 = vst [vmem:[%s3350 + $0x6c] sm:$0xf] %v7581
        %7583 = vst.msk [vmem:[%s3350 + $0x70] sm:$0xf] %vm324, %v7365
        %v7584 = vld [vmem:[%s3350 + $0x74] sm:$0x1]
        %v7585 = vsel %vm335, %v7366, %v7584
        %7586 = vst [vmem:[%s3350 + $0x74] sm:$0x1] %v7585
        %v7587 = vld [vmem:[%s3350 + $0x78] sm:$0xf]
        %v7588 = vsel %vm3352, %v7373, %v7587
        %7589 = vst [vmem:[%s3350 + $0x78] sm:$0xf] %v7588
        %7590 = vst.msk [vmem:[%s3350 + $0x7c] sm:$0xf] %vm324, %v7382
        %v7591 = vld [vmem:[%s3350 + $0x80] sm:$0x1]
        %v7592 = vsel %vm335, %v7383, %v7591
        %7593 = vst [vmem:[%s3350 + $0x80] sm:$0x1] %v7592
        %v7594 = vld [vmem:[%s3350 + $0x84] sm:$0xf]
        %v7595 = vsel %vm3352, %v7390, %v7594
        %7596 = vst [vmem:[%s3350 + $0x84] sm:$0xf] %v7595
        %7597 = vst.msk [vmem:[%s3350 + $0x88] sm:$0xf] %vm324, %v7399
        %v7598 = vld [vmem:[%s3350 + $0x8c] sm:$0x1]
        %v7599 = vsel %vm335, %v7400, %v7598
        %7600 = vst [vmem:[%s3350 + $0x8c] sm:$0x1] %v7599
        %v7601 = vld [vmem:[%s3350 + $0x90] sm:$0xf]
        %v7602 = vsel %vm3352, %v7407, %v7601
        %7603 = vst [vmem:[%s3350 + $0x90] sm:$0xf] %v7602
        %7604 = vst.msk [vmem:[%s3350 + $0x94] sm:$0xf] %vm324, %v7416
        %v7605 = vld [vmem:[%s3350 + $0x98] sm:$0x1]
        %v7606 = vsel %vm335, %v7417, %v7605
        %7607 = vst [vmem:[%s3350 + $0x98] sm:$0x1] %v7606
        %v7608 = vld [vmem:[%s3350 + $0x9c] sm:$0xf]
        %v7609 = vsel %vm3352, %v7424, %v7608
        %7610 = vst [vmem:[%s3350 + $0x9c] sm:$0xf] %v7609
        %7611 = vst.msk [vmem:[%s3350 + $0xa0] sm:$0xf] %vm324, %v7433
        %v7612 = vld [vmem:[%s3350 + $0xa4] sm:$0x1]
        %v7613 = vsel %vm335, %v7434, %v7612
        %7614 = vst [vmem:[%s3350 + $0xa4] sm:$0x1] %v7613
        %v7615 = vld [vmem:[%s3350 + $0xa8] sm:$0xf]
        %v7616 = vsel %vm3352, %v7441, %v7615
        %7617 = vst [vmem:[%s3350 + $0xa8] sm:$0xf] %v7616
        %7618 = vst.msk [vmem:[%s3350 + $0xac] sm:$0xf] %vm324, %v7450
        %v7619 = vld [vmem:[%s3350 + $0xb0] sm:$0x1]
        %v7620 = vsel %vm335, %v7451, %v7619
        %7621 = vst [vmem:[%s3350 + $0xb0] sm:$0x1] %v7620
        %v7622 = vld [vmem:[%s3350 + $0xb4] sm:$0xf]
        %v7623 = vsel %vm3352, %v7458, %v7622
        %7624 = vst [vmem:[%s3350 + $0xb4] sm:$0xf] %v7623
        %7625 = vst.msk [vmem:[%s3350 + $0xb8] sm:$0xf] %vm324, %v7467
        %v7626 = vld [vmem:[%s3350 + $0xbc] sm:$0x1]
        %v7627 = vsel %vm335, %v7468, %v7626
        %7628 = vst [vmem:[%s3350 + $0xbc] sm:$0x1] %v7627
        %v7629 = vld [vmem:[#allocation3] sm:$0xf]
        %v7630 = vld [vmem:[#allocation3 + $0x4] sm:$0xf]
        %v7631 = vld [vmem:[#allocation3 + $0xc] sm:$0xf]
        %v7632 = vld [vmem:[#allocation3 + $0x10] sm:$0xf]
        %v7633 = vld [vmem:[#allocation3 + $0x18] sm:$0xf]
        %v7634 = vld [vmem:[#allocation3 + $0x1c] sm:$0xf]
        %v7635 = vld [vmem:[#allocation3 + $0x24] sm:$0xf]
        %v7636 = vld [vmem:[#allocation3 + $0x28] sm:$0xf]
        %v7637 = vld [vmem:[#allocation3 + $0x30] sm:$0xf]
        %v7638 = vld [vmem:[#allocation3 + $0x34] sm:$0xf]
        %v7639 = vld [vmem:[#allocation3 + $0x3c] sm:$0xf]
        %v7640 = vld [vmem:[#allocation3 + $0x40] sm:$0xf]
        %v7641 = vld [vmem:[#allocation3 + $0x48] sm:$0xf]
        %v7642 = vld [vmem:[#allocation3 + $0x4c] sm:$0xf]
        %v7643 = vld [vmem:[#allocation3 + $0x54] sm:$0xf]
        %v7644 = vld [vmem:[#allocation3 + $0x58] sm:$0xf]
        %v7645 = vld [vmem:[#allocation3 + $0x60] sm:$0xf]
        %v7646 = vld [vmem:[#allocation3 + $0x64] sm:$0xf]
        %v7647 = vld [vmem:[#allocation3 + $0x6c] sm:$0xf]
        %v7648 = vld [vmem:[#allocation3 + $0x70] sm:$0xf]
        %v7649 = vld [vmem:[#allocation3 + $0x78] sm:$0xf]
        %v7650 = vld [vmem:[#allocation3 + $0x7c] sm:$0xf]
        %v7651 = vld [vmem:[#allocation3 + $0x84] sm:$0xf]
        %v7652 = vld [vmem:[#allocation3 + $0x88] sm:$0xf]
        %v7653 = vld [vmem:[#allocation3 + $0x90] sm:$0xf]
        %v7654 = vld [vmem:[#allocation3 + $0x94] sm:$0xf]
        %v7655 = vld [vmem:[#allocation3 + $0x9c] sm:$0xf]
        %v7656 = vld [vmem:[#allocation3 + $0xa0] sm:$0xf]
        %v7657 = vld [vmem:[#allocation3 + $0xa8] sm:$0xf]
        %v7658 = vld [vmem:[#allocation3 + $0xac] sm:$0xf]
        %v7659 = vld [vmem:[#allocation3 + $0xb4] sm:$0xf]
        %v7660 = vld [vmem:[#allocation3 + $0xb8] sm:$0xf]
        %v7693 = vunpack.c.l.b16 %v7629
        %v7694 = vunpack.c.l.b16 %v7630
        %v7695 = vunpack.c.l.b16 %v7631
        %v7696 = vunpack.c.l.b16 %v7632
        %v7697 = vunpack.c.l.b16 %v7633
        %v7698 = vunpack.c.l.b16 %v7634
        %v7699 = vunpack.c.l.b16 %v7635
        %v7700 = vunpack.c.l.b16 %v7636
        %v7701 = vunpack.c.l.b16 %v7637
        %v7702 = vunpack.c.l.b16 %v7638
        %v7703 = vunpack.c.l.b16 %v7639
        %v7704 = vunpack.c.l.b16 %v7640
        %v7705 = vunpack.c.l.b16 %v7641
        %v7706 = vunpack.c.l.b16 %v7642
        %v7707 = vunpack.c.l.b16 %v7643
        %v7708 = vunpack.c.l.b16 %v7644
        %v7709 = vunpack.c.l.b16 %v7645
        %v7710 = vunpack.c.l.b16 %v7646
        %v7711 = vunpack.c.l.b16 %v7647
        %v7712 = vunpack.c.l.b16 %v7648
        %v7713 = vunpack.c.l.b16 %v7649
        %v7714 = vunpack.c.l.b16 %v7650
        %v7715 = vunpack.c.l.b16 %v7651
        %v7716 = vunpack.c.l.b16 %v7652
        %v7717 = vunpack.c.l.b16 %v7653
        %v7718 = vunpack.c.l.b16 %v7654
        %v7719 = vunpack.c.l.b16 %v7655
        %v7720 = vunpack.c.l.b16 %v7656
        %v7721 = vunpack.c.l.b16 %v7657
        %v7722 = vunpack.c.l.b16 %v7658
        %v7723 = vunpack.c.l.b16 %v7659
        %v7724 = vunpack.c.l.b16 %v7660
        %v7725 = vpack.c.b16 %v7694, %v7693
        %v7726 = vpack.c.b16 %v7696, %v7695
        %v7727 = vpack.c.b16 %v7698, %v7697
        %v7728 = vpack.c.b16 %v7700, %v7699
        %v7729 = vpack.c.b16 %v7702, %v7701
        %v7730 = vpack.c.b16 %v7704, %v7703
        %v7731 = vpack.c.b16 %v7706, %v7705
        %v7732 = vpack.c.b16 %v7708, %v7707
        %v7733 = vpack.c.b16 %v7710, %v7709
        %v7734 = vpack.c.b16 %v7712, %v7711
        %v7735 = vpack.c.b16 %v7714, %v7713
        %v7736 = vpack.c.b16 %v7716, %v7715
        %v7737 = vpack.c.b16 %v7718, %v7717
        %v7738 = vpack.c.b16 %v7720, %v7719
        %v7739 = vpack.c.b16 %v7722, %v7721
        %v7740 = vpack.c.b16 %v7724, %v7723
        %7757 = vst.msk [vmem:[#allocation4] sm:$0xff] %vm3593, %v7725
        %7758 = vst.msk [vmem:[#allocation4 + $0x18] sm:$0xff] %vm3593, %v7726
        %7759 = vst.msk [vmem:[#allocation4 + $0x30] sm:$0xff] %vm3593, %v7727
        %7760 = vst.msk [vmem:[#allocation4 + $0x48] sm:$0xff] %vm3593, %v7728
        %7761 = vst.msk [vmem:[#allocation4 + $0x60] sm:$0xff] %vm3593, %v7729
        %7762 = vst.msk [vmem:[#allocation4 + $0x78] sm:$0xff] %vm3593, %v7730
        %7763 = vst.msk [vmem:[#allocation4 + $0x90] sm:$0xff] %vm3593, %v7731
        %7764 = vst.msk [vmem:[#allocation4 + $0xa8] sm:$0xff] %vm3593, %v7732
        %7765 = vst.msk [vmem:[#allocation4 + $0xc0] sm:$0xff] %vm3593, %v7733
        %7766 = vst.msk [vmem:[#allocation4 + $0xd8] sm:$0xff] %vm3593, %v7734
        %7767 = vst.msk [vmem:[#allocation4 + $0xf0] sm:$0xff] %vm3593, %v7735
        %7768 = vst.msk [vmem:[#allocation4 + $0x108] sm:$0xff] %vm3593, %v7736
        %7769 = vst.msk [vmem:[#allocation4 + $0x120] sm:$0xff] %vm3593, %v7737
        %7770 = vst.msk [vmem:[#allocation4 + $0x138] sm:$0xff] %vm3593, %v7738
        %7771 = vst.msk [vmem:[#allocation4 + $0x150] sm:$0xff] %vm3593, %v7739
        %7772 = vst.msk [vmem:[#allocation4 + $0x168] sm:$0xff] %vm3593, %v7740
        %v7773 = vld [vmem:[#allocation3] sm:$0xf]
        %v7774 = vld [vmem:[#allocation3 + $0x4] sm:$0xf]
        %v7775 = vld [vmem:[#allocation3 + $0x8] sm:$0x1]
        %v7776 = vld [vmem:[#allocation3 + $0xc] sm:$0xf]
        %v7777 = vld [vmem:[#allocation3 + $0x10] sm:$0xf]
        %v7778 = vld [vmem:[#allocation3 + $0x14] sm:$0x1]
        %v7779 = vld [vmem:[#allocation3 + $0x18] sm:$0xf]
        %v7780 = vld [vmem:[#allocation3 + $0x1c] sm:$0xf]
        %v7781 = vld [vmem:[#allocation3 + $0x20] sm:$0x1]
        %v7782 = vld [vmem:[#allocation3 + $0x24] sm:$0xf]
        %v7783 = vld [vmem:[#allocation3 + $0x28] sm:$0xf]
        %v7784 = vld [vmem:[#allocation3 + $0x2c] sm:$0x1]
        %v7785 = vld [vmem:[#allocation3 + $0x30] sm:$0xf]
        %v7786 = vld [vmem:[#allocation3 + $0x34] sm:$0xf]
        %v7787 = vld [vmem:[#allocation3 + $0x38] sm:$0x1]
        %v7788 = vld [vmem:[#allocation3 + $0x3c] sm:$0xf]
        %v7789 = vld [vmem:[#allocation3 + $0x40] sm:$0xf]
        %v7790 = vld [vmem:[#allocation3 + $0x44] sm:$0x1]
        %v7791 = vld [vmem:[#allocation3 + $0x48] sm:$0xf]
        %v7792 = vld [vmem:[#allocation3 + $0x4c] sm:$0xf]
        %v7793 = vld [vmem:[#allocation3 + $0x50] sm:$0x1]
        %v7794 = vld [vmem:[#allocation3 + $0x54] sm:$0xf]
        %v7795 = vld [vmem:[#allocation3 + $0x58] sm:$0xf]
        %v7796 = vld [vmem:[#allocation3 + $0x5c] sm:$0x1]
        %v7797 = vld [vmem:[#allocation3 + $0x60] sm:$0xf]
        %v7798 = vld [vmem:[#allocation3 + $0x64] sm:$0xf]
        %v7799 = vld [vmem:[#allocation3 + $0x68] sm:$0x1]
        %v7800 = vld [vmem:[#allocation3 + $0x6c] sm:$0xf]
        %v7801 = vld [vmem:[#allocation3 + $0x70] sm:$0xf]
        %v7802 = vld [vmem:[#allocation3 + $0x74] sm:$0x1]
        %v7803 = vld [vmem:[#allocation3 + $0x78] sm:$0xf]
        %v7804 = vld [vmem:[#allocation3 + $0x7c] sm:$0xf]
        %v7805 = vld [vmem:[#allocation3 + $0x80] sm:$0x1]
        %v7806 = vld [vmem:[#allocation3 + $0x84] sm:$0xf]
        %v7807 = vld [vmem:[#allocation3 + $0x88] sm:$0xf]
        %v7808 = vld [vmem:[#allocation3 + $0x8c] sm:$0x1]
        %v7809 = vld [vmem:[#allocation3 + $0x90] sm:$0xf]
        %v7810 = vld [vmem:[#allocation3 + $0x94] sm:$0xf]
        %v7811 = vld [vmem:[#allocation3 + $0x98] sm:$0x1]
        %v7812 = vld [vmem:[#allocation3 + $0x9c] sm:$0xf]
        %v7813 = vld [vmem:[#allocation3 + $0xa0] sm:$0xf]
        %v7814 = vld [vmem:[#allocation3 + $0xa4] sm:$0x1]
        %v7815 = vld [vmem:[#allocation3 + $0xa8] sm:$0xf]
        %v7816 = vld [vmem:[#allocation3 + $0xac] sm:$0xf]
        %v7817 = vld [vmem:[#allocation3 + $0xb0] sm:$0x1]
        %v7818 = vld [vmem:[#allocation3 + $0xb4] sm:$0xf]
        %v7819 = vld [vmem:[#allocation3 + $0xb8] sm:$0xf]
        %v7820 = vld [vmem:[#allocation3 + $0xbc] sm:$0x1]
        %v7822 = vshrl.u32 %v7773, 16
        %v7824 = vrot.slane %v7822, 4
        %v7825 = vshll.u32 %v7773, 16
        %v7827 = vrot.slane %v7825, 5
        %v7828 = vor.u32 %v7824, %v7827
        %v7829 = vrot.slane %v7828, 4
        %v7831 = vshll.u32 %v7774, 16
        %v7833 = vrot.slane %v7831, 5
        %v7834 = vsel %vm3660, %v7829, %v7833
        %v7835 = vshrl.u32 %v7774, 16
        %v7837 = vrot.slane %v7835, 4
        %v7838 = vor.u32 %v7837, %v7833
        %v7839 = vrot.slane %v7838, 4
        %v7841 = vshll.u32 %v7775, 16
        %v7843 = vrot.slane %v7841, 5
        %v7844 = vsel %vm3660, %v7839, %v7843
        %v7846 = vshrl.u32 %v7776, 16
        %v7848 = vrot.slane %v7846, 4
        %v7849 = vshll.u32 %v7776, 16
        %v7851 = vrot.slane %v7849, 5
        %v7852 = vor.u32 %v7848, %v7851
        %v7853 = vrot.slane %v7852, 4
        %v7855 = vshll.u32 %v7777, 16
        %v7857 = vrot.slane %v7855, 5
        %v7858 = vsel %vm3660, %v7853, %v7857
        %v7859 = vshrl.u32 %v7777, 16
        %v7861 = vrot.slane %v7859, 4
        %v7862 = vor.u32 %v7861, %v7857
        %v7863 = vrot.slane %v7862, 4
        %v7865 = vshll.u32 %v7778, 16
        %v7867 = vrot.slane %v7865, 5
        %v7868 = vsel %vm3660, %v7863, %v7867
        %v7870 = vshrl.u32 %v7779, 16
        %v7872 = vrot.slane %v7870, 4
        %v7873 = vshll.u32 %v7779, 16
        %v7875 = vrot.slane %v7873, 5
        %v7876 = vor.u32 %v7872, %v7875
        %v7877 = vrot.slane %v7876, 4
        %v7879 = vshll.u32 %v7780, 16
        %v7881 = vrot.slane %v7879, 5
        %v7882 = vsel %vm3660, %v7877, %v7881
        %v7883 = vshrl.u32 %v7780, 16
        %v7885 = vrot.slane %v7883, 4
        %v7886 = vor.u32 %v7885, %v7881
        %v7887 = vrot.slane %v7886, 4
        %v7889 = vshll.u32 %v7781, 16
        %v7891 = vrot.slane %v7889, 5
        %v7892 = vsel %vm3660, %v7887, %v7891
        %v7894 = vshrl.u32 %v7782, 16
        %v7896 = vrot.slane %v7894, 4
        %v7897 = vshll.u32 %v7782, 16
        %v7899 = vrot.slane %v7897, 5
        %v7900 = vor.u32 %v7896, %v7899
        %v7901 = vrot.slane %v7900, 4
        %v7903 = vshll.u32 %v7783, 16
        %v7905 = vrot.slane %v7903, 5
        %v7906 = vsel %vm3660, %v7901, %v7905
        %v7907 = vshrl.u32 %v7783, 16
        %v7909 = vrot.slane %v7907, 4
        %v7910 = vor.u32 %v7909, %v7905
        %v7911 = vrot.slane %v7910, 4
        %v7913 = vshll.u32 %v7784, 16
        %v7915 = vrot.slane %v7913, 5
        %v7916 = vsel %vm3660, %v7911, %v7915
        %v7918 = vshrl.u32 %v7785, 16
        %v7920 = vrot.slane %v7918, 4
        %v7921 = vshll.u32 %v7785, 16
        %v7923 = vrot.slane %v7921, 5
        %v7924 = vor.u32 %v7920, %v7923
        %v7925 = vrot.slane %v7924, 4
        %v7927 = vshll.u32 %v7786, 16
        %v7929 = vrot.slane %v7927, 5
        %v7930 = vsel %vm3660, %v7925, %v7929
        %v7931 = vshrl.u32 %v7786, 16
        %v7933 = vrot.slane %v7931, 4
        %v7934 = vor.u32 %v7933, %v7929
        %v7935 = vrot.slane %v7934, 4
        %v7937 = vshll.u32 %v7787, 16
        %v7939 = vrot.slane %v7937, 5
        %v7940 = vsel %vm3660, %v7935, %v7939
        %v7942 = vshrl.u32 %v7788, 16
        %v7944 = vrot.slane %v7942, 4
        %v7945 = vshll.u32 %v7788, 16
        %v7947 = vrot.slane %v7945, 5
        %v7948 = vor.u32 %v7944, %v7947
        %v7949 = vrot.slane %v7948, 4
        %v7951 = vshll.u32 %v7789, 16
        %v7953 = vrot.slane %v7951, 5
        %v7954 = vsel %vm3660, %v7949, %v7953
        %v7955 = vshrl.u32 %v7789, 16
        %v7957 = vrot.slane %v7955, 4
        %v7958 = vor.u32 %v7957, %v7953
        %v7959 = vrot.slane %v7958, 4
        %v7961 = vshll.u32 %v7790, 16
        %v7963 = vrot.slane %v7961, 5
        %v7964 = vsel %vm3660, %v7959, %v7963
        %v7966 = vshrl.u32 %v7791, 16
        %v7968 = vrot.slane %v7966, 4
        %v7969 = vshll.u32 %v7791, 16
        %v7971 = vrot.slane %v7969, 5
        %v7972 = vor.u32 %v7968, %v7971
        %v7973 = vrot.slane %v7972, 4
        %v7975 = vshll.u32 %v7792, 16
        %v7977 = vrot.slane %v7975, 5
        %v7978 = vsel %vm3660, %v7973, %v7977
        %v7979 = vshrl.u32 %v7792, 16
        %v7981 = vrot.slane %v7979, 4
        %v7982 = vor.u32 %v7981, %v7977
        %v7983 = vrot.slane %v7982, 4
        %v7985 = vshll.u32 %v7793, 16
        %v7987 = vrot.slane %v7985, 5
        %v7988 = vsel %vm3660, %v7983, %v7987
        %v7990 = vshrl.u32 %v7794, 16
        %v7992 = vrot.slane %v7990, 4
        %v7993 = vshll.u32 %v7794, 16
        %v7995 = vrot.slane %v7993, 5
        %v7996 = vor.u32 %v7992, %v7995
        %v7997 = vrot.slane %v7996, 4
        %v7999 = vshll.u32 %v7795, 16
        %v8001 = vrot.slane %v7999, 5
        %v8002 = vsel %vm3660, %v7997, %v8001
        %v8003 = vshrl.u32 %v7795, 16
        %v8005 = vrot.slane %v8003, 4
        %v8006 = vor.u32 %v8005, %v8001
        %v8007 = vrot.slane %v8006, 4
        %v8009 = vshll.u32 %v7796, 16
        %v8011 = vrot.slane %v8009, 5
        %v8012 = vsel %vm3660, %v8007, %v8011
        %v8014 = vshrl.u32 %v7797, 16
        %v8016 = vrot.slane %v8014, 4
        %v8017 = vshll.u32 %v7797, 16
        %v8019 = vrot.slane %v8017, 5
        %v8020 = vor.u32 %v8016, %v8019
        %v8021 = vrot.slane %v8020, 4
        %v8023 = vshll.u32 %v7798, 16
        %v8025 = vrot.slane %v8023, 5
        %v8026 = vsel %vm3660, %v8021, %v8025
        %v8027 = vshrl.u32 %v7798, 16
        %v8029 = vrot.slane %v8027, 4
        %v8030 = vor.u32 %v8029, %v8025
        %v8031 = vrot.slane %v8030, 4
        %v8033 = vshll.u32 %v7799, 16
        %v8035 = vrot.slane %v8033, 5
        %v8036 = vsel %vm3660, %v8031, %v8035
        %v8038 = vshrl.u32 %v7800, 16
        %v8040 = vrot.slane %v8038, 4
        %v8041 = vshll.u32 %v7800, 16
        %v8043 = vrot.slane %v8041, 5
        %v8044 = vor.u32 %v8040, %v8043
        %v8045 = vrot.slane %v8044, 4
        %v8047 = vshll.u32 %v7801, 16
        %v8049 = vrot.slane %v8047, 5
        %v8050 = vsel %vm3660, %v8045, %v8049
        %v8051 = vshrl.u32 %v7801, 16
        %v8053 = vrot.slane %v8051, 4
        %v8054 = vor.u32 %v8053, %v8049
        %v8055 = vrot.slane %v8054, 4
        %v8057 = vshll.u32 %v7802, 16
        %v8059 = vrot.slane %v8057, 5
        %v8060 = vsel %vm3660, %v8055, %v8059
        %v8062 = vshrl.u32 %v7803, 16
        %v8064 = vrot.slane %v8062, 4
        %v8065 = vshll.u32 %v7803, 16
        %v8067 = vrot.slane %v8065, 5
        %v8068 = vor.u32 %v8064, %v8067
        %v8069 = vrot.slane %v8068, 4
        %v8071 = vshll.u32 %v7804, 16
        %v8073 = vrot.slane %v8071, 5
        %v8074 = vsel %vm3660, %v8069, %v8073
        %v8075 = vshrl.u32 %v7804, 16
        %v8077 = vrot.slane %v8075, 4
        %v8078 = vor.u32 %v8077, %v8073
        %v8079 = vrot.slane %v8078, 4
        %v8081 = vshll.u32 %v7805, 16
        %v8083 = vrot.slane %v8081, 5
        %v8084 = vsel %vm3660, %v8079, %v8083
        %v8086 = vshrl.u32 %v7806, 16
        %v8088 = vrot.slane %v8086, 4
        %v8089 = vshll.u32 %v7806, 16
        %v8091 = vrot.slane %v8089, 5
        %v8092 = vor.u32 %v8088, %v8091
        %v8093 = vrot.slane %v8092, 4
        %v8095 = vshll.u32 %v7807, 16
        %v8097 = vrot.slane %v8095, 5
        %v8098 = vsel %vm3660, %v8093, %v8097
        %v8099 = vshrl.u32 %v7807, 16
        %v8101 = vrot.slane %v8099, 4
        %v8102 = vor.u32 %v8101, %v8097
        %v8103 = vrot.slane %v8102, 4
        %v8105 = vshll.u32 %v7808, 16
        %v8107 = vrot.slane %v8105, 5
        %v8108 = vsel %vm3660, %v8103, %v8107
        %v8110 = vshrl.u32 %v7809, 16
        %v8112 = vrot.slane %v8110, 4
        %v8113 = vshll.u32 %v7809, 16
        %v8115 = vrot.slane %v8113, 5
        %v8116 = vor.u32 %v8112, %v8115
        %v8117 = vrot.slane %v8116, 4
        %v8119 = vshll.u32 %v7810, 16
        %v8121 = vrot.slane %v8119, 5
        %v8122 = vsel %vm3660, %v8117, %v8121
        %v8123 = vshrl.u32 %v7810, 16
        %v8125 = vrot.slane %v8123, 4
        %v8126 = vor.u32 %v8125, %v8121
        %v8127 = vrot.slane %v8126, 4
        %v8129 = vshll.u32 %v7811, 16
        %v8131 = vrot.slane %v8129, 5
        %v8132 = vsel %vm3660, %v8127, %v8131
        %v8134 = vshrl.u32 %v7812, 16
        %v8136 = vrot.slane %v8134, 4
        %v8137 = vshll.u32 %v7812, 16
        %v8139 = vrot.slane %v8137, 5
        %v8140 = vor.u32 %v8136, %v8139
        %v8141 = vrot.slane %v8140, 4
        %v8143 = vshll.u32 %v7813, 16
        %v8145 = vrot.slane %v8143, 5
        %v8146 = vsel %vm3660, %v8141, %v8145
        %v8147 = vshrl.u32 %v7813, 16
        %v8149 = vrot.slane %v8147, 4
        %v8150 = vor.u32 %v8149, %v8145
        %v8151 = vrot.slane %v8150, 4
        %v8153 = vshll.u32 %v7814, 16
        %v8155 = vrot.slane %v8153, 5
        %v8156 = vsel %vm3660, %v8151, %v8155
        %v8158 = vshrl.u32 %v7815, 16
        %v8160 = vrot.slane %v8158, 4
        %v8161 = vshll.u32 %v7815, 16
        %v8163 = vrot.slane %v8161, 5
        %v8164 = vor.u32 %v8160, %v8163
        %v8165 = vrot.slane %v8164, 4
        %v8167 = vshll.u32 %v7816, 16
        %v8169 = vrot.slane %v8167, 5
        %v8170 = vsel %vm3660, %v8165, %v8169
        %v8171 = vshrl.u32 %v7816, 16
        %v8173 = vrot.slane %v8171, 4
        %v8174 = vor.u32 %v8173, %v8169
        %v8175 = vrot.slane %v8174, 4
        %v8177 = vshll.u32 %v7817, 16
        %v8179 = vrot.slane %v8177, 5
        %v8180 = vsel %vm3660, %v8175, %v8179
        %v8182 = vshrl.u32 %v7818, 16
        %v8184 = vrot.slane %v8182, 4
        %v8185 = vshll.u32 %v7818, 16
        %v8187 = vrot.slane %v8185, 5
        %v8188 = vor.u32 %v8184, %v8187
        %v8189 = vrot.slane %v8188, 4
        %v8191 = vshll.u32 %v7819, 16
        %v8193 = vrot.slane %v8191, 5
        %v8194 = vsel %vm3660, %v8189, %v8193
        %v8195 = vshrl.u32 %v7819, 16
        %v8197 = vrot.slane %v8195, 4
        %v8198 = vor.u32 %v8197, %v8193
        %v8199 = vrot.slane %v8198, 4
        %v8201 = vshll.u32 %v7820, 16
        %v8203 = vrot.slane %v8201, 5
        %v8204 = vsel %vm3660, %v8199, %v8203
        %v8205 = vunpack.c.l.b16 %v7834
        %v8206 = vunpack.c.l.b16 %v7844
        %v8207 = vunpack.c.l.b16 %v7858
        %v8208 = vunpack.c.l.b16 %v7868
        %v8209 = vunpack.c.l.b16 %v7882
        %v8210 = vunpack.c.l.b16 %v7892
        %v8211 = vunpack.c.l.b16 %v7906
        %v8212 = vunpack.c.l.b16 %v7916
        %v8213 = vunpack.c.l.b16 %v7930
        %v8214 = vunpack.c.l.b16 %v7940
        %v8215 = vunpack.c.l.b16 %v7954
        %v8216 = vunpack.c.l.b16 %v7964
        %v8217 = vunpack.c.l.b16 %v7978
        %v8218 = vunpack.c.l.b16 %v7988
        %v8219 = vunpack.c.l.b16 %v8002
        %v8220 = vunpack.c.l.b16 %v8012
        %v8221 = vunpack.c.l.b16 %v8026
        %v8222 = vunpack.c.l.b16 %v8036
        %v8223 = vunpack.c.l.b16 %v8050
        %v8224 = vunpack.c.l.b16 %v8060
        %v8225 = vunpack.c.l.b16 %v8074
        %v8226 = vunpack.c.l.b16 %v8084
        %v8227 = vunpack.c.l.b16 %v8098
        %v8228 = vunpack.c.l.b16 %v8108
        %v8229 = vunpack.c.l.b16 %v8122
        %v8230 = vunpack.c.l.b16 %v8132
        %v8231 = vunpack.c.l.b16 %v8146
        %v8232 = vunpack.c.l.b16 %v8156
        %v8233 = vunpack.c.l.b16 %v8170
        %v8234 = vunpack.c.l.b16 %v8180
        %v8235 = vunpack.c.l.b16 %v8194
        %v8236 = vunpack.c.l.b16 %v8204
        %v8237 = vpack.c.b16 %v8206, %v8205
        %v8238 = vpack.c.b16 %v8208, %v8207
        %v8239 = vpack.c.b16 %v8210, %v8209
        %v8240 = vpack.c.b16 %v8212, %v8211
        %v8241 = vpack.c.b16 %v8214, %v8213
        %v8242 = vpack.c.b16 %v8216, %v8215
        %v8243 = vpack.c.b16 %v8218, %v8217
        %v8244 = vpack.c.b16 %v8220, %v8219
        %v8245 = vpack.c.b16 %v8222, %v8221
        %v8246 = vpack.c.b16 %v8224, %v8223
        %v8247 = vpack.c.b16 %v8226, %v8225
        %v8248 = vpack.c.b16 %v8228, %v8227
        %v8249 = vpack.c.b16 %v8230, %v8229
        %v8250 = vpack.c.b16 %v8232, %v8231
        %v8251 = vpack.c.b16 %v8234, %v8233
        %v8252 = vpack.c.b16 %v8236, %v8235
        %8253 = vrot.lane.b32.xlu0 %v8237, 32
        %v8254 = vpop.permute.xlu0 %8253
        %8255 = vrot.lane.b32.xlu0 %v8238, 32
        %v8256 = vpop.permute.xlu0 %8255
        %8257 = vrot.lane.b32.xlu0 %v8239, 32
        %v8258 = vpop.permute.xlu0 %8257
        %8259 = vrot.lane.b32.xlu0 %v8240, 32
        %v8260 = vpop.permute.xlu0 %8259
        %8261 = vrot.lane.b32.xlu0 %v8241, 32
        %v8262 = vpop.permute.xlu0 %8261
        %8263 = vrot.lane.b32.xlu0 %v8242, 32
        %v8264 = vpop.permute.xlu0 %8263
        %8265 = vrot.lane.b32.xlu0 %v8243, 32
        %v8266 = vpop.permute.xlu0 %8265
        %8267 = vrot.lane.b32.xlu0 %v8244, 32
        %v8268 = vpop.permute.xlu0 %8267
        %8269 = vrot.lane.b32.xlu0 %v8245, 32
        %v8270 = vpop.permute.xlu0 %8269
        %8271 = vrot.lane.b32.xlu0 %v8246, 32
        %v8272 = vpop.permute.xlu0 %8271
        %8273 = vrot.lane.b32.xlu0 %v8247, 32
        %v8274 = vpop.permute.xlu0 %8273
        %8275 = vrot.lane.b32.xlu0 %v8248, 32
        %v8276 = vpop.permute.xlu0 %8275
        %8277 = vrot.lane.b32.xlu0 %v8249, 32
        %v8278 = vpop.permute.xlu0 %8277
        %8279 = vrot.lane.b32.xlu0 %v8250, 32
        %v8280 = vpop.permute.xlu0 %8279
        %8281 = vrot.lane.b32.xlu0 %v8251, 32
        %v8282 = vpop.permute.xlu0 %8281
        %8283 = vrot.lane.b32.xlu0 %v8252, 32
        %v8284 = vpop.permute.xlu0 %8283
        %8301 = vst.msk [vmem:[#allocation4] sm:$0xff] %vm4141, %v8254
        %8302 = vst.msk [vmem:[#allocation4 + $0x18] sm:$0xff] %vm4141, %v8256
        %8303 = vst.msk [vmem:[#allocation4 + $0x30] sm:$0xff] %vm4141, %v8258
        %8304 = vst.msk [vmem:[#allocation4 + $0x48] sm:$0xff] %vm4141, %v8260
        %8305 = vst.msk [vmem:[#allocation4 + $0x60] sm:$0xff] %vm4141, %v8262
        %8306 = vst.msk [vmem:[#allocation4 + $0x78] sm:$0xff] %vm4141, %v8264
        %8307 = vst.msk [vmem:[#allocation4 + $0x90] sm:$0xff] %vm4141, %v8266
        %8308 = vst.msk [vmem:[#allocation4 + $0xa8] sm:$0xff] %vm4141, %v8268
        %8309 = vst.msk [vmem:[#allocation4 + $0xc0] sm:$0xff] %vm4141, %v8270
        %8310 = vst.msk [vmem:[#allocation4 + $0xd8] sm:$0xff] %vm4141, %v8272
        %8311 = vst.msk [vmem:[#allocation4 + $0xf0] sm:$0xff] %vm4141, %v8274
        %8312 = vst.msk [vmem:[#allocation4 + $0x108] sm:$0xff] %vm4141, %v8276
        %8313 = vst.msk [vmem:[#allocation4 + $0x120] sm:$0xff] %vm4141, %v8278
        %8314 = vst.msk [vmem:[#allocation4 + $0x138] sm:$0xff] %vm4141, %v8280
        %8315 = vst.msk [vmem:[#allocation4 + $0x150] sm:$0xff] %vm4141, %v8282
        %8316 = vst.msk [vmem:[#allocation4 + $0x168] sm:$0xff] %vm4141, %v8284
        %v8317 = vld [vmem:[#allocation3] sm:$0xe]
        %v8318 = vld [vmem:[#allocation3 + $0x4] sm:$0xf]
        %v8319 = vld [vmem:[#allocation3 + $0x8] sm:$0x1]
        %v8320 = vld [vmem:[#allocation3 + $0xc] sm:$0xe]
        %v8321 = vld [vmem:[#allocation3 + $0x10] sm:$0xf]
        %v8322 = vld [vmem:[#allocation3 + $0x14] sm:$0x1]
        %v8323 = vld [vmem:[#allocation3 + $0x18] sm:$0xe]
        %v8324 = vld [vmem:[#allocation3 + $0x1c] sm:$0xf]
        %v8325 = vld [vmem:[#allocation3 + $0x20] sm:$0x1]
        %v8326 = vld [vmem:[#allocation3 + $0x24] sm:$0xe]
        %v8327 = vld [vmem:[#allocation3 + $0x28] sm:$0xf]
        %v8328 = vld [vmem:[#allocation3 + $0x2c] sm:$0x1]
        %v8329 = vld [vmem:[#allocation3 + $0x30] sm:$0xe]
        %v8330 = vld [vmem:[#allocation3 + $0x34] sm:$0xf]
        %v8331 = vld [vmem:[#allocation3 + $0x38] sm:$0x1]
        %v8332 = vld [vmem:[#allocation3 + $0x3c] sm:$0xe]
        %v8333 = vld [vmem:[#allocation3 + $0x40] sm:$0xf]
        %v8334 = vld [vmem:[#allocation3 + $0x44] sm:$0x1]
        %v8335 = vld [vmem:[#allocation3 + $0x48] sm:$0xe]
        %v8336 = vld [vmem:[#allocation3 + $0x4c] sm:$0xf]
        %v8337 = vld [vmem:[#allocation3 + $0x50] sm:$0x1]
        %v8338 = vld [vmem:[#allocation3 + $0x54] sm:$0xe]
        %v8339 = vld [vmem:[#allocation3 + $0x58] sm:$0xf]
        %v8340 = vld [vmem:[#allocation3 + $0x5c] sm:$0x1]
        %v8341 = vld [vmem:[#allocation3 + $0x60] sm:$0xe]
        %v8342 = vld [vmem:[#allocation3 + $0x64] sm:$0xf]
        %v8343 = vld [vmem:[#allocation3 + $0x68] sm:$0x1]
        %v8344 = vld [vmem:[#allocation3 + $0x6c] sm:$0xe]
        %v8345 = vld [vmem:[#allocation3 + $0x70] sm:$0xf]
        %v8346 = vld [vmem:[#allocation3 + $0x74] sm:$0x1]
        %v8347 = vld [vmem:[#allocation3 + $0x78] sm:$0xe]
        %v8348 = vld [vmem:[#allocation3 + $0x7c] sm:$0xf]
        %v8349 = vld [vmem:[#allocation3 + $0x80] sm:$0x1]
        %v8350 = vld [vmem:[#allocation3 + $0x84] sm:$0xe]
        %v8351 = vld [vmem:[#allocation3 + $0x88] sm:$0xf]
        %v8352 = vld [vmem:[#allocation3 + $0x8c] sm:$0x1]
        %v8353 = vld [vmem:[#allocation3 + $0x90] sm:$0xe]
        %v8354 = vld [vmem:[#allocation3 + $0x94] sm:$0xf]
        %v8355 = vld [vmem:[#allocation3 + $0x98] sm:$0x1]
        %v8356 = vld [vmem:[#allocation3 + $0x9c] sm:$0xe]
        %v8357 = vld [vmem:[#allocation3 + $0xa0] sm:$0xf]
        %v8358 = vld [vmem:[#allocation3 + $0xa4] sm:$0x1]
        %v8359 = vld [vmem:[#allocation3 + $0xa8] sm:$0xe]
        %v8360 = vld [vmem:[#allocation3 + $0xac] sm:$0xf]
        %v8361 = vld [vmem:[#allocation3 + $0xb0] sm:$0x1]
        %v8362 = vld [vmem:[#allocation3 + $0xb4] sm:$0xe]
        %v8363 = vld [vmem:[#allocation3 + $0xb8] sm:$0xf]
        %v8364 = vld [vmem:[#allocation3 + $0xbc] sm:$0x1]
        %v8413 = vrot.slane %v8317, 5
        %v8414 = vrot.slane %v8413, 4
        %v8415 = vrot.slane %v8318, 5
        %v8416 = vsel %vm4256, %v8414, %v8415
        %v8417 = vrot.slane %v8415, 4
        %v8418 = vrot.slane %v8319, 5
        %v8419 = vsel %vm4256, %v8417, %v8418
        %v8420 = vrot.slane %v8320, 5
        %v8421 = vrot.slane %v8420, 4
        %v8422 = vrot.slane %v8321, 5
        %v8423 = vsel %vm4256, %v8421, %v8422
        %v8424 = vrot.slane %v8422, 4
        %v8425 = vrot.slane %v8322, 5
        %v8426 = vsel %vm4256, %v8424, %v8425
        %v8427 = vrot.slane %v8323, 5
        %v8428 = vrot.slane %v8427, 4
        %v8429 = vrot.slane %v8324, 5
        %v8430 = vsel %vm4256, %v8428, %v8429
        %v8431 = vrot.slane %v8429, 4
        %v8432 = vrot.slane %v8325, 5
        %v8433 = vsel %vm4256, %v8431, %v8432
        %v8434 = vrot.slane %v8326, 5
        %v8435 = vrot.slane %v8434, 4
        %v8436 = vrot.slane %v8327, 5
        %v8437 = vsel %vm4256, %v8435, %v8436
        %v8438 = vrot.slane %v8436, 4
        %v8439 = vrot.slane %v8328, 5
        %v8440 = vsel %vm4256, %v8438, %v8439
        %v8441 = vrot.slane %v8329, 5
        %v8442 = vrot.slane %v8441, 4
        %v8443 = vrot.slane %v8330, 5
        %v8444 = vsel %vm4256, %v8442, %v8443
        %v8445 = vrot.slane %v8443, 4
        %v8446 = vrot.slane %v8331, 5
        %v8447 = vsel %vm4256, %v8445, %v8446
        %v8448 = vrot.slane %v8332, 5
        %v8449 = vrot.slane %v8448, 4
        %v8450 = vrot.slane %v8333, 5
        %v8451 = vsel %vm4256, %v8449, %v8450
        %v8452 = vrot.slane %v8450, 4
        %v8453 = vrot.slane %v8334, 5
        %v8454 = vsel %vm4256, %v8452, %v8453
        %v8455 = vrot.slane %v8335, 5
        %v8456 = vrot.slane %v8455, 4
        %v8457 = vrot.slane %v8336, 5
        %v8458 = vsel %vm4256, %v8456, %v8457
        %v8459 = vrot.slane %v8457, 4
        %v8460 = vrot.slane %v8337, 5
        %v8461 = vsel %vm4256, %v8459, %v8460
        %v8462 = vrot.slane %v8338, 5
        %v8463 = vrot.slane %v8462, 4
        %v8464 = vrot.slane %v8339, 5
        %v8465 = vsel %vm4256, %v8463, %v8464
        %v8466 = vrot.slane %v8464, 4
        %v8467 = vrot.slane %v8340, 5
        %v8468 = vsel %vm4256, %v8466, %v8467
        %v8469 = vrot.slane %v8341, 5
        %v8470 = vrot.slane %v8469, 4
        %v8471 = vrot.slane %v8342, 5
        %v8472 = vsel %vm4256, %v8470, %v8471
        %v8473 = vrot.slane %v8471, 4
        %v8474 = vrot.slane %v8343, 5
        %v8475 = vsel %vm4256, %v8473, %v8474
        %v8476 = vrot.slane %v8344, 5
        %v8477 = vrot.slane %v8476, 4
        %v8478 = vrot.slane %v8345, 5
        %v8479 = vsel %vm4256, %v8477, %v8478
        %v8480 = vrot.slane %v8478, 4
        %v8481 = vrot.slane %v8346, 5
        %v8482 = vsel %vm4256, %v8480, %v8481
        %v8483 = vrot.slane %v8347, 5
        %v8484 = vrot.slane %v8483, 4
        %v8485 = vrot.slane %v8348, 5
        %v8486 = vsel %vm4256, %v8484, %v8485
        %v8487 = vrot.slane %v8485, 4
        %v8488 = vrot.slane %v8349, 5
        %v8489 = vsel %vm4256, %v8487, %v8488
        %v8490 = vrot.slane %v8350, 5
        %v8491 = vrot.slane %v8490, 4
        %v8492 = vrot.slane %v8351, 5
        %v8493 = vsel %vm4256, %v8491, %v8492
        %v8494 = vrot.slane %v8492, 4
        %v8495 = vrot.slane %v8352, 5
        %v8496 = vsel %vm4256, %v8494, %v8495
        %v8497 = vrot.slane %v8353, 5
        %v8498 = vrot.slane %v8497, 4
        %v8499 = vrot.slane %v8354, 5
        %v8500 = vsel %vm4256, %v8498, %v8499
        %v8501 = vrot.slane %v8499, 4
        %v8502 = vrot.slane %v8355, 5
        %v8503 = vsel %vm4256, %v8501, %v8502
        %v8504 = vrot.slane %v8356, 5
        %v8505 = vrot.slane %v8504, 4
        %v8506 = vrot.slane %v8357, 5
        %v8507 = vsel %vm4256, %v8505, %v8506
        %v8508 = vrot.slane %v8506, 4
        %v8509 = vrot.slane %v8358, 5
        %v8510 = vsel %vm4256, %v8508, %v8509
        %v8511 = vrot.slane %v8359, 5
        %v8512 = vrot.slane %v8511, 4
        %v8513 = vrot.slane %v8360, 5
        %v8514 = vsel %vm4256, %v8512, %v8513
        %v8515 = vrot.slane %v8513, 4
        %v8516 = vrot.slane %v8361, 5
        %v8517 = vsel %vm4256, %v8515, %v8516
        %v8518 = vrot.slane %v8362, 5
        %v8519 = vrot.slane %v8518, 4
        %v8520 = vrot.slane %v8363, 5
        %v8521 = vsel %vm4256, %v8519, %v8520
        %v8522 = vrot.slane %v8520, 4
        %v8523 = vrot.slane %v8364, 5
        %v8524 = vsel %vm4256, %v8522, %v8523
        %v8525 = vunpack.c.l.b16 %v8416
        %v8526 = vunpack.c.l.b16 %v8419
        %v8527 = vunpack.c.l.b16 %v8423
        %v8528 = vunpack.c.l.b16 %v8426
        %v8529 = vunpack.c.l.b16 %v8430
        %v8530 = vunpack.c.l.b16 %v8433
        %v8531 = vunpack.c.l.b16 %v8437
        %v8532 = vunpack.c.l.b16 %v8440
        %v8533 = vunpack.c.l.b16 %v8444
        %v8534 = vunpack.c.l.b16 %v8447
        %v8535 = vunpack.c.l.b16 %v8451
        %v8536 = vunpack.c.l.b16 %v8454
        %v8537 = vunpack.c.l.b16 %v8458
        %v8538 = vunpack.c.l.b16 %v8461
        %v8539 = vunpack.c.l.b16 %v8465
        %v8540 = vunpack.c.l.b16 %v8468
        %v8541 = vunpack.c.l.b16 %v8472
        %v8542 = vunpack.c.l.b16 %v8475
        %v8543 = vunpack.c.l.b16 %v8479
        %v8544 = vunpack.c.l.b16 %v8482
        %v8545 = vunpack.c.l.b16 %v8486
        %v8546 = vunpack.c.l.b16 %v8489
        %v8547 = vunpack.c.l.b16 %v8493
        %v8548 = vunpack.c.l.b16 %v8496
        %v8549 = vunpack.c.l.b16 %v8500
        %v8550 = vunpack.c.l.b16 %v8503
        %v8551 = vunpack.c.l.b16 %v8507
        %v8552 = vunpack.c.l.b16 %v8510
        %v8553 = vunpack.c.l.b16 %v8514
        %v8554 = vunpack.c.l.b16 %v8517
        %v8555 = vunpack.c.l.b16 %v8521
        %v8556 = vunpack.c.l.b16 %v8524
        %v8557 = vpack.c.b16 %v8526, %v8525
        %v8558 = vpack.c.b16 %v8528, %v8527
        %v8559 = vpack.c.b16 %v8530, %v8529
        %v8560 = vpack.c.b16 %v8532, %v8531
        %v8561 = vpack.c.b16 %v8534, %v8533
        %v8562 = vpack.c.b16 %v8536, %v8535
        %v8563 = vpack.c.b16 %v8538, %v8537
        %v8564 = vpack.c.b16 %v8540, %v8539
        %v8565 = vpack.c.b16 %v8542, %v8541
        %v8566 = vpack.c.b16 %v8544, %v8543
        %v8567 = vpack.c.b16 %v8546, %v8545
        %v8568 = vpack.c.b16 %v8548, %v8547
        %v8569 = vpack.c.b16 %v8550, %v8549
        %v8570 = vpack.c.b16 %v8552, %v8551
        %v8571 = vpack.c.b16 %v8554, %v8553
        %v8572 = vpack.c.b16 %v8556, %v8555
        %8573 = vrot.lane.b32.xlu0 %v8557, 64
        %v8574 = vpop.permute.xlu0 %8573
        %8575 = vrot.lane.b32.xlu0 %v8558, 64
        %v8576 = vpop.permute.xlu0 %8575
        %8577 = vrot.lane.b32.xlu0 %v8559, 64
        %v8578 = vpop.permute.xlu0 %8577
        %8579 = vrot.lane.b32.xlu0 %v8560, 64
        %v8580 = vpop.permute.xlu0 %8579
        %8581 = vrot.lane.b32.xlu0 %v8561, 64
        %v8582 = vpop.permute.xlu0 %8581
        %8583 = vrot.lane.b32.xlu0 %v8562, 64
        %v8584 = vpop.permute.xlu0 %8583
        %8585 = vrot.lane.b32.xlu0 %v8563, 64
        %v8586 = vpop.permute.xlu0 %8585
        %8587 = vrot.lane.b32.xlu0 %v8564, 64
        %v8588 = vpop.permute.xlu0 %8587
        %8589 = vrot.lane.b32.xlu0 %v8565, 64
        %v8590 = vpop.permute.xlu0 %8589
        %8591 = vrot.lane.b32.xlu0 %v8566, 64
        %v8592 = vpop.permute.xlu0 %8591
        %8593 = vrot.lane.b32.xlu0 %v8567, 64
        %v8594 = vpop.permute.xlu0 %8593
        %8595 = vrot.lane.b32.xlu0 %v8568, 64
        %v8596 = vpop.permute.xlu0 %8595
        %8597 = vrot.lane.b32.xlu0 %v8569, 64
        %v8598 = vpop.permute.xlu0 %8597
        %8599 = vrot.lane.b32.xlu0 %v8570, 64
        %v8600 = vpop.permute.xlu0 %8599
        %8601 = vrot.lane.b32.xlu0 %v8571, 64
        %v8602 = vpop.permute.xlu0 %8601
        %8603 = vrot.lane.b32.xlu0 %v8572, 64
        %v8604 = vpop.permute.xlu0 %8603
        %8621 = vst.msk [vmem:[#allocation4] sm:$0xff] %vm4465, %v8574
        %8622 = vst.msk [vmem:[#allocation4 + $0x18] sm:$0xff] %vm4465, %v8576
        %8623 = vst.msk [vmem:[#allocation4 + $0x30] sm:$0xff] %vm4465, %v8578
        %8624 = vst.msk [vmem:[#allocation4 + $0x48] sm:$0xff] %vm4465, %v8580
        %8625 = vst.msk [vmem:[#allocation4 + $0x60] sm:$0xff] %vm4465, %v8582
        %8626 = vst.msk [vmem:[#allocation4 + $0x78] sm:$0xff] %vm4465, %v8584
        %8627 = vst.msk [vmem:[#allocation4 + $0x90] sm:$0xff] %vm4465, %v8586
        %8628 = vst.msk [vmem:[#allocation4 + $0xa8] sm:$0xff] %vm4465, %v8588
        %8629 = vst.msk [vmem:[#allocation4 + $0xc0] sm:$0xff] %vm4465, %v8590
        %8630 = vst.msk [vmem:[#allocation4 + $0xd8] sm:$0xff] %vm4465, %v8592
        %8631 = vst.msk [vmem:[#allocation4 + $0xf0] sm:$0xff] %vm4465, %v8594
        %8632 = vst.msk [vmem:[#allocation4 + $0x108] sm:$0xff] %vm4465, %v8596
        %8633 = vst.msk [vmem:[#allocation4 + $0x120] sm:$0xff] %vm4465, %v8598
        %8634 = vst.msk [vmem:[#allocation4 + $0x138] sm:$0xff] %vm4465, %v8600
        %8635 = vst.msk [vmem:[#allocation4 + $0x150] sm:$0xff] %vm4465, %v8602
        %8636 = vst.msk [vmem:[#allocation4 + $0x168] sm:$0xff] %vm4465, %v8604
        %v8637 = vld [vmem:[%s3350] sm:$0xf]
        %v8638 = vld [vmem:[%s3350 + $0x4] sm:$0xf]
        %v8639 = vld [vmem:[%s3350 + $0xc] sm:$0xf]
        %v8640 = vld [vmem:[%s3350 + $0x10] sm:$0xf]
        %v8641 = vld [vmem:[%s3350 + $0x18] sm:$0xf]
        %v8642 = vld [vmem:[%s3350 + $0x1c] sm:$0xf]
        %v8643 = vld [vmem:[%s3350 + $0x24] sm:$0xf]
        %v8644 = vld [vmem:[%s3350 + $0x28] sm:$0xf]
        %v8645 = vld [vmem:[%s3350 + $0x30] sm:$0xf]
        %v8646 = vld [vmem:[%s3350 + $0x34] sm:$0xf]
        %v8647 = vld [vmem:[%s3350 + $0x3c] sm:$0xf]
        %v8648 = vld [vmem:[%s3350 + $0x40] sm:$0xf]
        %v8649 = vld [vmem:[%s3350 + $0x48] sm:$0xf]
        %v8650 = vld [vmem:[%s3350 + $0x4c] sm:$0xf]
        %v8651 = vld [vmem:[%s3350 + $0x54] sm:$0xf]
        %v8652 = vld [vmem:[%s3350 + $0x58] sm:$0xf]
        %v8653 = vld [vmem:[%s3350 + $0x60] sm:$0xf]
        %v8654 = vld [vmem:[%s3350 + $0x64] sm:$0xf]
        %v8655 = vld [vmem:[%s3350 + $0x6c] sm:$0xf]
        %v8656 = vld [vmem:[%s3350 + $0x70] sm:$0xf]
        %v8657 = vld [vmem:[%s3350 + $0x78] sm:$0xf]
        %v8658 = vld [vmem:[%s3350 + $0x7c] sm:$0xf]
        %v8659 = vld [vmem:[%s3350 + $0x84] sm:$0xf]
        %v8660 = vld [vmem:[%s3350 + $0x88] sm:$0xf]
        %v8661 = vld [vmem:[%s3350 + $0x90] sm:$0xf]
        %v8662 = vld [vmem:[%s3350 + $0x94] sm:$0xf]
        %v8663 = vld [vmem:[%s3350 + $0x9c] sm:$0xf]
        %v8664 = vld [vmem:[%s3350 + $0xa0] sm:$0xf]
        %v8665 = vld [vmem:[%s3350 + $0xa8] sm:$0xf]
        %v8666 = vld [vmem:[%s3350 + $0xac] sm:$0xf]
        %v8667 = vld [vmem:[%s3350 + $0xb4] sm:$0xf]
        %v8668 = vld [vmem:[%s3350 + $0xb8] sm:$0xf]
        %v8701 = vunpack.c.l.b16 %v8637
        %v8702 = vunpack.c.l.b16 %v8638
        %v8703 = vunpack.c.l.b16 %v8639
        %v8704 = vunpack.c.l.b16 %v8640
        %v8705 = vunpack.c.l.b16 %v8641
        %v8706 = vunpack.c.l.b16 %v8642
        %v8707 = vunpack.c.l.b16 %v8643
        %v8708 = vunpack.c.l.b16 %v8644
        %v8709 = vunpack.c.l.b16 %v8645
        %v8710 = vunpack.c.l.b16 %v8646
        %v8711 = vunpack.c.l.b16 %v8647
        %v8712 = vunpack.c.l.b16 %v8648
        %v8713 = vunpack.c.l.b16 %v8649
        %v8714 = vunpack.c.l.b16 %v8650
        %v8715 = vunpack.c.l.b16 %v8651
        %v8716 = vunpack.c.l.b16 %v8652
        %v8717 = vunpack.c.l.b16 %v8653
        %v8718 = vunpack.c.l.b16 %v8654
        %v8719 = vunpack.c.l.b16 %v8655
        %v8720 = vunpack.c.l.b16 %v8656
        %v8721 = vunpack.c.l.b16 %v8657
        %v8722 = vunpack.c.l.b16 %v8658
        %v8723 = vunpack.c.l.b16 %v8659
        %v8724 = vunpack.c.l.b16 %v8660
        %v8725 = vunpack.c.l.b16 %v8661
        %v8726 = vunpack.c.l.b16 %v8662
        %v8727 = vunpack.c.l.b16 %v8663
        %v8728 = vunpack.c.l.b16 %v8664
        %v8729 = vunpack.c.l.b16 %v8665
        %v8730 = vunpack.c.l.b16 %v8666
        %v8731 = vunpack.c.l.b16 %v8667
        %v8732 = vunpack.c.l.b16 %v8668
        %v8733 = vpack.c.b16 %v8702, %v8701
        %v8734 = vpack.c.b16 %v8704, %v8703
        %v8735 = vpack.c.b16 %v8706, %v8705
        %v8736 = vpack.c.b16 %v8708, %v8707
        %v8737 = vpack.c.b16 %v8710, %v8709
        %v8738 = vpack.c.b16 %v8712, %v8711
        %v8739 = vpack.c.b16 %v8714, %v8713
        %v8740 = vpack.c.b16 %v8716, %v8715
        %v8741 = vpack.c.b16 %v8718, %v8717
        %v8742 = vpack.c.b16 %v8720, %v8719
        %v8743 = vpack.c.b16 %v8722, %v8721
        %v8744 = vpack.c.b16 %v8724, %v8723
        %v8745 = vpack.c.b16 %v8726, %v8725
        %v8746 = vpack.c.b16 %v8728, %v8727
        %v8747 = vpack.c.b16 %v8730, %v8729
        %v8748 = vpack.c.b16 %v8732, %v8731
        %8749 = vrot.lane.b32.xlu0 %v8733, 96
        %v8750 = vpop.permute.xlu0 %8749
        %8751 = vrot.lane.b32.xlu0 %v8734, 96
        %v8752 = vpop.permute.xlu0 %8751
        %8753 = vrot.lane.b32.xlu0 %v8735, 96
        %v8754 = vpop.permute.xlu0 %8753
        %8755 = vrot.lane.b32.xlu0 %v8736, 96
        %v8756 = vpop.permute.xlu0 %8755
        %8757 = vrot.lane.b32.xlu0 %v8737, 96
        %v8758 = vpop.permute.xlu0 %8757
        %8759 = vrot.lane.b32.xlu0 %v8738, 96
        %v8760 = vpop.permute.xlu0 %8759
        %8761 = vrot.lane.b32.xlu0 %v8739, 96
        %v8762 = vpop.permute.xlu0 %8761
        %8763 = vrot.lane.b32.xlu0 %v8740, 96
        %v8764 = vpop.permute.xlu0 %8763
        %8765 = vrot.lane.b32.xlu0 %v8741, 96
        %v8766 = vpop.permute.xlu0 %8765
        %8767 = vrot.lane.b32.xlu0 %v8742, 96
        %v8768 = vpop.permute.xlu0 %8767
        %8769 = vrot.lane.b32.xlu0 %v8743, 96
        %v8770 = vpop.permute.xlu0 %8769
        %8771 = vrot.lane.b32.xlu0 %v8744, 96
        %v8772 = vpop.permute.xlu0 %8771
        %8773 = vrot.lane.b32.xlu0 %v8745, 96
        %v8774 = vpop.permute.xlu0 %8773
        %8775 = vrot.lane.b32.xlu0 %v8746, 96
        %v8776 = vpop.permute.xlu0 %8775
        %8777 = vrot.lane.b32.xlu0 %v8747, 96
        %v8778 = vpop.permute.xlu0 %8777
        %8779 = vrot.lane.b32.xlu0 %v8748, 96
        %v8780 = vpop.permute.xlu0 %8779
        %8797 = vst.msk [vmem:[#allocation4] sm:$0xff] %vm4642, %v8750
        %8798 = vst.msk [vmem:[#allocation4 + $0x18] sm:$0xff] %vm4642, %v8752
        %8799 = vst.msk [vmem:[#allocation4 + $0x30] sm:$0xff] %vm4642, %v8754
        %8800 = vst.msk [vmem:[#allocation4 + $0x48] sm:$0xff] %vm4642, %v8756
        %8801 = vst.msk [vmem:[#allocation4 + $0x60] sm:$0xff] %vm4642, %v8758
        %8802 = vst.msk [vmem:[#allocation4 + $0x78] sm:$0xff] %vm4642, %v8760
        %8803 = vst.msk [vmem:[#allocation4 + $0x90] sm:$0xff] %vm4642, %v8762
        %8804 = vst.msk [vmem:[#allocation4 + $0xa8] sm:$0xff] %vm4642, %v8764
        %8805 = vst.msk [vmem:[#allocation4 + $0xc0] sm:$0xff] %vm4642, %v8766
        %8806 = vst.msk [vmem:[#allocation4 + $0xd8] sm:$0xff] %vm4642, %v8768
        %8807 = vst.msk [vmem:[#allocation4 + $0xf0] sm:$0xff] %vm4642, %v8770
        %8808 = vst.msk [vmem:[#allocation4 + $0x108] sm:$0xff] %vm4642, %v8772
        %8809 = vst.msk [vmem:[#allocation4 + $0x120] sm:$0xff] %vm4642, %v8774
        %8810 = vst.msk [vmem:[#allocation4 + $0x138] sm:$0xff] %vm4642, %v8776
        %8811 = vst.msk [vmem:[#allocation4 + $0x150] sm:$0xff] %vm4642, %v8778
        %8812 = vst.msk [vmem:[#allocation4 + $0x168] sm:$0xff] %vm4642, %v8780
        %v8813 = vld [vmem:[%s3350] sm:$0xf]
        %v8814 = vld [vmem:[%s3350 + $0x4] sm:$0xf]
        %v8815 = vld [vmem:[%s3350 + $0x8] sm:$0x1]
        %v8816 = vld [vmem:[%s3350 + $0xc] sm:$0xf]
        %v8817 = vld [vmem:[%s3350 + $0x10] sm:$0xf]
        %v8818 = vld [vmem:[%s3350 + $0x14] sm:$0x1]
        %v8819 = vld [vmem:[%s3350 + $0x18] sm:$0xf]
        %v8820 = vld [vmem:[%s3350 + $0x1c] sm:$0xf]
        %v8821 = vld [vmem:[%s3350 + $0x20] sm:$0x1]
        %v8822 = vld [vmem:[%s3350 + $0x24] sm:$0xf]
        %v8823 = vld [vmem:[%s3350 + $0x28] sm:$0xf]
        %v8824 = vld [vmem:[%s3350 + $0x2c] sm:$0x1]
        %v8825 = vld [vmem:[%s3350 + $0x30] sm:$0xf]
        %v8826 = vld [vmem:[%s3350 + $0x34] sm:$0xf]
        %v8827 = vld [vmem:[%s3350 + $0x38] sm:$0x1]
        %v8828 = vld [vmem:[%s3350 + $0x3c] sm:$0xf]
        %v8829 = vld [vmem:[%s3350 + $0x40] sm:$0xf]
        %v8830 = vld [vmem:[%s3350 + $0x44] sm:$0x1]
        %v8831 = vld [vmem:[%s3350 + $0x48] sm:$0xf]
        %v8832 = vld [vmem:[%s3350 + $0x4c] sm:$0xf]
        %v8833 = vld [vmem:[%s3350 + $0x50] sm:$0x1]
        %v8834 = vld [vmem:[%s3350 + $0x54] sm:$0xf]
        %v8835 = vld [vmem:[%s3350 + $0x58] sm:$0xf]
        %v8836 = vld [vmem:[%s3350 + $0x5c] sm:$0x1]
        %v8837 = vld [vmem:[%s3350 + $0x60] sm:$0xf]
        %v8838 = vld [vmem:[%s3350 + $0x64] sm:$0xf]
        %v8839 = vld [vmem:[%s3350 + $0x68] sm:$0x1]
        %v8840 = vld [vmem:[%s3350 + $0x6c] sm:$0xf]
        %v8841 = vld [vmem:[%s3350 + $0x70] sm:$0xf]
        %v8842 = vld [vmem:[%s3350 + $0x74] sm:$0x1]
        %v8843 = vld [vmem:[%s3350 + $0x78] sm:$0xf]
        %v8844 = vld [vmem:[%s3350 + $0x7c] sm:$0xf]
        %v8845 = vld [vmem:[%s3350 + $0x80] sm:$0x1]
        %v8846 = vld [vmem:[%s3350 + $0x84] sm:$0xf]
        %v8847 = vld [vmem:[%s3350 + $0x88] sm:$0xf]
        %v8848 = vld [vmem:[%s3350 + $0x8c] sm:$0x1]
        %v8849 = vld [vmem:[%s3350 + $0x90] sm:$0xf]
        %v8850 = vld [vmem:[%s3350 + $0x94] sm:$0xf]
        %v8851 = vld [vmem:[%s3350 + $0x98] sm:$0x1]
        %v8852 = vld [vmem:[%s3350 + $0x9c] sm:$0xf]
        %v8853 = vld [vmem:[%s3350 + $0xa0] sm:$0xf]
        %v8854 = vld [vmem:[%s3350 + $0xa4] sm:$0x1]
        %v8855 = vld [vmem:[%s3350 + $0xa8] sm:$0xf]
        %v8856 = vld [vmem:[%s3350 + $0xac] sm:$0xf]
        %v8857 = vld [vmem:[%s3350 + $0xb0] sm:$0x1]
        %v8858 = vld [vmem:[%s3350 + $0xb4] sm:$0xf]
        %v8859 = vld [vmem:[%s3350 + $0xb8] sm:$0xf]
        %v8860 = vld [vmem:[%s3350 + $0xbc] sm:$0x1]
        %v8862 = vshrl.u32 %v8813, 16
        %v8864 = vrot.slane %v8862, 4
        %v8865 = vshll.u32 %v8813, 16
        %v8867 = vrot.slane %v8865, 5
        %v8868 = vor.u32 %v8864, %v8867
        %v8869 = vrot.slane %v8868, 4
        %v8871 = vshll.u32 %v8814, 16
        %v8873 = vrot.slane %v8871, 5
        %v8874 = vsel %vm3660, %v8869, %v8873
        %v8875 = vshrl.u32 %v8814, 16
        %v8877 = vrot.slane %v8875, 4
        %v8878 = vor.u32 %v8877, %v8873
        %v8879 = vrot.slane %v8878, 4
        %v8881 = vshll.u32 %v8815, 16
        %v8883 = vrot.slane %v8881, 5
        %v8884 = vsel %vm3660, %v8879, %v8883
        %v8886 = vshrl.u32 %v8816, 16
        %v8888 = vrot.slane %v8886, 4
        %v8889 = vshll.u32 %v8816, 16
        %v8891 = vrot.slane %v8889, 5
        %v8892 = vor.u32 %v8888, %v8891
        %v8893 = vrot.slane %v8892, 4
        %v8895 = vshll.u32 %v8817, 16
        %v8897 = vrot.slane %v8895, 5
        %v8898 = vsel %vm3660, %v8893, %v8897
        %v8899 = vshrl.u32 %v8817, 16
        %v8901 = vrot.slane %v8899, 4
        %v8902 = vor.u32 %v8901, %v8897
        %v8903 = vrot.slane %v8902, 4
        %v8905 = vshll.u32 %v8818, 16
        %v8907 = vrot.slane %v8905, 5
        %v8908 = vsel %vm3660, %v8903, %v8907
        %v8910 = vshrl.u32 %v8819, 16
        %v8912 = vrot.slane %v8910, 4
        %v8913 = vshll.u32 %v8819, 16
        %v8915 = vrot.slane %v8913, 5
        %v8916 = vor.u32 %v8912, %v8915
        %v8917 = vrot.slane %v8916, 4
        %v8919 = vshll.u32 %v8820, 16
        %v8921 = vrot.slane %v8919, 5
        %v8922 = vsel %vm3660, %v8917, %v8921
        %v8923 = vshrl.u32 %v8820, 16
        %v8925 = vrot.slane %v8923, 4
        %v8926 = vor.u32 %v8925, %v8921
        %v8927 = vrot.slane %v8926, 4
        %v8929 = vshll.u32 %v8821, 16
        %v8931 = vrot.slane %v8929, 5
        %v8932 = vsel %vm3660, %v8927, %v8931
        %v8934 = vshrl.u32 %v8822, 16
        %v8936 = vrot.slane %v8934, 4
        %v8937 = vshll.u32 %v8822, 16
        %v8939 = vrot.slane %v8937, 5
        %v8940 = vor.u32 %v8936, %v8939
        %v8941 = vrot.slane %v8940, 4
        %v8943 = vshll.u32 %v8823, 16
        %v8945 = vrot.slane %v8943, 5
        %v8946 = vsel %vm3660, %v8941, %v8945
        %v8947 = vshrl.u32 %v8823, 16
        %v8949 = vrot.slane %v8947, 4
        %v8950 = vor.u32 %v8949, %v8945
        %v8951 = vrot.slane %v8950, 4
        %v8953 = vshll.u32 %v8824, 16
        %v8955 = vrot.slane %v8953, 5
        %v8956 = vsel %vm3660, %v8951, %v8955
        %v8958 = vshrl.u32 %v8825, 16
        %v8960 = vrot.slane %v8958, 4
        %v8961 = vshll.u32 %v8825, 16
        %v8963 = vrot.slane %v8961, 5
        %v8964 = vor.u32 %v8960, %v8963
        %v8965 = vrot.slane %v8964, 4
        %v8967 = vshll.u32 %v8826, 16
        %v8969 = vrot.slane %v8967, 5
        %v8970 = vsel %vm3660, %v8965, %v8969
        %v8971 = vshrl.u32 %v8826, 16
        %v8973 = vrot.slane %v8971, 4
        %v8974 = vor.u32 %v8973, %v8969
        %v8975 = vrot.slane %v8974, 4
        %v8977 = vshll.u32 %v8827, 16
        %v8979 = vrot.slane %v8977, 5
        %v8980 = vsel %vm3660, %v8975, %v8979
        %v8982 = vshrl.u32 %v8828, 16
        %v8984 = vrot.slane %v8982, 4
        %v8985 = vshll.u32 %v8828, 16
        %v8987 = vrot.slane %v8985, 5
        %v8988 = vor.u32 %v8984, %v8987
        %v8989 = vrot.slane %v8988, 4
        %v8991 = vshll.u32 %v8829, 16
        %v8993 = vrot.slane %v8991, 5
        %v8994 = vsel %vm3660, %v8989, %v8993
        %v8995 = vshrl.u32 %v8829, 16
        %v8997 = vrot.slane %v8995, 4
        %v8998 = vor.u32 %v8997, %v8993
        %v8999 = vrot.slane %v8998, 4
        %v9001 = vshll.u32 %v8830, 16
        %v9003 = vrot.slane %v9001, 5
        %v9004 = vsel %vm3660, %v8999, %v9003
        %v9006 = vshrl.u32 %v8831, 16
        %v9008 = vrot.slane %v9006, 4
        %v9009 = vshll.u32 %v8831, 16
        %v9011 = vrot.slane %v9009, 5
        %v9012 = vor.u32 %v9008, %v9011
        %v9013 = vrot.slane %v9012, 4
        %v9015 = vshll.u32 %v8832, 16
        %v9017 = vrot.slane %v9015, 5
        %v9018 = vsel %vm3660, %v9013, %v9017
        %v9019 = vshrl.u32 %v8832, 16
        %v9021 = vrot.slane %v9019, 4
        %v9022 = vor.u32 %v9021, %v9017
        %v9023 = vrot.slane %v9022, 4
        %v9025 = vshll.u32 %v8833, 16
        %v9027 = vrot.slane %v9025, 5
        %v9028 = vsel %vm3660, %v9023, %v9027
        %v9030 = vshrl.u32 %v8834, 16
        %v9032 = vrot.slane %v9030, 4
        %v9033 = vshll.u32 %v8834, 16
        %v9035 = vrot.slane %v9033, 5
        %v9036 = vor.u32 %v9032, %v9035
        %v9037 = vrot.slane %v9036, 4
        %v9039 = vshll.u32 %v8835, 16
        %v9041 = vrot.slane %v9039, 5
        %v9042 = vsel %vm3660, %v9037, %v9041
        %v9043 = vshrl.u32 %v8835, 16
        %v9045 = vrot.slane %v9043, 4
        %v9046 = vor.u32 %v9045, %v9041
        %v9047 = vrot.slane %v9046, 4
        %v9049 = vshll.u32 %v8836, 16
        %v9051 = vrot.slane %v9049, 5
        %v9052 = vsel %vm3660, %v9047, %v9051
        %v9054 = vshrl.u32 %v8837, 16
        %v9056 = vrot.slane %v9054, 4
        %v9057 = vshll.u32 %v8837, 16
        %v9059 = vrot.slane %v9057, 5
        %v9060 = vor.u32 %v9056, %v9059
        %v9061 = vrot.slane %v9060, 4
        %v9063 = vshll.u32 %v8838, 16
        %v9065 = vrot.slane %v9063, 5
        %v9066 = vsel %vm3660, %v9061, %v9065
        %v9067 = vshrl.u32 %v8838, 16
        %v9069 = vrot.slane %v9067, 4
        %v9070 = vor.u32 %v9069, %v9065
        %v9071 = vrot.slane %v9070, 4
        %v9073 = vshll.u32 %v8839, 16
        %v9075 = vrot.slane %v9073, 5
        %v9076 = vsel %vm3660, %v9071, %v9075
        %v9078 = vshrl.u32 %v8840, 16
        %v9080 = vrot.slane %v9078, 4
        %v9081 = vshll.u32 %v8840, 16
        %v9083 = vrot.slane %v9081, 5
        %v9084 = vor.u32 %v9080, %v9083
        %v9085 = vrot.slane %v9084, 4
        %v9087 = vshll.u32 %v8841, 16
        %v9089 = vrot.slane %v9087, 5
        %v9090 = vsel %vm3660, %v9085, %v9089
        %v9091 = vshrl.u32 %v8841, 16
        %v9093 = vrot.slane %v9091, 4
        %v9094 = vor.u32 %v9093, %v9089
        %v9095 = vrot.slane %v9094, 4
        %v9097 = vshll.u32 %v8842, 16
        %v9099 = vrot.slane %v9097, 5
        %v9100 = vsel %vm3660, %v9095, %v9099
        %v9102 = vshrl.u32 %v8843, 16
        %v9104 = vrot.slane %v9102, 4
        %v9105 = vshll.u32 %v8843, 16
        %v9107 = vrot.slane %v9105, 5
        %v9108 = vor.u32 %v9104, %v9107
        %v9109 = vrot.slane %v9108, 4
        %v9111 = vshll.u32 %v8844, 16
        %v9113 = vrot.slane %v9111, 5
        %v9114 = vsel %vm3660, %v9109, %v9113
        %v9115 = vshrl.u32 %v8844, 16
        %v9117 = vrot.slane %v9115, 4
        %v9118 = vor.u32 %v9117, %v9113
        %v9119 = vrot.slane %v9118, 4
        %v9121 = vshll.u32 %v8845, 16
        %v9123 = vrot.slane %v9121, 5
        %v9124 = vsel %vm3660, %v9119, %v9123
        %v9126 = vshrl.u32 %v8846, 16
        %v9128 = vrot.slane %v9126, 4
        %v9129 = vshll.u32 %v8846, 16
        %v9131 = vrot.slane %v9129, 5
        %v9132 = vor.u32 %v9128, %v9131
        %v9133 = vrot.slane %v9132, 4
        %v9135 = vshll.u32 %v8847, 16
        %v9137 = vrot.slane %v9135, 5
        %v9138 = vsel %vm3660, %v9133, %v9137
        %v9139 = vshrl.u32 %v8847, 16
        %v9141 = vrot.slane %v9139, 4
        %v9142 = vor.u32 %v9141, %v9137
        %v9143 = vrot.slane %v9142, 4
        %v9145 = vshll.u32 %v8848, 16
        %v9147 = vrot.slane %v9145, 5
        %v9148 = vsel %vm3660, %v9143, %v9147
        %v9150 = vshrl.u32 %v8849, 16
        %v9152 = vrot.slane %v9150, 4
        %v9153 = vshll.u32 %v8849, 16
        %v9155 = vrot.slane %v9153, 5
        %v9156 = vor.u32 %v9152, %v9155
        %v9157 = vrot.slane %v9156, 4
        %v9159 = vshll.u32 %v8850, 16
        %v9161 = vrot.slane %v9159, 5
        %v9162 = vsel %vm3660, %v9157, %v9161
        %v9163 = vshrl.u32 %v8850, 16
        %v9165 = vrot.slane %v9163, 4
        %v9166 = vor.u32 %v9165, %v9161
        %v9167 = vrot.slane %v9166, 4
        %v9169 = vshll.u32 %v8851, 16
        %v9171 = vrot.slane %v9169, 5
        %v9172 = vsel %vm3660, %v9167, %v9171
        %v9174 = vshrl.u32 %v8852, 16
        %v9176 = vrot.slane %v9174, 4
        %v9177 = vshll.u32 %v8852, 16
        %v9179 = vrot.slane %v9177, 5
        %v9180 = vor.u32 %v9176, %v9179
        %v9181 = vrot.slane %v9180, 4
        %v9183 = vshll.u32 %v8853, 16
        %v9185 = vrot.slane %v9183, 5
        %v9186 = vsel %vm3660, %v9181, %v9185
        %v9187 = vshrl.u32 %v8853, 16
        %v9189 = vrot.slane %v9187, 4
        %v9190 = vor.u32 %v9189, %v9185
        %v9191 = vrot.slane %v9190, 4
        %v9193 = vshll.u32 %v8854, 16
        %v9195 = vrot.slane %v9193, 5
        %v9196 = vsel %vm3660, %v9191, %v9195
        %v9198 = vshrl.u32 %v8855, 16
        %v9200 = vrot.slane %v9198, 4
        %v9201 = vshll.u32 %v8855, 16
        %v9203 = vrot.slane %v9201, 5
        %v9204 = vor.u32 %v9200, %v9203
        %v9205 = vrot.slane %v9204, 4
        %v9207 = vshll.u32 %v8856, 16
        %v9209 = vrot.slane %v9207, 5
        %v9210 = vsel %vm3660, %v9205, %v9209
        %v9211 = vshrl.u32 %v8856, 16
        %v9213 = vrot.slane %v9211, 4
        %v9214 = vor.u32 %v9213, %v9209
        %v9215 = vrot.slane %v9214, 4
        %v9217 = vshll.u32 %v8857, 16
        %v9219 = vrot.slane %v9217, 5
        %v9220 = vsel %vm3660, %v9215, %v9219
        %v9222 = vshrl.u32 %v8858, 16
        %v9224 = vrot.slane %v9222, 4
        %v9225 = vshll.u32 %v8858, 16
        %v9227 = vrot.slane %v9225, 5
        %v9228 = vor.u32 %v9224, %v9227
        %v9229 = vrot.slane %v9228, 4
        %v9231 = vshll.u32 %v8859, 16
        %v9233 = vrot.slane %v9231, 5
        %v9234 = vsel %vm3660, %v9229, %v9233
        %v9235 = vshrl.u32 %v8859, 16
        %v9237 = vrot.slane %v9235, 4
        %v9238 = vor.u32 %v9237, %v9233
        %v9239 = vrot.slane %v9238, 4
        %v9241 = vshll.u32 %v8860, 16
        %v9243 = vrot.slane %v9241, 5
        %v9244 = vsel %vm3660, %v9239, %v9243
        %v9245 = vunpack.c.l.b16 %v8874
        %v9246 = vunpack.c.l.b16 %v8884
        %v9247 = vunpack.c.l.b16 %v8898
        %v9248 = vunpack.c.l.b16 %v8908
        %v9249 = vunpack.c.l.b16 %v8922
        %v9250 = vunpack.c.l.b16 %v8932
        %v9251 = vunpack.c.l.b16 %v8946
        %v9252 = vunpack.c.l.b16 %v8956
        %v9253 = vunpack.c.l.b16 %v8970
        %v9254 = vunpack.c.l.b16 %v8980
        %v9255 = vunpack.c.l.b16 %v8994
        %v9256 = vunpack.c.l.b16 %v9004
        %v9257 = vunpack.c.l.b16 %v9018
        %v9258 = vunpack.c.l.b16 %v9028
        %v9259 = vunpack.c.l.b16 %v9042
        %v9260 = vunpack.c.l.b16 %v9052
        %v9261 = vunpack.c.l.b16 %v9066
        %v9262 = vunpack.c.l.b16 %v9076
        %v9263 = vunpack.c.l.b16 %v9090
        %v9264 = vunpack.c.l.b16 %v9100
        %v9265 = vunpack.c.l.b16 %v9114
        %v9266 = vunpack.c.l.b16 %v9124
        %v9267 = vunpack.c.l.b16 %v9138
        %v9268 = vunpack.c.l.b16 %v9148
        %v9269 = vunpack.c.l.b16 %v9162
        %v9270 = vunpack.c.l.b16 %v9172
        %v9271 = vunpack.c.l.b16 %v9186
        %v9272 = vunpack.c.l.b16 %v9196
        %v9273 = vunpack.c.l.b16 %v9210
        %v9274 = vunpack.c.l.b16 %v9220
        %v9275 = vunpack.c.l.b16 %v9234
        %v9276 = vunpack.c.l.b16 %v9244
        %v9277 = vpack.c.b16 %v9246, %v9245
        %v9278 = vpack.c.b16 %v9248, %v9247
        %v9279 = vpack.c.b16 %v9250, %v9249
        %v9280 = vpack.c.b16 %v9252, %v9251
        %v9281 = vpack.c.b16 %v9254, %v9253
        %v9282 = vpack.c.b16 %v9256, %v9255
        %v9283 = vpack.c.b16 %v9258, %v9257
        %v9284 = vpack.c.b16 %v9260, %v9259
        %v9285 = vpack.c.b16 %v9262, %v9261
        %v9286 = vpack.c.b16 %v9264, %v9263
        %v9287 = vpack.c.b16 %v9266, %v9265
        %v9288 = vpack.c.b16 %v9268, %v9267
        %v9289 = vpack.c.b16 %v9270, %v9269
        %v9290 = vpack.c.b16 %v9272, %v9271
        %v9291 = vpack.c.b16 %v9274, %v9273
        %v9292 = vpack.c.b16 %v9276, %v9275
        %9309 = vst.msk [vmem:[#allocation4 + $0x8] sm:$0xff] %vm3593, %v9277
        %9310 = vst.msk [vmem:[#allocation4 + $0x20] sm:$0xff] %vm3593, %v9278
        %9311 = vst.msk [vmem:[#allocation4 + $0x38] sm:$0xff] %vm3593, %v9279
        %9312 = vst.msk [vmem:[#allocation4 + $0x50] sm:$0xff] %vm3593, %v9280
        %9313 = vst.msk [vmem:[#allocation4 + $0x68] sm:$0xff] %vm3593, %v9281
        %9314 = vst.msk [vmem:[#allocation4 + $0x80] sm:$0xff] %vm3593, %v9282
        %9315 = vst.msk [vmem:[#allocation4 + $0x98] sm:$0xff] %vm3593, %v9283
        %9316 = vst.msk [vmem:[#allocation4 + $0xb0] sm:$0xff] %vm3593, %v9284
        %9317 = vst.msk [vmem:[#allocation4 + $0xc8] sm:$0xff] %vm3593, %v9285
        %9318 = vst.msk [vmem:[#allocation4 + $0xe0] sm:$0xff] %vm3593, %v9286
        %9319 = vst.msk [vmem:[#allocation4 + $0xf8] sm:$0xff] %vm3593, %v9287
        %9320 = vst.msk [vmem:[#allocation4 + $0x110] sm:$0xff] %vm3593, %v9288
        %9321 = vst.msk [vmem:[#allocation4 + $0x128] sm:$0xff] %vm3593, %v9289
        %9322 = vst.msk [vmem:[#allocation4 + $0x140] sm:$0xff] %vm3593, %v9290
        %9323 = vst.msk [vmem:[#allocation4 + $0x158] sm:$0xff] %vm3593, %v9291
        %9324 = vst.msk [vmem:[#allocation4 + $0x170] sm:$0xff] %vm3593, %v9292
        %v9325 = vld [vmem:[%s3350] sm:$0xe]
        %v9326 = vld [vmem:[%s3350 + $0x4] sm:$0xf]
        %v9327 = vld [vmem:[%s3350 + $0x8] sm:$0x1]
        %v9328 = vld [vmem:[%s3350 + $0xc] sm:$0xe]
        %v9329 = vld [vmem:[%s3350 + $0x10] sm:$0xf]
        %v9330 = vld [vmem:[%s3350 + $0x14] sm:$0x1]
        %v9331 = vld [vmem:[%s3350 + $0x18] sm:$0xe]
        %v9332 = vld [vmem:[%s3350 + $0x1c] sm:$0xf]
        %v9333 = vld [vmem:[%s3350 + $0x20] sm:$0x1]
        %v9334 = vld [vmem:[%s3350 + $0x24] sm:$0xe]
        %v9335 = vld [vmem:[%s3350 + $0x28] sm:$0xf]
        %v9336 = vld [vmem:[%s3350 + $0x2c] sm:$0x1]
        %v9337 = vld [vmem:[%s3350 + $0x30] sm:$0xe]
        %v9338 = vld [vmem:[%s3350 + $0x34] sm:$0xf]
        %v9339 = vld [vmem:[%s3350 + $0x38] sm:$0x1]
        %v9340 = vld [vmem:[%s3350 + $0x3c] sm:$0xe]
        %v9341 = vld [vmem:[%s3350 + $0x40] sm:$0xf]
        %v9342 = vld [vmem:[%s3350 + $0x44] sm:$0x1]
        %v9343 = vld [vmem:[%s3350 + $0x48] sm:$0xe]
        %v9344 = vld [vmem:[%s3350 + $0x4c] sm:$0xf]
        %v9345 = vld [vmem:[%s3350 + $0x50] sm:$0x1]
        %v9346 = vld [vmem:[%s3350 + $0x54] sm:$0xe]
        %v9347 = vld [vmem:[%s3350 + $0x58] sm:$0xf]
        %v9348 = vld [vmem:[%s3350 + $0x5c] sm:$0x1]
        %v9349 = vld [vmem:[%s3350 + $0x60] sm:$0xe]
        %v9350 = vld [vmem:[%s3350 + $0x64] sm:$0xf]
        %v9351 = vld [vmem:[%s3350 + $0x68] sm:$0x1]
        %v9352 = vld [vmem:[%s3350 + $0x6c] sm:$0xe]
        %v9353 = vld [vmem:[%s3350 + $0x70] sm:$0xf]
        %v9354 = vld [vmem:[%s3350 + $0x74] sm:$0x1]
        %v9355 = vld [vmem:[%s3350 + $0x78] sm:$0xe]
        %v9356 = vld [vmem:[%s3350 + $0x7c] sm:$0xf]
        %v9357 = vld [vmem:[%s3350 + $0x80] sm:$0x1]
        %v9358 = vld [vmem:[%s3350 + $0x84] sm:$0xe]
        %v9359 = vld [vmem:[%s3350 + $0x88] sm:$0xf]
        %v9360 = vld [vmem:[%s3350 + $0x8c] sm:$0x1]
        %v9361 = vld [vmem:[%s3350 + $0x90] sm:$0xe]
        %v9362 = vld [vmem:[%s3350 + $0x94] sm:$0xf]
        %v9363 = vld [vmem:[%s3350 + $0x98] sm:$0x1]
        %v9364 = vld [vmem:[%s3350 + $0x9c] sm:$0xe]
        %v9365 = vld [vmem:[%s3350 + $0xa0] sm:$0xf]
        %v9366 = vld [vmem:[%s3350 + $0xa4] sm:$0x1]
        %v9367 = vld [vmem:[%s3350 + $0xa8] sm:$0xe]
        %v9368 = vld [vmem:[%s3350 + $0xac] sm:$0xf]
        %v9369 = vld [vmem:[%s3350 + $0xb0] sm:$0x1]
        %v9370 = vld [vmem:[%s3350 + $0xb4] sm:$0xe]
        %v9371 = vld [vmem:[%s3350 + $0xb8] sm:$0xf]
        %v9372 = vld [vmem:[%s3350 + $0xbc] sm:$0x1]
        %v9421 = vrot.slane %v9325, 5
        %v9422 = vrot.slane %v9421, 4
        %v9423 = vrot.slane %v9326, 5
        %v9424 = vsel %vm4256, %v9422, %v9423
        %v9425 = vrot.slane %v9423, 4
        %v9426 = vrot.slane %v9327, 5
        %v9427 = vsel %vm4256, %v9425, %v9426
        %v9428 = vrot.slane %v9328, 5
        %v9429 = vrot.slane %v9428, 4
        %v9430 = vrot.slane %v9329, 5
        %v9431 = vsel %vm4256, %v9429, %v9430
        %v9432 = vrot.slane %v9430, 4
        %v9433 = vrot.slane %v9330, 5
        %v9434 = vsel %vm4256, %v9432, %v9433
        %v9435 = vrot.slane %v9331, 5
        %v9436 = vrot.slane %v9435, 4
        %v9437 = vrot.slane %v9332, 5
        %v9438 = vsel %vm4256, %v9436, %v9437
        %v9439 = vrot.slane %v9437, 4
        %v9440 = vrot.slane %v9333, 5
        %v9441 = vsel %vm4256, %v9439, %v9440
        %v9442 = vrot.slane %v9334, 5
        %v9443 = vrot.slane %v9442, 4
        %v9444 = vrot.slane %v9335, 5
        %v9445 = vsel %vm4256, %v9443, %v9444
        %v9446 = vrot.slane %v9444, 4
        %v9447 = vrot.slane %v9336, 5
        %v9448 = vsel %vm4256, %v9446, %v9447
        %v9449 = vrot.slane %v9337, 5
        %v9450 = vrot.slane %v9449, 4
        %v9451 = vrot.slane %v9338, 5
        %v9452 = vsel %vm4256, %v9450, %v9451
        %v9453 = vrot.slane %v9451, 4
        %v9454 = vrot.slane %v9339, 5
        %v9455 = vsel %vm4256, %v9453, %v9454
        %v9456 = vrot.slane %v9340, 5
        %v9457 = vrot.slane %v9456, 4
        %v9458 = vrot.slane %v9341, 5
        %v9459 = vsel %vm4256, %v9457, %v9458
        %v9460 = vrot.slane %v9458, 4
        %v9461 = vrot.slane %v9342, 5
        %v9462 = vsel %vm4256, %v9460, %v9461
        %v9463 = vrot.slane %v9343, 5
        %v9464 = vrot.slane %v9463, 4
        %v9465 = vrot.slane %v9344, 5
        %v9466 = vsel %vm4256, %v9464, %v9465
        %v9467 = vrot.slane %v9465, 4
        %v9468 = vrot.slane %v9345, 5
        %v9469 = vsel %vm4256, %v9467, %v9468
        %v9470 = vrot.slane %v9346, 5
        %v9471 = vrot.slane %v9470, 4
        %v9472 = vrot.slane %v9347, 5
        %v9473 = vsel %vm4256, %v9471, %v9472
        %v9474 = vrot.slane %v9472, 4
        %v9475 = vrot.slane %v9348, 5
        %v9476 = vsel %vm4256, %v9474, %v9475
        %v9477 = vrot.slane %v9349, 5
        %v9478 = vrot.slane %v9477, 4
        %v9479 = vrot.slane %v9350, 5
        %v9480 = vsel %vm4256, %v9478, %v9479
        %v9481 = vrot.slane %v9479, 4
        %v9482 = vrot.slane %v9351, 5
        %v9483 = vsel %vm4256, %v9481, %v9482
        %v9484 = vrot.slane %v9352, 5
        %v9485 = vrot.slane %v9484, 4
        %v9486 = vrot.slane %v9353, 5
        %v9487 = vsel %vm4256, %v9485, %v9486
        %v9488 = vrot.slane %v9486, 4
        %v9489 = vrot.slane %v9354, 5
        %v9490 = vsel %vm4256, %v9488, %v9489
        %v9491 = vrot.slane %v9355, 5
        %v9492 = vrot.slane %v9491, 4
        %v9493 = vrot.slane %v9356, 5
        %v9494 = vsel %vm4256, %v9492, %v9493
        %v9495 = vrot.slane %v9493, 4
        %v9496 = vrot.slane %v9357, 5
        %v9497 = vsel %vm4256, %v9495, %v9496
        %v9498 = vrot.slane %v9358, 5
        %v9499 = vrot.slane %v9498, 4
        %v9500 = vrot.slane %v9359, 5
        %v9501 = vsel %vm4256, %v9499, %v9500
        %v9502 = vrot.slane %v9500, 4
        %v9503 = vrot.slane %v9360, 5
        %v9504 = vsel %vm4256, %v9502, %v9503
        %v9505 = vrot.slane %v9361, 5
        %v9506 = vrot.slane %v9505, 4
        %v9507 = vrot.slane %v9362, 5
        %v9508 = vsel %vm4256, %v9506, %v9507
        %v9509 = vrot.slane %v9507, 4
        %v9510 = vrot.slane %v9363, 5
        %v9511 = vsel %vm4256, %v9509, %v9510
        %v9512 = vrot.slane %v9364, 5
        %v9513 = vrot.slane %v9512, 4
        %v9514 = vrot.slane %v9365, 5
        %v9515 = vsel %vm4256, %v9513, %v9514
        %v9516 = vrot.slane %v9514, 4
        %v9517 = vrot.slane %v9366, 5
        %v9518 = vsel %vm4256, %v9516, %v9517
        %v9519 = vrot.slane %v9367, 5
        %v9520 = vrot.slane %v9519, 4
        %v9521 = vrot.slane %v9368, 5
        %v9522 = vsel %vm4256, %v9520, %v9521
        %v9523 = vrot.slane %v9521, 4
        %v9524 = vrot.slane %v9369, 5
        %v9525 = vsel %vm4256, %v9523, %v9524
        %v9526 = vrot.slane %v9370, 5
        %v9527 = vrot.slane %v9526, 4
        %v9528 = vrot.slane %v9371, 5
        %v9529 = vsel %vm4256, %v9527, %v9528
        %v9530 = vrot.slane %v9528, 4
        %v9531 = vrot.slane %v9372, 5
        %v9532 = vsel %vm4256, %v9530, %v9531
        %v9533 = vunpack.c.l.b16 %v9424
        %v9534 = vunpack.c.l.b16 %v9427
        %v9535 = vunpack.c.l.b16 %v9431
        %v9536 = vunpack.c.l.b16 %v9434
        %v9537 = vunpack.c.l.b16 %v9438
        %v9538 = vunpack.c.l.b16 %v9441
        %v9539 = vunpack.c.l.b16 %v9445
        %v9540 = vunpack.c.l.b16 %v9448
        %v9541 = vunpack.c.l.b16 %v9452
        %v9542 = vunpack.c.l.b16 %v9455
        %v9543 = vunpack.c.l.b16 %v9459
        %v9544 = vunpack.c.l.b16 %v9462
        %v9545 = vunpack.c.l.b16 %v9466
        %v9546 = vunpack.c.l.b16 %v9469
        %v9547 = vunpack.c.l.b16 %v9473
        %v9548 = vunpack.c.l.b16 %v9476
        %v9549 = vunpack.c.l.b16 %v9480
        %v9550 = vunpack.c.l.b16 %v9483
        %v9551 = vunpack.c.l.b16 %v9487
        %v9552 = vunpack.c.l.b16 %v9490
        %v9553 = vunpack.c.l.b16 %v9494
        %v9554 = vunpack.c.l.b16 %v9497
        %v9555 = vunpack.c.l.b16 %v9501
        %v9556 = vunpack.c.l.b16 %v9504
        %v9557 = vunpack.c.l.b16 %v9508
        %v9558 = vunpack.c.l.b16 %v9511
        %v9559 = vunpack.c.l.b16 %v9515
        %v9560 = vunpack.c.l.b16 %v9518
        %v9561 = vunpack.c.l.b16 %v9522
        %v9562 = vunpack.c.l.b16 %v9525
        %v9563 = vunpack.c.l.b16 %v9529
        %v9564 = vunpack.c.l.b16 %v9532
        %v9565 = vpack.c.b16 %v9534, %v9533
        %v9566 = vpack.c.b16 %v9536, %v9535
        %v9567 = vpack.c.b16 %v9538, %v9537
        %v9568 = vpack.c.b16 %v9540, %v9539
        %v9569 = vpack.c.b16 %v9542, %v9541
        %v9570 = vpack.c.b16 %v9544, %v9543
        %v9571 = vpack.c.b16 %v9546, %v9545
        %v9572 = vpack.c.b16 %v9548, %v9547
        %v9573 = vpack.c.b16 %v9550, %v9549
        %v9574 = vpack.c.b16 %v9552, %v9551
        %v9575 = vpack.c.b16 %v9554, %v9553
        %v9576 = vpack.c.b16 %v9556, %v9555
        %v9577 = vpack.c.b16 %v9558, %v9557
        %v9578 = vpack.c.b16 %v9560, %v9559
        %v9579 = vpack.c.b16 %v9562, %v9561
        %v9580 = vpack.c.b16 %v9564, %v9563
        %9581 = vrot.lane.b32.xlu0 %v9565, 32
        %v9582 = vpop.permute.xlu0 %9581
        %9583 = vrot.lane.b32.xlu0 %v9566, 32
        %v9584 = vpop.permute.xlu0 %9583
        %9585 = vrot.lane.b32.xlu0 %v9567, 32
        %v9586 = vpop.permute.xlu0 %9585
        %9587 = vrot.lane.b32.xlu0 %v9568, 32
        %v9588 = vpop.permute.xlu0 %9587
        %9589 = vrot.lane.b32.xlu0 %v9569, 32
        %v9590 = vpop.permute.xlu0 %9589
        %9591 = vrot.lane.b32.xlu0 %v9570, 32
        %v9592 = vpop.permute.xlu0 %9591
        %9593 = vrot.lane.b32.xlu0 %v9571, 32
        %v9594 = vpop.permute.xlu0 %9593
        %9595 = vrot.lane.b32.xlu0 %v9572, 32
        %v9596 = vpop.permute.xlu0 %9595
        %9597 = vrot.lane.b32.xlu0 %v9573, 32
        %v9598 = vpop.permute.xlu0 %9597
        %9599 = vrot.lane.b32.xlu0 %v9574, 32
        %v9600 = vpop.permute.xlu0 %9599
        %9601 = vrot.lane.b32.xlu0 %v9575, 32
        %v9602 = vpop.permute.xlu0 %9601
        %9603 = vrot.lane.b32.xlu0 %v9576, 32
        %v9604 = vpop.permute.xlu0 %9603
        %9605 = vrot.lane.b32.xlu0 %v9577, 32
        %v9606 = vpop.permute.xlu0 %9605
        %9607 = vrot.lane.b32.xlu0 %v9578, 32
        %v9608 = vpop.permute.xlu0 %9607
        %9609 = vrot.lane.b32.xlu0 %v9579, 32
        %v9610 = vpop.permute.xlu0 %9609
        %9611 = vrot.lane.b32.xlu0 %v9580, 32
        %v9612 = vpop.permute.xlu0 %9611
        %9629 = vst.msk [vmem:[#allocation4 + $0x8] sm:$0xff] %vm4141, %v9582
        %9630 = vst.msk [vmem:[#allocation4 + $0x20] sm:$0xff] %vm4141, %v9584
        %9631 = vst.msk [vmem:[#allocation4 + $0x38] sm:$0xff] %vm4141, %v9586
        %9632 = vst.msk [vmem:[#allocation4 + $0x50] sm:$0xff] %vm4141, %v9588
        %9633 = vst.msk [vmem:[#allocation4 + $0x68] sm:$0xff] %vm4141, %v9590
        %9634 = vst.msk [vmem:[#allocation4 + $0x80] sm:$0xff] %vm4141, %v9592
        %9635 = vst.msk [vmem:[#allocation4 + $0x98] sm:$0xff] %vm4141, %v9594
        %9636 = vst.msk [vmem:[#allocation4 + $0xb0] sm:$0xff] %vm4141, %v9596
        %9637 = vst.msk [vmem:[#allocation4 + $0xc8] sm:$0xff] %vm4141, %v9598
        %9638 = vst.msk [vmem:[#allocation4 + $0xe0] sm:$0xff] %vm4141, %v9600
        %9639 = vst.msk [vmem:[#allocation4 + $0xf8] sm:$0xff] %vm4141, %v9602
        %9640 = vst.msk [vmem:[#allocation4 + $0x110] sm:$0xff] %vm4141, %v9604
        %9641 = vst.msk [vmem:[#allocation4 + $0x128] sm:$0xff] %vm4141, %v9606
        %9642 = vst.msk [vmem:[#allocation4 + $0x140] sm:$0xff] %vm4141, %v9608
        %9643 = vst.msk [vmem:[#allocation4 + $0x158] sm:$0xff] %vm4141, %v9610
        %9644 = vst.msk [vmem:[#allocation4 + $0x170] sm:$0xff] %vm4141, %v9612
        %v9645 = vld [vmem:[%s5491] sm:$0xf]
        %v9646 = vld [vmem:[%s5491 + $0x4] sm:$0xf]
        %v9647 = vld [vmem:[%s5491 + $0xc] sm:$0xf]
        %v9648 = vld [vmem:[%s5491 + $0x10] sm:$0xf]
        %v9649 = vld [vmem:[%s5491 + $0x18] sm:$0xf]
        %v9650 = vld [vmem:[%s5491 + $0x1c] sm:$0xf]
        %v9651 = vld [vmem:[%s5491 + $0x24] sm:$0xf]
        %v9652 = vld [vmem:[%s5491 + $0x28] sm:$0xf]
        %v9653 = vld [vmem:[%s5491 + $0x30] sm:$0xf]
        %v9654 = vld [vmem:[%s5491 + $0x34] sm:$0xf]
        %v9655 = vld [vmem:[%s5491 + $0x3c] sm:$0xf]
        %v9656 = vld [vmem:[%s5491 + $0x40] sm:$0xf]
        %v9657 = vld [vmem:[%s5491 + $0x48] sm:$0xf]
        %v9658 = vld [vmem:[%s5491 + $0x4c] sm:$0xf]
        %v9659 = vld [vmem:[%s5491 + $0x54] sm:$0xf]
        %v9660 = vld [vmem:[%s5491 + $0x58] sm:$0xf]
        %v9661 = vld [vmem:[%s5491 + $0x60] sm:$0xf]
        %v9662 = vld [vmem:[%s5491 + $0x64] sm:$0xf]
        %v9663 = vld [vmem:[%s5491 + $0x6c] sm:$0xf]
        %v9664 = vld [vmem:[%s5491 + $0x70] sm:$0xf]
        %v9665 = vld [vmem:[%s5491 + $0x78] sm:$0xf]
        %v9666 = vld [vmem:[%s5491 + $0x7c] sm:$0xf]
        %v9667 = vld [vmem:[%s5491 + $0x84] sm:$0xf]
        %v9668 = vld [vmem:[%s5491 + $0x88] sm:$0xf]
        %v9669 = vld [vmem:[%s5491 + $0x90] sm:$0xf]
        %v9670 = vld [vmem:[%s5491 + $0x94] sm:$0xf]
        %v9671 = vld [vmem:[%s5491 + $0x9c] sm:$0xf]
        %v9672 = vld [vmem:[%s5491 + $0xa0] sm:$0xf]
        %v9673 = vld [vmem:[%s5491 + $0xa8] sm:$0xf]
        %v9674 = vld [vmem:[%s5491 + $0xac] sm:$0xf]
        %v9675 = vld [vmem:[%s5491 + $0xb4] sm:$0xf]
        %v9676 = vld [vmem:[%s5491 + $0xb8] sm:$0xf]
        %v9709 = vunpack.c.l.b16 %v9645
        %v9710 = vunpack.c.l.b16 %v9646
        %v9711 = vunpack.c.l.b16 %v9647
        %v9712 = vunpack.c.l.b16 %v9648
        %v9713 = vunpack.c.l.b16 %v9649
        %v9714 = vunpack.c.l.b16 %v9650
        %v9715 = vunpack.c.l.b16 %v9651
        %v9716 = vunpack.c.l.b16 %v9652
        %v9717 = vunpack.c.l.b16 %v9653
        %v9718 = vunpack.c.l.b16 %v9654
        %v9719 = vunpack.c.l.b16 %v9655
        %v9720 = vunpack.c.l.b16 %v9656
        %v9721 = vunpack.c.l.b16 %v9657
        %v9722 = vunpack.c.l.b16 %v9658
        %v9723 = vunpack.c.l.b16 %v9659
        %v9724 = vunpack.c.l.b16 %v9660
        %v9725 = vunpack.c.l.b16 %v9661
        %v9726 = vunpack.c.l.b16 %v9662
        %v9727 = vunpack.c.l.b16 %v9663
        %v9728 = vunpack.c.l.b16 %v9664
        %v9729 = vunpack.c.l.b16 %v9665
        %v9730 = vunpack.c.l.b16 %v9666
        %v9731 = vunpack.c.l.b16 %v9667
        %v9732 = vunpack.c.l.b16 %v9668
        %v9733 = vunpack.c.l.b16 %v9669
        %v9734 = vunpack.c.l.b16 %v9670
        %v9735 = vunpack.c.l.b16 %v9671
        %v9736 = vunpack.c.l.b16 %v9672
        %v9737 = vunpack.c.l.b16 %v9673
        %v9738 = vunpack.c.l.b16 %v9674
        %v9739 = vunpack.c.l.b16 %v9675
        %v9740 = vunpack.c.l.b16 %v9676
        %v9741 = vpack.c.b16 %v9710, %v9709
        %v9742 = vpack.c.b16 %v9712, %v9711
        %v9743 = vpack.c.b16 %v9714, %v9713
        %v9744 = vpack.c.b16 %v9716, %v9715
        %v9745 = vpack.c.b16 %v9718, %v9717
        %v9746 = vpack.c.b16 %v9720, %v9719
        %v9747 = vpack.c.b16 %v9722, %v9721
        %v9748 = vpack.c.b16 %v9724, %v9723
        %v9749 = vpack.c.b16 %v9726, %v9725
        %v9750 = vpack.c.b16 %v9728, %v9727
        %v9751 = vpack.c.b16 %v9730, %v9729
        %v9752 = vpack.c.b16 %v9732, %v9731
        %v9753 = vpack.c.b16 %v9734, %v9733
        %v9754 = vpack.c.b16 %v9736, %v9735
        %v9755 = vpack.c.b16 %v9738, %v9737
        %v9756 = vpack.c.b16 %v9740, %v9739
        %9757 = vrot.lane.b32.xlu0 %v9741, 64
        %v9758 = vpop.permute.xlu0 %9757
        %9759 = vrot.lane.b32.xlu0 %v9742, 64
        %v9760 = vpop.permute.xlu0 %9759
        %9761 = vrot.lane.b32.xlu0 %v9743, 64
        %v9762 = vpop.permute.xlu0 %9761
        %9763 = vrot.lane.b32.xlu0 %v9744, 64
        %v9764 = vpop.permute.xlu0 %9763
        %9765 = vrot.lane.b32.xlu0 %v9745, 64
        %v9766 = vpop.permute.xlu0 %9765
        %9767 = vrot.lane.b32.xlu0 %v9746, 64
        %v9768 = vpop.permute.xlu0 %9767
        %9769 = vrot.lane.b32.xlu0 %v9747, 64
        %v9770 = vpop.permute.xlu0 %9769
        %9771 = vrot.lane.b32.xlu0 %v9748, 64
        %v9772 = vpop.permute.xlu0 %9771
        %9773 = vrot.lane.b32.xlu0 %v9749, 64
        %v9774 = vpop.permute.xlu0 %9773
        %9775 = vrot.lane.b32.xlu0 %v9750, 64
        %v9776 = vpop.permute.xlu0 %9775
        %9777 = vrot.lane.b32.xlu0 %v9751, 64
        %v9778 = vpop.permute.xlu0 %9777
        %9779 = vrot.lane.b32.xlu0 %v9752, 64
        %v9780 = vpop.permute.xlu0 %9779
        %9781 = vrot.lane.b32.xlu0 %v9753, 64
        %v9782 = vpop.permute.xlu0 %9781
        %9783 = vrot.lane.b32.xlu0 %v9754, 64
        %v9784 = vpop.permute.xlu0 %9783
        %9785 = vrot.lane.b32.xlu0 %v9755, 64
        %v9786 = vpop.permute.xlu0 %9785
        %9787 = vrot.lane.b32.xlu0 %v9756, 64
        %v9788 = vpop.permute.xlu0 %9787
        %9805 = vst.msk [vmem:[#allocation4 + $0x8] sm:$0xff] %vm4465, %v9758
        %9806 = vst.msk [vmem:[#allocation4 + $0x20] sm:$0xff] %vm4465, %v9760
        %9807 = vst.msk [vmem:[#allocation4 + $0x38] sm:$0xff] %vm4465, %v9762
        %9808 = vst.msk [vmem:[#allocation4 + $0x50] sm:$0xff] %vm4465, %v9764
        %9809 = vst.msk [vmem:[#allocation4 + $0x68] sm:$0xff] %vm4465, %v9766
        %9810 = vst.msk [vmem:[#allocation4 + $0x80] sm:$0xff] %vm4465, %v9768
        %9811 = vst.msk [vmem:[#allocation4 + $0x98] sm:$0xff] %vm4465, %v9770
        %9812 = vst.msk [vmem:[#allocation4 + $0xb0] sm:$0xff] %vm4465, %v9772
        %9813 = vst.msk [vmem:[#allocation4 + $0xc8] sm:$0xff] %vm4465, %v9774
        %9814 = vst.msk [vmem:[#allocation4 + $0xe0] sm:$0xff] %vm4465, %v9776
        %9815 = vst.msk [vmem:[#allocation4 + $0xf8] sm:$0xff] %vm4465, %v9778
        %9816 = vst.msk [vmem:[#allocation4 + $0x110] sm:$0xff] %vm4465, %v9780
        %9817 = vst.msk [vmem:[#allocation4 + $0x128] sm:$0xff] %vm4465, %v9782
        %9818 = vst.msk [vmem:[#allocation4 + $0x140] sm:$0xff] %vm4465, %v9784
        %9819 = vst.msk [vmem:[#allocation4 + $0x158] sm:$0xff] %vm4465, %v9786
        %9820 = vst.msk [vmem:[#allocation4 + $0x170] sm:$0xff] %vm4465, %v9788
        %v9821 = vld [vmem:[%s5491] sm:$0xf]
        %v9822 = vld [vmem:[%s5491 + $0x4] sm:$0xf]
        %v9823 = vld [vmem:[%s5491 + $0x8] sm:$0x1]
        %v9824 = vld [vmem:[%s5491 + $0xc] sm:$0xf]
        %v9825 = vld [vmem:[%s5491 + $0x10] sm:$0xf]
        %v9826 = vld [vmem:[%s5491 + $0x14] sm:$0x1]
        %v9827 = vld [vmem:[%s5491 + $0x18] sm:$0xf]
        %v9828 = vld [vmem:[%s5491 + $0x1c] sm:$0xf]
        %v9829 = vld [vmem:[%s5491 + $0x20] sm:$0x1]
        %v9830 = vld [vmem:[%s5491 + $0x24] sm:$0xf]
        %v9831 = vld [vmem:[%s5491 + $0x28] sm:$0xf]
        %v9832 = vld [vmem:[%s5491 + $0x2c] sm:$0x1]
        %v9833 = vld [vmem:[%s5491 + $0x30] sm:$0xf]
        %v9834 = vld [vmem:[%s5491 + $0x34] sm:$0xf]
        %v9835 = vld [vmem:[%s5491 + $0x38] sm:$0x1]
        %v9836 = vld [vmem:[%s5491 + $0x3c] sm:$0xf]
        %v9837 = vld [vmem:[%s5491 + $0x40] sm:$0xf]
        %v9838 = vld [vmem:[%s5491 + $0x44] sm:$0x1]
        %v9839 = vld [vmem:[%s5491 + $0x48] sm:$0xf]
        %v9840 = vld [vmem:[%s5491 + $0x4c] sm:$0xf]
        %v9841 = vld [vmem:[%s5491 + $0x50] sm:$0x1]
        %v9842 = vld [vmem:[%s5491 + $0x54] sm:$0xf]
        %v9843 = vld [vmem:[%s5491 + $0x58] sm:$0xf]
        %v9844 = vld [vmem:[%s5491 + $0x5c] sm:$0x1]
        %v9845 = vld [vmem:[%s5491 + $0x60] sm:$0xf]
        %v9846 = vld [vmem:[%s5491 + $0x64] sm:$0xf]
        %v9847 = vld [vmem:[%s5491 + $0x68] sm:$0x1]
        %v9848 = vld [vmem:[%s5491 + $0x6c] sm:$0xf]
        %v9849 = vld [vmem:[%s5491 + $0x70] sm:$0xf]
        %v9850 = vld [vmem:[%s5491 + $0x74] sm:$0x1]
        %v9851 = vld [vmem:[%s5491 + $0x78] sm:$0xf]
        %v9852 = vld [vmem:[%s5491 + $0x7c] sm:$0xf]
        %v9853 = vld [vmem:[%s5491 + $0x80] sm:$0x1]
        %v9854 = vld [vmem:[%s5491 + $0x84] sm:$0xf]
        %v9855 = vld [vmem:[%s5491 + $0x88] sm:$0xf]
        %v9856 = vld [vmem:[%s5491 + $0x8c] sm:$0x1]
        %v9857 = vld [vmem:[%s5491 + $0x90] sm:$0xf]
        %v9858 = vld [vmem:[%s5491 + $0x94] sm:$0xf]
        %v9859 = vld [vmem:[%s5491 + $0x98] sm:$0x1]
        %v9860 = vld [vmem:[%s5491 + $0x9c] sm:$0xf]
        %v9861 = vld [vmem:[%s5491 + $0xa0] sm:$0xf]
        %v9862 = vld [vmem:[%s5491 + $0xa4] sm:$0x1]
        %v9863 = vld [vmem:[%s5491 + $0xa8] sm:$0xf]
        %v9864 = vld [vmem:[%s5491 + $0xac] sm:$0xf]
        %v9865 = vld [vmem:[%s5491 + $0xb0] sm:$0x1]
        %v9866 = vld [vmem:[%s5491 + $0xb4] sm:$0xf]
        %v9867 = vld [vmem:[%s5491 + $0xb8] sm:$0xf]
        %v9868 = vld [vmem:[%s5491 + $0xbc] sm:$0x1]
        %v9870 = vshrl.u32 %v9821, 16
        %v9872 = vrot.slane %v9870, 4
        %v9873 = vshll.u32 %v9821, 16
        %v9875 = vrot.slane %v9873, 5
        %v9876 = vor.u32 %v9872, %v9875
        %v9877 = vrot.slane %v9876, 4
        %v9879 = vshll.u32 %v9822, 16
        %v9881 = vrot.slane %v9879, 5
        %v9882 = vsel %vm3660, %v9877, %v9881
        %v9883 = vshrl.u32 %v9822, 16
        %v9885 = vrot.slane %v9883, 4
        %v9886 = vor.u32 %v9885, %v9881
        %v9887 = vrot.slane %v9886, 4
        %v9889 = vshll.u32 %v9823, 16
        %v9891 = vrot.slane %v9889, 5
        %v9892 = vsel %vm3660, %v9887, %v9891
        %v9894 = vshrl.u32 %v9824, 16
        %v9896 = vrot.slane %v9894, 4
        %v9897 = vshll.u32 %v9824, 16
        %v9899 = vrot.slane %v9897, 5
        %v9900 = vor.u32 %v9896, %v9899
        %v9901 = vrot.slane %v9900, 4
        %v9903 = vshll.u32 %v9825, 16
        %v9905 = vrot.slane %v9903, 5
        %v9906 = vsel %vm3660, %v9901, %v9905
        %v9907 = vshrl.u32 %v9825, 16
        %v9909 = vrot.slane %v9907, 4
        %v9910 = vor.u32 %v9909, %v9905
        %v9911 = vrot.slane %v9910, 4
        %v9913 = vshll.u32 %v9826, 16
        %v9915 = vrot.slane %v9913, 5
        %v9916 = vsel %vm3660, %v9911, %v9915
        %v9918 = vshrl.u32 %v9827, 16
        %v9920 = vrot.slane %v9918, 4
        %v9921 = vshll.u32 %v9827, 16
        %v9923 = vrot.slane %v9921, 5
        %v9924 = vor.u32 %v9920, %v9923
        %v9925 = vrot.slane %v9924, 4
        %v9927 = vshll.u32 %v9828, 16
        %v9929 = vrot.slane %v9927, 5
        %v9930 = vsel %vm3660, %v9925, %v9929
        %v9931 = vshrl.u32 %v9828, 16
        %v9933 = vrot.slane %v9931, 4
        %v9934 = vor.u32 %v9933, %v9929
        %v9935 = vrot.slane %v9934, 4
        %v9937 = vshll.u32 %v9829, 16
        %v9939 = vrot.slane %v9937, 5
        %v9940 = vsel %vm3660, %v9935, %v9939
        %v9942 = vshrl.u32 %v9830, 16
        %v9944 = vrot.slane %v9942, 4
        %v9945 = vshll.u32 %v9830, 16
        %v9947 = vrot.slane %v9945, 5
        %v9948 = vor.u32 %v9944, %v9947
        %v9949 = vrot.slane %v9948, 4
        %v9951 = vshll.u32 %v9831, 16
        %v9953 = vrot.slane %v9951, 5
        %v9954 = vsel %vm3660, %v9949, %v9953
        %v9955 = vshrl.u32 %v9831, 16
        %v9957 = vrot.slane %v9955, 4
        %v9958 = vor.u32 %v9957, %v9953
        %v9959 = vrot.slane %v9958, 4
        %v9961 = vshll.u32 %v9832, 16
        %v9963 = vrot.slane %v9961, 5
        %v9964 = vsel %vm3660, %v9959, %v9963
        %v9966 = vshrl.u32 %v9833, 16
        %v9968 = vrot.slane %v9966, 4
        %v9969 = vshll.u32 %v9833, 16
        %v9971 = vrot.slane %v9969, 5
        %v9972 = vor.u32 %v9968, %v9971
        %v9973 = vrot.slane %v9972, 4
        %v9975 = vshll.u32 %v9834, 16
        %v9977 = vrot.slane %v9975, 5
        %v9978 = vsel %vm3660, %v9973, %v9977
        %v9979 = vshrl.u32 %v9834, 16
        %v9981 = vrot.slane %v9979, 4
        %v9982 = vor.u32 %v9981, %v9977
        %v9983 = vrot.slane %v9982, 4
        %v9985 = vshll.u32 %v9835, 16
        %v9987 = vrot.slane %v9985, 5
        %v9988 = vsel %vm3660, %v9983, %v9987
        %v9990 = vshrl.u32 %v9836, 16
        %v9992 = vrot.slane %v9990, 4
        %v9993 = vshll.u32 %v9836, 16
        %v9995 = vrot.slane %v9993, 5
        %v9996 = vor.u32 %v9992, %v9995
        %v9997 = vrot.slane %v9996, 4
        %v9999 = vshll.u32 %v9837, 16
        %v10001 = vrot.slane %v9999, 5
        %v10002 = vsel %vm3660, %v9997, %v10001
        %v10003 = vshrl.u32 %v9837, 16
        %v10005 = vrot.slane %v10003, 4
        %v10006 = vor.u32 %v10005, %v10001
        %v10007 = vrot.slane %v10006, 4
        %v10009 = vshll.u32 %v9838, 16
        %v10011 = vrot.slane %v10009, 5
        %v10012 = vsel %vm3660, %v10007, %v10011
        %v10014 = vshrl.u32 %v9839, 16
        %v10016 = vrot.slane %v10014, 4
        %v10017 = vshll.u32 %v9839, 16
        %v10019 = vrot.slane %v10017, 5
        %v10020 = vor.u32 %v10016, %v10019
        %v10021 = vrot.slane %v10020, 4
        %v10023 = vshll.u32 %v9840, 16
        %v10025 = vrot.slane %v10023, 5
        %v10026 = vsel %vm3660, %v10021, %v10025
        %v10027 = vshrl.u32 %v9840, 16
        %v10029 = vrot.slane %v10027, 4
        %v10030 = vor.u32 %v10029, %v10025
        %v10031 = vrot.slane %v10030, 4
        %v10033 = vshll.u32 %v9841, 16
        %v10035 = vrot.slane %v10033, 5
        %v10036 = vsel %vm3660, %v10031, %v10035
        %v10038 = vshrl.u32 %v9842, 16
        %v10040 = vrot.slane %v10038, 4
        %v10041 = vshll.u32 %v9842, 16
        %v10043 = vrot.slane %v10041, 5
        %v10044 = vor.u32 %v10040, %v10043
        %v10045 = vrot.slane %v10044, 4
        %v10047 = vshll.u32 %v9843, 16
        %v10049 = vrot.slane %v10047, 5
        %v10050 = vsel %vm3660, %v10045, %v10049
        %v10051 = vshrl.u32 %v9843, 16
        %v10053 = vrot.slane %v10051, 4
        %v10054 = vor.u32 %v10053, %v10049
        %v10055 = vrot.slane %v10054, 4
        %v10057 = vshll.u32 %v9844, 16
        %v10059 = vrot.slane %v10057, 5
        %v10060 = vsel %vm3660, %v10055, %v10059
        %v10062 = vshrl.u32 %v9845, 16
        %v10064 = vrot.slane %v10062, 4
        %v10065 = vshll.u32 %v9845, 16
        %v10067 = vrot.slane %v10065, 5
        %v10068 = vor.u32 %v10064, %v10067
        %v10069 = vrot.slane %v10068, 4
        %v10071 = vshll.u32 %v9846, 16
        %v10073 = vrot.slane %v10071, 5
        %v10074 = vsel %vm3660, %v10069, %v10073
        %v10075 = vshrl.u32 %v9846, 16
        %v10077 = vrot.slane %v10075, 4
        %v10078 = vor.u32 %v10077, %v10073
        %v10079 = vrot.slane %v10078, 4
        %v10081 = vshll.u32 %v9847, 16
        %v10083 = vrot.slane %v10081, 5
        %v10084 = vsel %vm3660, %v10079, %v10083
        %v10086 = vshrl.u32 %v9848, 16
        %v10088 = vrot.slane %v10086, 4
        %v10089 = vshll.u32 %v9848, 16
        %v10091 = vrot.slane %v10089, 5
        %v10092 = vor.u32 %v10088, %v10091
        %v10093 = vrot.slane %v10092, 4
        %v10095 = vshll.u32 %v9849, 16
        %v10097 = vrot.slane %v10095, 5
        %v10098 = vsel %vm3660, %v10093, %v10097
        %v10099 = vshrl.u32 %v9849, 16
        %v10101 = vrot.slane %v10099, 4
        %v10102 = vor.u32 %v10101, %v10097
        %v10103 = vrot.slane %v10102, 4
        %v10105 = vshll.u32 %v9850, 16
        %v10107 = vrot.slane %v10105, 5
        %v10108 = vsel %vm3660, %v10103, %v10107
        %v10110 = vshrl.u32 %v9851, 16
        %v10112 = vrot.slane %v10110, 4
        %v10113 = vshll.u32 %v9851, 16
        %v10115 = vrot.slane %v10113, 5
        %v10116 = vor.u32 %v10112, %v10115
        %v10117 = vrot.slane %v10116, 4
        %v10119 = vshll.u32 %v9852, 16
        %v10121 = vrot.slane %v10119, 5
        %v10122 = vsel %vm3660, %v10117, %v10121
        %v10123 = vshrl.u32 %v9852, 16
        %v10125 = vrot.slane %v10123, 4
        %v10126 = vor.u32 %v10125, %v10121
        %v10127 = vrot.slane %v10126, 4
        %v10129 = vshll.u32 %v9853, 16
        %v10131 = vrot.slane %v10129, 5
        %v10132 = vsel %vm3660, %v10127, %v10131
        %v10134 = vshrl.u32 %v9854, 16
        %v10136 = vrot.slane %v10134, 4
        %v10137 = vshll.u32 %v9854, 16
        %v10139 = vrot.slane %v10137, 5
        %v10140 = vor.u32 %v10136, %v10139
        %v10141 = vrot.slane %v10140, 4
        %v10143 = vshll.u32 %v9855, 16
        %v10145 = vrot.slane %v10143, 5
        %v10146 = vsel %vm3660, %v10141, %v10145
        %v10147 = vshrl.u32 %v9855, 16
        %v10149 = vrot.slane %v10147, 4
        %v10150 = vor.u32 %v10149, %v10145
        %v10151 = vrot.slane %v10150, 4
        %v10153 = vshll.u32 %v9856, 16
        %v10155 = vrot.slane %v10153, 5
        %v10156 = vsel %vm3660, %v10151, %v10155
        %v10158 = vshrl.u32 %v9857, 16
        %v10160 = vrot.slane %v10158, 4
        %v10161 = vshll.u32 %v9857, 16
        %v10163 = vrot.slane %v10161, 5
        %v10164 = vor.u32 %v10160, %v10163
        %v10165 = vrot.slane %v10164, 4
        %v10167 = vshll.u32 %v9858, 16
        %v10169 = vrot.slane %v10167, 5
        %v10170 = vsel %vm3660, %v10165, %v10169
        %v10171 = vshrl.u32 %v9858, 16
        %v10173 = vrot.slane %v10171, 4
        %v10174 = vor.u32 %v10173, %v10169
        %v10175 = vrot.slane %v10174, 4
        %v10177 = vshll.u32 %v9859, 16
        %v10179 = vrot.slane %v10177, 5
        %v10180 = vsel %vm3660, %v10175, %v10179
        %v10182 = vshrl.u32 %v9860, 16
        %v10184 = vrot.slane %v10182, 4
        %v10185 = vshll.u32 %v9860, 16
        %v10187 = vrot.slane %v10185, 5
        %v10188 = vor.u32 %v10184, %v10187
        %v10189 = vrot.slane %v10188, 4
        %v10191 = vshll.u32 %v9861, 16
        %v10193 = vrot.slane %v10191, 5
        %v10194 = vsel %vm3660, %v10189, %v10193
        %v10195 = vshrl.u32 %v9861, 16
        %v10197 = vrot.slane %v10195, 4
        %v10198 = vor.u32 %v10197, %v10193
        %v10199 = vrot.slane %v10198, 4
        %v10201 = vshll.u32 %v9862, 16
        %v10203 = vrot.slane %v10201, 5
        %v10204 = vsel %vm3660, %v10199, %v10203
        %v10206 = vshrl.u32 %v9863, 16
        %v10208 = vrot.slane %v10206, 4
        %v10209 = vshll.u32 %v9863, 16
        %v10211 = vrot.slane %v10209, 5
        %v10212 = vor.u32 %v10208, %v10211
        %v10213 = vrot.slane %v10212, 4
        %v10215 = vshll.u32 %v9864, 16
        %v10217 = vrot.slane %v10215, 5
        %v10218 = vsel %vm3660, %v10213, %v10217
        %v10219 = vshrl.u32 %v9864, 16
        %v10221 = vrot.slane %v10219, 4
        %v10222 = vor.u32 %v10221, %v10217
        %v10223 = vrot.slane %v10222, 4
        %v10225 = vshll.u32 %v9865, 16
        %v10227 = vrot.slane %v10225, 5
        %v10228 = vsel %vm3660, %v10223, %v10227
        %v10230 = vshrl.u32 %v9866, 16
        %v10232 = vrot.slane %v10230, 4
        %v10233 = vshll.u32 %v9866, 16
        %v10235 = vrot.slane %v10233, 5
        %v10236 = vor.u32 %v10232, %v10235
        %v10237 = vrot.slane %v10236, 4
        %v10239 = vshll.u32 %v9867, 16
        %v10241 = vrot.slane %v10239, 5
        %v10242 = vsel %vm3660, %v10237, %v10241
        %v10243 = vshrl.u32 %v9867, 16
        %v10245 = vrot.slane %v10243, 4
        %v10246 = vor.u32 %v10245, %v10241
        %v10247 = vrot.slane %v10246, 4
        %v10249 = vshll.u32 %v9868, 16
        %v10251 = vrot.slane %v10249, 5
        %v10252 = vsel %vm3660, %v10247, %v10251
        %v10253 = vunpack.c.l.b16 %v9882
        %v10254 = vunpack.c.l.b16 %v9892
        %v10255 = vunpack.c.l.b16 %v9906
        %v10256 = vunpack.c.l.b16 %v9916
        %v10257 = vunpack.c.l.b16 %v9930
        %v10258 = vunpack.c.l.b16 %v9940
        %v10259 = vunpack.c.l.b16 %v9954
        %v10260 = vunpack.c.l.b16 %v9964
        %v10261 = vunpack.c.l.b16 %v9978
        %v10262 = vunpack.c.l.b16 %v9988
        %v10263 = vunpack.c.l.b16 %v10002
        %v10264 = vunpack.c.l.b16 %v10012
        %v10265 = vunpack.c.l.b16 %v10026
        %v10266 = vunpack.c.l.b16 %v10036
        %v10267 = vunpack.c.l.b16 %v10050
        %v10268 = vunpack.c.l.b16 %v10060
        %v10269 = vunpack.c.l.b16 %v10074
        %v10270 = vunpack.c.l.b16 %v10084
        %v10271 = vunpack.c.l.b16 %v10098
        %v10272 = vunpack.c.l.b16 %v10108
        %v10273 = vunpack.c.l.b16 %v10122
        %v10274 = vunpack.c.l.b16 %v10132
        %v10275 = vunpack.c.l.b16 %v10146
        %v10276 = vunpack.c.l.b16 %v10156
        %v10277 = vunpack.c.l.b16 %v10170
        %v10278 = vunpack.c.l.b16 %v10180
        %v10279 = vunpack.c.l.b16 %v10194
        %v10280 = vunpack.c.l.b16 %v10204
        %v10281 = vunpack.c.l.b16 %v10218
        %v10282 = vunpack.c.l.b16 %v10228
        %v10283 = vunpack.c.l.b16 %v10242
        %v10284 = vunpack.c.l.b16 %v10252
        %v10285 = vpack.c.b16 %v10254, %v10253
        %v10286 = vpack.c.b16 %v10256, %v10255
        %v10287 = vpack.c.b16 %v10258, %v10257
        %v10288 = vpack.c.b16 %v10260, %v10259
        %v10289 = vpack.c.b16 %v10262, %v10261
        %v10290 = vpack.c.b16 %v10264, %v10263
        %v10291 = vpack.c.b16 %v10266, %v10265
        %v10292 = vpack.c.b16 %v10268, %v10267
        %v10293 = vpack.c.b16 %v10270, %v10269
        %v10294 = vpack.c.b16 %v10272, %v10271
        %v10295 = vpack.c.b16 %v10274, %v10273
        %v10296 = vpack.c.b16 %v10276, %v10275
        %v10297 = vpack.c.b16 %v10278, %v10277
        %v10298 = vpack.c.b16 %v10280, %v10279
        %v10299 = vpack.c.b16 %v10282, %v10281
        %v10300 = vpack.c.b16 %v10284, %v10283
        %10301 = vrot.lane.b32.xlu0 %v10285, 96
        %v10302 = vpop.permute.xlu0 %10301
        %10303 = vrot.lane.b32.xlu0 %v10286, 96
        %v10304 = vpop.permute.xlu0 %10303
        %10305 = vrot.lane.b32.xlu0 %v10287, 96
        %v10306 = vpop.permute.xlu0 %10305
        %10307 = vrot.lane.b32.xlu0 %v10288, 96
        %v10308 = vpop.permute.xlu0 %10307
        %10309 = vrot.lane.b32.xlu0 %v10289, 96
        %v10310 = vpop.permute.xlu0 %10309
        %10311 = vrot.lane.b32.xlu0 %v10290, 96
        %v10312 = vpop.permute.xlu0 %10311
        %10313 = vrot.lane.b32.xlu0 %v10291, 96
        %v10314 = vpop.permute.xlu0 %10313
        %10315 = vrot.lane.b32.xlu0 %v10292, 96
        %v10316 = vpop.permute.xlu0 %10315
        %10317 = vrot.lane.b32.xlu0 %v10293, 96
        %v10318 = vpop.permute.xlu0 %10317
        %10319 = vrot.lane.b32.xlu0 %v10294, 96
        %v10320 = vpop.permute.xlu0 %10319
        %10321 = vrot.lane.b32.xlu0 %v10295, 96
        %v10322 = vpop.permute.xlu0 %10321
        %10323 = vrot.lane.b32.xlu0 %v10296, 96
        %v10324 = vpop.permute.xlu0 %10323
        %10325 = vrot.lane.b32.xlu0 %v10297, 96
        %v10326 = vpop.permute.xlu0 %10325
        %10327 = vrot.lane.b32.xlu0 %v10298, 96
        %v10328 = vpop.permute.xlu0 %10327
        %10329 = vrot.lane.b32.xlu0 %v10299, 96
        %v10330 = vpop.permute.xlu0 %10329
        %10331 = vrot.lane.b32.xlu0 %v10300, 96
        %v10332 = vpop.permute.xlu0 %10331
        %10349 = vst.msk [vmem:[#allocation4 + $0x8] sm:$0xff] %vm4642, %v10302
        %10350 = vst.msk [vmem:[#allocation4 + $0x20] sm:$0xff] %vm4642, %v10304
        %10351 = vst.msk [vmem:[#allocation4 + $0x38] sm:$0xff] %vm4642, %v10306
        %10352 = vst.msk [vmem:[#allocation4 + $0x50] sm:$0xff] %vm4642, %v10308
        %10353 = vst.msk [vmem:[#allocation4 + $0x68] sm:$0xff] %vm4642, %v10310
        %10354 = vst.msk [vmem:[#allocation4 + $0x80] sm:$0xff] %vm4642, %v10312
        %10355 = vst.msk [vmem:[#allocation4 + $0x98] sm:$0xff] %vm4642, %v10314
        %10356 = vst.msk [vmem:[#allocation4 + $0xb0] sm:$0xff] %vm4642, %v10316
        %10357 = vst.msk [vmem:[#allocation4 + $0xc8] sm:$0xff] %vm4642, %v10318
        %10358 = vst.msk [vmem:[#allocation4 + $0xe0] sm:$0xff] %vm4642, %v10320
        %10359 = vst.msk [vmem:[#allocation4 + $0xf8] sm:$0xff] %vm4642, %v10322
        %10360 = vst.msk [vmem:[#allocation4 + $0x110] sm:$0xff] %vm4642, %v10324
        %10361 = vst.msk [vmem:[#allocation4 + $0x128] sm:$0xff] %vm4642, %v10326
        %10362 = vst.msk [vmem:[#allocation4 + $0x140] sm:$0xff] %vm4642, %v10328
        %10363 = vst.msk [vmem:[#allocation4 + $0x158] sm:$0xff] %vm4642, %v10330
        %10364 = vst.msk [vmem:[#allocation4 + $0x170] sm:$0xff] %vm4642, %v10332
        %v10365 = vld [vmem:[%s5491] sm:$0xe]
        %v10366 = vld [vmem:[%s5491 + $0x4] sm:$0xf]
        %v10367 = vld [vmem:[%s5491 + $0x8] sm:$0x1]
        %v10368 = vld [vmem:[%s5491 + $0xc] sm:$0xe]
        %v10369 = vld [vmem:[%s5491 + $0x10] sm:$0xf]
        %v10370 = vld [vmem:[%s5491 + $0x14] sm:$0x1]
        %v10371 = vld [vmem:[%s5491 + $0x18] sm:$0xe]
        %v10372 = vld [vmem:[%s5491 + $0x1c] sm:$0xf]
        %v10373 = vld [vmem:[%s5491 + $0x20] sm:$0x1]
        %v10374 = vld [vmem:[%s5491 + $0x24] sm:$0xe]
        %v10375 = vld [vmem:[%s5491 + $0x28] sm:$0xf]
        %v10376 = vld [vmem:[%s5491 + $0x2c] sm:$0x1]
        %v10377 = vld [vmem:[%s5491 + $0x30] sm:$0xe]
        %v10378 = vld [vmem:[%s5491 + $0x34] sm:$0xf]
        %v10379 = vld [vmem:[%s5491 + $0x38] sm:$0x1]
        %v10380 = vld [vmem:[%s5491 + $0x3c] sm:$0xe]
        %v10381 = vld [vmem:[%s5491 + $0x40] sm:$0xf]
        %v10382 = vld [vmem:[%s5491 + $0x44] sm:$0x1]
        %v10383 = vld [vmem:[%s5491 + $0x48] sm:$0xe]
        %v10384 = vld [vmem:[%s5491 + $0x4c] sm:$0xf]
        %v10385 = vld [vmem:[%s5491 + $0x50] sm:$0x1]
        %v10386 = vld [vmem:[%s5491 + $0x54] sm:$0xe]
        %v10387 = vld [vmem:[%s5491 + $0x58] sm:$0xf]
        %v10388 = vld [vmem:[%s5491 + $0x5c] sm:$0x1]
        %v10389 = vld [vmem:[%s5491 + $0x60] sm:$0xe]
        %v10390 = vld [vmem:[%s5491 + $0x64] sm:$0xf]
        %v10391 = vld [vmem:[%s5491 + $0x68] sm:$0x1]
        %v10392 = vld [vmem:[%s5491 + $0x6c] sm:$0xe]
        %v10393 = vld [vmem:[%s5491 + $0x70] sm:$0xf]
        %v10394 = vld [vmem:[%s5491 + $0x74] sm:$0x1]
        %v10395 = vld [vmem:[%s5491 + $0x78] sm:$0xe]
        %v10396 = vld [vmem:[%s5491 + $0x7c] sm:$0xf]
        %v10397 = vld [vmem:[%s5491 + $0x80] sm:$0x1]
        %v10398 = vld [vmem:[%s5491 + $0x84] sm:$0xe]
        %v10399 = vld [vmem:[%s5491 + $0x88] sm:$0xf]
        %v10400 = vld [vmem:[%s5491 + $0x8c] sm:$0x1]
        %v10401 = vld [vmem:[%s5491 + $0x90] sm:$0xe]
        %v10402 = vld [vmem:[%s5491 + $0x94] sm:$0xf]
        %v10403 = vld [vmem:[%s5491 + $0x98] sm:$0x1]
        %v10404 = vld [vmem:[%s5491 + $0x9c] sm:$0xe]
        %v10405 = vld [vmem:[%s5491 + $0xa0] sm:$0xf]
        %v10406 = vld [vmem:[%s5491 + $0xa4] sm:$0x1]
        %v10407 = vld [vmem:[%s5491 + $0xa8] sm:$0xe]
        %v10408 = vld [vmem:[%s5491 + $0xac] sm:$0xf]
        %v10409 = vld [vmem:[%s5491 + $0xb0] sm:$0x1]
        %v10410 = vld [vmem:[%s5491 + $0xb4] sm:$0xe]
        %v10411 = vld [vmem:[%s5491 + $0xb8] sm:$0xf]
        %v10412 = vld [vmem:[%s5491 + $0xbc] sm:$0x1]
        %v10461 = vrot.slane %v10365, 5
        %v10462 = vrot.slane %v10461, 4
        %v10463 = vrot.slane %v10366, 5
        %v10464 = vsel %vm4256, %v10462, %v10463
        %v10465 = vrot.slane %v10463, 4
        %v10466 = vrot.slane %v10367, 5
        %v10467 = vsel %vm4256, %v10465, %v10466
        %v10468 = vrot.slane %v10368, 5
        %v10469 = vrot.slane %v10468, 4
        %v10470 = vrot.slane %v10369, 5
        %v10471 = vsel %vm4256, %v10469, %v10470
        %v10472 = vrot.slane %v10470, 4
        %v10473 = vrot.slane %v10370, 5
        %v10474 = vsel %vm4256, %v10472, %v10473
        %v10475 = vrot.slane %v10371, 5
        %v10476 = vrot.slane %v10475, 4
        %v10477 = vrot.slane %v10372, 5
        %v10478 = vsel %vm4256, %v10476, %v10477
        %v10479 = vrot.slane %v10477, 4
        %v10480 = vrot.slane %v10373, 5
        %v10481 = vsel %vm4256, %v10479, %v10480
        %v10482 = vrot.slane %v10374, 5
        %v10483 = vrot.slane %v10482, 4
        %v10484 = vrot.slane %v10375, 5
        %v10485 = vsel %vm4256, %v10483, %v10484
        %v10486 = vrot.slane %v10484, 4
        %v10487 = vrot.slane %v10376, 5
        %v10488 = vsel %vm4256, %v10486, %v10487
        %v10489 = vrot.slane %v10377, 5
        %v10490 = vrot.slane %v10489, 4
        %v10491 = vrot.slane %v10378, 5
        %v10492 = vsel %vm4256, %v10490, %v10491
        %v10493 = vrot.slane %v10491, 4
        %v10494 = vrot.slane %v10379, 5
        %v10495 = vsel %vm4256, %v10493, %v10494
        %v10496 = vrot.slane %v10380, 5
        %v10497 = vrot.slane %v10496, 4
        %v10498 = vrot.slane %v10381, 5
        %v10499 = vsel %vm4256, %v10497, %v10498
        %v10500 = vrot.slane %v10498, 4
        %v10501 = vrot.slane %v10382, 5
        %v10502 = vsel %vm4256, %v10500, %v10501
        %v10503 = vrot.slane %v10383, 5
        %v10504 = vrot.slane %v10503, 4
        %v10505 = vrot.slane %v10384, 5
        %v10506 = vsel %vm4256, %v10504, %v10505
        %v10507 = vrot.slane %v10505, 4
        %v10508 = vrot.slane %v10385, 5
        %v10509 = vsel %vm4256, %v10507, %v10508
        %v10510 = vrot.slane %v10386, 5
        %v10511 = vrot.slane %v10510, 4
        %v10512 = vrot.slane %v10387, 5
        %v10513 = vsel %vm4256, %v10511, %v10512
        %v10514 = vrot.slane %v10512, 4
        %v10515 = vrot.slane %v10388, 5
        %v10516 = vsel %vm4256, %v10514, %v10515
        %v10517 = vrot.slane %v10389, 5
        %v10518 = vrot.slane %v10517, 4
        %v10519 = vrot.slane %v10390, 5
        %v10520 = vsel %vm4256, %v10518, %v10519
        %v10521 = vrot.slane %v10519, 4
        %v10522 = vrot.slane %v10391, 5
        %v10523 = vsel %vm4256, %v10521, %v10522
        %v10524 = vrot.slane %v10392, 5
        %v10525 = vrot.slane %v10524, 4
        %v10526 = vrot.slane %v10393, 5
        %v10527 = vsel %vm4256, %v10525, %v10526
        %v10528 = vrot.slane %v10526, 4
        %v10529 = vrot.slane %v10394, 5
        %v10530 = vsel %vm4256, %v10528, %v10529
        %v10531 = vrot.slane %v10395, 5
        %v10532 = vrot.slane %v10531, 4
        %v10533 = vrot.slane %v10396, 5
        %v10534 = vsel %vm4256, %v10532, %v10533
        %v10535 = vrot.slane %v10533, 4
        %v10536 = vrot.slane %v10397, 5
        %v10537 = vsel %vm4256, %v10535, %v10536
        %v10538 = vrot.slane %v10398, 5
        %v10539 = vrot.slane %v10538, 4
        %v10540 = vrot.slane %v10399, 5
        %v10541 = vsel %vm4256, %v10539, %v10540
        %v10542 = vrot.slane %v10540, 4
        %v10543 = vrot.slane %v10400, 5
        %v10544 = vsel %vm4256, %v10542, %v10543
        %v10545 = vrot.slane %v10401, 5
        %v10546 = vrot.slane %v10545, 4
        %v10547 = vrot.slane %v10402, 5
        %v10548 = vsel %vm4256, %v10546, %v10547
        %v10549 = vrot.slane %v10547, 4
        %v10550 = vrot.slane %v10403, 5
        %v10551 = vsel %vm4256, %v10549, %v10550
        %v10552 = vrot.slane %v10404, 5
        %v10553 = vrot.slane %v10552, 4
        %v10554 = vrot.slane %v10405, 5
        %v10555 = vsel %vm4256, %v10553, %v10554
        %v10556 = vrot.slane %v10554, 4
        %v10557 = vrot.slane %v10406, 5
        %v10558 = vsel %vm4256, %v10556, %v10557
        %v10559 = vrot.slane %v10407, 5
        %v10560 = vrot.slane %v10559, 4
        %v10561 = vrot.slane %v10408, 5
        %v10562 = vsel %vm4256, %v10560, %v10561
        %v10563 = vrot.slane %v10561, 4
        %v10564 = vrot.slane %v10409, 5
        %v10565 = vsel %vm4256, %v10563, %v10564
        %v10566 = vrot.slane %v10410, 5
        %v10567 = vrot.slane %v10566, 4
        %v10568 = vrot.slane %v10411, 5
        %v10569 = vsel %vm4256, %v10567, %v10568
        %v10570 = vrot.slane %v10568, 4
        %v10571 = vrot.slane %v10412, 5
        %v10572 = vsel %vm4256, %v10570, %v10571
        %v10573 = vunpack.c.l.b16 %v10464
        %v10574 = vunpack.c.l.b16 %v10467
        %v10575 = vunpack.c.l.b16 %v10471
        %v10576 = vunpack.c.l.b16 %v10474
        %v10577 = vunpack.c.l.b16 %v10478
        %v10578 = vunpack.c.l.b16 %v10481
        %v10579 = vunpack.c.l.b16 %v10485
        %v10580 = vunpack.c.l.b16 %v10488
        %v10581 = vunpack.c.l.b16 %v10492
        %v10582 = vunpack.c.l.b16 %v10495
        %v10583 = vunpack.c.l.b16 %v10499
        %v10584 = vunpack.c.l.b16 %v10502
        %v10585 = vunpack.c.l.b16 %v10506
        %v10586 = vunpack.c.l.b16 %v10509
        %v10587 = vunpack.c.l.b16 %v10513
        %v10588 = vunpack.c.l.b16 %v10516
        %v10589 = vunpack.c.l.b16 %v10520
        %v10590 = vunpack.c.l.b16 %v10523
        %v10591 = vunpack.c.l.b16 %v10527
        %v10592 = vunpack.c.l.b16 %v10530
        %v10593 = vunpack.c.l.b16 %v10534
        %v10594 = vunpack.c.l.b16 %v10537
        %v10595 = vunpack.c.l.b16 %v10541
        %v10596 = vunpack.c.l.b16 %v10544
        %v10597 = vunpack.c.l.b16 %v10548
        %v10598 = vunpack.c.l.b16 %v10551
        %v10599 = vunpack.c.l.b16 %v10555
        %v10600 = vunpack.c.l.b16 %v10558
        %v10601 = vunpack.c.l.b16 %v10562
        %v10602 = vunpack.c.l.b16 %v10565
        %v10603 = vunpack.c.l.b16 %v10569
        %v10604 = vunpack.c.l.b16 %v10572
        %v10605 = vpack.c.b16 %v10574, %v10573
        %v10606 = vpack.c.b16 %v10576, %v10575
        %v10607 = vpack.c.b16 %v10578, %v10577
        %v10608 = vpack.c.b16 %v10580, %v10579
        %v10609 = vpack.c.b16 %v10582, %v10581
        %v10610 = vpack.c.b16 %v10584, %v10583
        %v10611 = vpack.c.b16 %v10586, %v10585
        %v10612 = vpack.c.b16 %v10588, %v10587
        %v10613 = vpack.c.b16 %v10590, %v10589
        %v10614 = vpack.c.b16 %v10592, %v10591
        %v10615 = vpack.c.b16 %v10594, %v10593
        %v10616 = vpack.c.b16 %v10596, %v10595
        %v10617 = vpack.c.b16 %v10598, %v10597
        %v10618 = vpack.c.b16 %v10600, %v10599
        %v10619 = vpack.c.b16 %v10602, %v10601
        %v10620 = vpack.c.b16 %v10604, %v10603
        %10637 = vst.msk [vmem:[#allocation4 + $0x10] sm:$0xff] %vm3593, %v10605
        %10638 = vst.msk [vmem:[#allocation4 + $0x28] sm:$0xff] %vm3593, %v10606
        %10639 = vst.msk [vmem:[#allocation4 + $0x40] sm:$0xff] %vm3593, %v10607
        %10640 = vst.msk [vmem:[#allocation4 + $0x58] sm:$0xff] %vm3593, %v10608
        %10641 = vst.msk [vmem:[#allocation4 + $0x70] sm:$0xff] %vm3593, %v10609
        %10642 = vst.msk [vmem:[#allocation4 + $0x88] sm:$0xff] %vm3593, %v10610
        %10643 = vst.msk [vmem:[#allocation4 + $0xa0] sm:$0xff] %vm3593, %v10611
        %10644 = vst.msk [vmem:[#allocation4 + $0xb8] sm:$0xff] %vm3593, %v10612
        %10645 = vst.msk [vmem:[#allocation4 + $0xd0] sm:$0xff] %vm3593, %v10613
        %10646 = vst.msk [vmem:[#allocation4 + $0xe8] sm:$0xff] %vm3593, %v10614
        %10647 = vst.msk [vmem:[#allocation4 + $0x100] sm:$0xff] %vm3593, %v10615
        %10648 = vst.msk [vmem:[#allocation4 + $0x118] sm:$0xff] %vm3593, %v10616
        %10649 = vst.msk [vmem:[#allocation4 + $0x130] sm:$0xff] %vm3593, %v10617
        %10650 = vst.msk [vmem:[#allocation4 + $0x148] sm:$0xff] %vm3593, %v10618
        %10651 = vst.msk [vmem:[#allocation4 + $0x160] sm:$0xff] %vm3593, %v10619
        %10652 = vst.msk [vmem:[#allocation4 + $0x178] sm:$0xff] %vm3593, %v10620
        %v10653 = vld [vmem:[#allocation4] sm:$0xff]
        %v10654 = vld [vmem:[#allocation4 + $0x8] sm:$0xff]
        %v10655 = vld [vmem:[#allocation4 + $0x10] sm:$0xff]
        %v10656 = vld [vmem:[#allocation4 + $0x18] sm:$0xff]
        %v10657 = vld [vmem:[#allocation4 + $0x20] sm:$0xff]
        %v10658 = vld [vmem:[#allocation4 + $0x28] sm:$0xff]
        %v10659 = vld [vmem:[#allocation4 + $0x30] sm:$0xff]
        %v10660 = vld [vmem:[#allocation4 + $0x38] sm:$0xff]
        %v10661 = vld [vmem:[#allocation4 + $0x40] sm:$0xff]
        %v10662 = vld [vmem:[#allocation4 + $0x48] sm:$0xff]
        %v10663 = vld [vmem:[#allocation4 + $0x50] sm:$0xff]
        %v10664 = vld [vmem:[#allocation4 + $0x58] sm:$0xff]
        %v10665 = vld [vmem:[#allocation4 + $0x60] sm:$0xff]
        %v10666 = vld [vmem:[#allocation4 + $0x68] sm:$0xff]
        %v10667 = vld [vmem:[#allocation4 + $0x70] sm:$0xff]
        %v10668 = vld [vmem:[#allocation4 + $0x78] sm:$0xff]
        %v10669 = vld [vmem:[#allocation4 + $0x80] sm:$0xff]
        %v10670 = vld [vmem:[#allocation4 + $0x88] sm:$0xff]
        %v10671 = vld [vmem:[#allocation4 + $0x90] sm:$0xff]
        %v10672 = vld [vmem:[#allocation4 + $0x98] sm:$0xff]
        %v10673 = vld [vmem:[#allocation4 + $0xa0] sm:$0xff]
        %v10674 = vld [vmem:[#allocation4 + $0xa8] sm:$0xff]
        %v10675 = vld [vmem:[#allocation4 + $0xb0] sm:$0xff]
        %v10676 = vld [vmem:[#allocation4 + $0xb8] sm:$0xff]
        %v10677 = vld [vmem:[#allocation4 + $0xc0] sm:$0xff]
        %v10678 = vld [vmem:[#allocation4 + $0xc8] sm:$0xff]
        %v10679 = vld [vmem:[#allocation4 + $0xd0] sm:$0xff]
        %v10680 = vld [vmem:[#allocation4 + $0xd8] sm:$0xff]
        %v10681 = vld [vmem:[#allocation4 + $0xe0] sm:$0xff]
        %v10682 = vld [vmem:[#allocation4 + $0xe8] sm:$0xff]
        %v10683 = vld [vmem:[#allocation4 + $0xf0] sm:$0xff]
        %v10684 = vld [vmem:[#allocation4 + $0xf8] sm:$0xff]
        %v10685 = vld [vmem:[#allocation4 + $0x100] sm:$0xff]
        %v10686 = vld [vmem:[#allocation4 + $0x108] sm:$0xff]
        %v10687 = vld [vmem:[#allocation4 + $0x110] sm:$0xff]
        %v10688 = vld [vmem:[#allocation4 + $0x118] sm:$0xff]
        %v10689 = vld [vmem:[#allocation4 + $0x120] sm:$0xff]
        %v10690 = vld [vmem:[#allocation4 + $0x128] sm:$0xff]
        %v10691 = vld [vmem:[#allocation4 + $0x130] sm:$0xff]
        %v10692 = vld [vmem:[#allocation4 + $0x138] sm:$0xff]
        %v10693 = vld [vmem:[#allocation4 + $0x140] sm:$0xff]
        %v10694 = vld [vmem:[#allocation4 + $0x148] sm:$0xff]
        %v10695 = vld [vmem:[#allocation4 + $0x150] sm:$0xff]
        %v10696 = vld [vmem:[#allocation4 + $0x158] sm:$0xff]
        %v10697 = vld [vmem:[#allocation4 + $0x160] sm:$0xff]
        %v10698 = vld [vmem:[#allocation4 + $0x168] sm:$0xff]
        %v10699 = vld [vmem:[#allocation4 + $0x170] sm:$0xff]
        %v10700 = vld [vmem:[#allocation4 + $0x178] sm:$0xff]
        %v10701 = vld [vmem:[%s5] sm:$0xf]
        %v10702 = vld [vmem:[%s5 + $0x4] sm:$0xf]
        %v10703 = vld [vmem:[%s5 + $0x8] sm:$0xf]
        %v10704 = vld [vmem:[%s5 + $0xc] sm:$0xf]
        %v10705 = vld [vmem:[%s5 + $0x10] sm:$0xf]
        %v10706 = vld [vmem:[%s5 + $0x14] sm:$0xf]
        %v10707 = vld [vmem:[%s5 + $0x18] sm:$0xf]
        %v10708 = vld [vmem:[%s5 + $0x1c] sm:$0xf]
        %v10709 = vld [vmem:[%s5 + $0x20] sm:$0xf]
        %v10710 = vld [vmem:[%s5 + $0x24] sm:$0xf]
        %v10711 = vld [vmem:[%s5 + $0x28] sm:$0xf]
        %v10712 = vld [vmem:[%s5 + $0x2c] sm:$0xf]
        %v10713 = vld [vmem:[%s5 + $0x30] sm:$0xf]
        %v10714 = vld [vmem:[%s5 + $0x34] sm:$0xf]
        %v10715 = vld [vmem:[%s5 + $0x38] sm:$0xf]
        %v10716 = vld [vmem:[%s5 + $0x3c] sm:$0xf]
        %v10717 = vld [vmem:[%s5 + $0x40] sm:$0xf]
        %v10718 = vld [vmem:[%s5 + $0x44] sm:$0xf]
        %v10719 = vld [vmem:[%s5 + $0x48] sm:$0xf]
        %v10720 = vld [vmem:[%s5 + $0x4c] sm:$0xf]
        %v10721 = vld [vmem:[%s5 + $0x50] sm:$0xf]
        %v10722 = vld [vmem:[%s5 + $0x54] sm:$0xf]
        %v10723 = vld [vmem:[%s5 + $0x58] sm:$0xf]
        %v10724 = vld [vmem:[%s5 + $0x5c] sm:$0xf]
        %v10725 = vld [vmem:[%s5 + $0x60] sm:$0xf]
        %v10726 = vld [vmem:[%s5 + $0x64] sm:$0xf]
        %v10727 = vld [vmem:[%s5 + $0x68] sm:$0xf]
        %v10728 = vld [vmem:[%s5 + $0x6c] sm:$0xf]
        %v10729 = vld [vmem:[%s5 + $0x70] sm:$0xf]
        %v10730 = vld [vmem:[%s5 + $0x74] sm:$0xf]
        %v10731 = vld [vmem:[%s5 + $0x78] sm:$0xf]
        %v10732 = vld [vmem:[%s5 + $0x7c] sm:$0xf]
        %v10733 = vld [vmem:[%s5 + $0x80] sm:$0xf]
        %v10734 = vld [vmem:[%s5 + $0x84] sm:$0xf]
        %v10735 = vld [vmem:[%s5 + $0x88] sm:$0xf]
        %v10736 = vld [vmem:[%s5 + $0x8c] sm:$0xf]
        %v10737 = vld [vmem:[%s6] sm:$0x1]
        %v10739 = vlaneseq
        %v10740 = vshrl.u32 %v10739, 7
        %v10741 = vsub.s32 0, %v10740
        %v10742 = vrot.slane %v10737, %v10741
        %v10780 = vunpack.c.l.b16 %v10701
        %v10781 = vunpack.c.l.b16 %v10702
        %v10782 = vunpack.c.l.b16 %v10703
        %v10783 = vunpack.c.l.b16 %v10704
        %v10784 = vunpack.c.l.b16 %v10705
        %v10785 = vunpack.c.l.b16 %v10706
        %v10786 = vunpack.c.l.b16 %v10707
        %v10787 = vunpack.c.l.b16 %v10708
        %v10788 = vunpack.c.l.b16 %v10709
        %v10789 = vunpack.c.l.b16 %v10710
        %v10790 = vunpack.c.l.b16 %v10711
        %v10791 = vunpack.c.l.b16 %v10712
        %v10792 = vunpack.c.l.b16 %v10713
        %v10793 = vunpack.c.l.b16 %v10714
        %v10794 = vunpack.c.l.b16 %v10715
        %v10795 = vunpack.c.l.b16 %v10716
        %v10796 = vunpack.c.l.b16 %v10717
        %v10797 = vunpack.c.l.b16 %v10718
        %v10798 = vunpack.c.l.b16 %v10719
        %v10799 = vunpack.c.l.b16 %v10720
        %v10800 = vunpack.c.l.b16 %v10721
        %v10801 = vunpack.c.l.b16 %v10722
        %v10802 = vunpack.c.l.b16 %v10723
        %v10803 = vunpack.c.l.b16 %v10724
        %v10804 = vunpack.c.l.b16 %v10725
        %v10805 = vunpack.c.l.b16 %v10726
        %v10806 = vunpack.c.l.b16 %v10727
        %v10807 = vunpack.c.l.b16 %v10728
        %v10808 = vunpack.c.l.b16 %v10729
        %v10809 = vunpack.c.l.b16 %v10730
        %v10810 = vunpack.c.l.b16 %v10731
        %v10811 = vunpack.c.l.b16 %v10732
        %v10812 = vunpack.c.l.b16 %v10733
        %v10813 = vunpack.c.l.b16 %v10734
        %v10814 = vunpack.c.l.b16 %v10735
        %v10815 = vunpack.c.l.b16 %v10736
        %v10816 = vpack.c.b16 %v10781, %v10780
        %v10817 = vpack.c.b16 %v10783, %v10782
        %v10818 = vpack.c.b16 %v10785, %v10784
        %v10819 = vpack.c.b16 %v10787, %v10786
        %v10820 = vpack.c.b16 %v10789, %v10788
        %v10821 = vpack.c.b16 %v10791, %v10790
        %v10822 = vpack.c.b16 %v10793, %v10792
        %v10823 = vpack.c.b16 %v10795, %v10794
        %v10824 = vpack.c.b16 %v10797, %v10796
        %v10825 = vpack.c.b16 %v10799, %v10798
        %v10826 = vpack.c.b16 %v10801, %v10800
        %v10827 = vpack.c.b16 %v10803, %v10802
        %v10828 = vpack.c.b16 %v10805, %v10804
        %v10829 = vpack.c.b16 %v10807, %v10806
        %v10830 = vpack.c.b16 %v10809, %v10808
        %v10831 = vpack.c.b16 %v10811, %v10810
        %v10832 = vpack.c.b16 %v10813, %v10812
        %v10833 = vpack.c.b16 %v10815, %v10814
        %v10853 = vsel %vm3593, %v10655, 0
        %v10856 = vsel %vm3593, %v10658, 0
        %v10859 = vsel %vm3593, %v10661, 0
        %v10862 = vsel %vm3593, %v10664, 0
        %v10865 = vsel %vm3593, %v10667, 0
        %v10868 = vsel %vm3593, %v10670, 0
        %v10871 = vsel %vm3593, %v10673, 0
        %v10874 = vsel %vm3593, %v10676, 0
        %v10877 = vsel %vm3593, %v10679, 0
        %v10880 = vsel %vm3593, %v10682, 0
        %v10883 = vsel %vm3593, %v10685, 0
        %v10886 = vsel %vm3593, %v10688, 0
        %v10889 = vsel %vm3593, %v10691, 0
        %v10892 = vsel %vm3593, %v10694, 0
        %v10895 = vsel %vm3593, %v10697, 0
        %v10898 = vsel %vm3593, %v10700, 0
        %10900 = vmatprep.subr.bf16.mxu0 0
        %10901 = vmatpush1.bf16.msra.mxu0 %v10816
        %10902 = vmatprep.subr.bf16.mxu0 0
        %10903 = vmatpush1.bf16.msra.mxu0 %v10817
        %10904 = vmatprep.subr.bf16.mxu0 0
        %10905 = vmatpush1.bf16.msra.mxu0 %v10818
        %10906 = vmatprep.subr.bf16.mxu0 0
        %10907 = vmatpush1.bf16.msra.mxu0 %v10819
        %10908 = vmatprep.subr.bf16.mxu0 0
        %10909 = vmatpush1.bf16.msra.mxu0 %v10820
        %10910 = vmatprep.subr.bf16.mxu0 0
        %10911 = vmatpush1.bf16.msra.mxu0 %v10821
        %10912 = vmatprep.subr.bf16.mxu0 0
        %10913 = vmatpush1.bf16.msra.mxu0 %v10822
        %10914 = vmatprep.subr.bf16.mxu0 0
        %10915 = vmatpush1.bf16.msra.mxu0 %v10823
        %10916 = vmatprep.subr.bf16.mxu0 0
        %10917 = vmatpush1.bf16.msra.mxu0 %v10824
        %10918 = vmatprep.subr.bf16.mxu0 0
        %10919 = vmatpush1.bf16.msra.mxu0 %v10825
        %10920 = vmatprep.subr.bf16.mxu0 0
        %10921 = vmatpush1.bf16.msra.mxu0 %v10826
        %10922 = vmatprep.subr.bf16.mxu0 0
        %10923 = vmatpush1.bf16.msra.mxu0 %v10827
        %10924 = vmatprep.subr.bf16.mxu0 0
        %10925 = vmatpush1.bf16.msra.mxu0 %v10828
        %10926 = vmatprep.subr.bf16.mxu0 0
        %10927 = vmatpush1.bf16.msra.mxu0 %v10829
        %10928 = vmatprep.subr.bf16.mxu0 0
        %10929 = vmatpush1.bf16.msra.mxu0 %v10830
        %10930 = vmatprep.subr.bf16.mxu0 0
        %10931 = vmatpush1.bf16.msra.mxu0 %v10831
        %10932 = vmatprep.mubr.bf16.mxu0 %v10654
        %10933 = vmatmul.mubr.bf16.gmra.mrb[0].mxu0 %v10653
        %v10934 = vpop.f32.mrb[0].mxu0
        %v10935 = vadd.f32 %v10742, %v10934
        %v10936 = vpop.f32.mrb[0].mxu0
        %v10937 = vpop.f32.mrb[0].mxu0
        %v10938 = vadd.f32 %v10742, %v10937
        %v10939 = vpop.f32.mrb[0].mxu0
        %10940 = vmatprep.mubr.bf16.mxu0 %v10657
        %10941 = vmatmul.mubr.bf16.gmra.mrb[0].mxu0 %v10656
        %v10942 = vpop.f32.mrb[0].mxu0
        %v10943 = vadd.f32 %v10742, %v10942
        %v10944 = vpop.f32.mrb[0].mxu0
        %v10945 = vpop.f32.mrb[0].mxu0
        %v10946 = vadd.f32 %v10742, %v10945
        %v10947 = vpop.f32.mrb[0].mxu0
        %10948 = vmatprep.mubr.bf16.mxu0 %v10660
        %10949 = vmatmul.mubr.bf16.gmra.mrb[0].mxu0 %v10659
        %v10950 = vpop.f32.mrb[0].mxu0
        %v10951 = vadd.f32 %v10742, %v10950
        %v10952 = vpop.f32.mrb[0].mxu0
        %v10953 = vpop.f32.mrb[0].mxu0
        %v10954 = vadd.f32 %v10742, %v10953
        %v10955 = vpop.f32.mrb[0].mxu0
        %10956 = vmatprep.mubr.bf16.mxu0 %v10663
        %10957 = vmatmul.mubr.bf16.gmra.mrb[0].mxu0 %v10662
        %v10958 = vpop.f32.mrb[0].mxu0
        %v10959 = vadd.f32 %v10742, %v10958
        %v10960 = vpop.f32.mrb[0].mxu0
        %v10961 = vpop.f32.mrb[0].mxu0
        %v10962 = vadd.f32 %v10742, %v10961
        %v10963 = vpop.f32.mrb[0].mxu0
        %10964 = vmatprep.mubr.bf16.mxu0 %v10666
        %10965 = vmatmul.mubr.bf16.gmra.mrb[0].mxu0 %v10665
        %v10966 = vpop.f32.mrb[0].mxu0
        %v10967 = vadd.f32 %v10742, %v10966
        %v10968 = vpop.f32.mrb[0].mxu0
        %v10969 = vpop.f32.mrb[0].mxu0
        %v10970 = vadd.f32 %v10742, %v10969
        %v10971 = vpop.f32.mrb[0].mxu0
        %10972 = vmatprep.mubr.bf16.mxu0 %v10669
        %10973 = vmatmul.mubr.bf16.gmra.mrb[0].mxu0 %v10668
        %v10974 = vpop.f32.mrb[0].mxu0
        %v10975 = vadd.f32 %v10742, %v10974
        %v10976 = vpop.f32.mrb[0].mxu0
        %v10977 = vpop.f32.mrb[0].mxu0
        %v10978 = vadd.f32 %v10742, %v10977
        %v10979 = vpop.f32.mrb[0].mxu0
        %10980 = vmatprep.mubr.bf16.mxu0 %v10672
        %10981 = vmatmul.mubr.bf16.gmra.mrb[0].mxu0 %v10671
        %v10982 = vpop.f32.mrb[0].mxu0
        %v10983 = vadd.f32 %v10742, %v10982
        %v10984 = vpop.f32.mrb[0].mxu0
        %v10985 = vpop.f32.mrb[0].mxu0
        %v10986 = vadd.f32 %v10742, %v10985
        %v10987 = vpop.f32.mrb[0].mxu0
        %10988 = vmatprep.mubr.bf16.mxu0 %v10675
        %10989 = vmatmul.mubr.bf16.gmra.mrb[0].mxu0 %v10674
        %v10990 = vpop.f32.mrb[0].mxu0
        %v10991 = vadd.f32 %v10742, %v10990
        %v10992 = vpop.f32.mrb[0].mxu0
        %v10993 = vpop.f32.mrb[0].mxu0
        %v10994 = vadd.f32 %v10742, %v10993
        %v10995 = vpop.f32.mrb[0].mxu0
        %10996 = vmatprep.mubr.bf16.mxu0 %v10678
        %10997 = vmatmul.mubr.bf16.gmra.mrb[0].mxu0 %v10677
        %v10998 = vpop.f32.mrb[0].mxu0
        %v10999 = vadd.f32 %v10742, %v10998
        %v11000 = vpop.f32.mrb[0].mxu0
        %v11001 = vpop.f32.mrb[0].mxu0
        %v11002 = vadd.f32 %v10742, %v11001
        %v11003 = vpop.f32.mrb[0].mxu0
        %11004 = vmatprep.mubr.bf16.mxu0 %v10681
        %11005 = vmatmul.mubr.bf16.gmra.mrb[0].mxu0 %v10680
        %v11006 = vpop.f32.mrb[0].mxu0
        %v11007 = vadd.f32 %v10742, %v11006
        %v11008 = vpop.f32.mrb[0].mxu0
        %v11009 = vpop.f32.mrb[0].mxu0
        %v11010 = vadd.f32 %v10742, %v11009
        %v11011 = vpop.f32.mrb[0].mxu0
        %11012 = vmatprep.mubr.bf16.mxu0 %v10684
        %11013 = vmatmul.mubr.bf16.gmra.mrb[0].mxu0 %v10683
        %v11014 = vpop.f32.mrb[0].mxu0
        %v11015 = vadd.f32 %v10742, %v11014
        %v11016 = vpop.f32.mrb[0].mxu0
        %v11017 = vpop.f32.mrb[0].mxu0
        %v11018 = vadd.f32 %v10742, %v11017
        %v11019 = vpop.f32.mrb[0].mxu0
        %11020 = vmatprep.mubr.bf16.mxu0 %v10687
        %11021 = vmatmul.mubr.bf16.gmra.mrb[0].mxu0 %v10686
        %v11022 = vpop.f32.mrb[0].mxu0
        %v11023 = vadd.f32 %v10742, %v11022
        %v11024 = vpop.f32.mrb[0].mxu0
        %v11025 = vpop.f32.mrb[0].mxu0
        %v11026 = vadd.f32 %v10742, %v11025
        %v11027 = vpop.f32.mrb[0].mxu0
        %11028 = vmatprep.mubr.bf16.mxu0 %v10690
        %11029 = vmatmul.mubr.bf16.gmra.mrb[0].mxu0 %v10689
        %v11030 = vpop.f32.mrb[0].mxu0
        %v11031 = vadd.f32 %v10742, %v11030
        %v11032 = vpop.f32.mrb[0].mxu0
        %v11033 = vpop.f32.mrb[0].mxu0
        %v11034 = vadd.f32 %v10742, %v11033
        %v11035 = vpop.f32.mrb[0].mxu0
        %11036 = vmatprep.mubr.bf16.mxu0 %v10693
        %11037 = vmatmul.mubr.bf16.gmra.mrb[0].mxu0 %v10692
        %v11038 = vpop.f32.mrb[0].mxu0
        %v11039 = vadd.f32 %v10742, %v11038
        %v11040 = vpop.f32.mrb[0].mxu0
        %v11041 = vpop.f32.mrb[0].mxu0
        %v11042 = vadd.f32 %v10742, %v11041
        %v11043 = vpop.f32.mrb[0].mxu0
        %11044 = vmatprep.mubr.bf16.mxu0 %v10696
        %11045 = vmatmul.mubr.bf16.gmra.mrb[0].mxu0 %v10695
        %v11046 = vpop.f32.mrb[0].mxu0
        %v11047 = vadd.f32 %v10742, %v11046
        %v11048 = vpop.f32.mrb[0].mxu0
        %v11049 = vpop.f32.mrb[0].mxu0
        %v11050 = vadd.f32 %v10742, %v11049
        %v11051 = vpop.f32.mrb[0].mxu0
        %11052 = vmatprep.mubr.bf16.mxu0 %v10699
        %11053 = vmatmul.mubr.bf16.gmra.mrb[0].mxu0 %v10698
        %v11054 = vpop.f32.mrb[0].mxu0
        %v11055 = vadd.f32 %v10742, %v11054
        %v11056 = vpop.f32.mrb[0].mxu0
        %v11057 = vpop.f32.mrb[0].mxu0
        %v11058 = vadd.f32 %v10742, %v11057
        %v11059 = vpop.f32.mrb[0].mxu0
        %11060 = vdwg.mxu0
        %11061 = vmatprep.subr.bf16.mxu0 0
        %11062 = vmatpush1.bf16.msra.mxu0 %v10832
        %11063 = vmatprep.subr.bf16.mxu0 0
        %11064 = vmatpush1.bf16.msra.mxu0 %v10833
        %11065 = vmatprep.subr.bf16.mxu0 0
        %11066 = vmatpush1.bf16.msra.mxu0 0
        %11067 = vmatprep.subr.bf16.mxu0 0
        %11068 = vmatpush1.bf16.msra.mxu0 0
        %11069 = vmatprep.subr.bf16.mxu0 0
        %11070 = vmatpush1.bf16.msra.mxu0 0
        %11071 = vmatprep.subr.bf16.mxu0 0
        %11072 = vmatpush1.bf16.msra.mxu0 0
        %11073 = vmatprep.subr.bf16.mxu0 0
        %11074 = vmatpush1.bf16.msra.mxu0 0
        %11075 = vmatprep.subr.bf16.mxu0 0
        %11076 = vmatpush1.bf16.msra.mxu0 0
        %11077 = vmatprep.subr.bf16.mxu0 0
        %11078 = vmatpush1.bf16.msra.mxu0 0
        %11079 = vmatprep.subr.bf16.mxu0 0
        %11080 = vmatpush1.bf16.msra.mxu0 0
        %11081 = vmatprep.subr.bf16.mxu0 0
        %11082 = vmatpush1.bf16.msra.mxu0 0
        %11083 = vmatprep.subr.bf16.mxu0 0
        %11084 = vmatpush1.bf16.msra.mxu0 0
        %11085 = vmatprep.subr.bf16.mxu0 0
        %11086 = vmatpush1.bf16.msra.mxu0 0
        %11087 = vmatprep.subr.bf16.mxu0 0
        %11088 = vmatpush1.bf16.msra.mxu0 0
        %11089 = vmatprep.subr.bf16.mxu0 0
        %11090 = vmatpush1.bf16.msra.mxu0 0
        %11091 = vmatprep.subr.bf16.mxu0 0
        %11092 = vmatpush1.bf16.msra.mxu0 0
        %11093 = vmatprep.mubr.bf16.mxu0 0
        %11094 = vmatmul.mubr.bf16.gmra.mrb[0].mxu0 %v10853
        %v11095 = vpop.f32.mrb[0].mxu0
        %v11096 = vadd.f32 %v10935, %v11095
        %v11097 = vpop.f32.mrb[0].mxu0
        %v11098 = vpop.f32.mrb[0].mxu0
        %v11099 = vadd.f32 %v10938, %v11098
        %v11100 = vpop.f32.mrb[0].mxu0
        %11101 = vmatprep.mubr.bf16.mxu0 0
        %11102 = vmatmul.mubr.bf16.gmra.mrb[0].mxu0 %v10856
        %v11103 = vpop.f32.mrb[0].mxu0
        %v11104 = vadd.f32 %v10943, %v11103
        %v11105 = vpop.f32.mrb[0].mxu0
        %v11106 = vpop.f32.mrb[0].mxu0
        %v11107 = vadd.f32 %v10946, %v11106
        %v11108 = vpop.f32.mrb[0].mxu0
        %11109 = vmatprep.mubr.bf16.mxu0 0
        %11110 = vmatmul.mubr.bf16.gmra.mrb[0].mxu0 %v10859
        %v11111 = vpop.f32.mrb[0].mxu0
        %v11112 = vadd.f32 %v10951, %v11111
        %v11113 = vpop.f32.mrb[0].mxu0
        %v11114 = vpop.f32.mrb[0].mxu0
        %v11115 = vadd.f32 %v10954, %v11114
        %v11116 = vpop.f32.mrb[0].mxu0
        %11117 = vmatprep.mubr.bf16.mxu0 0
        %11118 = vmatmul.mubr.bf16.gmra.mrb[0].mxu0 %v10862
        %v11119 = vpop.f32.mrb[0].mxu0
        %v11120 = vadd.f32 %v10959, %v11119
        %v11121 = vpop.f32.mrb[0].mxu0
        %v11122 = vpop.f32.mrb[0].mxu0
        %v11123 = vadd.f32 %v10962, %v11122
        %v11124 = vpop.f32.mrb[0].mxu0
        %11125 = vmatprep.mubr.bf16.mxu0 0
        %11126 = vmatmul.mubr.bf16.gmra.mrb[0].mxu0 %v10865
        %v11127 = vpop.f32.mrb[0].mxu0
        %v11128 = vadd.f32 %v10967, %v11127
        %v11129 = vpop.f32.mrb[0].mxu0
        %v11130 = vpop.f32.mrb[0].mxu0
        %v11131 = vadd.f32 %v10970, %v11130
        %v11132 = vpop.f32.mrb[0].mxu0
        %11133 = vmatprep.mubr.bf16.mxu0 0
        %11134 = vmatmul.mubr.bf16.gmra.mrb[0].mxu0 %v10868
        %v11135 = vpop.f32.mrb[0].mxu0
        %v11136 = vadd.f32 %v10975, %v11135
        %v11137 = vpop.f32.mrb[0].mxu0
        %v11138 = vpop.f32.mrb[0].mxu0
        %v11139 = vadd.f32 %v10978, %v11138
        %v11140 = vpop.f32.mrb[0].mxu0
        %11141 = vmatprep.mubr.bf16.mxu0 0
        %11142 = vmatmul.mubr.bf16.gmra.mrb[0].mxu0 %v10871
        %v11143 = vpop.f32.mrb[0].mxu0
        %v11144 = vadd.f32 %v10983, %v11143
        %v11145 = vpop.f32.mrb[0].mxu0
        %v11146 = vpop.f32.mrb[0].mxu0
        %v11147 = vadd.f32 %v10986, %v11146
        %v11148 = vpop.f32.mrb[0].mxu0
        %11149 = vmatprep.mubr.bf16.mxu0 0
        %11150 = vmatmul.mubr.bf16.gmra.mrb[0].mxu0 %v10874
        %v11151 = vpop.f32.mrb[0].mxu0
        %v11152 = vadd.f32 %v10991, %v11151
        %v11153 = vpop.f32.mrb[0].mxu0
        %v11154 = vpop.f32.mrb[0].mxu0
        %v11155 = vadd.f32 %v10994, %v11154
        %v11156 = vpop.f32.mrb[0].mxu0
        %11157 = vmatprep.mubr.bf16.mxu0 0
        %11158 = vmatmul.mubr.bf16.gmra.mrb[0].mxu0 %v10877
        %v11159 = vpop.f32.mrb[0].mxu0
        %v11160 = vadd.f32 %v10999, %v11159
        %v11161 = vpop.f32.mrb[0].mxu0
        %v11162 = vpop.f32.mrb[0].mxu0
        %v11163 = vadd.f32 %v11002, %v11162
        %v11164 = vpop.f32.mrb[0].mxu0
        %11165 = vmatprep.mubr.bf16.mxu0 0
        %11166 = vmatmul.mubr.bf16.gmra.mrb[0].mxu0 %v10880
        %v11167 = vpop.f32.mrb[0].mxu0
        %v11168 = vadd.f32 %v11007, %v11167
        %v11169 = vpop.f32.mrb[0].mxu0
        %v11170 = vpop.f32.mrb[0].mxu0
        %v11171 = vadd.f32 %v11010, %v11170
        %v11172 = vpop.f32.mrb[0].mxu0
        %11173 = vmatprep.mubr.bf16.mxu0 0
        %11174 = vmatmul.mubr.bf16.gmra.mrb[0].mxu0 %v10883
        %v11175 = vpop.f32.mrb[0].mxu0
        %v11176 = vadd.f32 %v11015, %v11175
        %v11177 = vpop.f32.mrb[0].mxu0
        %v11178 = vpop.f32.mrb[0].mxu0
        %v11179 = vadd.f32 %v11018, %v11178
        %v11180 = vpop.f32.mrb[0].mxu0
        %11181 = vmatprep.mubr.bf16.mxu0 0
        %11182 = vmatmul.mubr.bf16.gmra.mrb[0].mxu0 %v10886
        %v11183 = vpop.f32.mrb[0].mxu0
        %v11184 = vadd.f32 %v11023, %v11183
        %v11185 = vpop.f32.mrb[0].mxu0
        %v11186 = vpop.f32.mrb[0].mxu0
        %v11187 = vadd.f32 %v11026, %v11186
        %v11188 = vpop.f32.mrb[0].mxu0
        %11189 = vmatprep.mubr.bf16.mxu0 0
        %11190 = vmatmul.mubr.bf16.gmra.mrb[0].mxu0 %v10889
        %v11191 = vpop.f32.mrb[0].mxu0
        %v11192 = vadd.f32 %v11031, %v11191
        %v11193 = vpop.f32.mrb[0].mxu0
        %v11194 = vpop.f32.mrb[0].mxu0
        %v11195 = vadd.f32 %v11034, %v11194
        %v11196 = vpop.f32.mrb[0].mxu0
        %11197 = vmatprep.mubr.bf16.mxu0 0
        %11198 = vmatmul.mubr.bf16.gmra.mrb[0].mxu0 %v10892
        %v11199 = vpop.f32.mrb[0].mxu0
        %v11200 = vadd.f32 %v11039, %v11199
        %v11201 = vpop.f32.mrb[0].mxu0
        %v11202 = vpop.f32.mrb[0].mxu0
        %v11203 = vadd.f32 %v11042, %v11202
        %v11204 = vpop.f32.mrb[0].mxu0
        %11205 = vmatprep.mubr.bf16.mxu0 0
        %11206 = vmatmul.mubr.bf16.gmra.mrb[0].mxu0 %v10895
        %v11207 = vpop.f32.mrb[0].mxu0
        %v11208 = vadd.f32 %v11047, %v11207
        %v11209 = vpop.f32.mrb[0].mxu0
        %v11210 = vpop.f32.mrb[0].mxu0
        %v11211 = vadd.f32 %v11050, %v11210
        %v11212 = vpop.f32.mrb[0].mxu0
        %11213 = vmatprep.mubr.bf16.mxu0 0
        %11214 = vmatmul.mubr.bf16.gmra.mrb[0].mxu0 %v10898
        %v11215 = vpop.f32.mrb[0].mxu0
        %v11216 = vadd.f32 %v11055, %v11215
        %v11217 = vpop.f32.mrb[0].mxu0
        %v11218 = vpop.f32.mrb[0].mxu0
        %v11219 = vadd.f32 %v11058, %v11218
        %v11220 = vpop.f32.mrb[0].mxu0
        %11221 = vdwg.mxu0
        %v11222 = vmax.f32 %v11096, 0.0
        %v11223 = vmax.f32 %v11099, 0.0
        %v11224 = vmax.f32 %v11104, 0.0
        %v11225 = vmax.f32 %v11107, 0.0
        %v11226 = vmax.f32 %v11112, 0.0
        %v11227 = vmax.f32 %v11115, 0.0
        %v11228 = vmax.f32 %v11120, 0.0
        %v11229 = vmax.f32 %v11123, 0.0
        %v11230 = vmax.f32 %v11128, 0.0
        %v11231 = vmax.f32 %v11131, 0.0
        %v11232 = vmax.f32 %v11136, 0.0
        %v11233 = vmax.f32 %v11139, 0.0
        %v11234 = vmax.f32 %v11144, 0.0
        %v11235 = vmax.f32 %v11147, 0.0
        %v11236 = vmax.f32 %v11152, 0.0
        %v11237 = vmax.f32 %v11155, 0.0
        %v11238 = vmax.f32 %v11160, 0.0
        %v11239 = vmax.f32 %v11163, 0.0
        %v11240 = vmax.f32 %v11168, 0.0
        %v11241 = vmax.f32 %v11171, 0.0
        %v11242 = vmax.f32 %v11176, 0.0
        %v11243 = vmax.f32 %v11179, 0.0
        %v11244 = vmax.f32 %v11184, 0.0
        %v11245 = vmax.f32 %v11187, 0.0
        %v11246 = vmax.f32 %v11192, 0.0
        %v11247 = vmax.f32 %v11195, 0.0
        %v11248 = vmax.f32 %v11200, 0.0
        %v11249 = vmax.f32 %v11203, 0.0
        %v11250 = vmax.f32 %v11208, 0.0
        %v11251 = vmax.f32 %v11211, 0.0
        %v11252 = vmax.f32 %v11216, 0.0
        %v11253 = vmax.f32 %v11219, 0.0
        %11254 = vst.msk [vmem:[%s271] sm:$0xff] %vm3593, %v11222
        %11255 = vst.msk [vmem:[%s271 + $0x8] sm:$0xff] %vm3593, %v11223
        %11256 = vst.msk [vmem:[%s271 + $0x10] sm:$0xff] %vm3593, %v11224
        %11257 = vst.msk [vmem:[%s271 + $0x18] sm:$0xff] %vm3593, %v11225
        %11258 = vst.msk [vmem:[%s271 + $0x20] sm:$0xff] %vm3593, %v11226
        %11259 = vst.msk [vmem:[%s271 + $0x28] sm:$0xff] %vm3593, %v11227
        %11260 = vst.msk [vmem:[%s271 + $0x30] sm:$0xff] %vm3593, %v11228
        %11261 = vst.msk [vmem:[%s271 + $0x38] sm:$0xff] %vm3593, %v11229
        %11262 = vst.msk [vmem:[%s271 + $0x40] sm:$0xff] %vm3593, %v11230
        %11263 = vst.msk [vmem:[%s271 + $0x48] sm:$0xff] %vm3593, %v11231
        %11264 = vst.msk [vmem:[%s271 + $0x50] sm:$0xff] %vm3593, %v11232
        %11265 = vst.msk [vmem:[%s271 + $0x58] sm:$0xff] %vm3593, %v11233
        %11266 = vst.msk [vmem:[%s271 + $0x60] sm:$0xff] %vm3593, %v11234
        %11267 = vst.msk [vmem:[%s271 + $0x68] sm:$0xff] %vm3593, %v11235
        %11268 = vst.msk [vmem:[%s271 + $0x70] sm:$0xff] %vm3593, %v11236
        %11269 = vst.msk [vmem:[%s271 + $0x78] sm:$0xff] %vm3593, %v11237
        %11270 = vst.msk [vmem:[%s271 + $0x80] sm:$0xff] %vm3593, %v11238
        %11271 = vst.msk [vmem:[%s271 + $0x88] sm:$0xff] %vm3593, %v11239
        %11272 = vst.msk [vmem:[%s271 + $0x90] sm:$0xff] %vm3593, %v11240
        %11273 = vst.msk [vmem:[%s271 + $0x98] sm:$0xff] %vm3593, %v11241
        %11274 = vst.msk [vmem:[%s271 + $0xa0] sm:$0xff] %vm3593, %v11242
        %11275 = vst.msk [vmem:[%s271 + $0xa8] sm:$0xff] %vm3593, %v11243
        %11276 = vst.msk [vmem:[%s271 + $0xb0] sm:$0xff] %vm3593, %v11244
        %11277 = vst.msk [vmem:[%s271 + $0xb8] sm:$0xff] %vm3593, %v11245
        %11278 = vst.msk [vmem:[%s271 + $0xc0] sm:$0xff] %vm3593, %v11246
        %11279 = vst.msk [vmem:[%s271 + $0xc8] sm:$0xff] %vm3593, %v11247
        %11280 = vst.msk [vmem:[%s271 + $0xd0] sm:$0xff] %vm3593, %v11248
        %11281 = vst.msk [vmem:[%s271 + $0xd8] sm:$0xff] %vm3593, %v11249
        %11282 = vst.msk [vmem:[%s271 + $0xe0] sm:$0xff] %vm3593, %v11250
        %11283 = vst.msk [vmem:[%s271 + $0xe8] sm:$0xff] %vm3593, %v11251
        %11284 = vst.msk [vmem:[%s271 + $0xf0] sm:$0xff] %vm3593, %v11252
        %11285 = vst.msk [vmem:[%s271 + $0xf8] sm:$0xff] %vm3593, %v11253
        %s11286 = sand.u32 %s181, 1
        %s11287 = scalar_lea.sflag [#allocation6], %s11286
        %s11288 = sand.u32 %s181, 1
        %s11289 = smul.addr %s11288, 256
        %s11290 = scalar_lea.vmem [#allocation5], %s11289
        // Predicated region
        $region49: #{tpu_custom_call.1} parent=47 // pred_check
          %p11291 = pneg %p191
        $region50: #{tpu_custom_call.1} parent=47 // pred_check_branch
          %11293 = sbr.rel (%p11291) target = $region52
        $region51: #{tpu_custom_call.1} parent=47 // pred_region
          %s11295 = ssub.s32 4096, 4096
          %11296 = vsyncadd %s11287, %s11295
          %s11297 = smul.addr %s21, 32
          %s11298 = smul.addr %s11297, 128
          %s11299 = scalar_lea.hbm %s7, %s11298
          %s11300 = sshll.u32 %s11290, 4
          %s11301 = int_to_ptr.vmem [resolvable:$true] %s11300
          %11306 = dma.vmem_to_hbm [thread:$0]  %s11301, 4096, %s11299, %s11287, 128, 128, 8
        $region52: #{tpu_custom_call.1} parent=47 // pred_fallthru
          _
      $region48: #{tpu_custom_call.1} parent=5 // pred_fallthru
        _
      %p11307 = scmp.le.s32.totalorder 2, %s16
      // Predicated region
      $region53: #{tpu_custom_call.1} parent=5 // pred_check
        %p11308 = pneg %p11307
      $region54: #{tpu_custom_call.1} parent=5 // pred_check_branch
        %11310 = sbr.rel (%p11308) target = $region56
      $region55: #{tpu_custom_call.1} parent=5 // pred_region
        %s11311 = ssub.s32 %s16, 2
        // Predicated region
        $region57: #{tpu_custom_call.1} parent=55 // pred_check
          %p11312 = pneg %p197
        $region58: #{tpu_custom_call.1} parent=55 // pred_check_branch
          %11314 = sbr.rel (%p11312) target = $region60
        $region59: #{tpu_custom_call.1} parent=55 // pred_region
          %s11315 = sand.u32 %s182, 1
          %s11316 = scalar_lea.sflag [#allocation6], %s11315
          %s11317 = sand.u32 %s182, 1
          %s11318 = smul.addr %s11317, 256
          %s11319 = scalar_lea.vmem [#allocation5], %s11318
          %11320 = dma.done %s11316, 4096
        $region60: #{tpu_custom_call.1} parent=55 // pred_fallthru
          _
      $region56: #{tpu_custom_call.1} parent=5 // pred_fallthru
        _
    $region6: #{tpu_custom_call.1} parent=1 // loop_footer
      %s20 = sadd.s32 1, %s16
    $region7: #{tpu_custom_call.1} parent=1 // loop_footer_branch
      %15 = sbr.rel target = $region3
    $region8: #{tpu_custom_call.1} parent=1 // loop_exit
      _
    %11321 = vsyncpa [#allocation6], 1
    %s11322 = scalar_lea.sflag [#allocation6], 1
    %11323 = vsyncpa %s11322, 1

</llo_original>
